<compile_context>
chip_gen: v5e
topology: v5e:2x2
jax: 0.10.0
libtpu: 0.0.40
codegen_flags: <defaults>
</compile_context>

<pallas_src>
import jax
import jax.numpy as jnp
import numpy as np
from jax.experimental import pallas as pl
from jax.experimental.pallas import tpu as pltpu

L1_CHANNELS = 8
L2_CHANNELS = 16

# MXU contraction-width cap for the stacked-K conv matmuls.
# 256 = single pass on v6e/v7x; set to 128 on TPU v5e (128-wide MXU K).
MXU_MAX_K = 256

GUARD = 128  # 128-lane zero guard for the shifted conv / pool window reads


def _leaky_relu(v):
    return jnp.where(v >= 0, v, 0.01 * v)  # F.leaky_relu default slope


# ----------------------------------------------------------------------------
# Host-side constants (per IMAGE, batch independent).
# In-kernel activation layout: (C, H*W), lane index = y*W + x.
# ----------------------------------------------------------------------------
def _conv_masks(height, width, k):
    """(k*k, H*W) 0/1 tap-validity masks (zero padding at image borders)."""
    p = k // 2
    m = height * width
    idx = np.arange(m)
    xx = idx % width
    yy = idx // width
    masks = np.zeros((k * k, m), np.float32)
    for dy in range(k):
        for dx in range(k):
            ok = ((yy + dy - p >= 0) & (yy + dy - p < height)
                  & (xx + dx - p >= 0) & (xx + dx - p < width))
            masks[dy * k + dx] = ok.astype(np.float32)
    return jnp.asarray(masks)


def _pool_select(height, width):
    """(H*W, (H/2)*(W/2)) bf16 0/1 matrix picking each 2x2 window top-left."""
    ho, wo = height // 2, width // 2
    sel = np.zeros((height * width, ho * wo), np.float32)
    for oy in range(ho):
        for ox in range(wo):
            sel[2 * oy * width + 2 * ox, oy * wo + ox] = 1.0
    return jnp.asarray(sel, dtype=jnp.bfloat16)


def _up_select(height, width):
    """(h*w, 2h*2w) bf16 0/1 matrix: nearest-neighbour 2x upsample as matmul."""
    ho, wo = 2 * height, 2 * width
    sel = np.zeros((height * width, ho * wo), np.float32)
    for oy in range(ho):
        for ox in range(wo):
            sel[(oy // 2) * width + (ox // 2), oy * wo + ox] = 1.0
    return jnp.asarray(sel, dtype=jnp.bfloat16)


def _flatten_consts(channels, hw):
    """Constants turning the channel-major NCHW flatten/unflatten into
    tiny matmul + mask ops (no per-(b,c) sub-vreg copies)."""
    tile = np.tile(np.eye(hw, dtype=np.float32), (1, channels))     # (hw, nz)
    qch = np.repeat(np.eye(channels, dtype=np.float32), hw, axis=1)  # (C, nz)
    return (jnp.asarray(tile, dtype=jnp.bfloat16),      # flat_tile   (hw, nz)
            jnp.asarray(tile.T, dtype=jnp.bfloat16),    # unflat_tile (nz, hw)
            jnp.asarray(qch))                           # chan_mask f32 (C, nz)


def build_constants(height, width):
    assert height % 4 == 0 and width % 4 == 0, "spatial dims must be mult. of 4"
    hq = (height // 4) * (width // 4)
    tile, tile_t, qch = _flatten_consts(L2_CHANNELS, hq)
    return {
        "mask5_full": _conv_masks(height, width, 5),
        "mask3_full": _conv_masks(height, width, 3),
        "mask3_half": _conv_masks(height // 2, width // 2, 3),
        "pool1_sel": _pool_select(height, width),
        "pool2_sel": _pool_select(height // 2, width // 2),
        "up5_sel": _up_select(height // 4, width // 4),
        "up6_sel": _up_select(height // 2, width // 2),
        "flat_tile": tile,
        "unflat_tile": tile_t,
        "chan_mask": qch,
    }


# ----------------------------------------------------------------------------
# Parameters (deterministic init, PyTorch-shaped) + one-time kernel repack.
# ----------------------------------------------------------------------------
def _conv_params(k1, k2, cout, cin, ks):
    bound = 1.0 / float(cin * ks * ks) ** 0.5
    w = jax.random.uniform(k1, (cout, cin, ks, ks), jnp.float32, -bound, bound)
    b = jax.random.uniform(k2, (cout,), jnp.float32, -bound, bound)
    return w, b


def _fc_params(k1, k2, out_u, in_u):
    bound = 1.0 / float(in_u) ** 0.5
    w = jax.random.uniform(k1, (out_u, in_u), jnp.float32, -bound, bound)
    b = jax.random.uniform(k2, (out_u,), jnp.float32, -bound, bound)
    return w, b


def init_params(key, img_channels, n_units, nz):
    ks = jax.random.split(key, 14)
    return {
        "conv1": _conv_params(ks[0], ks[1], L1_CHANNELS, img_channels, 5),
        "conv2": _conv_params(ks[2], ks[3], L2_CHANNELS, L1_CHANNELS, 3),
        "fc3": _fc_params(ks[4], ks[5], n_units, nz),
        "fc4": _fc_params(ks[6], ks[7], nz, n_units),
        "conv5": _conv_params(ks[8], ks[9], L2_CHANNELS, L2_CHANNELS, 3),
        "conv6": _conv_params(ks[10], ks[11], L1_CHANNELS, L2_CHANNELS, 3),
        "conv7": _conv_params(ks[12], ks[13], img_channels, L1_CHANNELS, 5),
    }


def prepare_params(params):
    """Repack once: conv (Cout,Cin,k,k) -> (Cout, k*k*Cin) bf16 (tap-major,
    cin-minor, matching the stacked operand rows); fc (out,in) -> (in,out)
    bf16; biases as 2-D f32 rows/columns."""
    prepped = {}
    for name in ("conv1", "conv2", "conv5", "conv6", "conv7"):
        w, b = params[name]
        cout, cin, k, k2 = w.shape
        assert k == k2 and k % 2 == 1, "only odd 'same' kernels supported"
        wp = jnp.transpose(w, (0, 2, 3, 1)).reshape(cout, k * k * cin)
        prepped[name] = (wp.astype(jnp.bfloat16),
                         b.reshape(cout, 1).astype(jnp.float32))
    for name in ("fc3", "fc4"):
        w, b = params[name]
        prepped[name] = (w.T.astype(jnp.bfloat16),
                         b.reshape(1, -1).astype(jnp.float32))
    return prepped


# ----------------------------------------------------------------------------
# Fused forward pass: one pallas_call, grid over the batch ("parallel").
# ----------------------------------------------------------------------------
@jax.jit
def autoencoder_forward(prepped, consts, x_nchw):
    batch, cimg, height, width = x_nchw.shape
    assert height % 4 == 0 and width % 4 == 0
    mf = height * width                       # pixels per image, full res
    mh = (height // 2) * (width // 2)         # half res
    hq = (height // 4) * (width // 4)         # quarter res
    nz, n_units = prepped["fc3"][0].shape
    assert nz == L2_CHANNELS * hq
    w_half = width // 2
    g = GUARD

    def kernel(x_ref,
               w1, b1, w2, b2, w3, b3, w4, b4, w5, b5, w6, b6, w7, b7,
               mk5, mk3f, mk3h, s1, s2, u5, u6, tfl, tuf, qch,
               out_ref,
               pad1, pad2, pad5, pad6, pad7, pp1, pp2,
               stk1, stk2, stk5, stk6, stk7):
        f32 = jnp.float32
        bf16 = jnp.bfloat16

        def conv(x, w_ref, b_ref, mk_ref, pad_ref, stk_ref, k, img_w, act):
            """'Same' conv as ONE stacked-K bf16 MXU matmul: all k*k
            border-masked shifted taps are packed along the contraction axis
            of a VMEM scratch (operand prep off the matmul chain)."""
            cin, m = x.shape
            cout, ktot = w_ref.shape
            kk = k * k
            p = k // 2
            assert ktot == kk * cin and mk_ref.shape == (kk, m)
            # zero the guards (uninitialised VMEM may hold NaNs), centre input
            pad_ref[:, :g] = jnp.zeros((cin, g), f32)
            pad_ref[:, g + m:] = jnp.zeros((cin, g), f32)
            pad_ref[:, g:g + m] = x
            # build the stacked (kk*cin, m) operand, one row block per tap
            for dy in range(k):
                for dx in range(k):
                    t = dy * k + dx
                    s0 = g + (dy - p) * img_w + (dx - p)
                    sl = pad_ref[:, s0:s0 + m]
                    if dy == p and dx == p:       # centre tap: all-ones mask
                        stk_ref[t * cin:(t + 1) * cin, :] = sl
                    else:
                        stk_ref[t * cin:(t + 1) * cin, :] = sl * mk_ref[t:t + 1, :]
            # single stacked matmul (chunked only if K exceeds MXU_MAX_K)
            taps_per_chunk = max(1, MXU_MAX_K // cin)
            acc = None
            for t0 in range(0, kk, taps_per_chunk):
                t1 = min(kk, t0 + taps_per_chunk)
                part = jnp.dot(w_ref[:, t0 * cin:t1 * cin],
                               stk_ref[t0 * cin:t1 * cin, :].astype(bf16),
                               preferred_element_type=f32)
                acc = part if acc is None else acc + part
            return act(acc + b_ref[...])

        def pool_members(x, pad_ref, img_w):
            """The 4 members of every 2x2 window (top-left anchored); lanes at
            odd positions hold junk that the selection matmul discards."""
            c, m = x.shape
            pad_ref[:, :m] = x
            pad_ref[:, m:] = jnp.zeros((c, pad_ref.shape[1] - m), f32)
            return (x, pad_ref[:, 1:1 + m],
                    pad_ref[:, img_w:img_w + m],
                    pad_ref[:, img_w + 1:img_w + 1 + m])

        x = x_ref[...]                                            # (Cimg, mf)

        # ------------------------------ encode ------------------------------
        a1 = conv(x, w1, b1, mk5, pad1, stk1, 5, width, _leaky_relu)      # conv1
        t00, t01, t10, t11 = pool_members(a1, pp1, width)                 # pool1
        wmax = jnp.maximum(jnp.maximum(t00, t01), jnp.maximum(t10, t11))
        p1 = jnp.dot(wmax.astype(bf16), s1[...], preferred_element_type=f32)

        a2 = conv(p1, w2, b2, mk3h, pad2, stk2, 3, w_half, _leaky_relu)   # conv2
        u00, u01, u10, u11 = pool_members(a2, pp2, w_half)                # pool2
        wavg = (u00 + u01 + u10 + u11) * 0.25
        p2 = jnp.dot(wavg.astype(bf16), s2[...], preferred_element_type=f32)

        # NCHW channel-major flatten: expand + channel mask + sublane reduce
        expand = jnp.dot(p2.astype(bf16), tfl[...], preferred_element_type=f32)
        flat = jnp.sum(expand * qch[...], axis=0, keepdims=True)          # (1,nz)

        y = jnp.tanh(jnp.dot(flat.astype(bf16), w3[...],
                             preferred_element_type=f32) + b3[...])        # fc3

        # ------------------------------ decode ------------------------------
        h4 = _leaky_relu(jnp.dot(y.astype(bf16), w4[...],
                                 preferred_element_type=f32) + b4[...])    # fc4
        dec = jnp.dot((qch[...] * h4).astype(bf16), tuf[...],
                      preferred_element_type=f32)                          # (C2,hq)

        u5x = jnp.dot(dec.astype(bf16), u5[...], preferred_element_type=f32)
        a5 = conv(u5x, w5, b5, mk3h, pad5, stk5, 3, w_half, _leaky_relu)   # conv5
        u6x = jnp.dot(a5.astype(bf16), u6[...], preferred_element_type=f32)
        a6 = conv(u6x, w6, b6, mk3f, pad6, stk6, 3, width, _leaky_relu)    # conv6
        a7 = conv(a6, w7, b7, mk5, pad7, stk7, 5, width, jax.nn.sigmoid)   # conv7

        out_ref[...] = a7.astype(out_ref.dtype)

    args = (
        x_nchw.reshape(batch, cimg, mf),
        *prepped["conv1"], *prepped["conv2"],
        *prepped["fc3"], *prepped["fc4"],
        *prepped["conv5"], *prepped["conv6"], *prepped["conv7"],
        consts["mask5_full"], consts["mask3_full"], consts["mask3_half"],
        consts["pool1_sel"], consts["pool2_sel"],
        consts["up5_sel"], consts["up6_sel"],
        consts["flat_tile"], consts["unflat_tile"], consts["chan_mask"],
    )

    def _resident(arr):            # whole array in VMEM, same block every step
        zeros = (0,) * arr.ndim
        return pl.BlockSpec(arr.shape, lambda b: zeros)

    in_specs = ([pl.BlockSpec((None, cimg, mf), lambda b: (b, 0, 0))]
                + [_resident(a) for a in args[1:]])
    out_specs = pl.BlockSpec((None, cimg, mf), lambda b: (b, 0, 0))

    def mm(m_, k_, n_):
        return 2 * m_ * k_ * n_
    flops_img = (mm(L1_CHANNELS, 25 * cimg, mf) + mm(L1_CHANNELS, mf, mh)
                 + mm(L2_CHANNELS, 9 * L1_CHANNELS, mh) + mm(L2_CHANNELS, mh, hq)
                 + mm(L2_CHANNELS, hq, nz) + mm(L2_CHANNELS, nz, hq)
                 + mm(1, nz, n_units) + mm(1, n_units, nz)
                 + mm(L2_CHANNELS, hq, mh) + mm(L2_CHANNELS, 9 * L2_CHANNELS, mh)
                 + mm(L2_CHANNELS, mh, mf) + mm(L1_CHANNELS, 9 * L2_CHANNELS, mf)
                 + mm(cimg, 25 * L1_CHANNELS, mf))
    bytes_accessed = int(sum(int(np.prod(a.shape)) * a.dtype.itemsize
                             for a in args) + batch * cimg * mf * 4)
    cost = pl.CostEstimate(flops=int(batch * flops_img),
                           transcendentals=int(batch * (cimg * mf + n_units)),
                           bytes_accessed=bytes_accessed)

    out = pl.pallas_call(
        kernel,
        out_shape=jax.ShapeDtypeStruct((batch, cimg, mf), jnp.float32),
        grid=(batch,),
        in_specs=in_specs,
        out_specs=out_specs,
        scratch_shapes=[
            pltpu.VMEM((cimg, mf + 2 * g), jnp.float32),           # pad conv1
            pltpu.VMEM((L1_CHANNELS, mh + 2 * g), jnp.float32),    # pad conv2
            pltpu.VMEM((L2_CHANNELS, mh + 2 * g), jnp.float32),    # pad conv5
            pltpu.VMEM((L2_CHANNELS, mf + 2 * g), jnp.float32),    # pad conv6
            pltpu.VMEM((L1_CHANNELS, mf + 2 * g), jnp.float32),    # pad conv7
            pltpu.VMEM((L1_CHANNELS, mf + g), jnp.float32),        # pool1 pad
            pltpu.VMEM((L2_CHANNELS, mh + g), jnp.float32),        # pool2 pad
            pltpu.VMEM((25 * cimg, mf), jnp.float32),              # stacked c1
            pltpu.VMEM((9 * L1_CHANNELS, mh), jnp.float32),        # stacked c2
            pltpu.VMEM((9 * L2_CHANNELS, mh), jnp.float32),        # stacked c5
            pltpu.VMEM((9 * L2_CHANNELS, mf), jnp.float32),        # stacked c6
            pltpu.VMEM((25 * L1_CHANNELS, mf), jnp.float32),       # stacked c7
        ],
        compiler_params=pltpu.CompilerParams(
            dimension_semantics=("parallel",),
            vmem_limit_bytes=32 * 1024 * 1024),
        cost_estimate=cost,
    )(*args)

    return out.reshape(batch, cimg, height, width)


# ----------------------------------------------------------------------------
# Pure-XLA reference (same assumed layer semantics) for a tolerance check.
# ----------------------------------------------------------------------------
def reference_forward(params, x):
    def conv2d(h, wb, act, k):
        w, b = wb
        p = k // 2
        y = jax.lax.conv_general_dilated(
            h, w, window_strides=(1, 1), padding=((p, p), (p, p)),
            dimension_numbers=("NCHW", "OIHW", "NCHW"))
        return act(y + b.reshape(1, -1, 1, 1))

    def maxpool(h):
        return jax.lax.reduce_window(h, -jnp.inf, jax.lax.max,
                                     (1, 1, 2, 2), (1, 1, 2, 2), "VALID")

    def avgpool(h):
        return jax.lax.reduce_window(h, 0.0, jax.lax.add,
                                     (1, 1, 2, 2), (1, 1, 2, 2), "VALID") * 0.25

    def up2(h):
        return jnp.repeat(jnp.repeat(h, 2, axis=2), 2, axis=3)

    batch = x.shape[0]
    h = conv2d(x, params["conv1"], _leaky_relu, 5)
    h = maxpool(h)
    h = conv2d(h, params["conv2"], _leaky_relu, 3)
    h = avgpool(h)
    flat = h.reshape(batch, -1)
    w3, b3 = params["fc3"]
    y = jnp.tanh(flat @ w3.T + b3)
    w4, b4 = params["fc4"]
    h = _leaky_relu(y @ w4.T + b4)
    h = h.reshape(batch, L2_CHANNELS, x.shape[2] // 4, x.shape[3] // 4)
    h = conv2d(up2(h), params["conv5"], _leaky_relu, 3)
    h = conv2d(up2(h), params["conv6"], _leaky_relu, 3)
    return conv2d(h, params["conv7"], jax.nn.sigmoid, 5)


if __name__ == "__main__":
    B, C, H, W = 2, 4, 16, 16
    n_units = 32
    nz = (H // 4) * (W // 4) * L2_CHANNELS

    key = jax.random.PRNGKey(0)
    kx, kp = jax.random.split(key)
    x = jax.random.uniform(kx, (B, C, H, W), dtype=jnp.float32)

    params = init_params(kp, C, n_units, nz)     # PyTorch-shaped params
    prepped = prepare_params(params)             # kernel-ready repack (once)
    consts = build_constants(H, W)               # per-image masks / selections

    out = autoencoder_forward(prepped, consts, x)
    jax.block_until_ready(out)
    assert out.shape == (B, C, H, W), out.shape
    assert bool(jnp.all(jnp.isfinite(out)))

    ref = reference_forward(params, x)
    err = float(jnp.max(jnp.abs(out - ref)))
    assert err < 5e-2, f"kernel vs XLA reference max|diff| = {err}"
    print("KERNEL_OK")
</pallas_src>

<mosaic_0001>
module attributes {stable_mosaic.version = 11 : i64} {
  func.func @kernel(%arg0: i32, %arg1: memref<1x4x256xf32, #tpu.memory_space<vmem>>, %arg2: memref<8x100xbf16, #tpu.memory_space<vmem>>, %arg3: memref<8x1xf32, #tpu.memory_space<vmem>>, %arg4: memref<16x72xbf16, #tpu.memory_space<vmem>>, %arg5: memref<16x1xf32, #tpu.memory_space<vmem>>, %arg6: memref<256x32xbf16, #tpu.memory_space<vmem>>, %arg7: memref<1x32xf32, #tpu.memory_space<vmem>>, %arg8: memref<32x256xbf16, #tpu.memory_space<vmem>>, %arg9: memref<1x256xf32, #tpu.memory_space<vmem>>, %arg10: memref<16x144xbf16, #tpu.memory_space<vmem>>, %arg11: memref<16x1xf32, #tpu.memory_space<vmem>>, %arg12: memref<8x144xbf16, #tpu.memory_space<vmem>>, %arg13: memref<8x1xf32, #tpu.memory_space<vmem>>, %arg14: memref<4x200xbf16, #tpu.memory_space<vmem>>, %arg15: memref<4x1xf32, #tpu.memory_space<vmem>>, %arg16: memref<25x256xf32, #tpu.memory_space<vmem>>, %arg17: memref<9x256xf32, #tpu.memory_space<vmem>>, %arg18: memref<9x64xf32, #tpu.memory_space<vmem>>, %arg19: memref<256x64xbf16, #tpu.memory_space<vmem>>, %arg20: memref<64x16xbf16, #tpu.memory_space<vmem>>, %arg21: memref<16x64xbf16, #tpu.memory_space<vmem>>, %arg22: memref<64x256xbf16, #tpu.memory_space<vmem>>, %arg23: memref<16x256xbf16, #tpu.memory_space<vmem>>, %arg24: memref<256x16xbf16, #tpu.memory_space<vmem>>, %arg25: memref<16x256xf32, #tpu.memory_space<vmem>>, %arg26: memref<1x4x256xf32, #tpu.memory_space<vmem>>, %arg27: memref<4x512xf32, #tpu.memory_space<vmem>>, %arg28: memref<8x320xf32, #tpu.memory_space<vmem>>, %arg29: memref<16x320xf32, #tpu.memory_space<vmem>>, %arg30: memref<16x512xf32, #tpu.memory_space<vmem>>, %arg31: memref<8x512xf32, #tpu.memory_space<vmem>>, %arg32: memref<8x384xf32, #tpu.memory_space<vmem>>, %arg33: memref<16x192xf32, #tpu.memory_space<vmem>>, %arg34: memref<100x256xf32, #tpu.memory_space<vmem>>, %arg35: memref<72x64xf32, #tpu.memory_space<vmem>>, %arg36: memref<144x64xf32, #tpu.memory_space<vmem>>, %arg37: memref<144x256xf32, #tpu.memory_space<vmem>>, %arg38: memref<200x256xf32, #tpu.memory_space<vmem>>) attributes {dimension_semantics = [#tpu.dimension_semantics<parallel>], iteration_bounds = array<i64: 2>, scalar_prefetch = 0 : i64, scratch_operands = 12 : i64, tpu.core_type = #tpu.core_type<tc>, window_params = [{transform_indices = @transform_0, window_bounds = array<i64: 1, 4, 256>}, {pipeline_mode = #tpu.pipeline_mode<synchronous>, transform_indices = @transform_1, window_bounds = array<i64: 8, 100>}, {pipeline_mode = #tpu.pipeline_mode<synchronous>, transform_indices = @transform_2, window_bounds = array<i64: 8, 1>}, {pipeline_mode = #tpu.pipeline_mode<synchronous>, transform_indices = @transform_3, window_bounds = array<i64: 16, 72>}, {pipeline_mode = #tpu.pipeline_mode<synchronous>, transform_indices = @transform_4, window_bounds = array<i64: 16, 1>}, {pipeline_mode = #tpu.pipeline_mode<synchronous>, transform_indices = @transform_5, window_bounds = array<i64: 256, 32>}, {pipeline_mode = #tpu.pipeline_mode<synchronous>, transform_indices = @transform_6, window_bounds = array<i64: 1, 32>}, {pipeline_mode = #tpu.pipeline_mode<synchronous>, transform_indices = @transform_7, window_bounds = array<i64: 32, 256>}, {pipeline_mode = #tpu.pipeline_mode<synchronous>, transform_indices = @transform_8, window_bounds = array<i64: 1, 256>}, {pipeline_mode = #tpu.pipeline_mode<synchronous>, transform_indices = @transform_9, window_bounds = array<i64: 16, 144>}, {pipeline_mode = #tpu.pipeline_mode<synchronous>, transform_indices = @transform_10, window_bounds = array<i64: 16, 1>}, {pipeline_mode = #tpu.pipeline_mode<synchronous>, transform_indices = @transform_11, window_bounds = array<i64: 8, 144>}, {pipeline_mode = #tpu.pipeline_mode<synchronous>, transform_indices = @transform_12, window_bounds = array<i64: 8, 1>}, {pipeline_mode = #tpu.pipeline_mode<synchronous>, transform_indices = @transform_13, window_bounds = array<i64: 4, 200>}, {pipeline_mode = #tpu.pipeline_mode<synchronous>, transform_indices = @transform_14, window_bounds = array<i64: 4, 1>}, {pipeline_mode = #tpu.pipeline_mode<synchronous>, transform_indices = @transform_15, window_bounds = array<i64: 25, 256>}, {pipeline_mode = #tpu.pipeline_mode<synchronous>, transform_indices = @transform_16, window_bounds = array<i64: 9, 256>}, {pipeline_mode = #tpu.pipeline_mode<synchronous>, transform_indices = @transform_17, window_bounds = array<i64: 9, 64>}, {pipeline_mode = #tpu.pipeline_mode<synchronous>, transform_indices = @transform_18, window_bounds = array<i64: 256, 64>}, {pipeline_mode = #tpu.pipeline_mode<synchronous>, transform_indices = @transform_19, window_bounds = array<i64: 64, 16>}, {pipeline_mode = #tpu.pipeline_mode<synchronous>, transform_indices = @transform_20, window_bounds = array<i64: 16, 64>}, {pipeline_mode = #tpu.pipeline_mode<synchronous>, transform_indices = @transform_21, window_bounds = array<i64: 64, 256>}, {pipeline_mode = #tpu.pipeline_mode<synchronous>, transform_indices = @transform_22, window_bounds = array<i64: 16, 256>}, {pipeline_mode = #tpu.pipeline_mode<synchronous>, transform_indices = @transform_23, window_bounds = array<i64: 256, 16>}, {pipeline_mode = #tpu.pipeline_mode<synchronous>, transform_indices = @transform_24, window_bounds = array<i64: 16, 256>}, {transform_indices = @transform_25, window_bounds = array<i64: 1, 4, 256>}]} {
    %c0 = arith.constant 0 : index
    %c0_0 = arith.constant 0 : index
    %c0_1 = arith.constant 0 : index
    %0 = vector.load %arg1[%c0, %c0_0, %c0_1] : memref<1x4x256xf32, #tpu.memory_space<vmem>>, vector<1x4x256xf32>
    %1 = vector.shape_cast %0 : vector<1x4x256xf32> to vector<4x256xf32>
    %cst = arith.constant 0.000000e+00 : f32
    %2 = vector.broadcast %cst : f32 to vector<4x128xf32>
    %c0_2 = arith.constant 0 : index
    %c0_3 = arith.constant 0 : index
    %3 = vector.load %arg27[%c0_2, %c0_3] : memref<4x512xf32, #tpu.memory_space<vmem>>, vector<4x128xf32>
    tpu.vector_store %arg27[%c0_2, %c0_3], %2 {strides = array<i32>} : memref<4x512xf32, #tpu.memory_space<vmem>>, vector<4x128xf32>,
    %cst_4 = arith.constant 0.000000e+00 : f32
    %4 = vector.broadcast %cst_4 : f32 to vector<4x128xf32>
    %c0_5 = arith.constant 0 : index
    %c384 = arith.constant 384 : index
    %5 = vector.load %arg27[%c0_5, %c384] : memref<4x512xf32, #tpu.memory_space<vmem>>, vector<4x128xf32>
    tpu.vector_store %arg27[%c0_5, %c384], %4 {strides = array<i32>} : memref<4x512xf32, #tpu.memory_space<vmem>>, vector<4x128xf32>,
    %c0_6 = arith.constant 0 : index
    %c128 = arith.constant 128 : index
    %6 = vector.load %arg27[%c0_6, %c128] : memref<4x512xf32, #tpu.memory_space<vmem>>, vector<4x256xf32>
    tpu.vector_store %arg27[%c0_6, %c128], %1 {strides = array<i32>} : memref<4x512xf32, #tpu.memory_space<vmem>>, vector<4x256xf32>,
    %c0_7 = arith.constant 0 : index
    %c94 = arith.constant 94 : index
    %7 = vector.load %arg27[%c0_7, %c94] : memref<4x512xf32, #tpu.memory_space<vmem>>, vector<4x256xf32>
    %c0_8 = arith.constant 0 : index
    %c0_9 = arith.constant 0 : index
    %8 = vector.load %arg16[%c0_8, %c0_9] : memref<25x256xf32, #tpu.memory_space<vmem>>, vector<1x256xf32>
    %9 = vector.broadcast %8 : vector<1x256xf32> to vector<4x256xf32>
    %10 = arith.mulf %7, %9 : vector<4x256xf32>
    %c0_10 = arith.constant 0 : index
    %c0_11 = arith.constant 0 : index
    %11 = vector.load %arg34[%c0_10, %c0_11] : memref<100x256xf32, #tpu.memory_space<vmem>>, vector<4x256xf32>
    tpu.vector_store %arg34[%c0_10, %c0_11], %10 {strides = array<i32>} : memref<100x256xf32, #tpu.memory_space<vmem>>, vector<4x256xf32>,
    %c0_12 = arith.constant 0 : index
    %c95 = arith.constant 95 : index
    %12 = vector.load %arg27[%c0_12, %c95] : memref<4x512xf32, #tpu.memory_space<vmem>>, vector<4x256xf32>
    %c1 = arith.constant 1 : index
    %c0_13 = arith.constant 0 : index
    %13 = vector.load %arg16[%c1, %c0_13] : memref<25x256xf32, #tpu.memory_space<vmem>>, vector<1x256xf32>
    %14 = vector.broadcast %13 : vector<1x256xf32> to vector<4x256xf32>
    %15 = arith.mulf %12, %14 : vector<4x256xf32>
    %c4 = arith.constant 4 : index
    %c0_14 = arith.constant 0 : index
    %16 = vector.load %arg34[%c4, %c0_14] : memref<100x256xf32, #tpu.memory_space<vmem>>, vector<4x256xf32>
    tpu.vector_store %arg34[%c4, %c0_14], %15 {strides = array<i32>} : memref<100x256xf32, #tpu.memory_space<vmem>>, vector<4x256xf32>,
    %c0_15 = arith.constant 0 : index
    %c96 = arith.constant 96 : index
    %17 = vector.load %arg27[%c0_15, %c96] : memref<4x512xf32, #tpu.memory_space<vmem>>, vector<4x256xf32>
    %c2 = arith.constant 2 : index
    %c0_16 = arith.constant 0 : index
    %18 = vector.load %arg16[%c2, %c0_16] : memref<25x256xf32, #tpu.memory_space<vmem>>, vector<1x256xf32>
    %19 = vector.broadcast %18 : vector<1x256xf32> to vector<4x256xf32>
    %20 = arith.mulf %17, %19 : vector<4x256xf32>
    %c8 = arith.constant 8 : index
    %c0_17 = arith.constant 0 : index
    %21 = vector.load %arg34[%c8, %c0_17] : memref<100x256xf32, #tpu.memory_space<vmem>>, vector<4x256xf32>
    tpu.vector_store %arg34[%c8, %c0_17], %20 {strides = array<i32>} : memref<100x256xf32, #tpu.memory_space<vmem>>, vector<4x256xf32>,
    %c0_18 = arith.constant 0 : index
    %c97 = arith.constant 97 : index
    %22 = vector.load %arg27[%c0_18, %c97] : memref<4x512xf32, #tpu.memory_space<vmem>>, vector<4x256xf32>
    %c3 = arith.constant 3 : index
    %c0_19 = arith.constant 0 : index
    %23 = vector.load %arg16[%c3, %c0_19] : memref<25x256xf32, #tpu.memory_space<vmem>>, vector<1x256xf32>
    %24 = vector.broadcast %23 : vector<1x256xf32> to vector<4x256xf32>
    %25 = arith.mulf %22, %24 : vector<4x256xf32>
    %c12 = arith.constant 12 : index
    %c0_20 = arith.constant 0 : index
    %26 = vector.load %arg34[%c12, %c0_20] : memref<100x256xf32, #tpu.memory_space<vmem>>, vector<4x256xf32>
    tpu.vector_store %arg34[%c12, %c0_20], %25 {strides = array<i32>} : memref<100x256xf32, #tpu.memory_space<vmem>>, vector<4x256xf32>,
    %c0_21 = arith.constant 0 : index
    %c98 = arith.constant 98 : index
    %27 = vector.load %arg27[%c0_21, %c98] : memref<4x512xf32, #tpu.memory_space<vmem>>, vector<4x256xf32>
    %c4_22 = arith.constant 4 : index
    %c0_23 = arith.constant 0 : index
    %28 = vector.load %arg16[%c4_22, %c0_23] : memref<25x256xf32, #tpu.memory_space<vmem>>, vector<1x256xf32>
    %29 = vector.broadcast %28 : vector<1x256xf32> to vector<4x256xf32>
    %30 = arith.mulf %27, %29 : vector<4x256xf32>
    %c16 = arith.constant 16 : index
    %c0_24 = arith.constant 0 : index
    %31 = vector.load %arg34[%c16, %c0_24] : memref<100x256xf32, #tpu.memory_space<vmem>>, vector<4x256xf32>
    tpu.vector_store %arg34[%c16, %c0_24], %30 {strides = array<i32>} : memref<100x256xf32, #tpu.memory_space<vmem>>, vector<4x256xf32>,
    %c0_25 = arith.constant 0 : index
    %c110 = arith.constant 110 : index
    %32 = vector.load %arg27[%c0_25, %c110] : memref<4x512xf32, #tpu.memory_space<vmem>>, vector<4x256xf32>
    %c5 = arith.constant 5 : index
    %c0_26 = arith.constant 0 : index
    %33 = vector.load %arg16[%c5, %c0_26] : memref<25x256xf32, #tpu.memory_space<vmem>>, vector<1x256xf32>
    %34 = vector.broadcast %33 : vector<1x256xf32> to vector<4x256xf32>
    %35 = arith.mulf %32, %34 : vector<4x256xf32>
    %c20 = arith.constant 20 : index
    %c0_27 = arith.constant 0 : index
    %36 = vector.load %arg34[%c20, %c0_27] : memref<100x256xf32, #tpu.memory_space<vmem>>, vector<4x256xf32>
    tpu.vector_store %arg34[%c20, %c0_27], %35 {strides = array<i32>} : memref<100x256xf32, #tpu.memory_space<vmem>>, vector<4x256xf32>,
    %c0_28 = arith.constant 0 : index
    %c111 = arith.constant 111 : index
    %37 = vector.load %arg27[%c0_28, %c111] : memref<4x512xf32, #tpu.memory_space<vmem>>, vector<4x256xf32>
    %c6 = arith.constant 6 : index
    %c0_29 = arith.constant 0 : index
    %38 = vector.load %arg16[%c6, %c0_29] : memref<25x256xf32, #tpu.memory_space<vmem>>, vector<1x256xf32>
    %39 = vector.broadcast %38 : vector<1x256xf32> to vector<4x256xf32>
    %40 = arith.mulf %37, %39 : vector<4x256xf32>
    %c24 = arith.constant 24 : index
    %c0_30 = arith.constant 0 : index
    %41 = vector.load %arg34[%c24, %c0_30] : memref<100x256xf32, #tpu.memory_space<vmem>>, vector<4x256xf32>
    tpu.vector_store %arg34[%c24, %c0_30], %40 {strides = array<i32>} : memref<100x256xf32, #tpu.memory_space<vmem>>, vector<4x256xf32>,
    %c0_31 = arith.constant 0 : index
    %c112 = arith.constant 112 : index
    %42 = vector.load %arg27[%c0_31, %c112] : memref<4x512xf32, #tpu.memory_space<vmem>>, vector<4x256xf32>
    %c7 = arith.constant 7 : index
    %c0_32 = arith.constant 0 : index
    %43 = vector.load %arg16[%c7, %c0_32] : memref<25x256xf32, #tpu.memory_space<vmem>>, vector<1x256xf32>
    %44 = vector.broadcast %43 : vector<1x256xf32> to vector<4x256xf32>
    %45 = arith.mulf %42, %44 : vector<4x256xf32>
    %c28 = arith.constant 28 : index
    %c0_33 = arith.constant 0 : index
    %46 = vector.load %arg34[%c28, %c0_33] : memref<100x256xf32, #tpu.memory_space<vmem>>, vector<4x256xf32>
    tpu.vector_store %arg34[%c28, %c0_33], %45 {strides = array<i32>} : memref<100x256xf32, #tpu.memory_space<vmem>>, vector<4x256xf32>,
    %c0_34 = arith.constant 0 : index
    %c113 = arith.constant 113 : index
    %47 = vector.load %arg27[%c0_34, %c113] : memref<4x512xf32, #tpu.memory_space<vmem>>, vector<4x256xf32>
    %c8_35 = arith.constant 8 : index
    %c0_36 = arith.constant 0 : index
    %48 = vector.load %arg16[%c8_35, %c0_36] : memref<25x256xf32, #tpu.memory_space<vmem>>, vector<1x256xf32>
    %49 = vector.broadcast %48 : vector<1x256xf32> to vector<4x256xf32>
    %50 = arith.mulf %47, %49 : vector<4x256xf32>
    %c32 = arith.constant 32 : index
    %c0_37 = arith.constant 0 : index
    %51 = vector.load %arg34[%c32, %c0_37] : memref<100x256xf32, #tpu.memory_space<vmem>>, vector<4x256xf32>
    tpu.vector_store %arg34[%c32, %c0_37], %50 {strides = array<i32>} : memref<100x256xf32, #tpu.memory_space<vmem>>, vector<4x256xf32>,
    %c0_38 = arith.constant 0 : index
    %c114 = arith.constant 114 : index
    %52 = vector.load %arg27[%c0_38, %c114] : memref<4x512xf32, #tpu.memory_space<vmem>>, vector<4x256xf32>
    %c9 = arith.constant 9 : index
    %c0_39 = arith.constant 0 : index
    %53 = vector.load %arg16[%c9, %c0_39] : memref<25x256xf32, #tpu.memory_space<vmem>>, vector<1x256xf32>
    %54 = vector.broadcast %53 : vector<1x256xf32> to vector<4x256xf32>
    %55 = arith.mulf %52, %54 : vector<4x256xf32>
    %c36 = arith.constant 36 : index
    %c0_40 = arith.constant 0 : index
    %56 = vector.load %arg34[%c36, %c0_40] : memref<100x256xf32, #tpu.memory_space<vmem>>, vector<4x256xf32>
    tpu.vector_store %arg34[%c36, %c0_40], %55 {strides = array<i32>} : memref<100x256xf32, #tpu.memory_space<vmem>>, vector<4x256xf32>,
    %c0_41 = arith.constant 0 : index
    %c126 = arith.constant 126 : index
    %57 = vector.load %arg27[%c0_41, %c126] : memref<4x512xf32, #tpu.memory_space<vmem>>, vector<4x256xf32>
    %c10 = arith.constant 10 : index
    %c0_42 = arith.constant 0 : index
    %58 = vector.load %arg16[%c10, %c0_42] : memref<25x256xf32, #tpu.memory_space<vmem>>, vector<1x256xf32>
    %59 = vector.broadcast %58 : vector<1x256xf32> to vector<4x256xf32>
    %60 = arith.mulf %57, %59 : vector<4x256xf32>
    %c40 = arith.constant 40 : index
    %c0_43 = arith.constant 0 : index
    %61 = vector.load %arg34[%c40, %c0_43] : memref<100x256xf32, #tpu.memory_space<vmem>>, vector<4x256xf32>
    tpu.vector_store %arg34[%c40, %c0_43], %60 {strides = array<i32>} : memref<100x256xf32, #tpu.memory_space<vmem>>, vector<4x256xf32>,
    %c0_44 = arith.constant 0 : index
    %c127 = arith.constant 127 : index
    %62 = vector.load %arg27[%c0_44, %c127] : memref<4x512xf32, #tpu.memory_space<vmem>>, vector<4x256xf32>
    %c11 = arith.constant 11 : index
    %c0_45 = arith.constant 0 : index
    %63 = vector.load %arg16[%c11, %c0_45] : memref<25x256xf32, #tpu.memory_space<vmem>>, vector<1x256xf32>
    %64 = vector.broadcast %63 : vector<1x256xf32> to vector<4x256xf32>
    %65 = arith.mulf %62, %64 : vector<4x256xf32>
    %c44 = arith.constant 44 : index
    %c0_46 = arith.constant 0 : index
    %66 = vector.load %arg34[%c44, %c0_46] : memref<100x256xf32, #tpu.memory_space<vmem>>, vector<4x256xf32>
    tpu.vector_store %arg34[%c44, %c0_46], %65 {strides = array<i32>} : memref<100x256xf32, #tpu.memory_space<vmem>>, vector<4x256xf32>,
    %c0_47 = arith.constant 0 : index
    %c128_48 = arith.constant 128 : index
    %67 = vector.load %arg27[%c0_47, %c128_48] : memref<4x512xf32, #tpu.memory_space<vmem>>, vector<4x256xf32>
    %c48 = arith.constant 48 : index
    %c0_49 = arith.constant 0 : index
    %68 = vector.load %arg34[%c48, %c0_49] : memref<100x256xf32, #tpu.memory_space<vmem>>, vector<4x256xf32>
    tpu.vector_store %arg34[%c48, %c0_49], %67 {strides = array<i32>} : memref<100x256xf32, #tpu.memory_space<vmem>>, vector<4x256xf32>,
    %c0_50 = arith.constant 0 : index
    %c129 = arith.constant 129 : index
    %69 = vector.load %arg27[%c0_50, %c129] : memref<4x512xf32, #tpu.memory_space<vmem>>, vector<4x256xf32>
    %c13 = arith.constant 13 : index
    %c0_51 = arith.constant 0 : index
    %70 = vector.load %arg16[%c13, %c0_51] : memref<25x256xf32, #tpu.memory_space<vmem>>, vector<1x256xf32>
    %71 = vector.broadcast %70 : vector<1x256xf32> to vector<4x256xf32>
    %72 = arith.mulf %69, %71 : vector<4x256xf32>
    %c52 = arith.constant 52 : index
    %c0_52 = arith.constant 0 : index
    %73 = vector.load %arg34[%c52, %c0_52] : memref<100x256xf32, #tpu.memory_space<vmem>>, vector<4x256xf32>
    tpu.vector_store %arg34[%c52, %c0_52], %72 {strides = array<i32>} : memref<100x256xf32, #tpu.memory_space<vmem>>, vector<4x256xf32>,
    %c0_53 = arith.constant 0 : index
    %c130 = arith.constant 130 : index
    %74 = vector.load %arg27[%c0_53, %c130] : memref<4x512xf32, #tpu.memory_space<vmem>>, vector<4x256xf32>
    %c14 = arith.constant 14 : index
    %c0_54 = arith.constant 0 : index
    %75 = vector.load %arg16[%c14, %c0_54] : memref<25x256xf32, #tpu.memory_space<vmem>>, vector<1x256xf32>
    %76 = vector.broadcast %75 : vector<1x256xf32> to vector<4x256xf32>
    %77 = arith.mulf %74, %76 : vector<4x256xf32>
    %c56 = arith.constant 56 : index
    %c0_55 = arith.constant 0 : index
    %78 = vector.load %arg34[%c56, %c0_55] : memref<100x256xf32, #tpu.memory_space<vmem>>, vector<4x256xf32>
    tpu.vector_store %arg34[%c56, %c0_55], %77 {strides = array<i32>} : memref<100x256xf32, #tpu.memory_space<vmem>>, vector<4x256xf32>,
    %c0_56 = arith.constant 0 : index
    %c142 = arith.constant 142 : index
    %79 = vector.load %arg27[%c0_56, %c142] : memref<4x512xf32, #tpu.memory_space<vmem>>, vector<4x256xf32>
    %c15 = arith.constant 15 : index
    %c0_57 = arith.constant 0 : index
    %80 = vector.load %arg16[%c15, %c0_57] : memref<25x256xf32, #tpu.memory_space<vmem>>, vector<1x256xf32>
    %81 = vector.broadcast %80 : vector<1x256xf32> to vector<4x256xf32>
    %82 = arith.mulf %79, %81 : vector<4x256xf32>
    %c60 = arith.constant 60 : index
    %c0_58 = arith.constant 0 : index
    %83 = vector.load %arg34[%c60, %c0_58] : memref<100x256xf32, #tpu.memory_space<vmem>>, vector<4x256xf32>
    tpu.vector_store %arg34[%c60, %c0_58], %82 {strides = array<i32>} : memref<100x256xf32, #tpu.memory_space<vmem>>, vector<4x256xf32>,
    %c0_59 = arith.constant 0 : index
    %c143 = arith.constant 143 : index
    %84 = vector.load %arg27[%c0_59, %c143] : memref<4x512xf32, #tpu.memory_space<vmem>>, vector<4x256xf32>
    %c16_60 = arith.constant 16 : index
    %c0_61 = arith.constant 0 : index
    %85 = vector.load %arg16[%c16_60, %c0_61] : memref<25x256xf32, #tpu.memory_space<vmem>>, vector<1x256xf32>
    %86 = vector.broadcast %85 : vector<1x256xf32> to vector<4x256xf32>
    %87 = arith.mulf %84, %86 : vector<4x256xf32>
    %c64 = arith.constant 64 : index
    %c0_62 = arith.constant 0 : index
    %88 = vector.load %arg34[%c64, %c0_62] : memref<100x256xf32, #tpu.memory_space<vmem>>, vector<4x256xf32>
    tpu.vector_store %arg34[%c64, %c0_62], %87 {strides = array<i32>} : memref<100x256xf32, #tpu.memory_space<vmem>>, vector<4x256xf32>,
    %c0_63 = arith.constant 0 : index
    %c144 = arith.constant 144 : index
    %89 = vector.load %arg27[%c0_63, %c144] : memref<4x512xf32, #tpu.memory_space<vmem>>, vector<4x256xf32>
    %c17 = arith.constant 17 : index
    %c0_64 = arith.constant 0 : index
    %90 = vector.load %arg16[%c17, %c0_64] : memref<25x256xf32, #tpu.memory_space<vmem>>, vector<1x256xf32>
    %91 = vector.broadcast %90 : vector<1x256xf32> to vector<4x256xf32>
    %92 = arith.mulf %89, %91 : vector<4x256xf32>
    %c68 = arith.constant 68 : index
    %c0_65 = arith.constant 0 : index
    %93 = vector.load %arg34[%c68, %c0_65] : memref<100x256xf32, #tpu.memory_space<vmem>>, vector<4x256xf32>
    tpu.vector_store %arg34[%c68, %c0_65], %92 {strides = array<i32>} : memref<100x256xf32, #tpu.memory_space<vmem>>, vector<4x256xf32>,
    %c0_66 = arith.constant 0 : index
    %c145 = arith.constant 145 : index
    %94 = vector.load %arg27[%c0_66, %c145] : memref<4x512xf32, #tpu.memory_space<vmem>>, vector<4x256xf32>
    %c18 = arith.constant 18 : index
    %c0_67 = arith.constant 0 : index
    %95 = vector.load %arg16[%c18, %c0_67] : memref<25x256xf32, #tpu.memory_space<vmem>>, vector<1x256xf32>
    %96 = vector.broadcast %95 : vector<1x256xf32> to vector<4x256xf32>
    %97 = arith.mulf %94, %96 : vector<4x256xf32>
    %c72 = arith.constant 72 : index
    %c0_68 = arith.constant 0 : index
    %98 = vector.load %arg34[%c72, %c0_68] : memref<100x256xf32, #tpu.memory_space<vmem>>, vector<4x256xf32>
    tpu.vector_store %arg34[%c72, %c0_68], %97 {strides = array<i32>} : memref<100x256xf32, #tpu.memory_space<vmem>>, vector<4x256xf32>,
    %c0_69 = arith.constant 0 : index
    %c146 = arith.constant 146 : index
    %99 = vector.load %arg27[%c0_69, %c146] : memref<4x512xf32, #tpu.memory_space<vmem>>, vector<4x256xf32>
    %c19 = arith.constant 19 : index
    %c0_70 = arith.constant 0 : index
    %100 = vector.load %arg16[%c19, %c0_70] : memref<25x256xf32, #tpu.memory_space<vmem>>, vector<1x256xf32>
    %101 = vector.broadcast %100 : vector<1x256xf32> to vector<4x256xf32>
    %102 = arith.mulf %99, %101 : vector<4x256xf32>
    %c76 = arith.constant 76 : index
    %c0_71 = arith.constant 0 : index
    %103 = vector.load %arg34[%c76, %c0_71] : memref<100x256xf32, #tpu.memory_space<vmem>>, vector<4x256xf32>
    tpu.vector_store %arg34[%c76, %c0_71], %102 {strides = array<i32>} : memref<100x256xf32, #tpu.memory_space<vmem>>, vector<4x256xf32>,
    %c0_72 = arith.constant 0 : index
    %c158 = arith.constant 158 : index
    %104 = vector.load %arg27[%c0_72, %c158] : memref<4x512xf32, #tpu.memory_space<vmem>>, vector<4x256xf32>
    %c20_73 = arith.constant 20 : index
    %c0_74 = arith.constant 0 : index
    %105 = vector.load %arg16[%c20_73, %c0_74] : memref<25x256xf32, #tpu.memory_space<vmem>>, vector<1x256xf32>
    %106 = vector.broadcast %105 : vector<1x256xf32> to vector<4x256xf32>
    %107 = arith.mulf %104, %106 : vector<4x256xf32>
    %c80 = arith.constant 80 : index
    %c0_75 = arith.constant 0 : index
    %108 = vector.load %arg34[%c80, %c0_75] : memref<100x256xf32, #tpu.memory_space<vmem>>, vector<4x256xf32>
    tpu.vector_store %arg34[%c80, %c0_75], %107 {strides = array<i32>} : memref<100x256xf32, #tpu.memory_space<vmem>>, vector<4x256xf32>,
    %c0_76 = arith.constant 0 : index
    %c159 = arith.constant 159 : index
    %109 = vector.load %arg27[%c0_76, %c159] : memref<4x512xf32, #tpu.memory_space<vmem>>, vector<4x256xf32>
    %c21 = arith.constant 21 : index
    %c0_77 = arith.constant 0 : index
    %110 = vector.load %arg16[%c21, %c0_77] : memref<25x256xf32, #tpu.memory_space<vmem>>, vector<1x256xf32>
    %111 = vector.broadcast %110 : vector<1x256xf32> to vector<4x256xf32>
    %112 = arith.mulf %109, %111 : vector<4x256xf32>
    %c84 = arith.constant 84 : index
    %c0_78 = arith.constant 0 : index
    %113 = vector.load %arg34[%c84, %c0_78] : memref<100x256xf32, #tpu.memory_space<vmem>>, vector<4x256xf32>
    tpu.vector_store %arg34[%c84, %c0_78], %112 {strides = array<i32>} : memref<100x256xf32, #tpu.memory_space<vmem>>, vector<4x256xf32>,
    %c0_79 = arith.constant 0 : index
    %c160 = arith.constant 160 : index
    %114 = vector.load %arg27[%c0_79, %c160] : memref<4x512xf32, #tpu.memory_space<vmem>>, vector<4x256xf32>
    %c22 = arith.constant 22 : index
    %c0_80 = arith.constant 0 : index
    %115 = vector.load %arg16[%c22, %c0_80] : memref<25x256xf32, #tpu.memory_space<vmem>>, vector<1x256xf32>
    %116 = vector.broadcast %115 : vector<1x256xf32> to vector<4x256xf32>
    %117 = arith.mulf %114, %116 : vector<4x256xf32>
    %c88 = arith.constant 88 : index
    %c0_81 = arith.constant 0 : index
    %118 = vector.load %arg34[%c88, %c0_81] : memref<100x256xf32, #tpu.memory_space<vmem>>, vector<4x256xf32>
    tpu.vector_store %arg34[%c88, %c0_81], %117 {strides = array<i32>} : memref<100x256xf32, #tpu.memory_space<vmem>>, vector<4x256xf32>,
    %c0_82 = arith.constant 0 : index
    %c161 = arith.constant 161 : index
    %119 = vector.load %arg27[%c0_82, %c161] : memref<4x512xf32, #tpu.memory_space<vmem>>, vector<4x256xf32>
    %c23 = arith.constant 23 : index
    %c0_83 = arith.constant 0 : index
    %120 = vector.load %arg16[%c23, %c0_83] : memref<25x256xf32, #tpu.memory_space<vmem>>, vector<1x256xf32>
    %121 = vector.broadcast %120 : vector<1x256xf32> to vector<4x256xf32>
    %122 = arith.mulf %119, %121 : vector<4x256xf32>
    %c92 = arith.constant 92 : index
    %c0_84 = arith.constant 0 : index
    %123 = vector.load %arg34[%c92, %c0_84] : memref<100x256xf32, #tpu.memory_space<vmem>>, vector<4x256xf32>
    tpu.vector_store %arg34[%c92, %c0_84], %122 {strides = array<i32>} : memref<100x256xf32, #tpu.memory_space<vmem>>, vector<4x256xf32>,
    %c0_85 = arith.constant 0 : index
    %c162 = arith.constant 162 : index
    %124 = vector.load %arg27[%c0_85, %c162] : memref<4x512xf32, #tpu.memory_space<vmem>>, vector<4x256xf32>
    %c24_86 = arith.constant 24 : index
    %c0_87 = arith.constant 0 : index
    %125 = vector.load %arg16[%c24_86, %c0_87] : memref<25x256xf32, #tpu.memory_space<vmem>>, vector<1x256xf32>
    %126 = vector.broadcast %125 : vector<1x256xf32> to vector<4x256xf32>
    %127 = arith.mulf %124, %126 : vector<4x256xf32>
    %c96_88 = arith.constant 96 : index
    %c0_89 = arith.constant 0 : index
    %128 = vector.load %arg34[%c96_88, %c0_89] : memref<100x256xf32, #tpu.memory_space<vmem>>, vector<4x256xf32>
    tpu.vector_store %arg34[%c96_88, %c0_89], %127 {strides = array<i32>} : memref<100x256xf32, #tpu.memory_space<vmem>>, vector<4x256xf32>,
    %c0_90 = arith.constant 0 : index
    %c0_91 = arith.constant 0 : index
    %129 = vector.load %arg2[%c0_90, %c0_91] : memref<8x100xbf16, #tpu.memory_space<vmem>>, vector<8x100xbf16>
    %c0_92 = arith.constant 0 : index
    %c0_93 = arith.constant 0 : index
    %130 = vector.load %arg34[%c0_92, %c0_93] : memref<100x256xf32, #tpu.memory_space<vmem>>, vector<100x256xf32>
    %131 = arith.truncf %130 : vector<100x256xf32> to vector<100x256xbf16>
    %cst_94 = arith.constant dense<0.000000e+00> : vector<8x256xf32>
    %132 = tpu.matmul %129, %131, %cst_94 {dimension_numbers = #tpu.dot_dimension_numbers<[1], [0], [0], [1], [0, 0, 1, 1], [], []>} : vector<8x100xbf16>, vector<100x256xbf16>, vector<8x256xf32> -> vector<8x256xf32>
    %c0_95 = arith.constant 0 : index
    %c0_96 = arith.constant 0 : index
    %133 = vector.load %arg3[%c0_95, %c0_96] : memref<8x1xf32, #tpu.memory_space<vmem>>, vector<8x1xf32>
    %134 = vector.broadcast %133 : vector<8x1xf32> to vector<8x256xf32>
    %135 = arith.addf %132, %134 : vector<8x256xf32>
    %cst_97 = arith.constant 0.000000e+00 : f32
    %136 = vector.broadcast %cst_97 : f32 to vector<8x256xf32>
    %137 = arith.cmpf oge, %135, %136 : vector<8x256xf32>
    %cst_98 = arith.constant 0.00999999977 : f32
    %138 = vector.broadcast %cst_98 : f32 to vector<8x256xf32>
    %139 = arith.mulf %138, %135 : vector<8x256xf32>
    %140 = arith.select %137, %135, %139 : vector<8x256xi1>, vector<8x256xf32>
    %c0_99 = arith.constant 0 : index
    %c0_100 = arith.constant 0 : index
    %141 = vector.load %arg32[%c0_99, %c0_100] : memref<8x384xf32, #tpu.memory_space<vmem>>, vector<8x256xf32>
    tpu.vector_store %arg32[%c0_99, %c0_100], %140 {strides = array<i32>} : memref<8x384xf32, #tpu.memory_space<vmem>>, vector<8x256xf32>,
    %cst_101 = arith.constant 0.000000e+00 : f32
    %142 = vector.broadcast %cst_101 : f32 to vector<8x128xf32>
    %c0_102 = arith.constant 0 : index
    %c256 = arith.constant 256 : index
    %143 = vector.load %arg32[%c0_102, %c256] : memref<8x384xf32, #tpu.memory_space<vmem>>, vector<8x128xf32>
    tpu.vector_store %arg32[%c0_102, %c256], %142 {strides = array<i32>} : memref<8x384xf32, #tpu.memory_space<vmem>>, vector<8x128xf32>,
    %c0_103 = arith.constant 0 : index
    %c1_104 = arith.constant 1 : index
    %144 = vector.load %arg32[%c0_103, %c1_104] : memref<8x384xf32, #tpu.memory_space<vmem>>, vector<8x256xf32>
    %c0_105 = arith.constant 0 : index
    %c16_106 = arith.constant 16 : index
    %145 = vector.load %arg32[%c0_105, %c16_106] : memref<8x384xf32, #tpu.memory_space<vmem>>, vector<8x256xf32>
    %c0_107 = arith.constant 0 : index
    %c17_108 = arith.constant 17 : index
    %146 = vector.load %arg32[%c0_107, %c17_108] : memref<8x384xf32, #tpu.memory_space<vmem>>, vector<8x256xf32>
    %147 = arith.maximumf %140, %144 : vector<8x256xf32>
    %148 = arith.maximumf %145, %146 : vector<8x256xf32>
    %149 = arith.maximumf %147, %148 : vector<8x256xf32>
    %150 = arith.truncf %149 : vector<8x256xf32> to vector<8x256xbf16>
    %c0_109 = arith.constant 0 : index
    %c0_110 = arith.constant 0 : index
    %151 = vector.load %arg19[%c0_109, %c0_110] : memref<256x64xbf16, #tpu.memory_space<vmem>>, vector<256x64xbf16>
    %cst_111 = arith.constant dense<0.000000e+00> : vector<8x64xf32>
    %152 = tpu.matmul %150, %151, %cst_111 {dimension_numbers = #tpu.dot_dimension_numbers<[1], [0], [0], [1], [0, 0, 1, 1], [], []>} : vector<8x256xbf16>, vector<256x64xbf16>, vector<8x64xf32> -> vector<8x64xf32>
    %cst_112 = arith.constant 0.000000e+00 : f32
    %153 = vector.broadcast %cst_112 : f32 to vector<8x128xf32>
    %c0_113 = arith.constant 0 : index
    %c0_114 = arith.constant 0 : index
    %154 = vector.load %arg28[%c0_113, %c0_114] : memref<8x320xf32, #tpu.memory_space<vmem>>, vector<8x128xf32>
    tpu.vector_store %arg28[%c0_113, %c0_114], %153 {strides = array<i32>} : memref<8x320xf32, #tpu.memory_space<vmem>>, vector<8x128xf32>,
    %cst_115 = arith.constant 0.000000e+00 : f32
    %155 = vector.broadcast %cst_115 : f32 to vector<8x128xf32>
    %c0_116 = arith.constant 0 : index
    %c192 = arith.constant 192 : index
    %156 = vector.load %arg28[%c0_116, %c192] : memref<8x320xf32, #tpu.memory_space<vmem>>, vector<8x128xf32>
    tpu.vector_store %arg28[%c0_116, %c192], %155 {strides = array<i32>} : memref<8x320xf32, #tpu.memory_space<vmem>>, vector<8x128xf32>,
    %c0_117 = arith.constant 0 : index
    %c128_118 = arith.constant 128 : index
    %157 = vector.load %arg28[%c0_117, %c128_118] : memref<8x320xf32, #tpu.memory_space<vmem>>, vector<8x64xf32>
    tpu.vector_store %arg28[%c0_117, %c128_118], %152 {strides = array<i32>} : memref<8x320xf32, #tpu.memory_space<vmem>>, vector<8x64xf32>,
    %c0_119 = arith.constant 0 : index
    %c119 = arith.constant 119 : index
    %158 = vector.load %arg28[%c0_119, %c119] : memref<8x320xf32, #tpu.memory_space<vmem>>, vector<8x64xf32>
    %c0_120 = arith.constant 0 : index
    %c0_121 = arith.constant 0 : index
    %159 = vector.load %arg18[%c0_120, %c0_121] : memref<9x64xf32, #tpu.memory_space<vmem>>, vector<1x64xf32>
    %160 = vector.broadcast %159 : vector<1x64xf32> to vector<8x64xf32>
    %161 = arith.mulf %158, %160 : vector<8x64xf32>
    %c0_122 = arith.constant 0 : index
    %c0_123 = arith.constant 0 : index
    %162 = vector.load %arg35[%c0_122, %c0_123] : memref<72x64xf32, #tpu.memory_space<vmem>>, vector<8x64xf32>
    tpu.vector_store %arg35[%c0_122, %c0_123], %161 {strides = array<i32>} : memref<72x64xf32, #tpu.memory_space<vmem>>, vector<8x64xf32>,
    %c0_124 = arith.constant 0 : index
    %c120 = arith.constant 120 : index
    %163 = vector.load %arg28[%c0_124, %c120] : memref<8x320xf32, #tpu.memory_space<vmem>>, vector<8x64xf32>
    %c1_125 = arith.constant 1 : index
    %c0_126 = arith.constant 0 : index
    %164 = vector.load %arg18[%c1_125, %c0_126] : memref<9x64xf32, #tpu.memory_space<vmem>>, vector<1x64xf32>
    %165 = vector.broadcast %164 : vector<1x64xf32> to vector<8x64xf32>
    %166 = arith.mulf %163, %165 : vector<8x64xf32>
    %c8_127 = arith.constant 8 : index
    %c0_128 = arith.constant 0 : index
    %167 = vector.load %arg35[%c8_127, %c0_128] : memref<72x64xf32, #tpu.memory_space<vmem>>, vector<8x64xf32>
    tpu.vector_store %arg35[%c8_127, %c0_128], %166 {strides = array<i32>} : memref<72x64xf32, #tpu.memory_space<vmem>>, vector<8x64xf32>,
    %c0_129 = arith.constant 0 : index
    %c121 = arith.constant 121 : index
    %168 = vector.load %arg28[%c0_129, %c121] : memref<8x320xf32, #tpu.memory_space<vmem>>, vector<8x64xf32>
    %c2_130 = arith.constant 2 : index
    %c0_131 = arith.constant 0 : index
    %169 = vector.load %arg18[%c2_130, %c0_131] : memref<9x64xf32, #tpu.memory_space<vmem>>, vector<1x64xf32>
    %170 = vector.broadcast %169 : vector<1x64xf32> to vector<8x64xf32>
    %171 = arith.mulf %168, %170 : vector<8x64xf32>
    %c16_132 = arith.constant 16 : index
    %c0_133 = arith.constant 0 : index
    %172 = vector.load %arg35[%c16_132, %c0_133] : memref<72x64xf32, #tpu.memory_space<vmem>>, vector<8x64xf32>
    tpu.vector_store %arg35[%c16_132, %c0_133], %171 {strides = array<i32>} : memref<72x64xf32, #tpu.memory_space<vmem>>, vector<8x64xf32>,
    %c0_134 = arith.constant 0 : index
    %c127_135 = arith.constant 127 : index
    %173 = vector.load %arg28[%c0_134, %c127_135] : memref<8x320xf32, #tpu.memory_space<vmem>>, vector<8x64xf32>
    %c3_136 = arith.constant 3 : index
    %c0_137 = arith.constant 0 : index
    %174 = vector.load %arg18[%c3_136, %c0_137] : memref<9x64xf32, #tpu.memory_space<vmem>>, vector<1x64xf32>
    %175 = vector.broadcast %174 : vector<1x64xf32> to vector<8x64xf32>
    %176 = arith.mulf %173, %175 : vector<8x64xf32>
    %c24_138 = arith.constant 24 : index
    %c0_139 = arith.constant 0 : index
    %177 = vector.load %arg35[%c24_138, %c0_139] : memref<72x64xf32, #tpu.memory_space<vmem>>, vector<8x64xf32>
    tpu.vector_store %arg35[%c24_138, %c0_139], %176 {strides = array<i32>} : memref<72x64xf32, #tpu.memory_space<vmem>>, vector<8x64xf32>,
    %c0_140 = arith.constant 0 : index
    %c128_141 = arith.constant 128 : index
    %178 = vector.load %arg28[%c0_140, %c128_141] : memref<8x320xf32, #tpu.memory_space<vmem>>, vector<8x64xf32>
    %c32_142 = arith.constant 32 : index
    %c0_143 = arith.constant 0 : index
    %179 = vector.load %arg35[%c32_142, %c0_143] : memref<72x64xf32, #tpu.memory_space<vmem>>, vector<8x64xf32>
    tpu.vector_store %arg35[%c32_142, %c0_143], %178 {strides = array<i32>} : memref<72x64xf32, #tpu.memory_space<vmem>>, vector<8x64xf32>,
    %c0_144 = arith.constant 0 : index
    %c129_145 = arith.constant 129 : index
    %180 = vector.load %arg28[%c0_144, %c129_145] : memref<8x320xf32, #tpu.memory_space<vmem>>, vector<8x64xf32>
    %c5_146 = arith.constant 5 : index
    %c0_147 = arith.constant 0 : index
    %181 = vector.load %arg18[%c5_146, %c0_147] : memref<9x64xf32, #tpu.memory_space<vmem>>, vector<1x64xf32>
    %182 = vector.broadcast %181 : vector<1x64xf32> to vector<8x64xf32>
    %183 = arith.mulf %180, %182 : vector<8x64xf32>
    %c40_148 = arith.constant 40 : index
    %c0_149 = arith.constant 0 : index
    %184 = vector.load %arg35[%c40_148, %c0_149] : memref<72x64xf32, #tpu.memory_space<vmem>>, vector<8x64xf32>
    tpu.vector_store %arg35[%c40_148, %c0_149], %183 {strides = array<i32>} : memref<72x64xf32, #tpu.memory_space<vmem>>, vector<8x64xf32>,
    %c0_150 = arith.constant 0 : index
    %c135 = arith.constant 135 : index
    %185 = vector.load %arg28[%c0_150, %c135] : memref<8x320xf32, #tpu.memory_space<vmem>>, vector<8x64xf32>
    %c6_151 = arith.constant 6 : index
    %c0_152 = arith.constant 0 : index
    %186 = vector.load %arg18[%c6_151, %c0_152] : memref<9x64xf32, #tpu.memory_space<vmem>>, vector<1x64xf32>
    %187 = vector.broadcast %186 : vector<1x64xf32> to vector<8x64xf32>
    %188 = arith.mulf %185, %187 : vector<8x64xf32>
    %c48_153 = arith.constant 48 : index
    %c0_154 = arith.constant 0 : index
    %189 = vector.load %arg35[%c48_153, %c0_154] : memref<72x64xf32, #tpu.memory_space<vmem>>, vector<8x64xf32>
    tpu.vector_store %arg35[%c48_153, %c0_154], %188 {strides = array<i32>} : memref<72x64xf32, #tpu.memory_space<vmem>>, vector<8x64xf32>,
    %c0_155 = arith.constant 0 : index
    %c136 = arith.constant 136 : index
    %190 = vector.load %arg28[%c0_155, %c136] : memref<8x320xf32, #tpu.memory_space<vmem>>, vector<8x64xf32>
    %c7_156 = arith.constant 7 : index
    %c0_157 = arith.constant 0 : index
    %191 = vector.load %arg18[%c7_156, %c0_157] : memref<9x64xf32, #tpu.memory_space<vmem>>, vector<1x64xf32>
    %192 = vector.broadcast %191 : vector<1x64xf32> to vector<8x64xf32>
    %193 = arith.mulf %190, %192 : vector<8x64xf32>
    %c56_158 = arith.constant 56 : index
    %c0_159 = arith.constant 0 : index
    %194 = vector.load %arg35[%c56_158, %c0_159] : memref<72x64xf32, #tpu.memory_space<vmem>>, vector<8x64xf32>
    tpu.vector_store %arg35[%c56_158, %c0_159], %193 {strides = array<i32>} : memref<72x64xf32, #tpu.memory_space<vmem>>, vector<8x64xf32>,
    %c0_160 = arith.constant 0 : index
    %c137 = arith.constant 137 : index
    %195 = vector.load %arg28[%c0_160, %c137] : memref<8x320xf32, #tpu.memory_space<vmem>>, vector<8x64xf32>
    %c8_161 = arith.constant 8 : index
    %c0_162 = arith.constant 0 : index
    %196 = vector.load %arg18[%c8_161, %c0_162] : memref<9x64xf32, #tpu.memory_space<vmem>>, vector<1x64xf32>
    %197 = vector.broadcast %196 : vector<1x64xf32> to vector<8x64xf32>
    %198 = arith.mulf %195, %197 : vector<8x64xf32>
    %c64_163 = arith.constant 64 : index
    %c0_164 = arith.constant 0 : index
    %199 = vector.load %arg35[%c64_163, %c0_164] : memref<72x64xf32, #tpu.memory_space<vmem>>, vector<8x64xf32>
    tpu.vector_store %arg35[%c64_163, %c0_164], %198 {strides = array<i32>} : memref<72x64xf32, #tpu.memory_space<vmem>>, vector<8x64xf32>,
    %c0_165 = arith.constant 0 : index
    %c0_166 = arith.constant 0 : index
    %200 = vector.load %arg4[%c0_165, %c0_166] : memref<16x72xbf16, #tpu.memory_space<vmem>>, vector<16x72xbf16>
    %c0_167 = arith.constant 0 : index
    %c0_168 = arith.constant 0 : index
    %201 = vector.load %arg35[%c0_167, %c0_168] : memref<72x64xf32, #tpu.memory_space<vmem>>, vector<72x64xf32>
    %202 = arith.truncf %201 : vector<72x64xf32> to vector<72x64xbf16>
    %cst_169 = arith.constant dense<0.000000e+00> : vector<16x64xf32>
    %203 = tpu.matmul %200, %202, %cst_169 {dimension_numbers = #tpu.dot_dimension_numbers<[1], [0], [0], [1], [0, 0, 1, 1], [], []>} : vector<16x72xbf16>, vector<72x64xbf16>, vector<16x64xf32> -> vector<16x64xf32>
    %c0_170 = arith.constant 0 : index
    %c0_171 = arith.constant 0 : index
    %204 = vector.load %arg5[%c0_170, %c0_171] : memref<16x1xf32, #tpu.memory_space<vmem>>, vector<16x1xf32>
    %205 = vector.broadcast %204 : vector<16x1xf32> to vector<16x64xf32>
    %206 = arith.addf %203, %205 : vector<16x64xf32>
    %cst_172 = arith.constant 0.000000e+00 : f32
    %207 = vector.broadcast %cst_172 : f32 to vector<16x64xf32>
    %208 = arith.cmpf oge, %206, %207 : vector<16x64xf32>
    %cst_173 = arith.constant 0.00999999977 : f32
    %209 = vector.broadcast %cst_173 : f32 to vector<16x64xf32>
    %210 = arith.mulf %209, %206 : vector<16x64xf32>
    %211 = arith.select %208, %206, %210 : vector<16x64xi1>, vector<16x64xf32>
    %c0_174 = arith.constant 0 : index
    %c0_175 = arith.constant 0 : index
    %212 = vector.load %arg33[%c0_174, %c0_175] : memref<16x192xf32, #tpu.memory_space<vmem>>, vector<16x64xf32>
    tpu.vector_store %arg33[%c0_174, %c0_175], %211 {strides = array<i32>} : memref<16x192xf32, #tpu.memory_space<vmem>>, vector<16x64xf32>,
    %cst_176 = arith.constant 0.000000e+00 : f32
    %213 = vector.broadcast %cst_176 : f32 to vector<16x128xf32>
    %c0_177 = arith.constant 0 : index
    %c64_178 = arith.constant 64 : index
    %214 = vector.load %arg33[%c0_177, %c64_178] : memref<16x192xf32, #tpu.memory_space<vmem>>, vector<16x128xf32>
    tpu.vector_store %arg33[%c0_177, %c64_178], %213 {strides = array<i32>} : memref<16x192xf32, #tpu.memory_space<vmem>>, vector<16x128xf32>,
    %c0_179 = arith.constant 0 : index
    %c1_180 = arith.constant 1 : index
    %215 = vector.load %arg33[%c0_179, %c1_180] : memref<16x192xf32, #tpu.memory_space<vmem>>, vector<16x64xf32>
    %c0_181 = arith.constant 0 : index
    %c8_182 = arith.constant 8 : index
    %216 = vector.load %arg33[%c0_181, %c8_182] : memref<16x192xf32, #tpu.memory_space<vmem>>, vector<16x64xf32>
    %c0_183 = arith.constant 0 : index
    %c9_184 = arith.constant 9 : index
    %217 = vector.load %arg33[%c0_183, %c9_184] : memref<16x192xf32, #tpu.memory_space<vmem>>, vector<16x64xf32>
    %218 = arith.addf %211, %215 : vector<16x64xf32>
    %219 = arith.addf %218, %216 : vector<16x64xf32>
    %220 = arith.addf %219, %217 : vector<16x64xf32>
    %cst_185 = arith.constant 2.500000e-01 : f32
    %221 = vector.broadcast %cst_185 : f32 to vector<16x64xf32>
    %222 = arith.mulf %220, %221 : vector<16x64xf32>
    %223 = arith.truncf %222 : vector<16x64xf32> to vector<16x64xbf16>
    %c0_186 = arith.constant 0 : index
    %c0_187 = arith.constant 0 : index
    %224 = vector.load %arg20[%c0_186, %c0_187] : memref<64x16xbf16, #tpu.memory_space<vmem>>, vector<64x16xbf16>
    %cst_188 = arith.constant dense<0.000000e+00> : vector<16x16xf32>
    %225 = tpu.matmul %223, %224, %cst_188 {dimension_numbers = #tpu.dot_dimension_numbers<[1], [0], [0], [1], [0, 0, 1, 1], [], []>} : vector<16x64xbf16>, vector<64x16xbf16>, vector<16x16xf32> -> vector<16x16xf32>
    %226 = arith.truncf %225 : vector<16x16xf32> to vector<16x16xbf16>
    %c0_189 = arith.constant 0 : index
    %c0_190 = arith.constant 0 : index
    %227 = vector.load %arg23[%c0_189, %c0_190] : memref<16x256xbf16, #tpu.memory_space<vmem>>, vector<16x256xbf16>
    %cst_191 = arith.constant dense<0.000000e+00> : vector<16x256xf32>
    %228 = tpu.matmul %226, %227, %cst_191 {dimension_numbers = #tpu.dot_dimension_numbers<[1], [0], [0], [1], [0, 0, 1, 1], [], []>} : vector<16x16xbf16>, vector<16x256xbf16>, vector<16x256xf32> -> vector<16x256xf32>
    %c0_192 = arith.constant 0 : index
    %c0_193 = arith.constant 0 : index
    %229 = vector.load %arg25[%c0_192, %c0_193] : memref<16x256xf32, #tpu.memory_space<vmem>>, vector<16x256xf32>
    %230 = arith.mulf %228, %229 : vector<16x256xf32>
    %cst_194 = arith.constant dense<0.000000e+00> : vector<256xf32>
    %231 = vector.multi_reduction <add>, %230, %cst_194 [0] : vector<16x256xf32> to vector<256xf32>
    %232 = vector.shape_cast %231 : vector<256xf32> to vector<1x256xf32>
    %233 = arith.truncf %232 : vector<1x256xf32> to vector<1x256xbf16>
    %c0_195 = arith.constant 0 : index
    %c0_196 = arith.constant 0 : index
    %234 = vector.load %arg6[%c0_195, %c0_196] : memref<256x32xbf16, #tpu.memory_space<vmem>>, vector<256x32xbf16>
    %cst_197 = arith.constant dense<0.000000e+00> : vector<1x32xf32>
    %235 = tpu.matmul %233, %234, %cst_197 {dimension_numbers = #tpu.dot_dimension_numbers<[1], [0], [0], [1], [0, 0, 1, 1], [], []>} : vector<1x256xbf16>, vector<256x32xbf16>, vector<1x32xf32> -> vector<1x32xf32>
    %c0_198 = arith.constant 0 : index
    %c0_199 = arith.constant 0 : index
    %236 = vector.load %arg7[%c0_198, %c0_199] : memref<1x32xf32, #tpu.memory_space<vmem>>, vector<1x32xf32>
    %237 = arith.addf %235, %236 : vector<1x32xf32>
    %238 = math.tanh %237 : vector<1x32xf32>
    %239 = arith.truncf %238 : vector<1x32xf32> to vector<1x32xbf16>
    %c0_200 = arith.constant 0 : index
    %c0_201 = arith.constant 0 : index
    %240 = vector.load %arg8[%c0_200, %c0_201] : memref<32x256xbf16, #tpu.memory_space<vmem>>, vector<32x256xbf16>
    %cst_202 = arith.constant dense<0.000000e+00> : vector<1x256xf32>
    %241 = tpu.matmul %239, %240, %cst_202 {dimension_numbers = #tpu.dot_dimension_numbers<[1], [0], [0], [1], [0, 0, 1, 1], [], []>} : vector<1x32xbf16>, vector<32x256xbf16>, vector<1x256xf32> -> vector<1x256xf32>
    %c0_203 = arith.constant 0 : index
    %c0_204 = arith.constant 0 : index
    %242 = vector.load %arg9[%c0_203, %c0_204] : memref<1x256xf32, #tpu.memory_space<vmem>>, vector<1x256xf32>
    %243 = arith.addf %241, %242 : vector<1x256xf32>
    %cst_205 = arith.constant 0.000000e+00 : f32
    %244 = vector.broadcast %cst_205 : f32 to vector<1x256xf32>
    %245 = arith.cmpf oge, %243, %244 : vector<1x256xf32>
    %cst_206 = arith.constant 0.00999999977 : f32
    %246 = vector.broadcast %cst_206 : f32 to vector<1x256xf32>
    %247 = arith.mulf %246, %243 : vector<1x256xf32>
    %248 = arith.select %245, %243, %247 : vector<1x256xi1>, vector<1x256xf32>
    %c0_207 = arith.constant 0 : index
    %c0_208 = arith.constant 0 : index
    %249 = vector.load %arg25[%c0_207, %c0_208] : memref<16x256xf32, #tpu.memory_space<vmem>>, vector<16x256xf32>
    %250 = vector.broadcast %248 : vector<1x256xf32> to vector<16x256xf32>
    %251 = arith.mulf %249, %250 : vector<16x256xf32>
    %252 = arith.truncf %251 : vector<16x256xf32> to vector<16x256xbf16>
    %c0_209 = arith.constant 0 : index
    %c0_210 = arith.constant 0 : index
    %253 = vector.load %arg24[%c0_209, %c0_210] : memref<256x16xbf16, #tpu.memory_space<vmem>>, vector<256x16xbf16>
    %cst_211 = arith.constant dense<0.000000e+00> : vector<16x16xf32>
    %254 = tpu.matmul %252, %253, %cst_211 {dimension_numbers = #tpu.dot_dimension_numbers<[1], [0], [0], [1], [0, 0, 1, 1], [], []>} : vector<16x256xbf16>, vector<256x16xbf16>, vector<16x16xf32> -> vector<16x16xf32>
    %255 = arith.truncf %254 : vector<16x16xf32> to vector<16x16xbf16>
    %c0_212 = arith.constant 0 : index
    %c0_213 = arith.constant 0 : index
    %256 = vector.load %arg21[%c0_212, %c0_213] : memref<16x64xbf16, #tpu.memory_space<vmem>>, vector<16x64xbf16>
    %cst_214 = arith.constant dense<0.000000e+00> : vector<16x64xf32>
    %257 = tpu.matmul %255, %256, %cst_214 {dimension_numbers = #tpu.dot_dimension_numbers<[1], [0], [0], [1], [0, 0, 1, 1], [], []>} : vector<16x16xbf16>, vector<16x64xbf16>, vector<16x64xf32> -> vector<16x64xf32>
    %cst_215 = arith.constant 0.000000e+00 : f32
    %258 = vector.broadcast %cst_215 : f32 to vector<16x128xf32>
    %c0_216 = arith.constant 0 : index
    %c0_217 = arith.constant 0 : index
    %259 = vector.load %arg29[%c0_216, %c0_217] : memref<16x320xf32, #tpu.memory_space<vmem>>, vector<16x128xf32>
    tpu.vector_store %arg29[%c0_216, %c0_217], %258 {strides = array<i32>} : memref<16x320xf32, #tpu.memory_space<vmem>>, vector<16x128xf32>,
    %cst_218 = arith.constant 0.000000e+00 : f32
    %260 = vector.broadcast %cst_218 : f32 to vector<16x128xf32>
    %c0_219 = arith.constant 0 : index
    %c192_220 = arith.constant 192 : index
    %261 = vector.load %arg29[%c0_219, %c192_220] : memref<16x320xf32, #tpu.memory_space<vmem>>, vector<16x128xf32>
    tpu.vector_store %arg29[%c0_219, %c192_220], %260 {strides = array<i32>} : memref<16x320xf32, #tpu.memory_space<vmem>>, vector<16x128xf32>,
    %c0_221 = arith.constant 0 : index
    %c128_222 = arith.constant 128 : index
    %262 = vector.load %arg29[%c0_221, %c128_222] : memref<16x320xf32, #tpu.memory_space<vmem>>, vector<16x64xf32>
    tpu.vector_store %arg29[%c0_221, %c128_222], %257 {strides = array<i32>} : memref<16x320xf32, #tpu.memory_space<vmem>>, vector<16x64xf32>,
    %c0_223 = arith.constant 0 : index
    %c119_224 = arith.constant 119 : index
    %263 = vector.load %arg29[%c0_223, %c119_224] : memref<16x320xf32, #tpu.memory_space<vmem>>, vector<16x64xf32>
    %c0_225 = arith.constant 0 : index
    %c0_226 = arith.constant 0 : index
    %264 = vector.load %arg18[%c0_225, %c0_226] : memref<9x64xf32, #tpu.memory_space<vmem>>, vector<1x64xf32>
    %265 = vector.broadcast %264 : vector<1x64xf32> to vector<16x64xf32>
    %266 = arith.mulf %263, %265 : vector<16x64xf32>
    %c0_227 = arith.constant 0 : index
    %c0_228 = arith.constant 0 : index
    %267 = vector.load %arg36[%c0_227, %c0_228] : memref<144x64xf32, #tpu.memory_space<vmem>>, vector<16x64xf32>
    tpu.vector_store %arg36[%c0_227, %c0_228], %266 {strides = array<i32>} : memref<144x64xf32, #tpu.memory_space<vmem>>, vector<16x64xf32>,
    %c0_229 = arith.constant 0 : index
    %c120_230 = arith.constant 120 : index
    %268 = vector.load %arg29[%c0_229, %c120_230] : memref<16x320xf32, #tpu.memory_space<vmem>>, vector<16x64xf32>
    %c1_231 = arith.constant 1 : index
    %c0_232 = arith.constant 0 : index
    %269 = vector.load %arg18[%c1_231, %c0_232] : memref<9x64xf32, #tpu.memory_space<vmem>>, vector<1x64xf32>
    %270 = vector.broadcast %269 : vector<1x64xf32> to vector<16x64xf32>
    %271 = arith.mulf %268, %270 : vector<16x64xf32>
    %c16_233 = arith.constant 16 : index
    %c0_234 = arith.constant 0 : index
    %272 = vector.load %arg36[%c16_233, %c0_234] : memref<144x64xf32, #tpu.memory_space<vmem>>, vector<16x64xf32>
    tpu.vector_store %arg36[%c16_233, %c0_234], %271 {strides = array<i32>} : memref<144x64xf32, #tpu.memory_space<vmem>>, vector<16x64xf32>,
    %c0_235 = arith.constant 0 : index
    %c121_236 = arith.constant 121 : index
    %273 = vector.load %arg29[%c0_235, %c121_236] : memref<16x320xf32, #tpu.memory_space<vmem>>, vector<16x64xf32>
    %c2_237 = arith.constant 2 : index
    %c0_238 = arith.constant 0 : index
    %274 = vector.load %arg18[%c2_237, %c0_238] : memref<9x64xf32, #tpu.memory_space<vmem>>, vector<1x64xf32>
    %275 = vector.broadcast %274 : vector<1x64xf32> to vector<16x64xf32>
    %276 = arith.mulf %273, %275 : vector<16x64xf32>
    %c32_239 = arith.constant 32 : index
    %c0_240 = arith.constant 0 : index
    %277 = vector.load %arg36[%c32_239, %c0_240] : memref<144x64xf32, #tpu.memory_space<vmem>>, vector<16x64xf32>
    tpu.vector_store %arg36[%c32_239, %c0_240], %276 {strides = array<i32>} : memref<144x64xf32, #tpu.memory_space<vmem>>, vector<16x64xf32>,
    %c0_241 = arith.constant 0 : index
    %c127_242 = arith.constant 127 : index
    %278 = vector.load %arg29[%c0_241, %c127_242] : memref<16x320xf32, #tpu.memory_space<vmem>>, vector<16x64xf32>
    %c3_243 = arith.constant 3 : index
    %c0_244 = arith.constant 0 : index
    %279 = vector.load %arg18[%c3_243, %c0_244] : memref<9x64xf32, #tpu.memory_space<vmem>>, vector<1x64xf32>
    %280 = vector.broadcast %279 : vector<1x64xf32> to vector<16x64xf32>
    %281 = arith.mulf %278, %280 : vector<16x64xf32>
    %c48_245 = arith.constant 48 : index
    %c0_246 = arith.constant 0 : index
    %282 = vector.load %arg36[%c48_245, %c0_246] : memref<144x64xf32, #tpu.memory_space<vmem>>, vector<16x64xf32>
    tpu.vector_store %arg36[%c48_245, %c0_246], %281 {strides = array<i32>} : memref<144x64xf32, #tpu.memory_space<vmem>>, vector<16x64xf32>,
    %c0_247 = arith.constant 0 : index
    %c128_248 = arith.constant 128 : index
    %283 = vector.load %arg29[%c0_247, %c128_248] : memref<16x320xf32, #tpu.memory_space<vmem>>, vector<16x64xf32>
    %c64_249 = arith.constant 64 : index
    %c0_250 = arith.constant 0 : index
    %284 = vector.load %arg36[%c64_249, %c0_250] : memref<144x64xf32, #tpu.memory_space<vmem>>, vector<16x64xf32>
    tpu.vector_store %arg36[%c64_249, %c0_250], %283 {strides = array<i32>} : memref<144x64xf32, #tpu.memory_space<vmem>>, vector<16x64xf32>,
    %c0_251 = arith.constant 0 : index
    %c129_252 = arith.constant 129 : index
    %285 = vector.load %arg29[%c0_251, %c129_252] : memref<16x320xf32, #tpu.memory_space<vmem>>, vector<16x64xf32>
    %c5_253 = arith.constant 5 : index
    %c0_254 = arith.constant 0 : index
    %286 = vector.load %arg18[%c5_253, %c0_254] : memref<9x64xf32, #tpu.memory_space<vmem>>, vector<1x64xf32>
    %287 = vector.broadcast %286 : vector<1x64xf32> to vector<16x64xf32>
    %288 = arith.mulf %285, %287 : vector<16x64xf32>
    %c80_255 = arith.constant 80 : index
    %c0_256 = arith.constant 0 : index
    %289 = vector.load %arg36[%c80_255, %c0_256] : memref<144x64xf32, #tpu.memory_space<vmem>>, vector<16x64xf32>
    tpu.vector_store %arg36[%c80_255, %c0_256], %288 {strides = array<i32>} : memref<144x64xf32, #tpu.memory_space<vmem>>, vector<16x64xf32>,
    %c0_257 = arith.constant 0 : index
    %c135_258 = arith.constant 135 : index
    %290 = vector.load %arg29[%c0_257, %c135_258] : memref<16x320xf32, #tpu.memory_space<vmem>>, vector<16x64xf32>
    %c6_259 = arith.constant 6 : index
    %c0_260 = arith.constant 0 : index
    %291 = vector.load %arg18[%c6_259, %c0_260] : memref<9x64xf32, #tpu.memory_space<vmem>>, vector<1x64xf32>
    %292 = vector.broadcast %291 : vector<1x64xf32> to vector<16x64xf32>
    %293 = arith.mulf %290, %292 : vector<16x64xf32>
    %c96_261 = arith.constant 96 : index
    %c0_262 = arith.constant 0 : index
    %294 = vector.load %arg36[%c96_261, %c0_262] : memref<144x64xf32, #tpu.memory_space<vmem>>, vector<16x64xf32>
    tpu.vector_store %arg36[%c96_261, %c0_262], %293 {strides = array<i32>} : memref<144x64xf32, #tpu.memory_space<vmem>>, vector<16x64xf32>,
    %c0_263 = arith.constant 0 : index
    %c136_264 = arith.constant 136 : index
    %295 = vector.load %arg29[%c0_263, %c136_264] : memref<16x320xf32, #tpu.memory_space<vmem>>, vector<16x64xf32>
    %c7_265 = arith.constant 7 : index
    %c0_266 = arith.constant 0 : index
    %296 = vector.load %arg18[%c7_265, %c0_266] : memref<9x64xf32, #tpu.memory_space<vmem>>, vector<1x64xf32>
    %297 = vector.broadcast %296 : vector<1x64xf32> to vector<16x64xf32>
    %298 = arith.mulf %295, %297 : vector<16x64xf32>
    %c112_267 = arith.constant 112 : index
    %c0_268 = arith.constant 0 : index
    %299 = vector.load %arg36[%c112_267, %c0_268] : memref<144x64xf32, #tpu.memory_space<vmem>>, vector<16x64xf32>
    tpu.vector_store %arg36[%c112_267, %c0_268], %298 {strides = array<i32>} : memref<144x64xf32, #tpu.memory_space<vmem>>, vector<16x64xf32>,
    %c0_269 = arith.constant 0 : index
    %c137_270 = arith.constant 137 : index
    %300 = vector.load %arg29[%c0_269, %c137_270] : memref<16x320xf32, #tpu.memory_space<vmem>>, vector<16x64xf32>
    %c8_271 = arith.constant 8 : index
    %c0_272 = arith.constant 0 : index
    %301 = vector.load %arg18[%c8_271, %c0_272] : memref<9x64xf32, #tpu.memory_space<vmem>>, vector<1x64xf32>
    %302 = vector.broadcast %301 : vector<1x64xf32> to vector<16x64xf32>
    %303 = arith.mulf %300, %302 : vector<16x64xf32>
    %c128_273 = arith.constant 128 : index
    %c0_274 = arith.constant 0 : index
    %304 = vector.load %arg36[%c128_273, %c0_274] : memref<144x64xf32, #tpu.memory_space<vmem>>, vector<16x64xf32>
    tpu.vector_store %arg36[%c128_273, %c0_274], %303 {strides = array<i32>} : memref<144x64xf32, #tpu.memory_space<vmem>>, vector<16x64xf32>,
    %c0_275 = arith.constant 0 : index
    %c0_276 = arith.constant 0 : index
    %305 = vector.load %arg10[%c0_275, %c0_276] : memref<16x144xbf16, #tpu.memory_space<vmem>>, vector<16x144xbf16>
    %c0_277 = arith.constant 0 : index
    %c0_278 = arith.constant 0 : index
    %306 = vector.load %arg36[%c0_277, %c0_278] : memref<144x64xf32, #tpu.memory_space<vmem>>, vector<144x64xf32>
    %307 = arith.truncf %306 : vector<144x64xf32> to vector<144x64xbf16>
    %cst_279 = arith.constant dense<0.000000e+00> : vector<16x64xf32>
    %308 = tpu.matmul %305, %307, %cst_279 {dimension_numbers = #tpu.dot_dimension_numbers<[1], [0], [0], [1], [0, 0, 1, 1], [], []>} : vector<16x144xbf16>, vector<144x64xbf16>, vector<16x64xf32> -> vector<16x64xf32>
    %c0_280 = arith.constant 0 : index
    %c0_281 = arith.constant 0 : index
    %309 = vector.load %arg11[%c0_280, %c0_281] : memref<16x1xf32, #tpu.memory_space<vmem>>, vector<16x1xf32>
    %310 = vector.broadcast %309 : vector<16x1xf32> to vector<16x64xf32>
    %311 = arith.addf %308, %310 : vector<16x64xf32>
    %cst_282 = arith.constant 0.000000e+00 : f32
    %312 = vector.broadcast %cst_282 : f32 to vector<16x64xf32>
    %313 = arith.cmpf oge, %311, %312 : vector<16x64xf32>
    %cst_283 = arith.constant 0.00999999977 : f32
    %314 = vector.broadcast %cst_283 : f32 to vector<16x64xf32>
    %315 = arith.mulf %314, %311 : vector<16x64xf32>
    %316 = arith.select %313, %311, %315 : vector<16x64xi1>, vector<16x64xf32>
    %317 = arith.truncf %316 : vector<16x64xf32> to vector<16x64xbf16>
    %c0_284 = arith.constant 0 : index
    %c0_285 = arith.constant 0 : index
    %318 = vector.load %arg22[%c0_284, %c0_285] : memref<64x256xbf16, #tpu.memory_space<vmem>>, vector<64x256xbf16>
    %cst_286 = arith.constant dense<0.000000e+00> : vector<16x256xf32>
    %319 = tpu.matmul %317, %318, %cst_286 {dimension_numbers = #tpu.dot_dimension_numbers<[1], [0], [0], [1], [0, 0, 1, 1], [], []>} : vector<16x64xbf16>, vector<64x256xbf16>, vector<16x256xf32> -> vector<16x256xf32>
    %cst_287 = arith.constant 0.000000e+00 : f32
    %320 = vector.broadcast %cst_287 : f32 to vector<16x128xf32>
    %c0_288 = arith.constant 0 : index
    %c0_289 = arith.constant 0 : index
    %321 = vector.load %arg30[%c0_288, %c0_289] : memref<16x512xf32, #tpu.memory_space<vmem>>, vector<16x128xf32>
    tpu.vector_store %arg30[%c0_288, %c0_289], %320 {strides = array<i32>} : memref<16x512xf32, #tpu.memory_space<vmem>>, vector<16x128xf32>,
    %cst_290 = arith.constant 0.000000e+00 : f32
    %322 = vector.broadcast %cst_290 : f32 to vector<16x128xf32>
    %c0_291 = arith.constant 0 : index
    %c384_292 = arith.constant 384 : index
    %323 = vector.load %arg30[%c0_291, %c384_292] : memref<16x512xf32, #tpu.memory_space<vmem>>, vector<16x128xf32>
    tpu.vector_store %arg30[%c0_291, %c384_292], %322 {strides = array<i32>} : memref<16x512xf32, #tpu.memory_space<vmem>>, vector<16x128xf32>,
    %c0_293 = arith.constant 0 : index
    %c128_294 = arith.constant 128 : index
    %324 = vector.load %arg30[%c0_293, %c128_294] : memref<16x512xf32, #tpu.memory_space<vmem>>, vector<16x256xf32>
    tpu.vector_store %arg30[%c0_293, %c128_294], %319 {strides = array<i32>} : memref<16x512xf32, #tpu.memory_space<vmem>>, vector<16x256xf32>,
    %c0_295 = arith.constant 0 : index
    %c111_296 = arith.constant 111 : index
    %325 = vector.load %arg30[%c0_295, %c111_296] : memref<16x512xf32, #tpu.memory_space<vmem>>, vector<16x256xf32>
    %c0_297 = arith.constant 0 : index
    %c0_298 = arith.constant 0 : index
    %326 = vector.load %arg17[%c0_297, %c0_298] : memref<9x256xf32, #tpu.memory_space<vmem>>, vector<1x256xf32>
    %327 = vector.broadcast %326 : vector<1x256xf32> to vector<16x256xf32>
    %328 = arith.mulf %325, %327 : vector<16x256xf32>
    %c0_299 = arith.constant 0 : index
    %c0_300 = arith.constant 0 : index
    %329 = vector.load %arg37[%c0_299, %c0_300] : memref<144x256xf32, #tpu.memory_space<vmem>>, vector<16x256xf32>
    tpu.vector_store %arg37[%c0_299, %c0_300], %328 {strides = array<i32>} : memref<144x256xf32, #tpu.memory_space<vmem>>, vector<16x256xf32>,
    %c0_301 = arith.constant 0 : index
    %c112_302 = arith.constant 112 : index
    %330 = vector.load %arg30[%c0_301, %c112_302] : memref<16x512xf32, #tpu.memory_space<vmem>>, vector<16x256xf32>
    %c1_303 = arith.constant 1 : index
    %c0_304 = arith.constant 0 : index
    %331 = vector.load %arg17[%c1_303, %c0_304] : memref<9x256xf32, #tpu.memory_space<vmem>>, vector<1x256xf32>
    %332 = vector.broadcast %331 : vector<1x256xf32> to vector<16x256xf32>
    %333 = arith.mulf %330, %332 : vector<16x256xf32>
    %c16_305 = arith.constant 16 : index
    %c0_306 = arith.constant 0 : index
    %334 = vector.load %arg37[%c16_305, %c0_306] : memref<144x256xf32, #tpu.memory_space<vmem>>, vector<16x256xf32>
    tpu.vector_store %arg37[%c16_305, %c0_306], %333 {strides = array<i32>} : memref<144x256xf32, #tpu.memory_space<vmem>>, vector<16x256xf32>,
    %c0_307 = arith.constant 0 : index
    %c113_308 = arith.constant 113 : index
    %335 = vector.load %arg30[%c0_307, %c113_308] : memref<16x512xf32, #tpu.memory_space<vmem>>, vector<16x256xf32>
    %c2_309 = arith.constant 2 : index
    %c0_310 = arith.constant 0 : index
    %336 = vector.load %arg17[%c2_309, %c0_310] : memref<9x256xf32, #tpu.memory_space<vmem>>, vector<1x256xf32>
    %337 = vector.broadcast %336 : vector<1x256xf32> to vector<16x256xf32>
    %338 = arith.mulf %335, %337 : vector<16x256xf32>
    %c32_311 = arith.constant 32 : index
    %c0_312 = arith.constant 0 : index
    %339 = vector.load %arg37[%c32_311, %c0_312] : memref<144x256xf32, #tpu.memory_space<vmem>>, vector<16x256xf32>
    tpu.vector_store %arg37[%c32_311, %c0_312], %338 {strides = array<i32>} : memref<144x256xf32, #tpu.memory_space<vmem>>, vector<16x256xf32>,
    %c0_313 = arith.constant 0 : index
    %c127_314 = arith.constant 127 : index
    %340 = vector.load %arg30[%c0_313, %c127_314] : memref<16x512xf32, #tpu.memory_space<vmem>>, vector<16x256xf32>
    %c3_315 = arith.constant 3 : index
    %c0_316 = arith.constant 0 : index
    %341 = vector.load %arg17[%c3_315, %c0_316] : memref<9x256xf32, #tpu.memory_space<vmem>>, vector<1x256xf32>
    %342 = vector.broadcast %341 : vector<1x256xf32> to vector<16x256xf32>
    %343 = arith.mulf %340, %342 : vector<16x256xf32>
    %c48_317 = arith.constant 48 : index
    %c0_318 = arith.constant 0 : index
    %344 = vector.load %arg37[%c48_317, %c0_318] : memref<144x256xf32, #tpu.memory_space<vmem>>, vector<16x256xf32>
    tpu.vector_store %arg37[%c48_317, %c0_318], %343 {strides = array<i32>} : memref<144x256xf32, #tpu.memory_space<vmem>>, vector<16x256xf32>,
    %c0_319 = arith.constant 0 : index
    %c128_320 = arith.constant 128 : index
    %345 = vector.load %arg30[%c0_319, %c128_320] : memref<16x512xf32, #tpu.memory_space<vmem>>, vector<16x256xf32>
    %c64_321 = arith.constant 64 : index
    %c0_322 = arith.constant 0 : index
    %346 = vector.load %arg37[%c64_321, %c0_322] : memref<144x256xf32, #tpu.memory_space<vmem>>, vector<16x256xf32>
    tpu.vector_store %arg37[%c64_321, %c0_322], %345 {strides = array<i32>} : memref<144x256xf32, #tpu.memory_space<vmem>>, vector<16x256xf32>,
    %c0_323 = arith.constant 0 : index
    %c129_324 = arith.constant 129 : index
    %347 = vector.load %arg30[%c0_323, %c129_324] : memref<16x512xf32, #tpu.memory_space<vmem>>, vector<16x256xf32>
    %c5_325 = arith.constant 5 : index
    %c0_326 = arith.constant 0 : index
    %348 = vector.load %arg17[%c5_325, %c0_326] : memref<9x256xf32, #tpu.memory_space<vmem>>, vector<1x256xf32>
    %349 = vector.broadcast %348 : vector<1x256xf32> to vector<16x256xf32>
    %350 = arith.mulf %347, %349 : vector<16x256xf32>
    %c80_327 = arith.constant 80 : index
    %c0_328 = arith.constant 0 : index
    %351 = vector.load %arg37[%c80_327, %c0_328] : memref<144x256xf32, #tpu.memory_space<vmem>>, vector<16x256xf32>
    tpu.vector_store %arg37[%c80_327, %c0_328], %350 {strides = array<i32>} : memref<144x256xf32, #tpu.memory_space<vmem>>, vector<16x256xf32>,
    %c0_329 = arith.constant 0 : index
    %c143_330 = arith.constant 143 : index
    %352 = vector.load %arg30[%c0_329, %c143_330] : memref<16x512xf32, #tpu.memory_space<vmem>>, vector<16x256xf32>
    %c6_331 = arith.constant 6 : index
    %c0_332 = arith.constant 0 : index
    %353 = vector.load %arg17[%c6_331, %c0_332] : memref<9x256xf32, #tpu.memory_space<vmem>>, vector<1x256xf32>
    %354 = vector.broadcast %353 : vector<1x256xf32> to vector<16x256xf32>
    %355 = arith.mulf %352, %354 : vector<16x256xf32>
    %c96_333 = arith.constant 96 : index
    %c0_334 = arith.constant 0 : index
    %356 = vector.load %arg37[%c96_333, %c0_334] : memref<144x256xf32, #tpu.memory_space<vmem>>, vector<16x256xf32>
    tpu.vector_store %arg37[%c96_333, %c0_334], %355 {strides = array<i32>} : memref<144x256xf32, #tpu.memory_space<vmem>>, vector<16x256xf32>,
    %c0_335 = arith.constant 0 : index
    %c144_336 = arith.constant 144 : index
    %357 = vector.load %arg30[%c0_335, %c144_336] : memref<16x512xf32, #tpu.memory_space<vmem>>, vector<16x256xf32>
    %c7_337 = arith.constant 7 : index
    %c0_338 = arith.constant 0 : index
    %358 = vector.load %arg17[%c7_337, %c0_338] : memref<9x256xf32, #tpu.memory_space<vmem>>, vector<1x256xf32>
    %359 = vector.broadcast %358 : vector<1x256xf32> to vector<16x256xf32>
    %360 = arith.mulf %357, %359 : vector<16x256xf32>
    %c112_339 = arith.constant 112 : index
    %c0_340 = arith.constant 0 : index
    %361 = vector.load %arg37[%c112_339, %c0_340] : memref<144x256xf32, #tpu.memory_space<vmem>>, vector<16x256xf32>
    tpu.vector_store %arg37[%c112_339, %c0_340], %360 {strides = array<i32>} : memref<144x256xf32, #tpu.memory_space<vmem>>, vector<16x256xf32>,
    %c0_341 = arith.constant 0 : index
    %c145_342 = arith.constant 145 : index
    %362 = vector.load %arg30[%c0_341, %c145_342] : memref<16x512xf32, #tpu.memory_space<vmem>>, vector<16x256xf32>
    %c8_343 = arith.constant 8 : index
    %c0_344 = arith.constant 0 : index
    %363 = vector.load %arg17[%c8_343, %c0_344] : memref<9x256xf32, #tpu.memory_space<vmem>>, vector<1x256xf32>
    %364 = vector.broadcast %363 : vector<1x256xf32> to vector<16x256xf32>
    %365 = arith.mulf %362, %364 : vector<16x256xf32>
    %c128_345 = arith.constant 128 : index
    %c0_346 = arith.constant 0 : index
    %366 = vector.load %arg37[%c128_345, %c0_346] : memref<144x256xf32, #tpu.memory_space<vmem>>, vector<16x256xf32>
    tpu.vector_store %arg37[%c128_345, %c0_346], %365 {strides = array<i32>} : memref<144x256xf32, #tpu.memory_space<vmem>>, vector<16x256xf32>,
    %c0_347 = arith.constant 0 : index
    %c0_348 = arith.constant 0 : index
    %367 = vector.load %arg12[%c0_347, %c0_348] : memref<8x144xbf16, #tpu.memory_space<vmem>>, vector<8x144xbf16>
    %c0_349 = arith.constant 0 : index
    %c0_350 = arith.constant 0 : index
    %368 = vector.load %arg37[%c0_349, %c0_350] : memref<144x256xf32, #tpu.memory_space<vmem>>, vector<144x256xf32>
    %369 = arith.truncf %368 : vector<144x256xf32> to vector<144x256xbf16>
    %cst_351 = arith.constant dense<0.000000e+00> : vector<8x256xf32>
    %370 = tpu.matmul %367, %369, %cst_351 {dimension_numbers = #tpu.dot_dimension_numbers<[1], [0], [0], [1], [0, 0, 1, 1], [], []>} : vector<8x144xbf16>, vector<144x256xbf16>, vector<8x256xf32> -> vector<8x256xf32>
    %c0_352 = arith.constant 0 : index
    %c0_353 = arith.constant 0 : index
    %371 = vector.load %arg13[%c0_352, %c0_353] : memref<8x1xf32, #tpu.memory_space<vmem>>, vector<8x1xf32>
    %372 = vector.broadcast %371 : vector<8x1xf32> to vector<8x256xf32>
    %373 = arith.addf %370, %372 : vector<8x256xf32>
    %cst_354 = arith.constant 0.000000e+00 : f32
    %374 = vector.broadcast %cst_354 : f32 to vector<8x256xf32>
    %375 = arith.cmpf oge, %373, %374 : vector<8x256xf32>
    %cst_355 = arith.constant 0.00999999977 : f32
    %376 = vector.broadcast %cst_355 : f32 to vector<8x256xf32>
    %377 = arith.mulf %376, %373 : vector<8x256xf32>
    %378 = arith.select %375, %373, %377 : vector<8x256xi1>, vector<8x256xf32>
    %cst_356 = arith.constant 0.000000e+00 : f32
    %379 = vector.broadcast %cst_356 : f32 to vector<8x128xf32>
    %c0_357 = arith.constant 0 : index
    %c0_358 = arith.constant 0 : index
    %380 = vector.load %arg31[%c0_357, %c0_358] : memref<8x512xf32, #tpu.memory_space<vmem>>, vector<8x128xf32>
    tpu.vector_store %arg31[%c0_357, %c0_358], %379 {strides = array<i32>} : memref<8x512xf32, #tpu.memory_space<vmem>>, vector<8x128xf32>,
    %cst_359 = arith.constant 0.000000e+00 : f32
    %381 = vector.broadcast %cst_359 : f32 to vector<8x128xf32>
    %c0_360 = arith.constant 0 : index
    %c384_361 = arith.constant 384 : index
    %382 = vector.load %arg31[%c0_360, %c384_361] : memref<8x512xf32, #tpu.memory_space<vmem>>, vector<8x128xf32>
    tpu.vector_store %arg31[%c0_360, %c384_361], %381 {strides = array<i32>} : memref<8x512xf32, #tpu.memory_space<vmem>>, vector<8x128xf32>,
    %c0_362 = arith.constant 0 : index
    %c128_363 = arith.constant 128 : index
    %383 = vector.load %arg31[%c0_362, %c128_363] : memref<8x512xf32, #tpu.memory_space<vmem>>, vector<8x256xf32>
    tpu.vector_store %arg31[%c0_362, %c128_363], %378 {strides = array<i32>} : memref<8x512xf32, #tpu.memory_space<vmem>>, vector<8x256xf32>,
    %c0_364 = arith.constant 0 : index
    %c94_365 = arith.constant 94 : index
    %384 = vector.load %arg31[%c0_364, %c94_365] : memref<8x512xf32, #tpu.memory_space<vmem>>, vector<8x256xf32>
    %c0_366 = arith.constant 0 : index
    %c0_367 = arith.constant 0 : index
    %385 = vector.load %arg16[%c0_366, %c0_367] : memref<25x256xf32, #tpu.memory_space<vmem>>, vector<1x256xf32>
    %386 = vector.broadcast %385 : vector<1x256xf32> to vector<8x256xf32>
    %387 = arith.mulf %384, %386 : vector<8x256xf32>
    %c0_368 = arith.constant 0 : index
    %c0_369 = arith.constant 0 : index
    %388 = vector.load %arg38[%c0_368, %c0_369] : memref<200x256xf32, #tpu.memory_space<vmem>>, vector<8x256xf32>
    tpu.vector_store %arg38[%c0_368, %c0_369], %387 {strides = array<i32>} : memref<200x256xf32, #tpu.memory_space<vmem>>, vector<8x256xf32>,
    %c0_370 = arith.constant 0 : index
    %c95_371 = arith.constant 95 : index
    %389 = vector.load %arg31[%c0_370, %c95_371] : memref<8x512xf32, #tpu.memory_space<vmem>>, vector<8x256xf32>
    %c1_372 = arith.constant 1 : index
    %c0_373 = arith.constant 0 : index
    %390 = vector.load %arg16[%c1_372, %c0_373] : memref<25x256xf32, #tpu.memory_space<vmem>>, vector<1x256xf32>
    %391 = vector.broadcast %390 : vector<1x256xf32> to vector<8x256xf32>
    %392 = arith.mulf %389, %391 : vector<8x256xf32>
    %c8_374 = arith.constant 8 : index
    %c0_375 = arith.constant 0 : index
    %393 = vector.load %arg38[%c8_374, %c0_375] : memref<200x256xf32, #tpu.memory_space<vmem>>, vector<8x256xf32>
    tpu.vector_store %arg38[%c8_374, %c0_375], %392 {strides = array<i32>} : memref<200x256xf32, #tpu.memory_space<vmem>>, vector<8x256xf32>,
    %c0_376 = arith.constant 0 : index
    %c96_377 = arith.constant 96 : index
    %394 = vector.load %arg31[%c0_376, %c96_377] : memref<8x512xf32, #tpu.memory_space<vmem>>, vector<8x256xf32>
    %c2_378 = arith.constant 2 : index
    %c0_379 = arith.constant 0 : index
    %395 = vector.load %arg16[%c2_378, %c0_379] : memref<25x256xf32, #tpu.memory_space<vmem>>, vector<1x256xf32>
    %396 = vector.broadcast %395 : vector<1x256xf32> to vector<8x256xf32>
    %397 = arith.mulf %394, %396 : vector<8x256xf32>
    %c16_380 = arith.constant 16 : index
    %c0_381 = arith.constant 0 : index
    %398 = vector.load %arg38[%c16_380, %c0_381] : memref<200x256xf32, #tpu.memory_space<vmem>>, vector<8x256xf32>
    tpu.vector_store %arg38[%c16_380, %c0_381], %397 {strides = array<i32>} : memref<200x256xf32, #tpu.memory_space<vmem>>, vector<8x256xf32>,
    %c0_382 = arith.constant 0 : index
    %c97_383 = arith.constant 97 : index
    %399 = vector.load %arg31[%c0_382, %c97_383] : memref<8x512xf32, #tpu.memory_space<vmem>>, vector<8x256xf32>
    %c3_384 = arith.constant 3 : index
    %c0_385 = arith.constant 0 : index
    %400 = vector.load %arg16[%c3_384, %c0_385] : memref<25x256xf32, #tpu.memory_space<vmem>>, vector<1x256xf32>
    %401 = vector.broadcast %400 : vector<1x256xf32> to vector<8x256xf32>
    %402 = arith.mulf %399, %401 : vector<8x256xf32>
    %c24_386 = arith.constant 24 : index
    %c0_387 = arith.constant 0 : index
    %403 = vector.load %arg38[%c24_386, %c0_387] : memref<200x256xf32, #tpu.memory_space<vmem>>, vector<8x256xf32>
    tpu.vector_store %arg38[%c24_386, %c0_387], %402 {strides = array<i32>} : memref<200x256xf32, #tpu.memory_space<vmem>>, vector<8x256xf32>,
    %c0_388 = arith.constant 0 : index
    %c98_389 = arith.constant 98 : index
    %404 = vector.load %arg31[%c0_388, %c98_389] : memref<8x512xf32, #tpu.memory_space<vmem>>, vector<8x256xf32>
    %c4_390 = arith.constant 4 : index
    %c0_391 = arith.constant 0 : index
    %405 = vector.load %arg16[%c4_390, %c0_391] : memref<25x256xf32, #tpu.memory_space<vmem>>, vector<1x256xf32>
    %406 = vector.broadcast %405 : vector<1x256xf32> to vector<8x256xf32>
    %407 = arith.mulf %404, %406 : vector<8x256xf32>
    %c32_392 = arith.constant 32 : index
    %c0_393 = arith.constant 0 : index
    %408 = vector.load %arg38[%c32_392, %c0_393] : memref<200x256xf32, #tpu.memory_space<vmem>>, vector<8x256xf32>
    tpu.vector_store %arg38[%c32_392, %c0_393], %407 {strides = array<i32>} : memref<200x256xf32, #tpu.memory_space<vmem>>, vector<8x256xf32>,
    %c0_394 = arith.constant 0 : index
    %c110_395 = arith.constant 110 : index
    %409 = vector.load %arg31[%c0_394, %c110_395] : memref<8x512xf32, #tpu.memory_space<vmem>>, vector<8x256xf32>
    %c5_396 = arith.constant 5 : index
    %c0_397 = arith.constant 0 : index
    %410 = vector.load %arg16[%c5_396, %c0_397] : memref<25x256xf32, #tpu.memory_space<vmem>>, vector<1x256xf32>
    %411 = vector.broadcast %410 : vector<1x256xf32> to vector<8x256xf32>
    %412 = arith.mulf %409, %411 : vector<8x256xf32>
    %c40_398 = arith.constant 40 : index
    %c0_399 = arith.constant 0 : index
    %413 = vector.load %arg38[%c40_398, %c0_399] : memref<200x256xf32, #tpu.memory_space<vmem>>, vector<8x256xf32>
    tpu.vector_store %arg38[%c40_398, %c0_399], %412 {strides = array<i32>} : memref<200x256xf32, #tpu.memory_space<vmem>>, vector<8x256xf32>,
    %c0_400 = arith.constant 0 : index
    %c111_401 = arith.constant 111 : index
    %414 = vector.load %arg31[%c0_400, %c111_401] : memref<8x512xf32, #tpu.memory_space<vmem>>, vector<8x256xf32>
    %c6_402 = arith.constant 6 : index
    %c0_403 = arith.constant 0 : index
    %415 = vector.load %arg16[%c6_402, %c0_403] : memref<25x256xf32, #tpu.memory_space<vmem>>, vector<1x256xf32>
    %416 = vector.broadcast %415 : vector<1x256xf32> to vector<8x256xf32>
    %417 = arith.mulf %414, %416 : vector<8x256xf32>
    %c48_404 = arith.constant 48 : index
    %c0_405 = arith.constant 0 : index
    %418 = vector.load %arg38[%c48_404, %c0_405] : memref<200x256xf32, #tpu.memory_space<vmem>>, vector<8x256xf32>
    tpu.vector_store %arg38[%c48_404, %c0_405], %417 {strides = array<i32>} : memref<200x256xf32, #tpu.memory_space<vmem>>, vector<8x256xf32>,
    %c0_406 = arith.constant 0 : index
    %c112_407 = arith.constant 112 : index
    %419 = vector.load %arg31[%c0_406, %c112_407] : memref<8x512xf32, #tpu.memory_space<vmem>>, vector<8x256xf32>
    %c7_408 = arith.constant 7 : index
    %c0_409 = arith.constant 0 : index
    %420 = vector.load %arg16[%c7_408, %c0_409] : memref<25x256xf32, #tpu.memory_space<vmem>>, vector<1x256xf32>
    %421 = vector.broadcast %420 : vector<1x256xf32> to vector<8x256xf32>
    %422 = arith.mulf %419, %421 : vector<8x256xf32>
    %c56_410 = arith.constant 56 : index
    %c0_411 = arith.constant 0 : index
    %423 = vector.load %arg38[%c56_410, %c0_411] : memref<200x256xf32, #tpu.memory_space<vmem>>, vector<8x256xf32>
    tpu.vector_store %arg38[%c56_410, %c0_411], %422 {strides = array<i32>} : memref<200x256xf32, #tpu.memory_space<vmem>>, vector<8x256xf32>,
    %c0_412 = arith.constant 0 : index
    %c113_413 = arith.constant 113 : index
    %424 = vector.load %arg31[%c0_412, %c113_413] : memref<8x512xf32, #tpu.memory_space<vmem>>, vector<8x256xf32>
    %c8_414 = arith.constant 8 : index
    %c0_415 = arith.constant 0 : index
    %425 = vector.load %arg16[%c8_414, %c0_415] : memref<25x256xf32, #tpu.memory_space<vmem>>, vector<1x256xf32>
    %426 = vector.broadcast %425 : vector<1x256xf32> to vector<8x256xf32>
    %427 = arith.mulf %424, %426 : vector<8x256xf32>
    %c64_416 = arith.constant 64 : index
    %c0_417 = arith.constant 0 : index
    %428 = vector.load %arg38[%c64_416, %c0_417] : memref<200x256xf32, #tpu.memory_space<vmem>>, vector<8x256xf32>
    tpu.vector_store %arg38[%c64_416, %c0_417], %427 {strides = array<i32>} : memref<200x256xf32, #tpu.memory_space<vmem>>, vector<8x256xf32>,
    %c0_418 = arith.constant 0 : index
    %c114_419 = arith.constant 114 : index
    %429 = vector.load %arg31[%c0_418, %c114_419] : memref<8x512xf32, #tpu.memory_space<vmem>>, vector<8x256xf32>
    %c9_420 = arith.constant 9 : index
    %c0_421 = arith.constant 0 : index
    %430 = vector.load %arg16[%c9_420, %c0_421] : memref<25x256xf32, #tpu.memory_space<vmem>>, vector<1x256xf32>
    %431 = vector.broadcast %430 : vector<1x256xf32> to vector<8x256xf32>
    %432 = arith.mulf %429, %431 : vector<8x256xf32>
    %c72_422 = arith.constant 72 : index
    %c0_423 = arith.constant 0 : index
    %433 = vector.load %arg38[%c72_422, %c0_423] : memref<200x256xf32, #tpu.memory_space<vmem>>, vector<8x256xf32>
    tpu.vector_store %arg38[%c72_422, %c0_423], %432 {strides = array<i32>} : memref<200x256xf32, #tpu.memory_space<vmem>>, vector<8x256xf32>,
    %c0_424 = arith.constant 0 : index
    %c126_425 = arith.constant 126 : index
    %434 = vector.load %arg31[%c0_424, %c126_425] : memref<8x512xf32, #tpu.memory_space<vmem>>, vector<8x256xf32>
    %c10_426 = arith.constant 10 : index
    %c0_427 = arith.constant 0 : index
    %435 = vector.load %arg16[%c10_426, %c0_427] : memref<25x256xf32, #tpu.memory_space<vmem>>, vector<1x256xf32>
    %436 = vector.broadcast %435 : vector<1x256xf32> to vector<8x256xf32>
    %437 = arith.mulf %434, %436 : vector<8x256xf32>
    %c80_428 = arith.constant 80 : index
    %c0_429 = arith.constant 0 : index
    %438 = vector.load %arg38[%c80_428, %c0_429] : memref<200x256xf32, #tpu.memory_space<vmem>>, vector<8x256xf32>
    tpu.vector_store %arg38[%c80_428, %c0_429], %437 {strides = array<i32>} : memref<200x256xf32, #tpu.memory_space<vmem>>, vector<8x256xf32>,
    %c0_430 = arith.constant 0 : index
    %c127_431 = arith.constant 127 : index
    %439 = vector.load %arg31[%c0_430, %c127_431] : memref<8x512xf32, #tpu.memory_space<vmem>>, vector<8x256xf32>
    %c11_432 = arith.constant 11 : index
    %c0_433 = arith.constant 0 : index
    %440 = vector.load %arg16[%c11_432, %c0_433] : memref<25x256xf32, #tpu.memory_space<vmem>>, vector<1x256xf32>
    %441 = vector.broadcast %440 : vector<1x256xf32> to vector<8x256xf32>
    %442 = arith.mulf %439, %441 : vector<8x256xf32>
    %c88_434 = arith.constant 88 : index
    %c0_435 = arith.constant 0 : index
    %443 = vector.load %arg38[%c88_434, %c0_435] : memref<200x256xf32, #tpu.memory_space<vmem>>, vector<8x256xf32>
    tpu.vector_store %arg38[%c88_434, %c0_435], %442 {strides = array<i32>} : memref<200x256xf32, #tpu.memory_space<vmem>>, vector<8x256xf32>,
    %c0_436 = arith.constant 0 : index
    %c128_437 = arith.constant 128 : index
    %444 = vector.load %arg31[%c0_436, %c128_437] : memref<8x512xf32, #tpu.memory_space<vmem>>, vector<8x256xf32>
    %c96_438 = arith.constant 96 : index
    %c0_439 = arith.constant 0 : index
    %445 = vector.load %arg38[%c96_438, %c0_439] : memref<200x256xf32, #tpu.memory_space<vmem>>, vector<8x256xf32>
    tpu.vector_store %arg38[%c96_438, %c0_439], %444 {strides = array<i32>} : memref<200x256xf32, #tpu.memory_space<vmem>>, vector<8x256xf32>,
    %c0_440 = arith.constant 0 : index
    %c129_441 = arith.constant 129 : index
    %446 = vector.load %arg31[%c0_440, %c129_441] : memref<8x512xf32, #tpu.memory_space<vmem>>, vector<8x256xf32>
    %c13_442 = arith.constant 13 : index
    %c0_443 = arith.constant 0 : index
    %447 = vector.load %arg16[%c13_442, %c0_443] : memref<25x256xf32, #tpu.memory_space<vmem>>, vector<1x256xf32>
    %448 = vector.broadcast %447 : vector<1x256xf32> to vector<8x256xf32>
    %449 = arith.mulf %446, %448 : vector<8x256xf32>
    %c104 = arith.constant 104 : index
    %c0_444 = arith.constant 0 : index
    %450 = vector.load %arg38[%c104, %c0_444] : memref<200x256xf32, #tpu.memory_space<vmem>>, vector<8x256xf32>
    tpu.vector_store %arg38[%c104, %c0_444], %449 {strides = array<i32>} : memref<200x256xf32, #tpu.memory_space<vmem>>, vector<8x256xf32>,
    %c0_445 = arith.constant 0 : index
    %c130_446 = arith.constant 130 : index
    %451 = vector.load %arg31[%c0_445, %c130_446] : memref<8x512xf32, #tpu.memory_space<vmem>>, vector<8x256xf32>
    %c14_447 = arith.constant 14 : index
    %c0_448 = arith.constant 0 : index
    %452 = vector.load %arg16[%c14_447, %c0_448] : memref<25x256xf32, #tpu.memory_space<vmem>>, vector<1x256xf32>
    %453 = vector.broadcast %452 : vector<1x256xf32> to vector<8x256xf32>
    %454 = arith.mulf %451, %453 : vector<8x256xf32>
    %c112_449 = arith.constant 112 : index
    %c0_450 = arith.constant 0 : index
    %455 = vector.load %arg38[%c112_449, %c0_450] : memref<200x256xf32, #tpu.memory_space<vmem>>, vector<8x256xf32>
    tpu.vector_store %arg38[%c112_449, %c0_450], %454 {strides = array<i32>} : memref<200x256xf32, #tpu.memory_space<vmem>>, vector<8x256xf32>,
    %c0_451 = arith.constant 0 : index
    %c142_452 = arith.constant 142 : index
    %456 = vector.load %arg31[%c0_451, %c142_452] : memref<8x512xf32, #tpu.memory_space<vmem>>, vector<8x256xf32>
    %c15_453 = arith.constant 15 : index
    %c0_454 = arith.constant 0 : index
    %457 = vector.load %arg16[%c15_453, %c0_454] : memref<25x256xf32, #tpu.memory_space<vmem>>, vector<1x256xf32>
    %458 = vector.broadcast %457 : vector<1x256xf32> to vector<8x256xf32>
    %459 = arith.mulf %456, %458 : vector<8x256xf32>
    %c120_455 = arith.constant 120 : index
    %c0_456 = arith.constant 0 : index
    %460 = vector.load %arg38[%c120_455, %c0_456] : memref<200x256xf32, #tpu.memory_space<vmem>>, vector<8x256xf32>
    tpu.vector_store %arg38[%c120_455, %c0_456], %459 {strides = array<i32>} : memref<200x256xf32, #tpu.memory_space<vmem>>, vector<8x256xf32>,
    %c0_457 = arith.constant 0 : index
    %c143_458 = arith.constant 143 : index
    %461 = vector.load %arg31[%c0_457, %c143_458] : memref<8x512xf32, #tpu.memory_space<vmem>>, vector<8x256xf32>
    %c16_459 = arith.constant 16 : index
    %c0_460 = arith.constant 0 : index
    %462 = vector.load %arg16[%c16_459, %c0_460] : memref<25x256xf32, #tpu.memory_space<vmem>>, vector<1x256xf32>
    %463 = vector.broadcast %462 : vector<1x256xf32> to vector<8x256xf32>
    %464 = arith.mulf %461, %463 : vector<8x256xf32>
    %c128_461 = arith.constant 128 : index
    %c0_462 = arith.constant 0 : index
    %465 = vector.load %arg38[%c128_461, %c0_462] : memref<200x256xf32, #tpu.memory_space<vmem>>, vector<8x256xf32>
    tpu.vector_store %arg38[%c128_461, %c0_462], %464 {strides = array<i32>} : memref<200x256xf32, #tpu.memory_space<vmem>>, vector<8x256xf32>,
    %c0_463 = arith.constant 0 : index
    %c144_464 = arith.constant 144 : index
    %466 = vector.load %arg31[%c0_463, %c144_464] : memref<8x512xf32, #tpu.memory_space<vmem>>, vector<8x256xf32>
    %c17_465 = arith.constant 17 : index
    %c0_466 = arith.constant 0 : index
    %467 = vector.load %arg16[%c17_465, %c0_466] : memref<25x256xf32, #tpu.memory_space<vmem>>, vector<1x256xf32>
    %468 = vector.broadcast %467 : vector<1x256xf32> to vector<8x256xf32>
    %469 = arith.mulf %466, %468 : vector<8x256xf32>
    %c136_467 = arith.constant 136 : index
    %c0_468 = arith.constant 0 : index
    %470 = vector.load %arg38[%c136_467, %c0_468] : memref<200x256xf32, #tpu.memory_space<vmem>>, vector<8x256xf32>
    tpu.vector_store %arg38[%c136_467, %c0_468], %469 {strides = array<i32>} : memref<200x256xf32, #tpu.memory_space<vmem>>, vector<8x256xf32>,
    %c0_469 = arith.constant 0 : index
    %c145_470 = arith.constant 145 : index
    %471 = vector.load %arg31[%c0_469, %c145_470] : memref<8x512xf32, #tpu.memory_space<vmem>>, vector<8x256xf32>
    %c18_471 = arith.constant 18 : index
    %c0_472 = arith.constant 0 : index
    %472 = vector.load %arg16[%c18_471, %c0_472] : memref<25x256xf32, #tpu.memory_space<vmem>>, vector<1x256xf32>
    %473 = vector.broadcast %472 : vector<1x256xf32> to vector<8x256xf32>
    %474 = arith.mulf %471, %473 : vector<8x256xf32>
    %c144_473 = arith.constant 144 : index
    %c0_474 = arith.constant 0 : index
    %475 = vector.load %arg38[%c144_473, %c0_474] : memref<200x256xf32, #tpu.memory_space<vmem>>, vector<8x256xf32>
    tpu.vector_store %arg38[%c144_473, %c0_474], %474 {strides = array<i32>} : memref<200x256xf32, #tpu.memory_space<vmem>>, vector<8x256xf32>,
    %c0_475 = arith.constant 0 : index
    %c146_476 = arith.constant 146 : index
    %476 = vector.load %arg31[%c0_475, %c146_476] : memref<8x512xf32, #tpu.memory_space<vmem>>, vector<8x256xf32>
    %c19_477 = arith.constant 19 : index
    %c0_478 = arith.constant 0 : index
    %477 = vector.load %arg16[%c19_477, %c0_478] : memref<25x256xf32, #tpu.memory_space<vmem>>, vector<1x256xf32>
    %478 = vector.broadcast %477 : vector<1x256xf32> to vector<8x256xf32>
    %479 = arith.mulf %476, %478 : vector<8x256xf32>
    %c152 = arith.constant 152 : index
    %c0_479 = arith.constant 0 : index
    %480 = vector.load %arg38[%c152, %c0_479] : memref<200x256xf32, #tpu.memory_space<vmem>>, vector<8x256xf32>
    tpu.vector_store %arg38[%c152, %c0_479], %479 {strides = array<i32>} : memref<200x256xf32, #tpu.memory_space<vmem>>, vector<8x256xf32>,
    %c0_480 = arith.constant 0 : index
    %c158_481 = arith.constant 158 : index
    %481 = vector.load %arg31[%c0_480, %c158_481] : memref<8x512xf32, #tpu.memory_space<vmem>>, vector<8x256xf32>
    %c20_482 = arith.constant 20 : index
    %c0_483 = arith.constant 0 : index
    %482 = vector.load %arg16[%c20_482, %c0_483] : memref<25x256xf32, #tpu.memory_space<vmem>>, vector<1x256xf32>
    %483 = vector.broadcast %482 : vector<1x256xf32> to vector<8x256xf32>
    %484 = arith.mulf %481, %483 : vector<8x256xf32>
    %c160_484 = arith.constant 160 : index
    %c0_485 = arith.constant 0 : index
    %485 = vector.load %arg38[%c160_484, %c0_485] : memref<200x256xf32, #tpu.memory_space<vmem>>, vector<8x256xf32>
    tpu.vector_store %arg38[%c160_484, %c0_485], %484 {strides = array<i32>} : memref<200x256xf32, #tpu.memory_space<vmem>>, vector<8x256xf32>,
    %c0_486 = arith.constant 0 : index
    %c159_487 = arith.constant 159 : index
    %486 = vector.load %arg31[%c0_486, %c159_487] : memref<8x512xf32, #tpu.memory_space<vmem>>, vector<8x256xf32>
    %c21_488 = arith.constant 21 : index
    %c0_489 = arith.constant 0 : index
    %487 = vector.load %arg16[%c21_488, %c0_489] : memref<25x256xf32, #tpu.memory_space<vmem>>, vector<1x256xf32>
    %488 = vector.broadcast %487 : vector<1x256xf32> to vector<8x256xf32>
    %489 = arith.mulf %486, %488 : vector<8x256xf32>
    %c168 = arith.constant 168 : index
    %c0_490 = arith.constant 0 : index
    %490 = vector.load %arg38[%c168, %c0_490] : memref<200x256xf32, #tpu.memory_space<vmem>>, vector<8x256xf32>
    tpu.vector_store %arg38[%c168, %c0_490], %489 {strides = array<i32>} : memref<200x256xf32, #tpu.memory_space<vmem>>, vector<8x256xf32>,
    %c0_491 = arith.constant 0 : index
    %c160_492 = arith.constant 160 : index
    %491 = vector.load %arg31[%c0_491, %c160_492] : memref<8x512xf32, #tpu.memory_space<vmem>>, vector<8x256xf32>
    %c22_493 = arith.constant 22 : index
    %c0_494 = arith.constant 0 : index
    %492 = vector.load %arg16[%c22_493, %c0_494] : memref<25x256xf32, #tpu.memory_space<vmem>>, vector<1x256xf32>
    %493 = vector.broadcast %492 : vector<1x256xf32> to vector<8x256xf32>
    %494 = arith.mulf %491, %493 : vector<8x256xf32>
    %c176 = arith.constant 176 : index
    %c0_495 = arith.constant 0 : index
    %495 = vector.load %arg38[%c176, %c0_495] : memref<200x256xf32, #tpu.memory_space<vmem>>, vector<8x256xf32>
    tpu.vector_store %arg38[%c176, %c0_495], %494 {strides = array<i32>} : memref<200x256xf32, #tpu.memory_space<vmem>>, vector<8x256xf32>,
    %c0_496 = arith.constant 0 : index
    %c161_497 = arith.constant 161 : index
    %496 = vector.load %arg31[%c0_496, %c161_497] : memref<8x512xf32, #tpu.memory_space<vmem>>, vector<8x256xf32>
    %c23_498 = arith.constant 23 : index
    %c0_499 = arith.constant 0 : index
    %497 = vector.load %arg16[%c23_498, %c0_499] : memref<25x256xf32, #tpu.memory_space<vmem>>, vector<1x256xf32>
    %498 = vector.broadcast %497 : vector<1x256xf32> to vector<8x256xf32>
    %499 = arith.mulf %496, %498 : vector<8x256xf32>
    %c184 = arith.constant 184 : index
    %c0_500 = arith.constant 0 : index
    %500 = vector.load %arg38[%c184, %c0_500] : memref<200x256xf32, #tpu.memory_space<vmem>>, vector<8x256xf32>
    tpu.vector_store %arg38[%c184, %c0_500], %499 {strides = array<i32>} : memref<200x256xf32, #tpu.memory_space<vmem>>, vector<8x256xf32>,
    %c0_501 = arith.constant 0 : index
    %c162_502 = arith.constant 162 : index
    %501 = vector.load %arg31[%c0_501, %c162_502] : memref<8x512xf32, #tpu.memory_space<vmem>>, vector<8x256xf32>
    %c24_503 = arith.constant 24 : index
    %c0_504 = arith.constant 0 : index
    %502 = vector.load %arg16[%c24_503, %c0_504] : memref<25x256xf32, #tpu.memory_space<vmem>>, vector<1x256xf32>
    %503 = vector.broadcast %502 : vector<1x256xf32> to vector<8x256xf32>
    %504 = arith.mulf %501, %503 : vector<8x256xf32>
    %c192_505 = arith.constant 192 : index
    %c0_506 = arith.constant 0 : index
    %505 = vector.load %arg38[%c192_505, %c0_506] : memref<200x256xf32, #tpu.memory_space<vmem>>, vector<8x256xf32>
    tpu.vector_store %arg38[%c192_505, %c0_506], %504 {strides = array<i32>} : memref<200x256xf32, #tpu.memory_space<vmem>>, vector<8x256xf32>,
    %c0_507 = arith.constant 0 : index
    %c0_508 = arith.constant 0 : index
    %506 = vector.load %arg14[%c0_507, %c0_508] : memref<4x200xbf16, #tpu.memory_space<vmem>>, vector<4x200xbf16>
    %c0_509 = arith.constant 0 : index
    %c0_510 = arith.constant 0 : index
    %507 = vector.load %arg38[%c0_509, %c0_510] : memref<200x256xf32, #tpu.memory_space<vmem>>, vector<200x256xf32>
    %508 = arith.truncf %507 : vector<200x256xf32> to vector<200x256xbf16>
    %cst_511 = arith.constant dense<0.000000e+00> : vector<4x256xf32>
    %509 = tpu.matmul %506, %508, %cst_511 {dimension_numbers = #tpu.dot_dimension_numbers<[1], [0], [0], [1], [0, 0, 1, 1], [], []>} : vector<4x200xbf16>, vector<200x256xbf16>, vector<4x256xf32> -> vector<4x256xf32>
    %c0_512 = arith.constant 0 : index
    %c0_513 = arith.constant 0 : index
    %510 = vector.load %arg15[%c0_512, %c0_513] : memref<4x1xf32, #tpu.memory_space<vmem>>, vector<4x1xf32>
    %511 = vector.broadcast %510 : vector<4x1xf32> to vector<4x256xf32>
    %512 = arith.addf %509, %511 : vector<4x256xf32>
    %513 = arith.negf %512 : vector<4x256xf32>
    %514 = math.exp %513 : vector<4x256xf32>
    %cst_514 = arith.constant 1.000000e+00 : f32
    %515 = vector.broadcast %cst_514 : f32 to vector<4x256xf32>
    %516 = arith.addf %515, %514 : vector<4x256xf32>
    %517 = arith.divf %515, %516 : vector<4x256xf32>
    %c0_515 = arith.constant 0 : index
    %c0_516 = arith.constant 0 : index
    %c0_517 = arith.constant 0 : index
    %518 = vector.load %arg26[%c0_515, %c0_516, %c0_517] : memref<1x4x256xf32, #tpu.memory_space<vmem>>, vector<1x4x256xf32>
    %519 = vector.shape_cast %518 : vector<1x4x256xf32> to vector<4x256xf32>
    %520 = vector.shape_cast %517 : vector<4x256xf32> to vector<1x4x256xf32>
    tpu.vector_store %arg26[%c0_515, %c0_516, %c0_517], %520 {strides = array<i32>} : memref<1x4x256xf32, #tpu.memory_space<vmem>>, vector<1x4x256xf32>,
    return
  }
  func.func @transform_0(%arg0: i32) -> (i32, i32, i32) {
    %c0_i32 = arith.constant 0 : i32
    %c0_i32_0 = arith.constant 0 : i32
    %c0_i32_1 = arith.constant 0 : i32
    return %arg0, %c0_i32, %c0_i32_0 : i32, i32, i32
  }
  func.func @transform_1(%arg0: i32) -> (i32, i32) {
    %c0_i32 = arith.constant 0 : i32
    %c0_i32_0 = arith.constant 0 : i32
    %c0_i32_1 = arith.constant 0 : i32
    return %c0_i32, %c0_i32_0 : i32, i32
  }
  func.func @transform_2(%arg0: i32) -> (i32, i32) {
    %c0_i32 = arith.constant 0 : i32
    %c0_i32_0 = arith.constant 0 : i32
    %c0_i32_1 = arith.constant 0 : i32
    return %c0_i32, %c0_i32_0 : i32, i32
  }
  func.func @transform_3(%arg0: i32) -> (i32, i32) {
    %c0_i32 = arith.constant 0 : i32
    %c0_i32_0 = arith.constant 0 : i32
    %c0_i32_1 = arith.constant 0 : i32
    return %c0_i32, %c0_i32_0 : i32, i32
  }
  func.func @transform_4(%arg0: i32) -> (i32, i32) {
    %c0_i32 = arith.constant 0 : i32
    %c0_i32_0 = arith.constant 0 : i32
    %c0_i32_1 = arith.constant 0 : i32
    return %c0_i32, %c0_i32_0 : i32, i32
  }
  func.func @transform_5(%arg0: i32) -> (i32, i32) {
    %c0_i32 = arith.constant 0 : i32
    %c0_i32_0 = arith.constant 0 : i32
    %c0_i32_1 = arith.constant 0 : i32
    return %c0_i32, %c0_i32_0 : i32, i32
  }
  func.func @transform_6(%arg0: i32) -> (i32, i32) {
    %c0_i32 = arith.constant 0 : i32
    %c0_i32_0 = arith.constant 0 : i32
    %c0_i32_1 = arith.constant 0 : i32
    return %c0_i32, %c0_i32_0 : i32, i32
  }
  func.func @transform_7(%arg0: i32) -> (i32, i32) {
    %c0_i32 = arith.constant 0 : i32
    %c0_i32_0 = arith.constant 0 : i32
    %c0_i32_1 = arith.constant 0 : i32
    return %c0_i32, %c0_i32_0 : i32, i32
  }
  func.func @transform_8(%arg0: i32) -> (i32, i32) {
    %c0_i32 = arith.constant 0 : i32
    %c0_i32_0 = arith.constant 0 : i32
    %c0_i32_1 = arith.constant 0 : i32
    return %c0_i32, %c0_i32_0 : i32, i32
  }
  func.func @transform_9(%arg0: i32) -> (i32, i32) {
    %c0_i32 = arith.constant 0 : i32
    %c0_i32_0 = arith.constant 0 : i32
    %c0_i32_1 = arith.constant 0 : i32
    return %c0_i32, %c0_i32_0 : i32, i32
  }
  func.func @transform_10(%arg0: i32) -> (i32, i32) {
    %c0_i32 = arith.constant 0 : i32
    %c0_i32_0 = arith.constant 0 : i32
    %c0_i32_1 = arith.constant 0 : i32
    return %c0_i32, %c0_i32_0 : i32, i32
  }
  func.func @transform_11(%arg0: i32) -> (i32, i32) {
    %c0_i32 = arith.constant 0 : i32
    %c0_i32_0 = arith.constant 0 : i32
    %c0_i32_1 = arith.constant 0 : i32
    return %c0_i32, %c0_i32_0 : i32, i32
  }
  func.func @transform_12(%arg0: i32) -> (i32, i32) {
    %c0_i32 = arith.constant 0 : i32
    %c0_i32_0 = arith.constant 0 : i32
    %c0_i32_1 = arith.constant 0 : i32
    return %c0_i32, %c0_i32_0 : i32, i32
  }
  func.func @transform_13(%arg0: i32) -> (i32, i32) {
    %c0_i32 = arith.constant 0 : i32
    %c0_i32_0 = arith.constant 0 : i32
    %c0_i32_1 = arith.constant 0 : i32
    return %c0_i32, %c0_i32_0 : i32, i32
  }
  func.func @transform_14(%arg0: i32) -> (i32, i32) {
    %c0_i32 = arith.constant 0 : i32
    %c0_i32_0 = arith.constant 0 : i32
    %c0_i32_1 = arith.constant 0 : i32
    return %c0_i32, %c0_i32_0 : i32, i32
  }
  func.func @transform_15(%arg0: i32) -> (i32, i32) {
    %c0_i32 = arith.constant 0 : i32
    %c0_i32_0 = arith.constant 0 : i32
    %c0_i32_1 = arith.constant 0 : i32
    return %c0_i32, %c0_i32_0 : i32, i32
  }
  func.func @transform_16(%arg0: i32) -> (i32, i32) {
    %c0_i32 = arith.constant 0 : i32
    %c0_i32_0 = arith.constant 0 : i32
    %c0_i32_1 = arith.constant 0 : i32
    return %c0_i32, %c0_i32_0 : i32, i32
  }
  func.func @transform_17(%arg0: i32) -> (i32, i32) {
    %c0_i32 = arith.constant 0 : i32
    %c0_i32_0 = arith.constant 0 : i32
    %c0_i32_1 = arith.constant 0 : i32
    return %c0_i32, %c0_i32_0 : i32, i32
  }
  func.func @transform_18(%arg0: i32) -> (i32, i32) {
    %c0_i32 = arith.constant 0 : i32
    %c0_i32_0 = arith.constant 0 : i32
    %c0_i32_1 = arith.constant 0 : i32
    return %c0_i32, %c0_i32_0 : i32, i32
  }
  func.func @transform_19(%arg0: i32) -> (i32, i32) {
    %c0_i32 = arith.constant 0 : i32
    %c0_i32_0 = arith.constant 0 : i32
    %c0_i32_1 = arith.constant 0 : i32
    return %c0_i32, %c0_i32_0 : i32, i32
  }
  func.func @transform_20(%arg0: i32) -> (i32, i32) {
    %c0_i32 = arith.constant 0 : i32
    %c0_i32_0 = arith.constant 0 : i32
    %c0_i32_1 = arith.constant 0 : i32
    return %c0_i32, %c0_i32_0 : i32, i32
  }
  func.func @transform_21(%arg0: i32) -> (i32, i32) {
    %c0_i32 = arith.constant 0 : i32
    %c0_i32_0 = arith.constant 0 : i32
    %c0_i32_1 = arith.constant 0 : i32
    return %c0_i32, %c0_i32_0 : i32, i32
  }
  func.func @transform_22(%arg0: i32) -> (i32, i32) {
    %c0_i32 = arith.constant 0 : i32
    %c0_i32_0 = arith.constant 0 : i32
    %c0_i32_1 = arith.constant 0 : i32
    return %c0_i32, %c0_i32_0 : i32, i32
  }
  func.func @transform_23(%arg0: i32) -> (i32, i32) {
    %c0_i32 = arith.constant 0 : i32
    %c0_i32_0 = arith.constant 0 : i32
    %c0_i32_1 = arith.constant 0 : i32
    return %c0_i32, %c0_i32_0 : i32, i32
  }
  func.func @transform_24(%arg0: i32) -> (i32, i32) {
    %c0_i32 = arith.constant 0 : i32
    %c0_i32_0 = arith.constant 0 : i32
    %c0_i32_1 = arith.constant 0 : i32
    return %c0_i32, %c0_i32_0 : i32, i32
  }
  func.func @transform_25(%arg0: i32) -> (i32, i32, i32) {
    %c0_i32 = arith.constant 0 : i32
    %c0_i32_0 = arith.constant 0 : i32
    %c0_i32_1 = arith.constant 0 : i32
    return %arg0, %c0_i32, %c0_i32_0 : i32, i32, i32
  }
}

</mosaic_0001>

<llo_original>
// kernel: autoencoder_forward.1
$region0: #{autoencoder_forward.1}
  #allocation0 [shape = 'u32[]', space=smem, size = 0x4, offset = 0x4, fixed_abs, tag = 'smem constant byte address 0x4 - core index']
  #allocation1 [shape = 'u32[72,128]{1,0:T(1,128)}', space=vmem, size = 0x9000, scoped, tag = 'internal scratch']
  #allocation2 [shape = 'f32[4,512]{1,0:T(4,128)}', space=vmem, size = 0x2000, scoped, tag = 'scratch operand']
  #allocation3 [shape = 'f32[8,320]{1,0:T(8,128)}', space=vmem, size = 0x3000, scoped, tag = 'scratch operand']
  #allocation4 [shape = 'f32[16,320]{1,0:T(8,128)}', space=vmem, size = 0x6000, scoped, tag = 'scratch operand']
  #allocation5 [shape = 'f32[16,512]{1,0:T(8,128)}', space=vmem, size = 0x8000, scoped, tag = 'scratch operand']
  #allocation6 [shape = 'f32[8,512]{1,0:T(8,128)}', space=vmem, size = 0x4000, scoped, tag = 'scratch operand']
  #allocation7 [shape = 'f32[8,384]{1,0:T(8,128)}', space=vmem, size = 0x3000, scoped, tag = 'scratch operand']
  #allocation8 [shape = 'f32[16,192]{1,0:T(8,128)}', space=vmem, size = 0x4000, scoped, tag = 'scratch operand']
  #allocation9 [shape = 'f32[100,256]{1,0:T(8,128)}', space=vmem, size = 0x1a000, scoped, tag = 'scratch operand']
  #allocation10 [shape = 'f32[72,64]{1,0:T(8,128)}', space=vmem, size = 0x9000, scoped, tag = 'scratch operand']
  #allocation11 [shape = 'f32[144,64]{1,0:T(8,128)}', space=vmem, size = 0x12000, scoped, tag = 'scratch operand']
  #allocation12 [shape = 'f32[144,256]{1,0:T(8,128)}', space=vmem, size = 0x24000, scoped, tag = 'scratch operand']
  #allocation13 [shape = 'f32[200,256]{1,0:T(8,128)}', space=vmem, size = 0x32000, scoped, tag = 'scratch operand']
  %s0 = inlined_call_operand.vmem [shape: f32[2,4,256], index: 0, kind: input, shape index: {}]
  %s1 = inlined_call_operand.vmem [shape: bf16[8,100], index: 1, kind: input, shape index: {}]
  %s2 = inlined_call_operand.vmem [shape: f32[8,1], index: 2, kind: input, shape index: {}]
  %s3 = inlined_call_operand.vmem [shape: bf16[16,72], index: 3, kind: input, shape index: {}]
  %s4 = inlined_call_operand.vmem [shape: f32[16,1], index: 4, kind: input, shape index: {}]
  %s5 = inlined_call_operand.vmem [shape: bf16[256,32], index: 5, kind: input, shape index: {}]
  %s6 = inlined_call_operand.vmem [shape: f32[1,32], index: 6, kind: input, shape index: {}]
  %s7 = inlined_call_operand.vmem [shape: bf16[32,256], index: 7, kind: input, shape index: {}]
  %s8 = inlined_call_operand.vmem [shape: f32[1,256], index: 8, kind: input, shape index: {}]
  %s9 = inlined_call_operand.vmem [shape: bf16[16,144], index: 9, kind: input, shape index: {}]
  %s10 = inlined_call_operand.vmem [shape: f32[16,1], index: 10, kind: input, shape index: {}]
  %s11 = inlined_call_operand.vmem [shape: bf16[8,144], index: 11, kind: input, shape index: {}]
  %s12 = inlined_call_operand.vmem [shape: f32[8,1], index: 12, kind: input, shape index: {}]
  %s13 = inlined_call_operand.vmem [shape: bf16[4,200], index: 13, kind: input, shape index: {}]
  %s14 = inlined_call_operand.vmem [shape: f32[4,1], index: 14, kind: input, shape index: {}]
  %s15 = inlined_call_operand.vmem [shape: f32[25,256], index: 15, kind: input, shape index: {}]
  %s16 = inlined_call_operand.vmem [shape: f32[9,256], index: 16, kind: input, shape index: {}]
  %s17 = inlined_call_operand.vmem [shape: f32[9,64], index: 17, kind: input, shape index: {}]
  %s18 = inlined_call_operand.vmem [shape: bf16[256,64], index: 18, kind: input, shape index: {}]
  %s19 = inlined_call_operand.vmem [shape: bf16[64,16], index: 19, kind: input, shape index: {}]
  %s20 = inlined_call_operand.vmem [shape: bf16[16,64], index: 20, kind: input, shape index: {}]
  %s21 = inlined_call_operand.vmem [shape: bf16[64,256], index: 21, kind: input, shape index: {}]
  %s22 = inlined_call_operand.vmem [shape: bf16[16,256], index: 22, kind: input, shape index: {}]
  %s23 = inlined_call_operand.vmem [shape: bf16[256,16], index: 23, kind: input, shape index: {}]
  %s24 = inlined_call_operand.vmem [shape: f32[16,256], index: 24, kind: input, shape index: {}]
  %s25 = inlined_call_operand.vmem [shape: f32[2,4,256], index: 25, kind: output, shape index: {}]
  %s26 = sld [smem:[#allocation0]]
  $region133: #{autoencoder_forward.1} parent=0
    _
  %s28 = ssub.s32 1, %s26
  %s29 = scalar_select 0, %s28, %s26
  loop: start=0, step=1, limit=4
  $region2: #{autoencoder_forward.1} parent=0 // loop_pre_header
    _
  $region3: #{autoencoder_forward.1} parent=0 // loop_header
    %s31 = sphi 0, %s35
    %p32 = scmp.ge.s32.totalorder %s31, 4
    %s41 = sphi 0, %s43
    %s44 = sphi 0, %s41
    %s45 = sphi 0, %s44
    %s61 = sphi 0, %s45
    %s65 = sphi 0, %s65
    %s67 = sphi 0, %s65
    %s68 = sphi 0, %s67
    %s82 = sphi 0, %s68
    %s86 = sphi 0, %s86
    %s88 = sphi 0, %s86
    %s89 = sphi 0, %s88
    %s103 = sphi 0, %s89
    %s107 = sphi 0, %s107
    %s109 = sphi 0, %s107
    %s110 = sphi 0, %s109
    %s124 = sphi 0, %s110
    %s128 = sphi 0, %s128
    %s130 = sphi 0, %s128
    %s131 = sphi 0, %s130
    %s145 = sphi 0, %s131
    %s149 = sphi 0, %s149
    %s151 = sphi 0, %s149
    %s152 = sphi 0, %s151
    %s166 = sphi 0, %s152
    %s170 = sphi 0, %s170
    %s172 = sphi 0, %s170
    %s173 = sphi 0, %s172
    %s187 = sphi 0, %s173
    %s191 = sphi 0, %s191
    %s193 = sphi 0, %s191
    %s194 = sphi 0, %s193
    %s208 = sphi 0, %s194
    %s212 = sphi 0, %s212
    %s214 = sphi 0, %s212
    %s215 = sphi 0, %s214
    %s229 = sphi 0, %s215
    %s233 = sphi 0, %s233
    %s235 = sphi 0, %s233
    %s236 = sphi 0, %s235
    %s250 = sphi 0, %s236
    %s254 = sphi 0, %s254
    %s256 = sphi 0, %s254
    %s257 = sphi 0, %s256
    %s271 = sphi 0, %s257
    %s275 = sphi 0, %s275
    %s277 = sphi 0, %s275
    %s278 = sphi 0, %s277
    %s292 = sphi 0, %s278
    %s296 = sphi 0, %s296
    %s298 = sphi 0, %s296
    %s299 = sphi 0, %s298
    %s313 = sphi 0, %s299
    %s317 = sphi 0, %s317
    %s319 = sphi 0, %s317
    %s320 = sphi 0, %s319
    %s334 = sphi 0, %s320
    %s338 = sphi 0, %s338
    %s340 = sphi 0, %s338
    %s341 = sphi 0, %s340
    %s355 = sphi 0, %s341
    %s359 = sphi 0, %s359
    %s361 = sphi 0, %s359
    %s362 = sphi 0, %s361
    %s376 = sphi 0, %s362
    %s380 = sphi 0, %s380
    %s382 = sphi 0, %s380
    %s383 = sphi 0, %s382
    %s397 = sphi 0, %s383
    %s401 = sphi 0, %s401
    %s403 = sphi 0, %s401
    %s404 = sphi 0, %s403
    %s418 = sphi 0, %s404
    %s422 = sphi 0, %s422
    %s424 = sphi 0, %s422
    %s425 = sphi 0, %s424
    %s439 = sphi 0, %s425
    %s443 = sphi 0, %s443
    %s445 = sphi 0, %s443
    %s446 = sphi 0, %s445
    %s460 = sphi 0, %s446
    %s464 = sphi 0, %s464
    %s466 = sphi 0, %s464
    %s467 = sphi 0, %s466
    %s481 = sphi 0, %s467
    %s485 = sphi 0, %s485
    %s487 = sphi 0, %s485
    %s488 = sphi 0, %s487
    %s502 = sphi 0, %s488
    %s506 = sphi 0, %s506
    %s508 = sphi 0, %s506
    %s509 = sphi 0, %s508
    %s523 = sphi 0, %s509
    %s527 = sphi 0, %s527
    %s529 = sphi 0, %s527
    %s530 = sphi 0, %s529
    %s544 = sphi 0, %s530
    %s548 = sphi 0, %s548
    %s550 = sphi 0, %s548
    %s551 = sphi 0, %s550
    %s565 = sphi 0, %s551
    %s571 = sphi 0, %s573
    %s574 = sphi 0, %s571
    %s575 = sphi 0, %s574
    %s591 = sphi 0, %s575
  $region4: #{autoencoder_forward.1} parent=0 // loop_header_branch
    %34 = sbr.rel (%p32) target = $region8
  $region5: #{autoencoder_forward.1} parent=0 // loop_body
    %s36 = ssub.s32 %s31, 1
    %s37 = ssub.s32 %s31, 2
    %s38 = sadd.s32 %s31, 1
    %s39 = ssub.s32 %s31, %s38
    %p40 = scmp.eq.s32.totalorder %s39, 0
    %s42 = sadd.s32 %s41, 1
    %s43 = scalar_select %p40, %s41, %s42
    %p46 = pneg %p40
    %p47 = scmp.eq.s32.totalorder %s31, 1
    %p48 = por %p46, %p47
    %p49 = scmp.ne.s32.totalorder %s41, %s44
    %p50 = scmp.eq.s32.totalorder %s31, 0
    %p51 = por %p49, %p50
    %p52 = scmp.ne.s32.totalorder %s41, %s44
    %p53 = scmp.eq.s32.totalorder %s36, 1
    %p54 = por %p52, %p53
    %p55 = scmp.ne.s32.totalorder %s44, %s45
    %p56 = scmp.eq.s32.totalorder %s36, 0
    %p57 = por %p55, %p56
    %p58 = scmp.ne.s32.totalorder %s44, %s45
    %p59 = scmp.eq.s32.totalorder %s37, 1
    %p60 = por %p58, %p59
    %p62 = scmp.ne.s32.totalorder %s45, %s61
    %p63 = scmp.eq.s32.totalorder %s37, 0
    %p64 = por %p62, %p63
    %s66 = sadd.s32 %s65, 1
    %p69 = scmp.eq.s32.totalorder %s31, 1
    %p70 = scmp.ne.s32.totalorder %s65, %s67
    %p71 = scmp.eq.s32.totalorder %s31, 0
    %p72 = por %p70, %p71
    %p73 = scmp.ne.s32.totalorder %s65, %s67
    %p74 = scmp.eq.s32.totalorder %s36, 1
    %p75 = por %p73, %p74
    %p76 = scmp.ne.s32.totalorder %s67, %s68
    %p77 = scmp.eq.s32.totalorder %s36, 0
    %p78 = por %p76, %p77
    %p79 = scmp.ne.s32.totalorder %s67, %s68
    %p80 = scmp.eq.s32.totalorder %s37, 1
    %p81 = por %p79, %p80
    %p83 = scmp.ne.s32.totalorder %s68, %s82
    %p84 = scmp.eq.s32.totalorder %s37, 0
    %p85 = por %p83, %p84
    %s87 = sadd.s32 %s86, 1
    %p90 = scmp.eq.s32.totalorder %s31, 1
    %p91 = scmp.ne.s32.totalorder %s86, %s88
    %p92 = scmp.eq.s32.totalorder %s31, 0
    %p93 = por %p91, %p92
    %p94 = scmp.ne.s32.totalorder %s86, %s88
    %p95 = scmp.eq.s32.totalorder %s36, 1
    %p96 = por %p94, %p95
    %p97 = scmp.ne.s32.totalorder %s88, %s89
    %p98 = scmp.eq.s32.totalorder %s36, 0
    %p99 = por %p97, %p98
    %p100 = scmp.ne.s32.totalorder %s88, %s89
    %p101 = scmp.eq.s32.totalorder %s37, 1
    %p102 = por %p100, %p101
    %p104 = scmp.ne.s32.totalorder %s89, %s103
    %p105 = scmp.eq.s32.totalorder %s37, 0
    %p106 = por %p104, %p105
    %s108 = sadd.s32 %s107, 1
    %p111 = scmp.eq.s32.totalorder %s31, 1
    %p112 = scmp.ne.s32.totalorder %s107, %s109
    %p113 = scmp.eq.s32.totalorder %s31, 0
    %p114 = por %p112, %p113
    %p115 = scmp.ne.s32.totalorder %s107, %s109
    %p116 = scmp.eq.s32.totalorder %s36, 1
    %p117 = por %p115, %p116
    %p118 = scmp.ne.s32.totalorder %s109, %s110
    %p119 = scmp.eq.s32.totalorder %s36, 0
    %p120 = por %p118, %p119
    %p121 = scmp.ne.s32.totalorder %s109, %s110
    %p122 = scmp.eq.s32.totalorder %s37, 1
    %p123 = por %p121, %p122
    %p125 = scmp.ne.s32.totalorder %s110, %s124
    %p126 = scmp.eq.s32.totalorder %s37, 0
    %p127 = por %p125, %p126
    %s129 = sadd.s32 %s128, 1
    %p132 = scmp.eq.s32.totalorder %s31, 1
    %p133 = scmp.ne.s32.totalorder %s128, %s130
    %p134 = scmp.eq.s32.totalorder %s31, 0
    %p135 = por %p133, %p134
    %p136 = scmp.ne.s32.totalorder %s128, %s130
    %p137 = scmp.eq.s32.totalorder %s36, 1
    %p138 = por %p136, %p137
    %p139 = scmp.ne.s32.totalorder %s130, %s131
    %p140 = scmp.eq.s32.totalorder %s36, 0
    %p141 = por %p139, %p140
    %p142 = scmp.ne.s32.totalorder %s130, %s131
    %p143 = scmp.eq.s32.totalorder %s37, 1
    %p144 = por %p142, %p143
    %p146 = scmp.ne.s32.totalorder %s131, %s145
    %p147 = scmp.eq.s32.totalorder %s37, 0
    %p148 = por %p146, %p147
    %s150 = sadd.s32 %s149, 1
    %p153 = scmp.eq.s32.totalorder %s31, 1
    %p154 = scmp.ne.s32.totalorder %s149, %s151
    %p155 = scmp.eq.s32.totalorder %s31, 0
    %p156 = por %p154, %p155
    %p157 = scmp.ne.s32.totalorder %s149, %s151
    %p158 = scmp.eq.s32.totalorder %s36, 1
    %p159 = por %p157, %p158
    %p160 = scmp.ne.s32.totalorder %s151, %s152
    %p161 = scmp.eq.s32.totalorder %s36, 0
    %p162 = por %p160, %p161
    %p163 = scmp.ne.s32.totalorder %s151, %s152
    %p164 = scmp.eq.s32.totalorder %s37, 1
    %p165 = por %p163, %p164
    %p167 = scmp.ne.s32.totalorder %s152, %s166
    %p168 = scmp.eq.s32.totalorder %s37, 0
    %p169 = por %p167, %p168
    %s171 = sadd.s32 %s170, 1
    %p174 = scmp.eq.s32.totalorder %s31, 1
    %p175 = scmp.ne.s32.totalorder %s170, %s172
    %p176 = scmp.eq.s32.totalorder %s31, 0
    %p177 = por %p175, %p176
    %p178 = scmp.ne.s32.totalorder %s170, %s172
    %p179 = scmp.eq.s32.totalorder %s36, 1
    %p180 = por %p178, %p179
    %p181 = scmp.ne.s32.totalorder %s172, %s173
    %p182 = scmp.eq.s32.totalorder %s36, 0
    %p183 = por %p181, %p182
    %p184 = scmp.ne.s32.totalorder %s172, %s173
    %p185 = scmp.eq.s32.totalorder %s37, 1
    %p186 = por %p184, %p185
    %p188 = scmp.ne.s32.totalorder %s173, %s187
    %p189 = scmp.eq.s32.totalorder %s37, 0
    %p190 = por %p188, %p189
    %s192 = sadd.s32 %s191, 1
    %p195 = scmp.eq.s32.totalorder %s31, 1
    %p196 = scmp.ne.s32.totalorder %s191, %s193
    %p197 = scmp.eq.s32.totalorder %s31, 0
    %p198 = por %p196, %p197
    %p199 = scmp.ne.s32.totalorder %s191, %s193
    %p200 = scmp.eq.s32.totalorder %s36, 1
    %p201 = por %p199, %p200
    %p202 = scmp.ne.s32.totalorder %s193, %s194
    %p203 = scmp.eq.s32.totalorder %s36, 0
    %p204 = por %p202, %p203
    %p205 = scmp.ne.s32.totalorder %s193, %s194
    %p206 = scmp.eq.s32.totalorder %s37, 1
    %p207 = por %p205, %p206
    %p209 = scmp.ne.s32.totalorder %s194, %s208
    %p210 = scmp.eq.s32.totalorder %s37, 0
    %p211 = por %p209, %p210
    %s213 = sadd.s32 %s212, 1
    %p216 = scmp.eq.s32.totalorder %s31, 1
    %p217 = scmp.ne.s32.totalorder %s212, %s214
    %p218 = scmp.eq.s32.totalorder %s31, 0
    %p219 = por %p217, %p218
    %p220 = scmp.ne.s32.totalorder %s212, %s214
    %p221 = scmp.eq.s32.totalorder %s36, 1
    %p222 = por %p220, %p221
    %p223 = scmp.ne.s32.totalorder %s214, %s215
    %p224 = scmp.eq.s32.totalorder %s36, 0
    %p225 = por %p223, %p224
    %p226 = scmp.ne.s32.totalorder %s214, %s215
    %p227 = scmp.eq.s32.totalorder %s37, 1
    %p228 = por %p226, %p227
    %p230 = scmp.ne.s32.totalorder %s215, %s229
    %p231 = scmp.eq.s32.totalorder %s37, 0
    %p232 = por %p230, %p231
    %s234 = sadd.s32 %s233, 1
    %p237 = scmp.eq.s32.totalorder %s31, 1
    %p238 = scmp.ne.s32.totalorder %s233, %s235
    %p239 = scmp.eq.s32.totalorder %s31, 0
    %p240 = por %p238, %p239
    %p241 = scmp.ne.s32.totalorder %s233, %s235
    %p242 = scmp.eq.s32.totalorder %s36, 1
    %p243 = por %p241, %p242
    %p244 = scmp.ne.s32.totalorder %s235, %s236
    %p245 = scmp.eq.s32.totalorder %s36, 0
    %p246 = por %p244, %p245
    %p247 = scmp.ne.s32.totalorder %s235, %s236
    %p248 = scmp.eq.s32.totalorder %s37, 1
    %p249 = por %p247, %p248
    %p251 = scmp.ne.s32.totalorder %s236, %s250
    %p252 = scmp.eq.s32.totalorder %s37, 0
    %p253 = por %p251, %p252
    %s255 = sadd.s32 %s254, 1
    %p258 = scmp.eq.s32.totalorder %s31, 1
    %p259 = scmp.ne.s32.totalorder %s254, %s256
    %p260 = scmp.eq.s32.totalorder %s31, 0
    %p261 = por %p259, %p260
    %p262 = scmp.ne.s32.totalorder %s254, %s256
    %p263 = scmp.eq.s32.totalorder %s36, 1
    %p264 = por %p262, %p263
    %p265 = scmp.ne.s32.totalorder %s256, %s257
    %p266 = scmp.eq.s32.totalorder %s36, 0
    %p267 = por %p265, %p266
    %p268 = scmp.ne.s32.totalorder %s256, %s257
    %p269 = scmp.eq.s32.totalorder %s37, 1
    %p270 = por %p268, %p269
    %p272 = scmp.ne.s32.totalorder %s257, %s271
    %p273 = scmp.eq.s32.totalorder %s37, 0
    %p274 = por %p272, %p273
    %s276 = sadd.s32 %s275, 1
    %p279 = scmp.eq.s32.totalorder %s31, 1
    %p280 = scmp.ne.s32.totalorder %s275, %s277
    %p281 = scmp.eq.s32.totalorder %s31, 0
    %p282 = por %p280, %p281
    %p283 = scmp.ne.s32.totalorder %s275, %s277
    %p284 = scmp.eq.s32.totalorder %s36, 1
    %p285 = por %p283, %p284
    %p286 = scmp.ne.s32.totalorder %s277, %s278
    %p287 = scmp.eq.s32.totalorder %s36, 0
    %p288 = por %p286, %p287
    %p289 = scmp.ne.s32.totalorder %s277, %s278
    %p290 = scmp.eq.s32.totalorder %s37, 1
    %p291 = por %p289, %p290
    %p293 = scmp.ne.s32.totalorder %s278, %s292
    %p294 = scmp.eq.s32.totalorder %s37, 0
    %p295 = por %p293, %p294
    %s297 = sadd.s32 %s296, 1
    %p300 = scmp.eq.s32.totalorder %s31, 1
    %p301 = scmp.ne.s32.totalorder %s296, %s298
    %p302 = scmp.eq.s32.totalorder %s31, 0
    %p303 = por %p301, %p302
    %p304 = scmp.ne.s32.totalorder %s296, %s298
    %p305 = scmp.eq.s32.totalorder %s36, 1
    %p306 = por %p304, %p305
    %p307 = scmp.ne.s32.totalorder %s298, %s299
    %p308 = scmp.eq.s32.totalorder %s36, 0
    %p309 = por %p307, %p308
    %p310 = scmp.ne.s32.totalorder %s298, %s299
    %p311 = scmp.eq.s32.totalorder %s37, 1
    %p312 = por %p310, %p311
    %p314 = scmp.ne.s32.totalorder %s299, %s313
    %p315 = scmp.eq.s32.totalorder %s37, 0
    %p316 = por %p314, %p315
    %s318 = sadd.s32 %s317, 1
    %p321 = scmp.eq.s32.totalorder %s31, 1
    %p322 = scmp.ne.s32.totalorder %s317, %s319
    %p323 = scmp.eq.s32.totalorder %s31, 0
    %p324 = por %p322, %p323
    %p325 = scmp.ne.s32.totalorder %s317, %s319
    %p326 = scmp.eq.s32.totalorder %s36, 1
    %p327 = por %p325, %p326
    %p328 = scmp.ne.s32.totalorder %s319, %s320
    %p329 = scmp.eq.s32.totalorder %s36, 0
    %p330 = por %p328, %p329
    %p331 = scmp.ne.s32.totalorder %s319, %s320
    %p332 = scmp.eq.s32.totalorder %s37, 1
    %p333 = por %p331, %p332
    %p335 = scmp.ne.s32.totalorder %s320, %s334
    %p336 = scmp.eq.s32.totalorder %s37, 0
    %p337 = por %p335, %p336
    %s339 = sadd.s32 %s338, 1
    %p342 = scmp.eq.s32.totalorder %s31, 1
    %p343 = scmp.ne.s32.totalorder %s338, %s340
    %p344 = scmp.eq.s32.totalorder %s31, 0
    %p345 = por %p343, %p344
    %p346 = scmp.ne.s32.totalorder %s338, %s340
    %p347 = scmp.eq.s32.totalorder %s36, 1
    %p348 = por %p346, %p347
    %p349 = scmp.ne.s32.totalorder %s340, %s341
    %p350 = scmp.eq.s32.totalorder %s36, 0
    %p351 = por %p349, %p350
    %p352 = scmp.ne.s32.totalorder %s340, %s341
    %p353 = scmp.eq.s32.totalorder %s37, 1
    %p354 = por %p352, %p353
    %p356 = scmp.ne.s32.totalorder %s341, %s355
    %p357 = scmp.eq.s32.totalorder %s37, 0
    %p358 = por %p356, %p357
    %s360 = sadd.s32 %s359, 1
    %p363 = scmp.eq.s32.totalorder %s31, 1
    %p364 = scmp.ne.s32.totalorder %s359, %s361
    %p365 = scmp.eq.s32.totalorder %s31, 0
    %p366 = por %p364, %p365
    %p367 = scmp.ne.s32.totalorder %s359, %s361
    %p368 = scmp.eq.s32.totalorder %s36, 1
    %p369 = por %p367, %p368
    %p370 = scmp.ne.s32.totalorder %s361, %s362
    %p371 = scmp.eq.s32.totalorder %s36, 0
    %p372 = por %p370, %p371
    %p373 = scmp.ne.s32.totalorder %s361, %s362
    %p374 = scmp.eq.s32.totalorder %s37, 1
    %p375 = por %p373, %p374
    %p377 = scmp.ne.s32.totalorder %s362, %s376
    %p378 = scmp.eq.s32.totalorder %s37, 0
    %p379 = por %p377, %p378
    %s381 = sadd.s32 %s380, 1
    %p384 = scmp.eq.s32.totalorder %s31, 1
    %p385 = scmp.ne.s32.totalorder %s380, %s382
    %p386 = scmp.eq.s32.totalorder %s31, 0
    %p387 = por %p385, %p386
    %p388 = scmp.ne.s32.totalorder %s380, %s382
    %p389 = scmp.eq.s32.totalorder %s36, 1
    %p390 = por %p388, %p389
    %p391 = scmp.ne.s32.totalorder %s382, %s383
    %p392 = scmp.eq.s32.totalorder %s36, 0
    %p393 = por %p391, %p392
    %p394 = scmp.ne.s32.totalorder %s382, %s383
    %p395 = scmp.eq.s32.totalorder %s37, 1
    %p396 = por %p394, %p395
    %p398 = scmp.ne.s32.totalorder %s383, %s397
    %p399 = scmp.eq.s32.totalorder %s37, 0
    %p400 = por %p398, %p399
    %s402 = sadd.s32 %s401, 1
    %p405 = scmp.eq.s32.totalorder %s31, 1
    %p406 = scmp.ne.s32.totalorder %s401, %s403
    %p407 = scmp.eq.s32.totalorder %s31, 0
    %p408 = por %p406, %p407
    %p409 = scmp.ne.s32.totalorder %s401, %s403
    %p410 = scmp.eq.s32.totalorder %s36, 1
    %p411 = por %p409, %p410
    %p412 = scmp.ne.s32.totalorder %s403, %s404
    %p413 = scmp.eq.s32.totalorder %s36, 0
    %p414 = por %p412, %p413
    %p415 = scmp.ne.s32.totalorder %s403, %s404
    %p416 = scmp.eq.s32.totalorder %s37, 1
    %p417 = por %p415, %p416
    %p419 = scmp.ne.s32.totalorder %s404, %s418
    %p420 = scmp.eq.s32.totalorder %s37, 0
    %p421 = por %p419, %p420
    %s423 = sadd.s32 %s422, 1
    %p426 = scmp.eq.s32.totalorder %s31, 1
    %p427 = scmp.ne.s32.totalorder %s422, %s424
    %p428 = scmp.eq.s32.totalorder %s31, 0
    %p429 = por %p427, %p428
    %p430 = scmp.ne.s32.totalorder %s422, %s424
    %p431 = scmp.eq.s32.totalorder %s36, 1
    %p432 = por %p430, %p431
    %p433 = scmp.ne.s32.totalorder %s424, %s425
    %p434 = scmp.eq.s32.totalorder %s36, 0
    %p435 = por %p433, %p434
    %p436 = scmp.ne.s32.totalorder %s424, %s425
    %p437 = scmp.eq.s32.totalorder %s37, 1
    %p438 = por %p436, %p437
    %p440 = scmp.ne.s32.totalorder %s425, %s439
    %p441 = scmp.eq.s32.totalorder %s37, 0
    %p442 = por %p440, %p441
    %s444 = sadd.s32 %s443, 1
    %p447 = scmp.eq.s32.totalorder %s31, 1
    %p448 = scmp.ne.s32.totalorder %s443, %s445
    %p449 = scmp.eq.s32.totalorder %s31, 0
    %p450 = por %p448, %p449
    %p451 = scmp.ne.s32.totalorder %s443, %s445
    %p452 = scmp.eq.s32.totalorder %s36, 1
    %p453 = por %p451, %p452
    %p454 = scmp.ne.s32.totalorder %s445, %s446
    %p455 = scmp.eq.s32.totalorder %s36, 0
    %p456 = por %p454, %p455
    %p457 = scmp.ne.s32.totalorder %s445, %s446
    %p458 = scmp.eq.s32.totalorder %s37, 1
    %p459 = por %p457, %p458
    %p461 = scmp.ne.s32.totalorder %s446, %s460
    %p462 = scmp.eq.s32.totalorder %s37, 0
    %p463 = por %p461, %p462
    %s465 = sadd.s32 %s464, 1
    %p468 = scmp.eq.s32.totalorder %s31, 1
    %p469 = scmp.ne.s32.totalorder %s464, %s466
    %p470 = scmp.eq.s32.totalorder %s31, 0
    %p471 = por %p469, %p470
    %p472 = scmp.ne.s32.totalorder %s464, %s466
    %p473 = scmp.eq.s32.totalorder %s36, 1
    %p474 = por %p472, %p473
    %p475 = scmp.ne.s32.totalorder %s466, %s467
    %p476 = scmp.eq.s32.totalorder %s36, 0
    %p477 = por %p475, %p476
    %p478 = scmp.ne.s32.totalorder %s466, %s467
    %p479 = scmp.eq.s32.totalorder %s37, 1
    %p480 = por %p478, %p479
    %p482 = scmp.ne.s32.totalorder %s467, %s481
    %p483 = scmp.eq.s32.totalorder %s37, 0
    %p484 = por %p482, %p483
    %s486 = sadd.s32 %s485, 1
    %p489 = scmp.eq.s32.totalorder %s31, 1
    %p490 = scmp.ne.s32.totalorder %s485, %s487
    %p491 = scmp.eq.s32.totalorder %s31, 0
    %p492 = por %p490, %p491
    %p493 = scmp.ne.s32.totalorder %s485, %s487
    %p494 = scmp.eq.s32.totalorder %s36, 1
    %p495 = por %p493, %p494
    %p496 = scmp.ne.s32.totalorder %s487, %s488
    %p497 = scmp.eq.s32.totalorder %s36, 0
    %p498 = por %p496, %p497
    %p499 = scmp.ne.s32.totalorder %s487, %s488
    %p500 = scmp.eq.s32.totalorder %s37, 1
    %p501 = por %p499, %p500
    %p503 = scmp.ne.s32.totalorder %s488, %s502
    %p504 = scmp.eq.s32.totalorder %s37, 0
    %p505 = por %p503, %p504
    %s507 = sadd.s32 %s506, 1
    %p510 = scmp.eq.s32.totalorder %s31, 1
    %p511 = scmp.ne.s32.totalorder %s506, %s508
    %p512 = scmp.eq.s32.totalorder %s31, 0
    %p513 = por %p511, %p512
    %p514 = scmp.ne.s32.totalorder %s506, %s508
    %p515 = scmp.eq.s32.totalorder %s36, 1
    %p516 = por %p514, %p515
    %p517 = scmp.ne.s32.totalorder %s508, %s509
    %p518 = scmp.eq.s32.totalorder %s36, 0
    %p519 = por %p517, %p518
    %p520 = scmp.ne.s32.totalorder %s508, %s509
    %p521 = scmp.eq.s32.totalorder %s37, 1
    %p522 = por %p520, %p521
    %p524 = scmp.ne.s32.totalorder %s509, %s523
    %p525 = scmp.eq.s32.totalorder %s37, 0
    %p526 = por %p524, %p525
    %s528 = sadd.s32 %s527, 1
    %p531 = scmp.eq.s32.totalorder %s31, 1
    %p532 = scmp.ne.s32.totalorder %s527, %s529
    %p533 = scmp.eq.s32.totalorder %s31, 0
    %p534 = por %p532, %p533
    %p535 = scmp.ne.s32.totalorder %s527, %s529
    %p536 = scmp.eq.s32.totalorder %s36, 1
    %p537 = por %p535, %p536
    %p538 = scmp.ne.s32.totalorder %s529, %s530
    %p539 = scmp.eq.s32.totalorder %s36, 0
    %p540 = por %p538, %p539
    %p541 = scmp.ne.s32.totalorder %s529, %s530
    %p542 = scmp.eq.s32.totalorder %s37, 1
    %p543 = por %p541, %p542
    %p545 = scmp.ne.s32.totalorder %s530, %s544
    %p546 = scmp.eq.s32.totalorder %s37, 0
    %p547 = por %p545, %p546
    %s549 = sadd.s32 %s548, 1
    %p552 = scmp.eq.s32.totalorder %s31, 1
    %p553 = scmp.ne.s32.totalorder %s548, %s550
    %p554 = scmp.eq.s32.totalorder %s31, 0
    %p555 = por %p553, %p554
    %p556 = scmp.ne.s32.totalorder %s548, %s550
    %p557 = scmp.eq.s32.totalorder %s36, 1
    %p558 = por %p556, %p557
    %p559 = scmp.ne.s32.totalorder %s550, %s551
    %p560 = scmp.eq.s32.totalorder %s36, 0
    %p561 = por %p559, %p560
    %p562 = scmp.ne.s32.totalorder %s550, %s551
    %p563 = scmp.eq.s32.totalorder %s37, 1
    %p564 = por %p562, %p563
    %p566 = scmp.ne.s32.totalorder %s551, %s565
    %p567 = scmp.eq.s32.totalorder %s37, 0
    %p568 = por %p566, %p567
    %s569 = ssub.s32 %s31, %s38
    %p570 = scmp.eq.s32.totalorder %s569, 0
    %s572 = sadd.s32 %s571, 1
    %s573 = scalar_select %p570, %s571, %s572
    %p576 = pneg %p570
    %p577 = scmp.eq.s32.totalorder %s31, 1
    %p578 = por %p576, %p577
    %p579 = scmp.ne.s32.totalorder %s571, %s574
    %p580 = scmp.eq.s32.totalorder %s31, 0
    %p581 = por %p579, %p580
    %p582 = scmp.ne.s32.totalorder %s571, %s574
    %p583 = scmp.eq.s32.totalorder %s36, 1
    %p584 = por %p582, %p583
    %p585 = scmp.ne.s32.totalorder %s574, %s575
    %p586 = scmp.eq.s32.totalorder %s36, 0
    %p587 = por %p585, %p586
    %p588 = scmp.ne.s32.totalorder %s574, %s575
    %p589 = scmp.eq.s32.totalorder %s37, 1
    %p590 = por %p588, %p589
    %p592 = scmp.ne.s32.totalorder %s575, %s591
    %p593 = scmp.eq.s32.totalorder %s37, 0
    %p594 = por %p592, %p593
    %p595 = scmp.le.s32.totalorder 1, %s31
    %p596 = scmp.lt.s32.totalorder %s31, 3
    %p597 = pnand %p595, %p596
    %p598 = pneg %p597
    // Predicated region
    $region9: #{autoencoder_forward.1} parent=5 // pred_check
      _
    $region10: #{autoencoder_forward.1} parent=5 // pred_check_branch
      %600 = sbr.rel (%p597) target = $region12
    $region11: #{autoencoder_forward.1} parent=5 // pred_region
      %s601 = ssub.s32 %s31, 1
      // Predicated region
      $region13: #{autoencoder_forward.1} parent=11 // pred_check
        %p602 = pneg %p78
      $region14: #{autoencoder_forward.1} parent=11 // pred_check_branch
        %604 = sbr.rel (%p602) target = $region16
      $region15: #{autoencoder_forward.1} parent=11 // pred_region
        _
      $region16: #{autoencoder_forward.1} parent=11 // pred_fallthru
        _
      // Predicated region
      $region17: #{autoencoder_forward.1} parent=11 // pred_check
        %p605 = pneg %p99
      $region18: #{autoencoder_forward.1} parent=11 // pred_check_branch
        %607 = sbr.rel (%p605) target = $region20
      $region19: #{autoencoder_forward.1} parent=11 // pred_region
        _
      $region20: #{autoencoder_forward.1} parent=11 // pred_fallthru
        _
      // Predicated region
      $region21: #{autoencoder_forward.1} parent=11 // pred_check
        %p608 = pneg %p120
      $region22: #{autoencoder_forward.1} parent=11 // pred_check_branch
        %610 = sbr.rel (%p608) target = $region24
      $region23: #{autoencoder_forward.1} parent=11 // pred_region
        _
      $region24: #{autoencoder_forward.1} parent=11 // pred_fallthru
        _
      // Predicated region
      $region25: #{autoencoder_forward.1} parent=11 // pred_check
        %p611 = pneg %p141
      $region26: #{autoencoder_forward.1} parent=11 // pred_check_branch
        %613 = sbr.rel (%p611) target = $region28
      $region27: #{autoencoder_forward.1} parent=11 // pred_region
        _
      $region28: #{autoencoder_forward.1} parent=11 // pred_fallthru
        _
      // Predicated region
      $region29: #{autoencoder_forward.1} parent=11 // pred_check
        %p614 = pneg %p162
      $region30: #{autoencoder_forward.1} parent=11 // pred_check_branch
        %616 = sbr.rel (%p614) target = $region32
      $region31: #{autoencoder_forward.1} parent=11 // pred_region
        _
      $region32: #{autoencoder_forward.1} parent=11 // pred_fallthru
        _
      // Predicated region
      $region33: #{autoencoder_forward.1} parent=11 // pred_check
        %p617 = pneg %p183
      $region34: #{autoencoder_forward.1} parent=11 // pred_check_branch
        %619 = sbr.rel (%p617) target = $region36
      $region35: #{autoencoder_forward.1} parent=11 // pred_region
        _
      $region36: #{autoencoder_forward.1} parent=11 // pred_fallthru
        _
      // Predicated region
      $region37: #{autoencoder_forward.1} parent=11 // pred_check
        %p620 = pneg %p204
      $region38: #{autoencoder_forward.1} parent=11 // pred_check_branch
        %622 = sbr.rel (%p620) target = $region40
      $region39: #{autoencoder_forward.1} parent=11 // pred_region
        _
      $region40: #{autoencoder_forward.1} parent=11 // pred_fallthru
        _
      // Predicated region
      $region41: #{autoencoder_forward.1} parent=11 // pred_check
        %p623 = pneg %p225
      $region42: #{autoencoder_forward.1} parent=11 // pred_check_branch
        %625 = sbr.rel (%p623) target = $region44
      $region43: #{autoencoder_forward.1} parent=11 // pred_region
        _
      $region44: #{autoencoder_forward.1} parent=11 // pred_fallthru
        _
      // Predicated region
      $region45: #{autoencoder_forward.1} parent=11 // pred_check
        %p626 = pneg %p246
      $region46: #{autoencoder_forward.1} parent=11 // pred_check_branch
        %628 = sbr.rel (%p626) target = $region48
      $region47: #{autoencoder_forward.1} parent=11 // pred_region
        _
      $region48: #{autoencoder_forward.1} parent=11 // pred_fallthru
        _
      // Predicated region
      $region49: #{autoencoder_forward.1} parent=11 // pred_check
        %p629 = pneg %p267
      $region50: #{autoencoder_forward.1} parent=11 // pred_check_branch
        %631 = sbr.rel (%p629) target = $region52
      $region51: #{autoencoder_forward.1} parent=11 // pred_region
        _
      $region52: #{autoencoder_forward.1} parent=11 // pred_fallthru
        _
      // Predicated region
      $region53: #{autoencoder_forward.1} parent=11 // pred_check
        %p632 = pneg %p288
      $region54: #{autoencoder_forward.1} parent=11 // pred_check_branch
        %634 = sbr.rel (%p632) target = $region56
      $region55: #{autoencoder_forward.1} parent=11 // pred_region
        _
      $region56: #{autoencoder_forward.1} parent=11 // pred_fallthru
        _
      // Predicated region
      $region57: #{autoencoder_forward.1} parent=11 // pred_check
        %p635 = pneg %p309
      $region58: #{autoencoder_forward.1} parent=11 // pred_check_branch
        %637 = sbr.rel (%p635) target = $region60
      $region59: #{autoencoder_forward.1} parent=11 // pred_region
        _
      $region60: #{autoencoder_forward.1} parent=11 // pred_fallthru
        _
      // Predicated region
      $region61: #{autoencoder_forward.1} parent=11 // pred_check
        %p638 = pneg %p330
      $region62: #{autoencoder_forward.1} parent=11 // pred_check_branch
        %640 = sbr.rel (%p638) target = $region64
      $region63: #{autoencoder_forward.1} parent=11 // pred_region
        _
      $region64: #{autoencoder_forward.1} parent=11 // pred_fallthru
        _
      // Predicated region
      $region65: #{autoencoder_forward.1} parent=11 // pred_check
        %p641 = pneg %p351
      $region66: #{autoencoder_forward.1} parent=11 // pred_check_branch
        %643 = sbr.rel (%p641) target = $region68
      $region67: #{autoencoder_forward.1} parent=11 // pred_region
        _
      $region68: #{autoencoder_forward.1} parent=11 // pred_fallthru
        _
      // Predicated region
      $region69: #{autoencoder_forward.1} parent=11 // pred_check
        %p644 = pneg %p372
      $region70: #{autoencoder_forward.1} parent=11 // pred_check_branch
        %646 = sbr.rel (%p644) target = $region72
      $region71: #{autoencoder_forward.1} parent=11 // pred_region
        _
      $region72: #{autoencoder_forward.1} parent=11 // pred_fallthru
        _
      // Predicated region
      $region73: #{autoencoder_forward.1} parent=11 // pred_check
        %p647 = pneg %p393
      $region74: #{autoencoder_forward.1} parent=11 // pred_check_branch
        %649 = sbr.rel (%p647) target = $region76
      $region75: #{autoencoder_forward.1} parent=11 // pred_region
        _
      $region76: #{autoencoder_forward.1} parent=11 // pred_fallthru
        _
      // Predicated region
      $region77: #{autoencoder_forward.1} parent=11 // pred_check
        %p650 = pneg %p414
      $region78: #{autoencoder_forward.1} parent=11 // pred_check_branch
        %652 = sbr.rel (%p650) target = $region80
      $region79: #{autoencoder_forward.1} parent=11 // pred_region
        _
      $region80: #{autoencoder_forward.1} parent=11 // pred_fallthru
        _
      // Predicated region
      $region81: #{autoencoder_forward.1} parent=11 // pred_check
        %p653 = pneg %p435
      $region82: #{autoencoder_forward.1} parent=11 // pred_check_branch
        %655 = sbr.rel (%p653) target = $region84
      $region83: #{autoencoder_forward.1} parent=11 // pred_region
        _
      $region84: #{autoencoder_forward.1} parent=11 // pred_fallthru
        _
      // Predicated region
      $region85: #{autoencoder_forward.1} parent=11 // pred_check
        %p656 = pneg %p456
      $region86: #{autoencoder_forward.1} parent=11 // pred_check_branch
        %658 = sbr.rel (%p656) target = $region88
      $region87: #{autoencoder_forward.1} parent=11 // pred_region
        _
      $region88: #{autoencoder_forward.1} parent=11 // pred_fallthru
        _
      // Predicated region
      $region89: #{autoencoder_forward.1} parent=11 // pred_check
        %p659 = pneg %p477
      $region90: #{autoencoder_forward.1} parent=11 // pred_check_branch
        %661 = sbr.rel (%p659) target = $region92
      $region91: #{autoencoder_forward.1} parent=11 // pred_region
        _
      $region92: #{autoencoder_forward.1} parent=11 // pred_fallthru
        _
      // Predicated region
      $region93: #{autoencoder_forward.1} parent=11 // pred_check
        %p662 = pneg %p498
      $region94: #{autoencoder_forward.1} parent=11 // pred_check_branch
        %664 = sbr.rel (%p662) target = $region96
      $region95: #{autoencoder_forward.1} parent=11 // pred_region
        _
      $region96: #{autoencoder_forward.1} parent=11 // pred_fallthru
        _
      // Predicated region
      $region97: #{autoencoder_forward.1} parent=11 // pred_check
        %p665 = pneg %p519
      $region98: #{autoencoder_forward.1} parent=11 // pred_check_branch
        %667 = sbr.rel (%p665) target = $region100
      $region99: #{autoencoder_forward.1} parent=11 // pred_region
        _
      $region100: #{autoencoder_forward.1} parent=11 // pred_fallthru
        _
      // Predicated region
      $region101: #{autoencoder_forward.1} parent=11 // pred_check
        %p668 = pneg %p540
      $region102: #{autoencoder_forward.1} parent=11 // pred_check_branch
        %670 = sbr.rel (%p668) target = $region104
      $region103: #{autoencoder_forward.1} parent=11 // pred_region
        _
      $region104: #{autoencoder_forward.1} parent=11 // pred_fallthru
        _
      // Predicated region
      $region105: #{autoencoder_forward.1} parent=11 // pred_check
        %p671 = pneg %p561
      $region106: #{autoencoder_forward.1} parent=11 // pred_check_branch
        %673 = sbr.rel (%p671) target = $region108
      $region107: #{autoencoder_forward.1} parent=11 // pred_region
        _
      $region108: #{autoencoder_forward.1} parent=11 // pred_fallthru
        _
    $region12: #{autoencoder_forward.1} parent=5 // pred_fallthru
      _
    %p674 = scmp.lt.s32.totalorder %s31, 2
    // Predicated region
    $region109: #{autoencoder_forward.1} parent=5 // pred_check
      %p675 = pneg %p674
    $region110: #{autoencoder_forward.1} parent=5 // pred_check_branch
      %677 = sbr.rel (%p675) target = $region112
    $region111: #{autoencoder_forward.1} parent=5 // pred_region
      // Predicated region
      $region113: #{autoencoder_forward.1} parent=111 // pred_check
        %p678 = pneg %p51
      $region114: #{autoencoder_forward.1} parent=111 // pred_check_branch
        %680 = sbr.rel (%p678) target = $region116
      $region115: #{autoencoder_forward.1} parent=111 // pred_region
        %p681 = scmp.lt.s32.totalorder %s31, 1
        %s682 = scalar_select %p681, %s31, 1
        %s683 = smul.addr %s682, 2
        %s684 = smul.addr %s683, 4
        %s685 = scalar_lea.vmem %s0, %s684
      $region116: #{autoencoder_forward.1} parent=111 // pred_fallthru
        _
    $region112: #{autoencoder_forward.1} parent=5 // pred_fallthru
      _
    %p686 = scmp.le.s32.totalorder 1, %s31
    %p687 = scmp.lt.s32.totalorder %s31, 3
    %p688 = pnand %p686, %p687
    %p689 = pneg %p688
    // Predicated region
    $region117: #{autoencoder_forward.1} parent=5 // pred_check
      _
    $region118: #{autoencoder_forward.1} parent=5 // pred_check_branch
      %691 = sbr.rel (%p688) target = $region120
    $region119: #{autoencoder_forward.1} parent=5 // pred_region
      %s692 = ssub.s32 %s31, 1
      %p693 = scmp.lt.s32.totalorder %s36, 1
      %s694 = scalar_select %p693, %s36, 1
      %s695 = smul.addr %s694, 2
      %s696 = smul.addr %s695, 4
      %s697 = scalar_lea.vmem %s0, %s696
      %p698 = pneg %p57
      %p699 = pneg %p54
      %p700 = pneg %p78
      %p701 = pneg %p75
      %p702 = pneg %p99
      %p703 = pneg %p96
      %p704 = pneg %p120
      %p705 = pneg %p117
      %p706 = pneg %p141
      %p707 = pneg %p138
      %p708 = pneg %p162
      %p709 = pneg %p159
      %p710 = pneg %p183
      %p711 = pneg %p180
      %p712 = pneg %p204
      %p713 = pneg %p201
      %p714 = pneg %p225
      %p715 = pneg %p222
      %p716 = pneg %p246
      %p717 = pneg %p243
      %p718 = pneg %p267
      %p719 = pneg %p264
      %p720 = pneg %p288
      %p721 = pneg %p285
      %p722 = pneg %p309
      %p723 = pneg %p306
      %p724 = pneg %p330
      %p725 = pneg %p327
      %p726 = pneg %p351
      %p727 = pneg %p348
      %p728 = pneg %p372
      %p729 = pneg %p369
      %p730 = pneg %p393
      %p731 = pneg %p390
      %p732 = pneg %p414
      %p733 = pneg %p411
      %p734 = pneg %p435
      %p735 = pneg %p432
      %p736 = pneg %p456
      %p737 = pneg %p453
      %p738 = pneg %p477
      %p739 = pneg %p474
      %p740 = pneg %p498
      %p741 = pneg %p495
      %p742 = pneg %p519
      %p743 = pneg %p516
      %p744 = pneg %p540
      %p745 = pneg %p537
      %p746 = pneg %p561
      %p747 = pneg %p558
      %p748 = pneg %p587
      %p749 = pneg %p584
      %p750 = scmp.lt.s32.totalorder %s36, 1
      %s751 = scalar_select %p750, %s36, 1
      %s752 = smul.addr %s751, 2
      %s753 = smul.addr %s752, 4
      %s754 = scalar_lea.vmem %s25, %s753
      %p755 = scmp.lt.s32.totalorder %s36, 1
      %s756 = scalar_select %p755, %s36, 1
      %s757 = smul.addr %s756, 2
      %s758 = smul.addr %s757, 4
      %s759 = scalar_lea.vmem %s0, %s758
      %p760 = scmp.lt.s32.totalorder %s36, 1
      %s761 = scalar_select %p760, %s36, 1
      %s762 = smul.addr %s761, 2
      %s763 = smul.addr %s762, 4
      %s764 = scalar_lea.vmem %s25, %s763
      %v766 = vld [vmem:[%s759] sm:$0xff]
      %767 = vst [vmem:[#allocation2] sm:$0xf] 0.0
      %768 = vst [vmem:[#allocation2 + $0xc] sm:$0xf] 0.0
      %769 = vst [vmem:[#allocation2 + $0x4] sm:$0xff] %v766
      %v770 = vld [vmem:[#allocation2] sm:$0xff]
      %v771 = vld [vmem:[#allocation2 + $0x8] sm:$0xf]
      %v772 = vld [vmem:[%s15] ss:$8 sm:$0x3]
      %v774 = vperm.slane %v772, 0
      %v775 = vperm.slane %v772, 1
      %v776 = vrot.slane %v775, 4
      %vm777 = vcmask 1043456
      %v778 = vsel %vm777, %v774, %v776
      %779 = vrot.lane.b32.xlu0 %v778, 94
      %v780 = vpop.permute.xlu0 %779
      %v781 = vrot.slane %v780, 4
      %vm782 = vcmask 769024
      %v783 = vsel %vm782, %v781, %v780
      %v786 = vmul.f32 %v770, %v783
      %v787 = vmul.f32 %v771, %v781
      %790 = vst [vmem:[#allocation1] ss:$2 sm:$0xff] %v786
      %s791 = scalar_lea.vmem [#allocation1], 16
      %792 = vst [vmem:[%s791] ss:$2 sm:$0xff] %v787
      %v793 = vld.sshfl [vmem:[#allocation1] sm:$0xff pattern:$0x75316420]
      %v794 = vld.sshfl [vmem:[#allocation1 + $0x8] sm:$0xff pattern:$0x75316420]
      %v795 = vld.sshfl [vmem:[#allocation1 + $0x10] sm:$0xff pattern:$0x75316420]
      %796 = vrot.lane.b32.xlu0 %v793, 34
      %v797 = vpop.permute.xlu0 %796
      %798 = vrot.lane.b32.xlu0 %v794, 34
      %v799 = vpop.permute.xlu0 %798
      %800 = vrot.lane.b32.xlu0 %v795, 34
      %v801 = vpop.permute.xlu0 %800
      %vm802 = vcmask 277504
      %v803 = vsel %vm802, %v797, %v799
      %v804 = vsel %vm802, %v799, %v801
      %807 = vst [vmem:[#allocation9] sm:$0xf] %v803
      %808 = vst [vmem:[#allocation9 + $0x8] sm:$0xf] %v804
      %v809 = vld [vmem:[#allocation2] sm:$0xff]
      %v810 = vld [vmem:[#allocation2 + $0x8] sm:$0xf]
      %s811 = scalar_lea.vmem %s15, 1
      %v812 = vld [vmem:[%s811] ss:$8 sm:$0x3]
      %v814 = vperm.slane %v812, 0
      %v815 = vperm.slane %v812, 1
      %v816 = vrot.slane %v815, 4
      %v817 = vsel %vm777, %v814, %v816
      %818 = vrot.lane.b32.xlu0 %v817, 95
      %v819 = vpop.permute.xlu0 %818
      %v820 = vrot.slane %v819, 4
      %vm821 = vcmask 777216
      %v822 = vsel %vm821, %v820, %v819
      %v825 = vmul.f32 %v809, %v822
      %v826 = vmul.f32 %v810, %v820
      %s829 = scalar_lea.vmem [#allocation1], 1
      %830 = vst [vmem:[%s829] ss:$2 sm:$0xff] %v825
      %s831 = scalar_lea.vmem [#allocation1], 17
      %832 = vst [vmem:[%s831] ss:$2 sm:$0xff] %v826
      %v833 = vld.sshfl [vmem:[#allocation1] sm:$0xff pattern:$0x75316420]
      %v834 = vld.sshfl [vmem:[#allocation1 + $0x8] sm:$0xff pattern:$0x75316420]
      %v835 = vld.sshfl [vmem:[#allocation1 + $0x10] sm:$0xff pattern:$0x75316420]
      %836 = vrot.lane.b32.xlu0 %v833, 33
      %v837 = vpop.permute.xlu0 %836
      %838 = vrot.lane.b32.xlu0 %v834, 33
      %v839 = vpop.permute.xlu0 %838
      %840 = vrot.lane.b32.xlu0 %v835, 33
      %v841 = vpop.permute.xlu0 %840
      %vm842 = vcmask 269312
      %v843 = vsel %vm842, %v837, %v839
      %v844 = vsel %vm842, %v839, %v841
      %847 = vst [vmem:[#allocation9] sm:$0xf0] %v843
      %848 = vst [vmem:[#allocation9 + $0x8] sm:$0xf0] %v844
      %v849 = vld [vmem:[#allocation2] sm:$0xff]
      %v850 = vld [vmem:[#allocation2 + $0x8] sm:$0xf]
      %s851 = scalar_lea.vmem %s15, 2
      %v852 = vld [vmem:[%s851] ss:$8 sm:$0x3]
      %v854 = vperm.slane %v852, 0
      %v855 = vperm.slane %v852, 1
      %v856 = vrot.slane %v855, 4
      %v857 = vsel %vm777, %v854, %v856
      %858 = vrot.lane.b32.xlu0 %v857, 96
      %v859 = vpop.permute.xlu0 %858
      %v860 = vrot.slane %v859, 4
      %vm861 = vcmask 785408
      %v862 = vsel %vm861, %v860, %v859
      %v865 = vmul.f32 %v849, %v862
      %v866 = vmul.f32 %v850, %v860
      %869 = vst [vmem:[#allocation1] ss:$2 sm:$0xff] %v865
      %s870 = scalar_lea.vmem [#allocation1], 16
      %871 = vst [vmem:[%s870] ss:$2 sm:$0xff] %v866
      %v872 = vld.sshfl [vmem:[#allocation1] sm:$0xff pattern:$0x75316420]
      %v873 = vld.sshfl [vmem:[#allocation1 + $0x8] sm:$0xff pattern:$0x75316420]
      %v874 = vld.sshfl [vmem:[#allocation1 + $0x10] sm:$0xff pattern:$0x75316420]
      %875 = vrot.lane.b32.xlu0 %v872, 32
      %v876 = vpop.permute.xlu0 %875
      %877 = vrot.lane.b32.xlu0 %v873, 32
      %v878 = vpop.permute.xlu0 %877
      %879 = vrot.lane.b32.xlu0 %v874, 32
      %v880 = vpop.permute.xlu0 %879
      %vm881 = vcmask 261120
      %v882 = vsel %vm881, %v876, %v878
      %v883 = vsel %vm881, %v878, %v880
      %886 = vst [vmem:[#allocation9 + $0x10] sm:$0xf] %v882
      %887 = vst [vmem:[#allocation9 + $0x18] sm:$0xf] %v883
      %v888 = vld [vmem:[#allocation2] sm:$0xff]
      %v889 = vld [vmem:[#allocation2 + $0x8] sm:$0xf]
      %s890 = scalar_lea.vmem %s15, 3
      %v891 = vld [vmem:[%s890] ss:$8 sm:$0x3]
      %v893 = vperm.slane %v891, 0
      %v894 = vperm.slane %v891, 1
      %v895 = vrot.slane %v894, 4
      %v896 = vsel %vm777, %v893, %v895
      %897 = vrot.lane.b32.xlu0 %v896, 97
      %v898 = vpop.permute.xlu0 %897
      %v899 = vrot.slane %v898, 4
      %vm900 = vcmask 793600
      %v901 = vsel %vm900, %v899, %v898
      %v904 = vmul.f32 %v888, %v901
      %v905 = vmul.f32 %v889, %v899
      %s908 = scalar_lea.vmem [#allocation1], 1
      %909 = vst [vmem:[%s908] ss:$2 sm:$0xff] %v904
      %s910 = scalar_lea.vmem [#allocation1], 17
      %911 = vst [vmem:[%s910] ss:$2 sm:$0xff] %v905
      %v912 = vld.sshfl [vmem:[#allocation1] sm:$0xff pattern:$0x75316420]
      %v913 = vld.sshfl [vmem:[#allocation1 + $0x8] sm:$0xff pattern:$0x75316420]
      %v914 = vld.sshfl [vmem:[#allocation1 + $0x10] sm:$0xff pattern:$0x75316420]
      %915 = vrot.lane.b32.xlu0 %v912, 31
      %v916 = vpop.permute.xlu0 %915
      %917 = vrot.lane.b32.xlu0 %v913, 31
      %v918 = vpop.permute.xlu0 %917
      %919 = vrot.lane.b32.xlu0 %v914, 31
      %v920 = vpop.permute.xlu0 %919
      %vm921 = vcmask 252928
      %v922 = vsel %vm921, %v916, %v918
      %v923 = vsel %vm921, %v918, %v920
      %926 = vst [vmem:[#allocation9 + $0x10] sm:$0xf0] %v922
      %927 = vst [vmem:[#allocation9 + $0x18] sm:$0xf0] %v923
      %v928 = vld [vmem:[#allocation2] sm:$0xff]
      %v929 = vld [vmem:[#allocation2 + $0x8] sm:$0xf]
      %s930 = scalar_lea.vmem %s15, 4
      %v931 = vld [vmem:[%s930] ss:$8 sm:$0x3]
      %v933 = vperm.slane %v931, 0
      %v934 = vperm.slane %v931, 1
      %v935 = vrot.slane %v934, 4
      %v936 = vsel %vm777, %v933, %v935
      %937 = vrot.lane.b32.xlu0 %v936, 98
      %v938 = vpop.permute.xlu0 %937
      %v939 = vrot.slane %v938, 4
      %vm940 = vcmask 801792
      %v941 = vsel %vm940, %v939, %v938
      %v944 = vmul.f32 %v928, %v941
      %v945 = vmul.f32 %v929, %v939
      %948 = vst [vmem:[#allocation1] ss:$2 sm:$0xff] %v944
      %s949 = scalar_lea.vmem [#allocation1], 16
      %950 = vst [vmem:[%s949] ss:$2 sm:$0xff] %v945
      %v951 = vld.sshfl [vmem:[#allocation1] sm:$0xff pattern:$0x75316420]
      %v952 = vld.sshfl [vmem:[#allocation1 + $0x8] sm:$0xff pattern:$0x75316420]
      %v953 = vld.sshfl [vmem:[#allocation1 + $0x10] sm:$0xff pattern:$0x75316420]
      %954 = vrot.lane.b32.xlu0 %v951, 30
      %v955 = vpop.permute.xlu0 %954
      %956 = vrot.lane.b32.xlu0 %v952, 30
      %v957 = vpop.permute.xlu0 %956
      %958 = vrot.lane.b32.xlu0 %v953, 30
      %v959 = vpop.permute.xlu0 %958
      %vm960 = vcmask 244736
      %v961 = vsel %vm960, %v955, %v957
      %v962 = vsel %vm960, %v957, %v959
      %965 = vst [vmem:[#allocation9 + $0x20] sm:$0xf] %v961
      %966 = vst [vmem:[#allocation9 + $0x28] sm:$0xf] %v962
      %v967 = vld [vmem:[#allocation2] sm:$0xff]
      %v968 = vld [vmem:[#allocation2 + $0x8] sm:$0xf]
      %s969 = scalar_lea.vmem %s15, 5
      %v970 = vld [vmem:[%s969] ss:$8 sm:$0x3]
      %v972 = vperm.slane %v970, 0
      %v973 = vperm.slane %v970, 1
      %v974 = vrot.slane %v973, 4
      %v975 = vsel %vm777, %v972, %v974
      %976 = vrot.lane.b32.xlu0 %v975, 110
      %v977 = vpop.permute.xlu0 %976
      %v978 = vrot.slane %v977, 4
      %vm979 = vcmask 900096
      %v980 = vsel %vm979, %v978, %v977
      %v983 = vmul.f32 %v967, %v980
      %v984 = vmul.f32 %v968, %v978
      %s987 = scalar_lea.vmem [#allocation1], 1
      %988 = vst [vmem:[%s987] ss:$2 sm:$0xff] %v983
      %s989 = scalar_lea.vmem [#allocation1], 17
      %990 = vst [vmem:[%s989] ss:$2 sm:$0xff] %v984
      %v991 = vld.sshfl [vmem:[#allocation1] sm:$0xff pattern:$0x75316420]
      %v992 = vld.sshfl [vmem:[#allocation1 + $0x8] sm:$0xff pattern:$0x75316420]
      %v993 = vld.sshfl [vmem:[#allocation1 + $0x10] sm:$0xff pattern:$0x75316420]
      %994 = vrot.lane.b32.xlu0 %v991, 18
      %v995 = vpop.permute.xlu0 %994
      %996 = vrot.lane.b32.xlu0 %v992, 18
      %v997 = vpop.permute.xlu0 %996
      %998 = vrot.lane.b32.xlu0 %v993, 18
      %v999 = vpop.permute.xlu0 %998
      %vm1000 = vcmask 146432
      %v1001 = vsel %vm1000, %v995, %v997
      %v1002 = vsel %vm1000, %v997, %v999
      %1005 = vst [vmem:[#allocation9 + $0x20] sm:$0xf0] %v1001
      %1006 = vst [vmem:[#allocation9 + $0x28] sm:$0xf0] %v1002
      %v1007 = vld [vmem:[#allocation2] sm:$0xff]
      %v1008 = vld [vmem:[#allocation2 + $0x8] sm:$0xf]
      %s1009 = scalar_lea.vmem %s15, 6
      %v1010 = vld [vmem:[%s1009] ss:$8 sm:$0x3]
      %v1012 = vperm.slane %v1010, 0
      %v1013 = vperm.slane %v1010, 1
      %v1014 = vrot.slane %v1013, 4
      %v1015 = vsel %vm777, %v1012, %v1014
      %1016 = vrot.lane.b32.xlu0 %v1015, 111
      %v1017 = vpop.permute.xlu0 %1016
      %v1018 = vrot.slane %v1017, 4
      %vm1019 = vcmask 908288
      %v1020 = vsel %vm1019, %v1018, %v1017
      %v1023 = vmul.f32 %v1007, %v1020
      %v1024 = vmul.f32 %v1008, %v1018
      %1027 = vst [vmem:[#allocation1] ss:$2 sm:$0xff] %v1023
      %s1028 = scalar_lea.vmem [#allocation1], 16
      %1029 = vst [vmem:[%s1028] ss:$2 sm:$0xff] %v1024
      %v1030 = vld.sshfl [vmem:[#allocation1] sm:$0xff pattern:$0x75316420]
      %v1031 = vld.sshfl [vmem:[#allocation1 + $0x8] sm:$0xff pattern:$0x75316420]
      %v1032 = vld.sshfl [vmem:[#allocation1 + $0x10] sm:$0xff pattern:$0x75316420]
      %1033 = vrot.lane.b32.xlu0 %v1030, 17
      %v1034 = vpop.permute.xlu0 %1033
      %1035 = vrot.lane.b32.xlu0 %v1031, 17
      %v1036 = vpop.permute.xlu0 %1035
      %1037 = vrot.lane.b32.xlu0 %v1032, 17
      %v1038 = vpop.permute.xlu0 %1037
      %vm1039 = vcmask 138240
      %v1040 = vsel %vm1039, %v1034, %v1036
      %v1041 = vsel %vm1039, %v1036, %v1038
      %1044 = vst [vmem:[#allocation9 + $0x30] sm:$0xf] %v1040
      %1045 = vst [vmem:[#allocation9 + $0x38] sm:$0xf] %v1041
      %v1046 = vld [vmem:[#allocation2] sm:$0xff]
      %v1047 = vld [vmem:[#allocation2 + $0x8] sm:$0xf]
      %s1048 = scalar_lea.vmem %s15, 7
      %v1049 = vld [vmem:[%s1048] ss:$8 sm:$0x3]
      %v1051 = vperm.slane %v1049, 0
      %v1052 = vperm.slane %v1049, 1
      %v1053 = vrot.slane %v1052, 4
      %v1054 = vsel %vm777, %v1051, %v1053
      %1055 = vrot.lane.b32.xlu0 %v1054, 112
      %v1056 = vpop.permute.xlu0 %1055
      %v1057 = vrot.slane %v1056, 4
      %vm1058 = vcmask 916480
      %v1059 = vsel %vm1058, %v1057, %v1056
      %v1062 = vmul.f32 %v1046, %v1059
      %v1063 = vmul.f32 %v1047, %v1057
      %s1066 = scalar_lea.vmem [#allocation1], 1
      %1067 = vst [vmem:[%s1066] ss:$2 sm:$0xff] %v1062
      %s1068 = scalar_lea.vmem [#allocation1], 17
      %1069 = vst [vmem:[%s1068] ss:$2 sm:$0xff] %v1063
      %v1070 = vld.sshfl [vmem:[#allocation1] sm:$0xff pattern:$0x75316420]
      %v1071 = vld.sshfl [vmem:[#allocation1 + $0x8] sm:$0xff pattern:$0x75316420]
      %v1072 = vld.sshfl [vmem:[#allocation1 + $0x10] sm:$0xff pattern:$0x75316420]
      %1073 = vrot.lane.b32.xlu0 %v1070, 16
      %v1074 = vpop.permute.xlu0 %1073
      %1075 = vrot.lane.b32.xlu0 %v1071, 16
      %v1076 = vpop.permute.xlu0 %1075
      %1077 = vrot.lane.b32.xlu0 %v1072, 16
      %v1078 = vpop.permute.xlu0 %1077
      %vm1079 = vcmask 130048
      %v1080 = vsel %vm1079, %v1074, %v1076
      %v1081 = vsel %vm1079, %v1076, %v1078
      %1084 = vst [vmem:[#allocation9 + $0x30] sm:$0xf0] %v1080
      %1085 = vst [vmem:[#allocation9 + $0x38] sm:$0xf0] %v1081
      %v1086 = vld [vmem:[#allocation2] sm:$0xff]
      %v1087 = vld [vmem:[#allocation2 + $0x8] sm:$0xf]
      %s1088 = scalar_lea.vmem %s15, 16
      %v1089 = vld [vmem:[%s1088] ss:$8 sm:$0x3]
      %v1091 = vperm.slane %v1089, 0
      %v1092 = vperm.slane %v1089, 1
      %v1093 = vrot.slane %v1092, 4
      %v1094 = vsel %vm777, %v1091, %v1093
      %1095 = vrot.lane.b32.xlu0 %v1094, 113
      %v1096 = vpop.permute.xlu0 %1095
      %v1097 = vrot.slane %v1096, 4
      %vm1098 = vcmask 924672
      %v1099 = vsel %vm1098, %v1097, %v1096
      %v1102 = vmul.f32 %v1086, %v1099
      %v1103 = vmul.f32 %v1087, %v1097
      %1106 = vst [vmem:[#allocation1] ss:$2 sm:$0xff] %v1102
      %s1107 = scalar_lea.vmem [#allocation1], 16
      %1108 = vst [vmem:[%s1107] ss:$2 sm:$0xff] %v1103
      %v1109 = vld.sshfl [vmem:[#allocation1] sm:$0xff pattern:$0x75316420]
      %v1110 = vld.sshfl [vmem:[#allocation1 + $0x8] sm:$0xff pattern:$0x75316420]
      %v1111 = vld.sshfl [vmem:[#allocation1 + $0x10] sm:$0xff pattern:$0x75316420]
      %1112 = vrot.lane.b32.xlu0 %v1109, 15
      %v1113 = vpop.permute.xlu0 %1112
      %1114 = vrot.lane.b32.xlu0 %v1110, 15
      %v1115 = vpop.permute.xlu0 %1114
      %1116 = vrot.lane.b32.xlu0 %v1111, 15
      %v1117 = vpop.permute.xlu0 %1116
      %vm1118 = vcmask 121856
      %v1119 = vsel %vm1118, %v1113, %v1115
      %v1120 = vsel %vm1118, %v1115, %v1117
      %1123 = vst [vmem:[#allocation9 + $0x40] sm:$0xf] %v1119
      %1124 = vst [vmem:[#allocation9 + $0x48] sm:$0xf] %v1120
      %v1125 = vld [vmem:[#allocation2] sm:$0xff]
      %v1126 = vld [vmem:[#allocation2 + $0x8] sm:$0xf]
      %s1127 = scalar_lea.vmem %s15, 17
      %v1128 = vld [vmem:[%s1127] ss:$8 sm:$0x3]
      %v1130 = vperm.slane %v1128, 0
      %v1131 = vperm.slane %v1128, 1
      %v1132 = vrot.slane %v1131, 4
      %v1133 = vsel %vm777, %v1130, %v1132
      %1134 = vrot.lane.b32.xlu0 %v1133, 114
      %v1135 = vpop.permute.xlu0 %1134
      %v1136 = vrot.slane %v1135, 4
      %vm1137 = vcmask 932864
      %v1138 = vsel %vm1137, %v1136, %v1135
      %v1141 = vmul.f32 %v1125, %v1138
      %v1142 = vmul.f32 %v1126, %v1136
      %s1145 = scalar_lea.vmem [#allocation1], 1
      %1146 = vst [vmem:[%s1145] ss:$2 sm:$0xff] %v1141
      %s1147 = scalar_lea.vmem [#allocation1], 17
      %1148 = vst [vmem:[%s1147] ss:$2 sm:$0xff] %v1142
      %v1149 = vld.sshfl [vmem:[#allocation1] sm:$0xff pattern:$0x75316420]
      %v1150 = vld.sshfl [vmem:[#allocation1 + $0x8] sm:$0xff pattern:$0x75316420]
      %v1151 = vld.sshfl [vmem:[#allocation1 + $0x10] sm:$0xff pattern:$0x75316420]
      %1152 = vrot.lane.b32.xlu0 %v1149, 14
      %v1153 = vpop.permute.xlu0 %1152
      %1154 = vrot.lane.b32.xlu0 %v1150, 14
      %v1155 = vpop.permute.xlu0 %1154
      %1156 = vrot.lane.b32.xlu0 %v1151, 14
      %v1157 = vpop.permute.xlu0 %1156
      %vm1158 = vcmask 113664
      %v1159 = vsel %vm1158, %v1153, %v1155
      %v1160 = vsel %vm1158, %v1155, %v1157
      %1163 = vst [vmem:[#allocation9 + $0x40] sm:$0xf0] %v1159
      %1164 = vst [vmem:[#allocation9 + $0x48] sm:$0xf0] %v1160
      %v1165 = vld [vmem:[#allocation2] sm:$0xff]
      %v1166 = vld [vmem:[#allocation2 + $0x8] sm:$0xf]
      %s1167 = scalar_lea.vmem %s15, 18
      %v1168 = vld [vmem:[%s1167] ss:$8 sm:$0x3]
      %v1170 = vperm.slane %v1168, 0
      %v1171 = vperm.slane %v1168, 1
      %v1172 = vrot.slane %v1171, 4
      %v1173 = vsel %vm777, %v1170, %v1172
      %1174 = vrot.lane.b32.xlu0 %v1173, 126
      %v1175 = vpop.permute.xlu0 %1174
      %v1176 = vrot.slane %v1175, 4
      %vm1177 = vcmask 1031168
      %v1178 = vsel %vm1177, %v1176, %v1175
      %v1181 = vmul.f32 %v1165, %v1178
      %v1182 = vmul.f32 %v1166, %v1176
      %1185 = vst [vmem:[#allocation1] ss:$2 sm:$0xff] %v1181
      %s1186 = scalar_lea.vmem [#allocation1], 16
      %1187 = vst [vmem:[%s1186] ss:$2 sm:$0xff] %v1182
      %v1188 = vld.sshfl [vmem:[#allocation1] sm:$0xff pattern:$0x75316420]
      %v1189 = vld.sshfl [vmem:[#allocation1 + $0x8] sm:$0xff pattern:$0x75316420]
      %v1190 = vld.sshfl [vmem:[#allocation1 + $0x10] sm:$0xff pattern:$0x75316420]
      %1191 = vrot.lane.b32.xlu0 %v1188, 2
      %v1192 = vpop.permute.xlu0 %1191
      %1193 = vrot.lane.b32.xlu0 %v1189, 2
      %v1194 = vpop.permute.xlu0 %1193
      %1195 = vrot.lane.b32.xlu0 %v1190, 2
      %v1196 = vpop.permute.xlu0 %1195
      %vm1197 = vcmask 15360
      %v1198 = vsel %vm1197, %v1192, %v1194
      %v1199 = vsel %vm1197, %v1194, %v1196
      %1202 = vst [vmem:[#allocation9 + $0x50] sm:$0xf] %v1198
      %1203 = vst [vmem:[#allocation9 + $0x58] sm:$0xf] %v1199
      %v1204 = vld [vmem:[#allocation2] sm:$0xff]
      %v1205 = vld [vmem:[#allocation2 + $0x8] sm:$0xf]
      %s1206 = scalar_lea.vmem %s15, 19
      %v1207 = vld [vmem:[%s1206] ss:$8 sm:$0x3]
      %v1209 = vperm.slane %v1207, 0
      %v1210 = vperm.slane %v1207, 1
      %v1211 = vrot.slane %v1210, 4
      %v1212 = vsel %vm777, %v1209, %v1211
      %1213 = vrot.lane.b32.xlu0 %v1212, 127
      %v1214 = vpop.permute.xlu0 %1213
      %v1215 = vrot.slane %v1214, 4
      %vm1216 = vcmask 1039360
      %v1217 = vsel %vm1216, %v1215, %v1214
      %v1220 = vmul.f32 %v1204, %v1217
      %v1221 = vmul.f32 %v1205, %v1215
      %s1224 = scalar_lea.vmem [#allocation1], 1
      %1225 = vst [vmem:[%s1224] ss:$2 sm:$0xff] %v1220
      %s1226 = scalar_lea.vmem [#allocation1], 17
      %1227 = vst [vmem:[%s1226] ss:$2 sm:$0xff] %v1221
      %v1228 = vld.sshfl [vmem:[#allocation1] sm:$0xff pattern:$0x75316420]
      %v1229 = vld.sshfl [vmem:[#allocation1 + $0x8] sm:$0xff pattern:$0x75316420]
      %v1230 = vld.sshfl [vmem:[#allocation1 + $0x10] sm:$0xff pattern:$0x75316420]
      %1231 = vrot.lane.b32.xlu0 %v1228, 1
      %v1232 = vpop.permute.xlu0 %1231
      %1233 = vrot.lane.b32.xlu0 %v1229, 1
      %v1234 = vpop.permute.xlu0 %1233
      %1235 = vrot.lane.b32.xlu0 %v1230, 1
      %v1236 = vpop.permute.xlu0 %1235
      %vm1237 = vcmask 7168
      %v1238 = vsel %vm1237, %v1232, %v1234
      %v1239 = vsel %vm1237, %v1234, %v1236
      %1242 = vst [vmem:[#allocation9 + $0x50] sm:$0xf0] %v1238
      %1243 = vst [vmem:[#allocation9 + $0x58] sm:$0xf0] %v1239
      %v1244 = vld [vmem:[#allocation2 + $0x4] sm:$0xff]
      %1246 = vst [vmem:[#allocation1] ss:$2 sm:$0xff] %v1244
      %v1247 = vld.sshfl [vmem:[#allocation1] sm:$0xff pattern:$0x75316420]
      %v1248 = vld.sshfl [vmem:[#allocation1 + $0x8] sm:$0xff pattern:$0x75316420]
      %1251 = vst [vmem:[#allocation9 + $0x60] sm:$0xf] %v1247
      %1252 = vst [vmem:[#allocation9 + $0x68] sm:$0xf] %v1248
      %v1253 = vld [vmem:[#allocation2 + $0x4] sm:$0xff]
      %v1254 = vld [vmem:[#allocation2 + $0xc] sm:$0xf]
      %s1255 = scalar_lea.vmem %s15, 21
      %v1256 = vld [vmem:[%s1255] ss:$8 sm:$0x3]
      %v1258 = vperm.slane %v1256, 0
      %v1259 = vperm.slane %v1256, 1
      %v1260 = vrot.slane %v1259, 4
      %v1261 = vsel %vm777, %v1258, %v1260
      %1262 = vrot.lane.b32.xlu0 %v1261, 1
      %v1263 = vpop.permute.xlu0 %1262
      %v1264 = vrot.slane %v1263, 4
      %v1265 = vsel %vm1237, %v1264, %v1263
      %v1268 = vmul.f32 %v1253, %v1265
      %v1269 = vmul.f32 %v1254, %v1264
      %s1272 = scalar_lea.vmem [#allocation1], 1
      %1273 = vst [vmem:[%s1272] ss:$2 sm:$0xff] %v1268
      %s1274 = scalar_lea.vmem [#allocation1], 17
      %1275 = vst [vmem:[%s1274] ss:$2 sm:$0xff] %v1269
      %v1276 = vld.sshfl [vmem:[#allocation1] sm:$0xff pattern:$0x75316420]
      %v1277 = vld.sshfl [vmem:[#allocation1 + $0x8] sm:$0xff pattern:$0x75316420]
      %v1278 = vld.sshfl [vmem:[#allocation1 + $0x10] sm:$0xff pattern:$0x75316420]
      %1279 = vrot.lane.b32.xlu0 %v1276, 127
      %v1280 = vpop.permute.xlu0 %1279
      %1281 = vrot.lane.b32.xlu0 %v1277, 127
      %v1282 = vpop.permute.xlu0 %1281
      %1283 = vrot.lane.b32.xlu0 %v1278, 127
      %v1284 = vpop.permute.xlu0 %1283
      %v1285 = vsel %vm1216, %v1280, %v1282
      %v1286 = vsel %vm1216, %v1282, %v1284
      %1289 = vst [vmem:[#allocation9 + $0x60] sm:$0xf0] %v1285
      %1290 = vst [vmem:[#allocation9 + $0x68] sm:$0xf0] %v1286
      %v1291 = vld [vmem:[#allocation2 + $0x4] sm:$0xff]
      %v1292 = vld [vmem:[#allocation2 + $0xc] sm:$0xf]
      %s1293 = scalar_lea.vmem %s15, 22
      %v1294 = vld [vmem:[%s1293] ss:$8 sm:$0x3]
      %v1296 = vperm.slane %v1294, 0
      %v1297 = vperm.slane %v1294, 1
      %v1298 = vrot.slane %v1297, 4
      %v1299 = vsel %vm777, %v1296, %v1298
      %1300 = vrot.lane.b32.xlu0 %v1299, 2
      %v1301 = vpop.permute.xlu0 %1300
      %v1302 = vrot.slane %v1301, 4
      %v1303 = vsel %vm1197, %v1302, %v1301
      %v1306 = vmul.f32 %v1291, %v1303
      %v1307 = vmul.f32 %v1292, %v1302
      %1310 = vst [vmem:[#allocation1] ss:$2 sm:$0xff] %v1306
      %s1311 = scalar_lea.vmem [#allocation1], 16
      %1312 = vst [vmem:[%s1311] ss:$2 sm:$0xff] %v1307
      %v1313 = vld.sshfl [vmem:[#allocation1] sm:$0xff pattern:$0x75316420]
      %v1314 = vld.sshfl [vmem:[#allocation1 + $0x8] sm:$0xff pattern:$0x75316420]
      %v1315 = vld.sshfl [vmem:[#allocation1 + $0x10] sm:$0xff pattern:$0x75316420]
      %1316 = vrot.lane.b32.xlu0 %v1313, 126
      %v1317 = vpop.permute.xlu0 %1316
      %1318 = vrot.lane.b32.xlu0 %v1314, 126
      %v1319 = vpop.permute.xlu0 %1318
      %1320 = vrot.lane.b32.xlu0 %v1315, 126
      %v1321 = vpop.permute.xlu0 %1320
      %v1322 = vsel %vm1177, %v1317, %v1319
      %v1323 = vsel %vm1177, %v1319, %v1321
      %1326 = vst [vmem:[#allocation9 + $0x70] sm:$0xf] %v1322
      %1327 = vst [vmem:[#allocation9 + $0x78] sm:$0xf] %v1323
      %v1328 = vld [vmem:[#allocation2 + $0x4] sm:$0xff]
      %v1329 = vld [vmem:[#allocation2 + $0xc] sm:$0xf]
      %s1330 = scalar_lea.vmem %s15, 23
      %v1331 = vld [vmem:[%s1330] ss:$8 sm:$0x3]
      %v1333 = vperm.slane %v1331, 0
      %v1334 = vperm.slane %v1331, 1
      %v1335 = vrot.slane %v1334, 4
      %v1336 = vsel %vm777, %v1333, %v1335
      %1337 = vrot.lane.b32.xlu0 %v1336, 14
      %v1338 = vpop.permute.xlu0 %1337
      %v1339 = vrot.slane %v1338, 4
      %v1340 = vsel %vm1158, %v1339, %v1338
      %v1343 = vmul.f32 %v1328, %v1340
      %v1344 = vmul.f32 %v1329, %v1339
      %s1347 = scalar_lea.vmem [#allocation1], 1
      %1348 = vst [vmem:[%s1347] ss:$2 sm:$0xff] %v1343
      %s1349 = scalar_lea.vmem [#allocation1], 17
      %1350 = vst [vmem:[%s1349] ss:$2 sm:$0xff] %v1344
      %v1351 = vld.sshfl [vmem:[#allocation1] sm:$0xff pattern:$0x75316420]
      %v1352 = vld.sshfl [vmem:[#allocation1 + $0x8] sm:$0xff pattern:$0x75316420]
      %v1353 = vld.sshfl [vmem:[#allocation1 + $0x10] sm:$0xff pattern:$0x75316420]
      %1354 = vrot.lane.b32.xlu0 %v1351, 114
      %v1355 = vpop.permute.xlu0 %1354
      %1356 = vrot.lane.b32.xlu0 %v1352, 114
      %v1357 = vpop.permute.xlu0 %1356
      %1358 = vrot.lane.b32.xlu0 %v1353, 114
      %v1359 = vpop.permute.xlu0 %1358
      %v1360 = vsel %vm1137, %v1355, %v1357
      %v1361 = vsel %vm1137, %v1357, %v1359
      %1364 = vst [vmem:[#allocation9 + $0x70] sm:$0xf0] %v1360
      %1365 = vst [vmem:[#allocation9 + $0x78] sm:$0xf0] %v1361
      %v1366 = vld [vmem:[#allocation2 + $0x4] sm:$0xff]
      %v1367 = vld [vmem:[#allocation2 + $0xc] sm:$0xf]
      %s1368 = scalar_lea.vmem %s15, 32
      %v1369 = vld [vmem:[%s1368] ss:$8 sm:$0x3]
      %v1371 = vperm.slane %v1369, 0
      %v1372 = vperm.slane %v1369, 1
      %v1373 = vrot.slane %v1372, 4
      %v1374 = vsel %vm777, %v1371, %v1373
      %1375 = vrot.lane.b32.xlu0 %v1374, 15
      %v1376 = vpop.permute.xlu0 %1375
      %v1377 = vrot.slane %v1376, 4
      %v1378 = vsel %vm1118, %v1377, %v1376
      %v1381 = vmul.f32 %v1366, %v1378
      %v1382 = vmul.f32 %v1367, %v1377
      %1385 = vst [vmem:[#allocation1] ss:$2 sm:$0xff] %v1381
      %s1386 = scalar_lea.vmem [#allocation1], 16
      %1387 = vst [vmem:[%s1386] ss:$2 sm:$0xff] %v1382
      %v1388 = vld.sshfl [vmem:[#allocation1] sm:$0xff pattern:$0x75316420]
      %v1389 = vld.sshfl [vmem:[#allocation1 + $0x8] sm:$0xff pattern:$0x75316420]
      %v1390 = vld.sshfl [vmem:[#allocation1 + $0x10] sm:$0xff pattern:$0x75316420]
      %1391 = vrot.lane.b32.xlu0 %v1388, 113
      %v1392 = vpop.permute.xlu0 %1391
      %1393 = vrot.lane.b32.xlu0 %v1389, 113
      %v1394 = vpop.permute.xlu0 %1393
      %1395 = vrot.lane.b32.xlu0 %v1390, 113
      %v1396 = vpop.permute.xlu0 %1395
      %v1397 = vsel %vm1098, %v1392, %v1394
      %v1398 = vsel %vm1098, %v1394, %v1396
      %1401 = vst [vmem:[#allocation9 + $0x80] sm:$0xf] %v1397
      %1402 = vst [vmem:[#allocation9 + $0x88] sm:$0xf] %v1398
      %v1403 = vld [vmem:[#allocation2 + $0x4] sm:$0xff]
      %v1404 = vld [vmem:[#allocation2 + $0xc] sm:$0xf]
      %s1405 = scalar_lea.vmem %s15, 33
      %v1406 = vld [vmem:[%s1405] ss:$8 sm:$0x3]
      %v1408 = vperm.slane %v1406, 0
      %v1409 = vperm.slane %v1406, 1
      %v1410 = vrot.slane %v1409, 4
      %v1411 = vsel %vm777, %v1408, %v1410
      %1412 = vrot.lane.b32.xlu0 %v1411, 16
      %v1413 = vpop.permute.xlu0 %1412
      %v1414 = vrot.slane %v1413, 4
      %v1415 = vsel %vm1079, %v1414, %v1413
      %v1418 = vmul.f32 %v1403, %v1415
      %v1419 = vmul.f32 %v1404, %v1414
      %s1422 = scalar_lea.vmem [#allocation1], 1
      %1423 = vst [vmem:[%s1422] ss:$2 sm:$0xff] %v1418
      %s1424 = scalar_lea.vmem [#allocation1], 17
      %1425 = vst [vmem:[%s1424] ss:$2 sm:$0xff] %v1419
      %v1426 = vld.sshfl [vmem:[#allocation1] sm:$0xff pattern:$0x75316420]
      %v1427 = vld.sshfl [vmem:[#allocation1 + $0x8] sm:$0xff pattern:$0x75316420]
      %v1428 = vld.sshfl [vmem:[#allocation1 + $0x10] sm:$0xff pattern:$0x75316420]
      %1429 = vrot.lane.b32.xlu0 %v1426, 112
      %v1430 = vpop.permute.xlu0 %1429
      %1431 = vrot.lane.b32.xlu0 %v1427, 112
      %v1432 = vpop.permute.xlu0 %1431
      %1433 = vrot.lane.b32.xlu0 %v1428, 112
      %v1434 = vpop.permute.xlu0 %1433
      %v1435 = vsel %vm1058, %v1430, %v1432
      %v1436 = vsel %vm1058, %v1432, %v1434
      %1439 = vst [vmem:[#allocation9 + $0x80] sm:$0xf0] %v1435
      %1440 = vst [vmem:[#allocation9 + $0x88] sm:$0xf0] %v1436
      %v1441 = vld [vmem:[#allocation2 + $0x4] sm:$0xff]
      %v1442 = vld [vmem:[#allocation2 + $0xc] sm:$0xf]
      %s1443 = scalar_lea.vmem %s15, 34
      %v1444 = vld [vmem:[%s1443] ss:$8 sm:$0x3]
      %v1446 = vperm.slane %v1444, 0
      %v1447 = vperm.slane %v1444, 1
      %v1448 = vrot.slane %v1447, 4
      %v1449 = vsel %vm777, %v1446, %v1448
      %1450 = vrot.lane.b32.xlu0 %v1449, 17
      %v1451 = vpop.permute.xlu0 %1450
      %v1452 = vrot.slane %v1451, 4
      %v1453 = vsel %vm1039, %v1452, %v1451
      %v1456 = vmul.f32 %v1441, %v1453
      %v1457 = vmul.f32 %v1442, %v1452
      %1460 = vst [vmem:[#allocation1] ss:$2 sm:$0xff] %v1456
      %s1461 = scalar_lea.vmem [#allocation1], 16
      %1462 = vst [vmem:[%s1461] ss:$2 sm:$0xff] %v1457
      %v1463 = vld.sshfl [vmem:[#allocation1] sm:$0xff pattern:$0x75316420]
      %v1464 = vld.sshfl [vmem:[#allocation1 + $0x8] sm:$0xff pattern:$0x75316420]
      %v1465 = vld.sshfl [vmem:[#allocation1 + $0x10] sm:$0xff pattern:$0x75316420]
      %1466 = vrot.lane.b32.xlu0 %v1463, 111
      %v1467 = vpop.permute.xlu0 %1466
      %1468 = vrot.lane.b32.xlu0 %v1464, 111
      %v1469 = vpop.permute.xlu0 %1468
      %1470 = vrot.lane.b32.xlu0 %v1465, 111
      %v1471 = vpop.permute.xlu0 %1470
      %v1472 = vsel %vm1019, %v1467, %v1469
      %v1473 = vsel %vm1019, %v1469, %v1471
      %1476 = vst [vmem:[#allocation9 + $0x90] sm:$0xf] %v1472
      %1477 = vst [vmem:[#allocation9 + $0x98] sm:$0xf] %v1473
      %v1478 = vld [vmem:[#allocation2 + $0x4] sm:$0xff]
      %v1479 = vld [vmem:[#allocation2 + $0xc] sm:$0xf]
      %s1480 = scalar_lea.vmem %s15, 35
      %v1481 = vld [vmem:[%s1480] ss:$8 sm:$0x3]
      %v1483 = vperm.slane %v1481, 0
      %v1484 = vperm.slane %v1481, 1
      %v1485 = vrot.slane %v1484, 4
      %v1486 = vsel %vm777, %v1483, %v1485
      %1487 = vrot.lane.b32.xlu0 %v1486, 18
      %v1488 = vpop.permute.xlu0 %1487
      %v1489 = vrot.slane %v1488, 4
      %v1490 = vsel %vm1000, %v1489, %v1488
      %v1493 = vmul.f32 %v1478, %v1490
      %v1494 = vmul.f32 %v1479, %v1489
      %s1497 = scalar_lea.vmem [#allocation1], 1
      %1498 = vst [vmem:[%s1497] ss:$2 sm:$0xff] %v1493
      %s1499 = scalar_lea.vmem [#allocation1], 17
      %1500 = vst [vmem:[%s1499] ss:$2 sm:$0xff] %v1494
      %v1501 = vld.sshfl [vmem:[#allocation1] sm:$0xff pattern:$0x75316420]
      %v1502 = vld.sshfl [vmem:[#allocation1 + $0x8] sm:$0xff pattern:$0x75316420]
      %v1503 = vld.sshfl [vmem:[#allocation1 + $0x10] sm:$0xff pattern:$0x75316420]
      %1504 = vrot.lane.b32.xlu0 %v1501, 110
      %v1505 = vpop.permute.xlu0 %1504
      %1506 = vrot.lane.b32.xlu0 %v1502, 110
      %v1507 = vpop.permute.xlu0 %1506
      %1508 = vrot.lane.b32.xlu0 %v1503, 110
      %v1509 = vpop.permute.xlu0 %1508
      %v1510 = vsel %vm979, %v1505, %v1507
      %v1511 = vsel %vm979, %v1507, %v1509
      %1514 = vst [vmem:[#allocation9 + $0x90] sm:$0xf0] %v1510
      %1515 = vst [vmem:[#allocation9 + $0x98] sm:$0xf0] %v1511
      %v1516 = vld [vmem:[#allocation2 + $0x4] sm:$0xff]
      %v1517 = vld [vmem:[#allocation2 + $0xc] sm:$0xf]
      %s1518 = scalar_lea.vmem %s15, 36
      %v1519 = vld [vmem:[%s1518] ss:$8 sm:$0x3]
      %v1521 = vperm.slane %v1519, 0
      %v1522 = vperm.slane %v1519, 1
      %v1523 = vrot.slane %v1522, 4
      %v1524 = vsel %vm777, %v1521, %v1523
      %1525 = vrot.lane.b32.xlu0 %v1524, 30
      %v1526 = vpop.permute.xlu0 %1525
      %v1527 = vrot.slane %v1526, 4
      %v1528 = vsel %vm960, %v1527, %v1526
      %v1531 = vmul.f32 %v1516, %v1528
      %v1532 = vmul.f32 %v1517, %v1527
      %1535 = vst [vmem:[#allocation1] ss:$2 sm:$0xff] %v1531
      %s1536 = scalar_lea.vmem [#allocation1], 16
      %1537 = vst [vmem:[%s1536] ss:$2 sm:$0xff] %v1532
      %v1538 = vld.sshfl [vmem:[#allocation1] sm:$0xff pattern:$0x75316420]
      %v1539 = vld.sshfl [vmem:[#allocation1 + $0x8] sm:$0xff pattern:$0x75316420]
      %v1540 = vld.sshfl [vmem:[#allocation1 + $0x10] sm:$0xff pattern:$0x75316420]
      %1541 = vrot.lane.b32.xlu0 %v1538, 98
      %v1542 = vpop.permute.xlu0 %1541
      %1543 = vrot.lane.b32.xlu0 %v1539, 98
      %v1544 = vpop.permute.xlu0 %1543
      %1545 = vrot.lane.b32.xlu0 %v1540, 98
      %v1546 = vpop.permute.xlu0 %1545
      %v1547 = vsel %vm940, %v1542, %v1544
      %v1548 = vsel %vm940, %v1544, %v1546
      %1551 = vst [vmem:[#allocation9 + $0xa0] sm:$0xf] %v1547
      %1552 = vst [vmem:[#allocation9 + $0xa8] sm:$0xf] %v1548
      %v1553 = vld [vmem:[#allocation2 + $0x4] sm:$0xff]
      %v1554 = vld [vmem:[#allocation2 + $0xc] sm:$0xf]
      %s1555 = scalar_lea.vmem %s15, 37
      %v1556 = vld [vmem:[%s1555] ss:$8 sm:$0x3]
      %v1558 = vperm.slane %v1556, 0
      %v1559 = vperm.slane %v1556, 1
      %v1560 = vrot.slane %v1559, 4
      %v1561 = vsel %vm777, %v1558, %v1560
      %1562 = vrot.lane.b32.xlu0 %v1561, 31
      %v1563 = vpop.permute.xlu0 %1562
      %v1564 = vrot.slane %v1563, 4
      %v1565 = vsel %vm921, %v1564, %v1563
      %v1568 = vmul.f32 %v1553, %v1565
      %v1569 = vmul.f32 %v1554, %v1564
      %s1572 = scalar_lea.vmem [#allocation1], 1
      %1573 = vst [vmem:[%s1572] ss:$2 sm:$0xff] %v1568
      %s1574 = scalar_lea.vmem [#allocation1], 17
      %1575 = vst [vmem:[%s1574] ss:$2 sm:$0xff] %v1569
      %v1576 = vld.sshfl [vmem:[#allocation1] sm:$0xff pattern:$0x75316420]
      %v1577 = vld.sshfl [vmem:[#allocation1 + $0x8] sm:$0xff pattern:$0x75316420]
      %v1578 = vld.sshfl [vmem:[#allocation1 + $0x10] sm:$0xff pattern:$0x75316420]
      %1579 = vrot.lane.b32.xlu0 %v1576, 97
      %v1580 = vpop.permute.xlu0 %1579
      %1581 = vrot.lane.b32.xlu0 %v1577, 97
      %v1582 = vpop.permute.xlu0 %1581
      %1583 = vrot.lane.b32.xlu0 %v1578, 97
      %v1584 = vpop.permute.xlu0 %1583
      %v1585 = vsel %vm900, %v1580, %v1582
      %v1586 = vsel %vm900, %v1582, %v1584
      %1589 = vst [vmem:[#allocation9 + $0xa0] sm:$0xf0] %v1585
      %1590 = vst [vmem:[#allocation9 + $0xa8] sm:$0xf0] %v1586
      %v1591 = vld [vmem:[#allocation2 + $0x4] sm:$0xff]
      %v1592 = vld [vmem:[#allocation2 + $0xc] sm:$0xf]
      %s1593 = scalar_lea.vmem %s15, 38
      %v1594 = vld [vmem:[%s1593] ss:$8 sm:$0x3]
      %v1596 = vperm.slane %v1594, 0
      %v1597 = vperm.slane %v1594, 1
      %v1598 = vrot.slane %v1597, 4
      %v1599 = vsel %vm777, %v1596, %v1598
      %1600 = vrot.lane.b32.xlu0 %v1599, 32
      %v1601 = vpop.permute.xlu0 %1600
      %v1602 = vrot.slane %v1601, 4
      %v1603 = vsel %vm881, %v1602, %v1601
      %v1606 = vmul.f32 %v1591, %v1603
      %v1607 = vmul.f32 %v1592, %v1602
      %1610 = vst [vmem:[#allocation1] ss:$2 sm:$0xff] %v1606
      %s1611 = scalar_lea.vmem [#allocation1], 16
      %1612 = vst [vmem:[%s1611] ss:$2 sm:$0xff] %v1607
      %v1613 = vld.sshfl [vmem:[#allocation1] sm:$0xff pattern:$0x75316420]
      %v1614 = vld.sshfl [vmem:[#allocation1 + $0x8] sm:$0xff pattern:$0x75316420]
      %v1615 = vld.sshfl [vmem:[#allocation1 + $0x10] sm:$0xff pattern:$0x75316420]
      %1616 = vrot.lane.b32.xlu0 %v1613, 96
      %v1617 = vpop.permute.xlu0 %1616
      %1618 = vrot.lane.b32.xlu0 %v1614, 96
      %v1619 = vpop.permute.xlu0 %1618
      %1620 = vrot.lane.b32.xlu0 %v1615, 96
      %v1621 = vpop.permute.xlu0 %1620
      %v1622 = vsel %vm861, %v1617, %v1619
      %v1623 = vsel %vm861, %v1619, %v1621
      %1626 = vst [vmem:[#allocation9 + $0xb0] sm:$0xf] %v1622
      %1627 = vst [vmem:[#allocation9 + $0xb8] sm:$0xf] %v1623
      %v1628 = vld [vmem:[#allocation2 + $0x4] sm:$0xff]
      %v1629 = vld [vmem:[#allocation2 + $0xc] sm:$0xf]
      %s1630 = scalar_lea.vmem %s15, 39
      %v1631 = vld [vmem:[%s1630] ss:$8 sm:$0x3]
      %v1633 = vperm.slane %v1631, 0
      %v1634 = vperm.slane %v1631, 1
      %v1635 = vrot.slane %v1634, 4
      %v1636 = vsel %vm777, %v1633, %v1635
      %1637 = vrot.lane.b32.xlu0 %v1636, 33
      %v1638 = vpop.permute.xlu0 %1637
      %v1639 = vrot.slane %v1638, 4
      %v1640 = vsel %vm842, %v1639, %v1638
      %v1643 = vmul.f32 %v1628, %v1640
      %v1644 = vmul.f32 %v1629, %v1639
      %s1647 = scalar_lea.vmem [#allocation1], 1
      %1648 = vst [vmem:[%s1647] ss:$2 sm:$0xff] %v1643
      %s1649 = scalar_lea.vmem [#allocation1], 17
      %1650 = vst [vmem:[%s1649] ss:$2 sm:$0xff] %v1644
      %v1651 = vld.sshfl [vmem:[#allocation1] sm:$0xff pattern:$0x75316420]
      %v1652 = vld.sshfl [vmem:[#allocation1 + $0x8] sm:$0xff pattern:$0x75316420]
      %v1653 = vld.sshfl [vmem:[#allocation1 + $0x10] sm:$0xff pattern:$0x75316420]
      %1654 = vrot.lane.b32.xlu0 %v1651, 95
      %v1655 = vpop.permute.xlu0 %1654
      %1656 = vrot.lane.b32.xlu0 %v1652, 95
      %v1657 = vpop.permute.xlu0 %1656
      %1658 = vrot.lane.b32.xlu0 %v1653, 95
      %v1659 = vpop.permute.xlu0 %1658
      %v1660 = vsel %vm821, %v1655, %v1657
      %v1661 = vsel %vm821, %v1657, %v1659
      %1664 = vst [vmem:[#allocation9 + $0xb0] sm:$0xf0] %v1660
      %1665 = vst [vmem:[#allocation9 + $0xb8] sm:$0xf0] %v1661
      %v1666 = vld [vmem:[#allocation2 + $0x4] sm:$0xff]
      %v1667 = vld [vmem:[#allocation2 + $0xc] sm:$0xf]
      %s1668 = scalar_lea.vmem %s15, 48
      %v1669 = vld [vmem:[%s1668] ss:$8 sm:$0x3]
      %v1671 = vperm.slane %v1669, 0
      %v1672 = vperm.slane %v1669, 1
      %v1673 = vrot.slane %v1672, 4
      %v1674 = vsel %vm777, %v1671, %v1673
      %1675 = vrot.lane.b32.xlu0 %v1674, 34
      %v1676 = vpop.permute.xlu0 %1675
      %v1677 = vrot.slane %v1676, 4
      %v1678 = vsel %vm802, %v1677, %v1676
      %v1681 = vmul.f32 %v1666, %v1678
      %v1682 = vmul.f32 %v1667, %v1677
      %1685 = vst [vmem:[#allocation1] ss:$2 sm:$0xff] %v1681
      %s1686 = scalar_lea.vmem [#allocation1], 16
      %1687 = vst [vmem:[%s1686] ss:$2 sm:$0xff] %v1682
      %v1688 = vld.sshfl [vmem:[#allocation1] sm:$0xff pattern:$0x75316420]
      %v1689 = vld.sshfl [vmem:[#allocation1 + $0x8] sm:$0xff pattern:$0x75316420]
      %v1690 = vld.sshfl [vmem:[#allocation1 + $0x10] sm:$0xff pattern:$0x75316420]
      %1691 = vrot.lane.b32.xlu0 %v1688, 94
      %v1692 = vpop.permute.xlu0 %1691
      %1693 = vrot.lane.b32.xlu0 %v1689, 94
      %v1694 = vpop.permute.xlu0 %1693
      %1695 = vrot.lane.b32.xlu0 %v1690, 94
      %v1696 = vpop.permute.xlu0 %1695
      %v1697 = vsel %vm782, %v1692, %v1694
      %v1698 = vsel %vm782, %v1694, %v1696
      %1701 = vst [vmem:[#allocation9 + $0xc0] sm:$0xf] %v1697
      %1702 = vst [vmem:[#allocation9 + $0xc8] sm:$0xf] %v1698
      %v1703 = vld [vmem:[%s1] sm:$0xf]
      %v1704 = vld [vmem:[#allocation9] sm:$0xff]
      %v1705 = vld [vmem:[#allocation9 + $0x8] sm:$0xff]
      %v1706 = vld [vmem:[#allocation9 + $0x10] sm:$0xff]
      %v1707 = vld [vmem:[#allocation9 + $0x18] sm:$0xff]
      %v1708 = vld [vmem:[#allocation9 + $0x20] sm:$0xff]
      %v1709 = vld [vmem:[#allocation9 + $0x28] sm:$0xff]
      %v1710 = vld [vmem:[#allocation9 + $0x30] sm:$0xff]
      %v1711 = vld [vmem:[#allocation9 + $0x38] sm:$0xff]
      %v1712 = vld [vmem:[#allocation9 + $0x40] sm:$0xff]
      %v1713 = vld [vmem:[#allocation9 + $0x48] sm:$0xff]
      %v1714 = vld [vmem:[#allocation9 + $0x50] sm:$0xff]
      %v1715 = vld [vmem:[#allocation9 + $0x58] sm:$0xff]
      %v1716 = vld [vmem:[#allocation9 + $0x60] sm:$0xff]
      %v1717 = vld [vmem:[#allocation9 + $0x68] sm:$0xff]
      %v1718 = vld [vmem:[#allocation9 + $0x70] sm:$0xff]
      %v1719 = vld [vmem:[#allocation9 + $0x78] sm:$0xff]
      %v1720 = vld [vmem:[#allocation9 + $0x80] sm:$0xff]
      %v1721 = vld [vmem:[#allocation9 + $0x88] sm:$0xff]
      %v1722 = vld [vmem:[#allocation9 + $0x90] sm:$0xff]
      %v1723 = vld [vmem:[#allocation9 + $0x98] sm:$0xff]
      %v1724 = vld [vmem:[#allocation9 + $0xa0] sm:$0xff]
      %v1725 = vld [vmem:[#allocation9 + $0xa8] sm:$0xff]
      %v1726 = vld [vmem:[#allocation9 + $0xb0] sm:$0xff]
      %v1727 = vld [vmem:[#allocation9 + $0xb8] sm:$0xff]
      %v1728 = vld [vmem:[#allocation9 + $0xc0] sm:$0xf]
      %v1729 = vld [vmem:[#allocation9 + $0xc8] sm:$0xf]
      %v1730 = vpack.c.bf16 %v1706, %v1704
      %v1731 = vpack.c.bf16 %v1707, %v1705
      %v1732 = vpack.c.bf16 %v1710, %v1708
      %v1733 = vpack.c.bf16 %v1711, %v1709
      %v1734 = vpack.c.bf16 %v1714, %v1712
      %v1735 = vpack.c.bf16 %v1715, %v1713
      %v1736 = vpack.c.bf16 %v1718, %v1716
      %v1737 = vpack.c.bf16 %v1719, %v1717
      %v1738 = vpack.c.bf16 %v1722, %v1720
      %v1739 = vpack.c.bf16 %v1723, %v1721
      %v1740 = vpack.c.bf16 %v1726, %v1724
      %v1741 = vpack.c.bf16 %v1727, %v1725
      %v1742 = vpack.c.bf16 %v1728, %v1728
      %v1743 = vpack.c.bf16 %v1729, %v1729
      %v1744 = vld [vmem:[%s2] sm:$0xff]
      %1746 = vset.pattern.permute.xlu0 0
      %1747 = vperm.xlu0 %1746, %v1744
      %v1748 = vpop.permute.xlu0 %1747
      %vm1750 = vcmask 818176
      %v1752 = vsel %vm1750, %v1703, 0
      %vm1754 = vcmask 1041408
      %v1756 = vsel %vm1754, %v1742, 0
      %v1759 = vsel %vm1754, %v1743, 0
      %1761 = vmatpush.bf16.msra.mxu0 0
      %1762 = vmatpush.bf16.msra.mxu0 %v1756
      %1763 = vmatpush.bf16.msra.mxu0 %v1740
      %1764 = vmatpush.bf16.msra.mxu0 %v1738
      %1765 = vmatpush.bf16.msra.mxu0 %v1736
      %1766 = vmatpush.bf16.msra.mxu0 %v1734
      %1767 = vmatpush.bf16.msra.mxu0 %v1732
      %1768 = vmatpush.bf16.msra.mxu0 %v1730
      %1769 = vmatmul.bf16.gmra.mxu0 %v1752
      %v1770 = vpop.f32.mrf.mxu0
      %v1771 = vadd.f32 %v1748, %v1770
      %v1772 = vpop.f32.mrf.mxu0
      %1773 = vdwg.mxu0
      %1774 = vmatpush.bf16.msra.mxu0 0
      %1775 = vmatpush.bf16.msra.mxu0 %v1759
      %1776 = vmatpush.bf16.msra.mxu0 %v1741
      %1777 = vmatpush.bf16.msra.mxu0 %v1739
      %1778 = vmatpush.bf16.msra.mxu0 %v1737
      %1779 = vmatpush.bf16.msra.mxu0 %v1735
      %1780 = vmatpush.bf16.msra.mxu0 %v1733
      %1781 = vmatpush.bf16.msra.mxu0 %v1731
      %1782 = vmatmul.bf16.gmra.mxu0 %v1752
      %v1783 = vpop.f32.mrf.mxu0
      %v1784 = vadd.f32 %v1748, %v1783
      %v1785 = vpop.f32.mrf.mxu0
      %1786 = vdwg.mxu0
      %vm1787 = vcmp.ge.f32.partialorder %v1771, 0.0
      %vm1788 = vcmp.ge.f32.partialorder %v1784, 0.0
      %v1789 = vmul.f32 %v1771, 0.01
      %v1790 = vmul.f32 %v1784, 0.01
      %v1791 = vsel %vm1787, %v1771, %v1789
      %v1792 = vsel %vm1788, %v1784, %v1790
      %1793 = vst [vmem:[#allocation7] sm:$0xff] %v1791
      %1794 = vst [vmem:[#allocation7 + $0x8] sm:$0xff] %v1792
      %1795 = vst [vmem:[#allocation7 + $0x10] sm:$0xff] 0.0
      %v1796 = vld [vmem:[#allocation7] sm:$0xff]
      %v1797 = vld [vmem:[#allocation7 + $0x8] sm:$0xff]
      %v1798 = vld [vmem:[#allocation7 + $0x10] sm:$0xff]
      %1802 = vrot.lane.b32.xlu0 %v1796, 127
      %v1803 = vpop.permute.xlu0 %1802
      %1804 = vrot.lane.b32.xlu0 %v1797, 127
      %v1805 = vpop.permute.xlu0 %1804
      %1806 = vrot.lane.b32.xlu0 %v1798, 127
      %v1807 = vpop.permute.xlu0 %1806
      %v1808 = vsel %vm1216, %v1803, %v1805
      %v1809 = vsel %vm1216, %v1805, %v1807
      %v1812 = vmax.f32 %v1791, %v1808
      %v1813 = vmax.f32 %v1792, %v1809
      %v1815 = vmax.f32 %v1796, %v1808
      %v1816 = vmax.f32 %v1797, %v1809
      %v1817 = vmax.f32 %v1798, %v1807
      %1821 = vrot.lane.b32.xlu0 %v1815, 112
      %v1822 = vpop.permute.xlu0 %1821
      %1823 = vrot.lane.b32.xlu0 %v1816, 112
      %v1824 = vpop.permute.xlu0 %1823
      %1825 = vrot.lane.b32.xlu0 %v1817, 112
      %v1826 = vpop.permute.xlu0 %1825
      %v1827 = vsel %vm1058, %v1822, %v1824
      %v1828 = vsel %vm1058, %v1824, %v1826
      %v1831 = vmax.f32 %v1812, %v1827
      %v1832 = vmax.f32 %v1813, %v1828
      %v1833 = vpack.c.bf16 %v1831, %v1831
      %v1834 = vpack.c.bf16 %v1832, %v1832
      %v1835 = vld [vmem:[%s18] sm:$0xf]
      %v1836 = vld [vmem:[%s18 + $0x4] sm:$0xf]
      %v1837 = vld [vmem:[%s18 + $0x8] sm:$0xf]
      %v1838 = vld [vmem:[%s18 + $0xc] sm:$0xf]
      %v1839 = vld [vmem:[%s18 + $0x10] sm:$0xf]
      %v1840 = vld [vmem:[%s18 + $0x14] sm:$0xf]
      %v1841 = vld [vmem:[%s18 + $0x18] sm:$0xf]
      %v1842 = vld [vmem:[%s18 + $0x1c] sm:$0xf]
      %v1843 = vld [vmem:[%s18 + $0x20] sm:$0xf]
      %v1844 = vld [vmem:[%s18 + $0x24] sm:$0xf]
      %v1845 = vld [vmem:[%s18 + $0x28] sm:$0xf]
      %v1846 = vld [vmem:[%s18 + $0x2c] sm:$0xf]
      %v1847 = vld [vmem:[%s18 + $0x30] sm:$0xf]
      %v1848 = vld [vmem:[%s18 + $0x34] sm:$0xf]
      %v1849 = vld [vmem:[%s18 + $0x38] sm:$0xf]
      %v1850 = vld [vmem:[%s18 + $0x3c] sm:$0xf]
      %v1851 = vld [vmem:[%s18 + $0x40] sm:$0xf]
      %v1852 = vld [vmem:[%s18 + $0x44] sm:$0xf]
      %v1853 = vld [vmem:[%s18 + $0x48] sm:$0xf]
      %v1854 = vld [vmem:[%s18 + $0x4c] sm:$0xf]
      %v1855 = vld [vmem:[%s18 + $0x50] sm:$0xf]
      %v1856 = vld [vmem:[%s18 + $0x54] sm:$0xf]
      %v1857 = vld [vmem:[%s18 + $0x58] sm:$0xf]
      %v1858 = vld [vmem:[%s18 + $0x5c] sm:$0xf]
      %v1859 = vld [vmem:[%s18 + $0x60] sm:$0xf]
      %v1860 = vld [vmem:[%s18 + $0x64] sm:$0xf]
      %v1861 = vld [vmem:[%s18 + $0x68] sm:$0xf]
      %v1862 = vld [vmem:[%s18 + $0x6c] sm:$0xf]
      %v1863 = vld [vmem:[%s18 + $0x70] sm:$0xf]
      %v1864 = vld [vmem:[%s18 + $0x74] sm:$0xf]
      %v1865 = vld [vmem:[%s18 + $0x78] sm:$0xf]
      %v1866 = vld [vmem:[%s18 + $0x7c] sm:$0xf]
      %v1899 = vunpack.c.l.b16 %v1835
      %v1900 = vunpack.c.l.b16 %v1836
      %v1901 = vunpack.c.l.b16 %v1837
      %v1902 = vunpack.c.l.b16 %v1838
      %v1903 = vunpack.c.l.b16 %v1839
      %v1904 = vunpack.c.l.b16 %v1840
      %v1905 = vunpack.c.l.b16 %v1841
      %v1906 = vunpack.c.l.b16 %v1842
      %v1907 = vunpack.c.l.b16 %v1843
      %v1908 = vunpack.c.l.b16 %v1844
      %v1909 = vunpack.c.l.b16 %v1845
      %v1910 = vunpack.c.l.b16 %v1846
      %v1911 = vunpack.c.l.b16 %v1847
      %v1912 = vunpack.c.l.b16 %v1848
      %v1913 = vunpack.c.l.b16 %v1849
      %v1914 = vunpack.c.l.b16 %v1850
      %v1915 = vunpack.c.l.b16 %v1851
      %v1916 = vunpack.c.l.b16 %v1852
      %v1917 = vunpack.c.l.b16 %v1853
      %v1918 = vunpack.c.l.b16 %v1854
      %v1919 = vunpack.c.l.b16 %v1855
      %v1920 = vunpack.c.l.b16 %v1856
      %v1921 = vunpack.c.l.b16 %v1857
      %v1922 = vunpack.c.l.b16 %v1858
      %v1923 = vunpack.c.l.b16 %v1859
      %v1924 = vunpack.c.l.b16 %v1860
      %v1925 = vunpack.c.l.b16 %v1861
      %v1926 = vunpack.c.l.b16 %v1862
      %v1927 = vunpack.c.l.b16 %v1863
      %v1928 = vunpack.c.l.b16 %v1864
      %v1929 = vunpack.c.l.b16 %v1865
      %v1930 = vunpack.c.l.b16 %v1866
      %v1931 = vpack.c.b16 %v1900, %v1899
      %v1932 = vpack.c.b16 %v1902, %v1901
      %v1933 = vpack.c.b16 %v1904, %v1903
      %v1934 = vpack.c.b16 %v1906, %v1905
      %v1935 = vpack.c.b16 %v1908, %v1907
      %v1936 = vpack.c.b16 %v1910, %v1909
      %v1937 = vpack.c.b16 %v1912, %v1911
      %v1938 = vpack.c.b16 %v1914, %v1913
      %v1939 = vpack.c.b16 %v1916, %v1915
      %v1940 = vpack.c.b16 %v1918, %v1917
      %v1941 = vpack.c.b16 %v1920, %v1919
      %v1942 = vpack.c.b16 %v1922, %v1921
      %v1943 = vpack.c.b16 %v1924, %v1923
      %v1944 = vpack.c.b16 %v1926, %v1925
      %v1945 = vpack.c.b16 %v1928, %v1927
      %v1946 = vpack.c.b16 %v1930, %v1929
      %1963 = vmatpush.bf16.msra.mxu0 %v1938
      %1964 = vmatpush.bf16.msra.mxu0 %v1937
      %1965 = vmatpush.bf16.msra.mxu0 %v1936
      %1966 = vmatpush.bf16.msra.mxu0 %v1935
      %1967 = vmatpush.bf16.msra.mxu0 %v1934
      %1968 = vmatpush.bf16.msra.mxu0 %v1933
      %1969 = vmatpush.bf16.msra.mxu0 %v1932
      %1970 = vmatpush.bf16.msra.mxu0 %v1931
      %1971 = vmatmul.bf16.gmra.mxu0 %v1833
      %v1972 = vpop.f32.mrf.mxu0
      %v1973 = vadd.f32 0.0, %v1972
      %v1974 = vpop.f32.mrf.mxu0
      %1975 = vdwg.mxu0
      %1976 = vmatpush.bf16.msra.mxu0 %v1946
      %1977 = vmatpush.bf16.msra.mxu0 %v1945
      %1978 = vmatpush.bf16.msra.mxu0 %v1944
      %1979 = vmatpush.bf16.msra.mxu0 %v1943
      %1980 = vmatpush.bf16.msra.mxu0 %v1942
      %1981 = vmatpush.bf16.msra.mxu0 %v1941
      %1982 = vmatpush.bf16.msra.mxu0 %v1940
      %1983 = vmatpush.bf16.msra.mxu0 %v1939
      %1984 = vmatmul.bf16.gmra.mxu0 %v1834
      %v1985 = vpop.f32.mrf.mxu0
      %v1986 = vadd.f32 %v1973, %v1985
      %v1987 = vpop.f32.mrf.mxu0
      %1988 = vdwg.mxu0
      %1989 = vst [vmem:[#allocation3] sm:$0xff] 0.0
      %vm1990 = vcmask 1048064
      %1991 = vst.msk [vmem:[#allocation3 + $0x8] sm:$0xff] %vm1990, 0.0
      %vm1992 = vcmask 523264
      %1993 = vst.msk [vmem:[#allocation3 + $0x10] sm:$0xff] %vm1992, 0.0
      %1994 = vst.msk [vmem:[#allocation3 + $0x8] sm:$0xff] %vm1992, %v1986
      %v1995 = vld [vmem:[#allocation3] sm:$0xff]
      %v1996 = vld [vmem:[#allocation3 + $0x8] sm:$0xff]
      %v1997 = vld [vmem:[%s17] sm:$0x1]
      %v1998 = vperm.slane %v1997, 0
      %2000 = vrot.lane.b32.xlu0 %v1998, 119
      %v2001 = vpop.permute.xlu0 %2000
      %v2003 = vmul.f32 %v1995, %v2001
      %v2004 = vmul.f32 %v1996, %v2001
      %2007 = vrot.lane.b32.xlu0 %v2003, 9
      %v2008 = vpop.permute.xlu0 %2007
      %2009 = vrot.lane.b32.xlu0 %v2004, 9
      %v2010 = vpop.permute.xlu0 %2009
      %vm2011 = vcmask 72704
      %v2012 = vsel %vm2011, %v2008, %v2010
      %2014 = vst.msk [vmem:[#allocation10] sm:$0xff] %vm1992, %v2012
      %v2015 = vld [vmem:[#allocation3] sm:$0xff]
      %v2016 = vld [vmem:[#allocation3 + $0x8] sm:$0xff]
      %v2017 = vld [vmem:[%s17 + $0x1] sm:$0x1]
      %v2018 = vperm.slane %v2017, 0
      %2020 = vrot.lane.b32.xlu0 %v2018, 120
      %v2021 = vpop.permute.xlu0 %2020
      %v2023 = vmul.f32 %v2015, %v2021
      %v2024 = vmul.f32 %v2016, %v2021
      %2027 = vrot.lane.b32.xlu0 %v2023, 8
      %v2028 = vpop.permute.xlu0 %2027
      %2029 = vrot.lane.b32.xlu0 %v2024, 8
      %v2030 = vpop.permute.xlu0 %2029
      %vm2031 = vcmask 64512
      %v2032 = vsel %vm2031, %v2028, %v2030
      %2034 = vst.msk [vmem:[#allocation10 + $0x8] sm:$0xff] %vm1992, %v2032
      %v2035 = vld [vmem:[#allocation3] sm:$0xff]
      %v2036 = vld [vmem:[#allocation3 + $0x8] sm:$0xff]
      %v2037 = vld [vmem:[%s17 + $0x2] sm:$0x1]
      %v2038 = vperm.slane %v2037, 0
      %2040 = vrot.lane.b32.xlu0 %v2038, 121
      %v2041 = vpop.permute.xlu0 %2040
      %v2043 = vmul.f32 %v2035, %v2041
      %v2044 = vmul.f32 %v2036, %v2041
      %2047 = vrot.lane.b32.xlu0 %v2043, 7
      %v2048 = vpop.permute.xlu0 %2047
      %2049 = vrot.lane.b32.xlu0 %v2044, 7
      %v2050 = vpop.permute.xlu0 %2049
      %vm2051 = vcmask 56320
      %v2052 = vsel %vm2051, %v2048, %v2050
      %2054 = vst.msk [vmem:[#allocation10 + $0x10] sm:$0xff] %vm1992, %v2052
      %v2055 = vld [vmem:[#allocation3] sm:$0xff]
      %v2056 = vld [vmem:[#allocation3 + $0x8] sm:$0xff]
      %v2057 = vld [vmem:[%s17 + $0x3] sm:$0x1]
      %v2058 = vperm.slane %v2057, 0
      %2060 = vrot.lane.b32.xlu0 %v2058, 127
      %v2061 = vpop.permute.xlu0 %2060
      %v2063 = vmul.f32 %v2055, %v2061
      %v2064 = vmul.f32 %v2056, %v2061
      %2067 = vrot.lane.b32.xlu0 %v2063, 1
      %v2068 = vpop.permute.xlu0 %2067
      %2069 = vrot.lane.b32.xlu0 %v2064, 1
      %v2070 = vpop.permute.xlu0 %2069
      %v2071 = vsel %vm1237, %v2068, %v2070
      %2073 = vst.msk [vmem:[#allocation10 + $0x18] sm:$0xff] %vm1992, %v2071
      %v2074 = vld [vmem:[#allocation3 + $0x8] sm:$0xff]
      %2075 = vst.msk [vmem:[#allocation10 + $0x20] sm:$0xff] %vm1992, %v2074
      %v2076 = vld [vmem:[#allocation3 + $0x8] sm:$0xff]
      %v2077 = vld [vmem:[%s17 + $0x5] sm:$0x1]
      %v2078 = vperm.slane %v2077, 0
      %2080 = vrot.lane.b32.xlu0 %v2078, 1
      %v2081 = vpop.permute.xlu0 %2080
      %v2083 = vmul.f32 %v2076, %v2081
      %2085 = vrot.lane.b32.xlu0 %v2083, 127
      %v2086 = vpop.permute.xlu0 %2085
      %2088 = vst.msk [vmem:[#allocation10 + $0x28] sm:$0xff] %vm1992, %v2086
      %v2089 = vld [vmem:[#allocation3 + $0x8] sm:$0xff]
      %v2090 = vld [vmem:[%s17 + $0x6] sm:$0x1]
      %v2091 = vperm.slane %v2090, 0
      %2093 = vrot.lane.b32.xlu0 %v2091, 7
      %v2094 = vpop.permute.xlu0 %2093
      %v2096 = vmul.f32 %v2089, %v2094
      %2098 = vrot.lane.b32.xlu0 %v2096, 121
      %v2099 = vpop.permute.xlu0 %2098
      %2101 = vst.msk [vmem:[#allocation10 + $0x30] sm:$0xff] %vm1992, %v2099
      %v2102 = vld [vmem:[#allocation3 + $0x8] sm:$0xff]
      %v2103 = vld [vmem:[%s17 + $0x7] sm:$0x1]
      %v2104 = vperm.slane %v2103, 0
      %2106 = vrot.lane.b32.xlu0 %v2104, 8
      %v2107 = vpop.permute.xlu0 %2106
      %v2109 = vmul.f32 %v2102, %v2107
      %2111 = vrot.lane.b32.xlu0 %v2109, 120
      %v2112 = vpop.permute.xlu0 %2111
      %2114 = vst.msk [vmem:[#allocation10 + $0x38] sm:$0xff] %vm1992, %v2112
      %v2115 = vld [vmem:[#allocation3 + $0x8] sm:$0xff]
      %v2116 = vld [vmem:[%s17 + $0x8] sm:$0x1]
      %v2117 = vperm.slane %v2116, 0
      %2119 = vrot.lane.b32.xlu0 %v2117, 9
      %v2120 = vpop.permute.xlu0 %2119
      %v2122 = vmul.f32 %v2115, %v2120
      %2124 = vrot.lane.b32.xlu0 %v2122, 119
      %v2125 = vpop.permute.xlu0 %2124
      %2127 = vst.msk [vmem:[#allocation10 + $0x40] sm:$0xff] %vm1992, %v2125
      %v2128 = vld [vmem:[%s3] sm:$0xf]
      %v2129 = vld [vmem:[%s3 + $0x4] sm:$0xf]
      %v2130 = vld [vmem:[#allocation10] sm:$0xff]
      %v2131 = vld [vmem:[#allocation10 + $0x8] sm:$0xff]
      %v2132 = vld [vmem:[#allocation10 + $0x10] sm:$0xff]
      %v2133 = vld [vmem:[#allocation10 + $0x18] sm:$0xff]
      %v2134 = vld [vmem:[#allocation10 + $0x20] sm:$0xff]
      %v2135 = vld [vmem:[#allocation10 + $0x28] sm:$0xff]
      %v2136 = vld [vmem:[#allocation10 + $0x30] sm:$0xff]
      %v2137 = vld [vmem:[#allocation10 + $0x38] sm:$0xff]
      %v2138 = vld [vmem:[#allocation10 + $0x40] sm:$0xff]
      %v2139 = vpack.c.bf16 %v2131, %v2130
      %v2140 = vpack.c.bf16 %v2133, %v2132
      %v2141 = vpack.c.bf16 %v2135, %v2134
      %v2142 = vpack.c.bf16 %v2137, %v2136
      %v2143 = vpack.c.bf16 %v2138, %v2138
      %v2144 = vld [vmem:[%s4] sm:$0xff]
      %v2145 = vld [vmem:[%s4 + $0x8] sm:$0xff]
      %2147 = vset.pattern.permute.xlu0 0
      %2148 = vperm.xlu0 %2147, %v2144
      %v2149 = vpop.permute.xlu0 %2148
      %2152 = vset.pattern.permute.xlu0 0
      %2153 = vperm.xlu0 %2152, %v2145
      %v2154 = vpop.permute.xlu0 %2153
      %v2158 = vunpack.c.l.b16 %v2128
      %v2159 = vunpack.c.l.b16 %v2129
      %v2160 = vpack.c.b16 %v2159, %v2158
      %vm2161 = vcmask 588800
      %v2163 = vsel %vm2161, %v2160, 0
      %v2166 = vsel %vm777, %v2143, 0
      %2168 = vmatpush.bf16.msra.mxu0 0
      %2169 = vmatpush.bf16.msra.mxu0 0
      %2170 = vmatpush.bf16.msra.mxu0 0
      %2171 = vmatpush.bf16.msra.mxu0 %v2166
      %2172 = vmatpush.bf16.msra.mxu0 %v2142
      %2173 = vmatpush.bf16.msra.mxu0 %v2141
      %2174 = vmatpush.bf16.msra.mxu0 %v2140
      %2175 = vmatpush.bf16.msra.mxu0 %v2139
      %2176 = vmatmul.bf16.gmra.mxu0 %v2163
      %v2177 = vpop.f32.mrf.mxu0
      %v2178 = vadd.f32 %v2149, %v2177
      %v2179 = vpop.f32.mrf.mxu0
      %v2180 = vadd.f32 %v2154, %v2179
      %2181 = vdwg.mxu0
      %vm2182 = vcmp.ge.f32.partialorder %v2178, 0.0
      %vm2183 = vcmp.ge.f32.partialorder %v2180, 0.0
      %v2184 = vmul.f32 %v2178, 0.01
      %v2185 = vmul.f32 %v2180, 0.01
      %v2186 = vsel %vm2182, %v2178, %v2184
      %v2187 = vsel %vm2183, %v2180, %v2185
      %2188 = vst.msk [vmem:[#allocation8] sm:$0xff] %vm1992, %v2186
      %2189 = vst.msk [vmem:[#allocation8 + $0x10] sm:$0xff] %vm1992, %v2187
      %2190 = vst.msk [vmem:[#allocation8] sm:$0xff] %vm1990, 0.0
      %2191 = vst.msk [vmem:[#allocation8 + $0x8] sm:$0xff] %vm1992, 0.0
      %2192 = vst.msk [vmem:[#allocation8 + $0x10] sm:$0xff] %vm1990, 0.0
      %2193 = vst.msk [vmem:[#allocation8 + $0x18] sm:$0xff] %vm1992, 0.0
      %v2194 = vld [vmem:[#allocation8] sm:$0xff]
      %v2195 = vld [vmem:[#allocation8 + $0x10] sm:$0xff]
      %2198 = vrot.lane.b32.xlu0 %v2194, 127
      %v2199 = vpop.permute.xlu0 %2198
      %2200 = vrot.lane.b32.xlu0 %v2195, 127
      %v2201 = vpop.permute.xlu0 %2200
      %v2204 = vadd.f32 %v2186, %v2199
      %v2205 = vadd.f32 %v2187, %v2201
      %2206 = vrot.lane.b32.xlu0 %v2194, 120
      %v2207 = vpop.permute.xlu0 %2206
      %2208 = vrot.lane.b32.xlu0 %v2195, 120
      %v2209 = vpop.permute.xlu0 %2208
      %v2212 = vadd.f32 %v2204, %v2207
      %v2213 = vadd.f32 %v2205, %v2209
      %2214 = vrot.lane.b32.xlu0 %v2194, 119
      %v2215 = vpop.permute.xlu0 %2214
      %2216 = vrot.lane.b32.xlu0 %v2195, 119
      %v2217 = vpop.permute.xlu0 %2216
      %v2220 = vadd.f32 %v2212, %v2215
      %v2221 = vadd.f32 %v2213, %v2217
      %v2222 = vmul.f32 %v2220, 0.25
      %v2223 = vmul.f32 %v2221, 0.25
      %v2224 = vpack.c.bf16 %v2223, %v2222
      %v2225 = vld [vmem:[%s19] sm:$0xf]
      %v2226 = vld [vmem:[%s19 + $0x4] sm:$0xf]
      %v2227 = vld [vmem:[%s19 + $0x8] sm:$0xf]
      %v2228 = vld [vmem:[%s19 + $0xc] sm:$0xf]
      %v2229 = vld [vmem:[%s19 + $0x10] sm:$0xf]
      %v2230 = vld [vmem:[%s19 + $0x14] sm:$0xf]
      %v2231 = vld [vmem:[%s19 + $0x18] sm:$0xf]
      %v2232 = vld [vmem:[%s19 + $0x1c] sm:$0xf]
      %v2241 = vunpack.c.l.b16 %v2225
      %v2242 = vunpack.c.l.b16 %v2226
      %v2243 = vunpack.c.l.b16 %v2227
      %v2244 = vunpack.c.l.b16 %v2228
      %v2245 = vunpack.c.l.b16 %v2229
      %v2246 = vunpack.c.l.b16 %v2230
      %v2247 = vunpack.c.l.b16 %v2231
      %v2248 = vunpack.c.l.b16 %v2232
      %v2249 = vpack.c.b16 %v2242, %v2241
      %v2250 = vpack.c.b16 %v2244, %v2243
      %v2251 = vpack.c.b16 %v2246, %v2245
      %v2252 = vpack.c.b16 %v2248, %v2247
      %v2258 = vsel %vm1992, %v2224, 0
      %2260 = vmatpush.bf16.msra.mxu0 0
      %2261 = vmatpush.bf16.msra.mxu0 0
      %2262 = vmatpush.bf16.msra.mxu0 0
      %2263 = vmatpush.bf16.msra.mxu0 0
      %2264 = vmatpush.bf16.msra.mxu0 %v2252
      %2265 = vmatpush.bf16.msra.mxu0 %v2251
      %2266 = vmatpush.bf16.msra.mxu0 %v2250
      %2267 = vmatpush.bf16.msra.mxu0 %v2249
      %2268 = vmatmul.bf16.gmra.mxu0 %v2258
      %v2269 = vpop.f32.mrf.mxu0
      %v2270 = vadd.f32 0.0, %v2269
      %v2271 = vpop.f32.mrf.mxu0
      %v2272 = vadd.f32 0.0, %v2271
      %2273 = vdwg.mxu0
      %v2274 = vpack.c.bf16 %v2272, %v2270
      %v2275 = vld [vmem:[%s22] sm:$0xff]
      %v2276 = vld [vmem:[%s22 + $0x8] sm:$0xff]
      %v2279 = vunpack.c.l.b16 %v2275
      %v2280 = vunpack.c.h.b16 %v2275
      %v2281 = vunpack.c.l.b16 %v2276
      %v2282 = vunpack.c.h.b16 %v2276
      %v2283 = vpack.c.b16 %v2281, %v2279
      %v2284 = vpack.c.b16 %v2282, %v2280
      %v2288 = vsel %vm1079, %v2274, 0
      %2290 = vmatpush.bf16.msra.mxu0 0
      %2291 = vmatpush.bf16.msra.mxu0 0
      %2292 = vmatpush.bf16.msra.mxu0 0
      %2293 = vmatpush.bf16.msra.mxu0 0
      %2294 = vmatpush.bf16.msra.mxu0 0
      %2295 = vmatpush.bf16.msra.mxu0 0
      %2296 = vmatpush.bf16.msra.mxu0 0
      %2297 = vmatpush.bf16.msra.mxu0 %v2283
      %2298 = vmatmul.bf16.gmra.mxu0 %v2288
      %v2299 = vpop.f32.mrf.mxu0
      %v2300 = vadd.f32 0.0, %v2299
      %v2301 = vpop.f32.mrf.mxu0
      %v2302 = vadd.f32 0.0, %v2301
      %2303 = vdwg.mxu0
      %2304 = vmatpush.bf16.msra.mxu0 0
      %2305 = vmatpush.bf16.msra.mxu0 0
      %2306 = vmatpush.bf16.msra.mxu0 0
      %2307 = vmatpush.bf16.msra.mxu0 0
      %2308 = vmatpush.bf16.msra.mxu0 0
      %2309 = vmatpush.bf16.msra.mxu0 0
      %2310 = vmatpush.bf16.msra.mxu0 0
      %2311 = vmatpush.bf16.msra.mxu0 %v2284
      %2312 = vmatmul.bf16.gmra.mxu0 %v2288
      %v2313 = vpop.f32.mrf.mxu0
      %v2314 = vadd.f32 0.0, %v2313
      %v2315 = vpop.f32.mrf.mxu0
      %v2316 = vadd.f32 0.0, %v2315
      %2317 = vdwg.mxu0
      %v2318 = vld [vmem:[%s24] sm:$0xff]
      %v2319 = vld [vmem:[%s24 + $0x8] sm:$0xff]
      %v2320 = vld [vmem:[%s24 + $0x10] sm:$0xff]
      %v2321 = vld [vmem:[%s24 + $0x18] sm:$0xff]
      %v2322 = vmul.f32 %v2300, %v2318
      %v2323 = vmul.f32 %v2314, %v2319
      %v2324 = vmul.f32 %v2302, %v2320
      %v2325 = vmul.f32 %v2316, %v2321
      %v2326 = vadd.f32 %v2322, %v2324
      %v2327 = vrot.slane %v2326, 4
      %v2328 = vadd.f32 %v2326, %v2327
      %v2329 = vrot.slane %v2328, 2
      %v2330 = vadd.f32 %v2328, %v2329
      %v2331 = vrot.slane %v2330, 1
      %v2332 = vadd.f32 %v2330, %v2331
      %v2333 = vadd.f32 %v2323, %v2325
      %v2334 = vrot.slane %v2333, 4
      %v2335 = vadd.f32 %v2333, %v2334
      %v2336 = vrot.slane %v2335, 2
      %v2337 = vadd.f32 %v2335, %v2336
      %v2338 = vrot.slane %v2337, 1
      %v2339 = vadd.f32 %v2337, %v2338
      %v2340 = vpack.c.bf16 %v2332, %v2332
      %v2341 = vpack.c.bf16 %v2339, %v2339
      %v2342 = vld [vmem:[%s5] sm:$0xf]
      %v2343 = vld [vmem:[%s5 + $0x4] sm:$0xf]
      %v2344 = vld [vmem:[%s5 + $0x8] sm:$0xf]
      %v2345 = vld [vmem:[%s5 + $0xc] sm:$0xf]
      %v2346 = vld [vmem:[%s5 + $0x10] sm:$0xf]
      %v2347 = vld [vmem:[%s5 + $0x14] sm:$0xf]
      %v2348 = vld [vmem:[%s5 + $0x18] sm:$0xf]
      %v2349 = vld [vmem:[%s5 + $0x1c] sm:$0xf]
      %v2350 = vld [vmem:[%s5 + $0x20] sm:$0xf]
      %v2351 = vld [vmem:[%s5 + $0x24] sm:$0xf]
      %v2352 = vld [vmem:[%s5 + $0x28] sm:$0xf]
      %v2353 = vld [vmem:[%s5 + $0x2c] sm:$0xf]
      %v2354 = vld [vmem:[%s5 + $0x30] sm:$0xf]
      %v2355 = vld [vmem:[%s5 + $0x34] sm:$0xf]
      %v2356 = vld [vmem:[%s5 + $0x38] sm:$0xf]
      %v2357 = vld [vmem:[%s5 + $0x3c] sm:$0xf]
      %v2358 = vld [vmem:[%s5 + $0x40] sm:$0xf]
      %v2359 = vld [vmem:[%s5 + $0x44] sm:$0xf]
      %v2360 = vld [vmem:[%s5 + $0x48] sm:$0xf]
      %v2361 = vld [vmem:[%s5 + $0x4c] sm:$0xf]
      %v2362 = vld [vmem:[%s5 + $0x50] sm:$0xf]
      %v2363 = vld [vmem:[%s5 + $0x54] sm:$0xf]
      %v2364 = vld [vmem:[%s5 + $0x58] sm:$0xf]
      %v2365 = vld [vmem:[%s5 + $0x5c] sm:$0xf]
      %v2366 = vld [vmem:[%s5 + $0x60] sm:$0xf]
      %v2367 = vld [vmem:[%s5 + $0x64] sm:$0xf]
      %v2368 = vld [vmem:[%s5 + $0x68] sm:$0xf]
      %v2369 = vld [vmem:[%s5 + $0x6c] sm:$0xf]
      %v2370 = vld [vmem:[%s5 + $0x70] sm:$0xf]
      %v2371 = vld [vmem:[%s5 + $0x74] sm:$0xf]
      %v2372 = vld [vmem:[%s5 + $0x78] sm:$0xf]
      %v2373 = vld [vmem:[%s5 + $0x7c] sm:$0xf]
      %v2374 = vld [vmem:[%s6] sm:$0x1]
      %v2407 = vunpack.c.l.b16 %v2342
      %v2408 = vunpack.c.l.b16 %v2343
      %v2409 = vunpack.c.l.b16 %v2344
      %v2410 = vunpack.c.l.b16 %v2345
      %v2411 = vunpack.c.l.b16 %v2346
      %v2412 = vunpack.c.l.b16 %v2347
      %v2413 = vunpack.c.l.b16 %v2348
      %v2414 = vunpack.c.l.b16 %v2349
      %v2415 = vunpack.c.l.b16 %v2350
      %v2416 = vunpack.c.l.b16 %v2351
      %v2417 = vunpack.c.l.b16 %v2352
      %v2418 = vunpack.c.l.b16 %v2353
      %v2419 = vunpack.c.l.b16 %v2354
      %v2420 = vunpack.c.l.b16 %v2355
      %v2421 = vunpack.c.l.b16 %v2356
      %v2422 = vunpack.c.l.b16 %v2357
      %v2423 = vunpack.c.l.b16 %v2358
      %v2424 = vunpack.c.l.b16 %v2359
      %v2425 = vunpack.c.l.b16 %v2360
      %v2426 = vunpack.c.l.b16 %v2361
      %v2427 = vunpack.c.l.b16 %v2362
      %v2428 = vunpack.c.l.b16 %v2363
      %v2429 = vunpack.c.l.b16 %v2364
      %v2430 = vunpack.c.l.b16 %v2365
      %v2431 = vunpack.c.l.b16 %v2366
      %v2432 = vunpack.c.l.b16 %v2367
      %v2433 = vunpack.c.l.b16 %v2368
      %v2434 = vunpack.c.l.b16 %v2369
      %v2435 = vunpack.c.l.b16 %v2370
      %v2436 = vunpack.c.l.b16 %v2371
      %v2437 = vunpack.c.l.b16 %v2372
      %v2438 = vunpack.c.l.b16 %v2373
      %v2439 = vpack.c.b16 %v2408, %v2407
      %v2440 = vpack.c.b16 %v2410, %v2409
      %v2441 = vpack.c.b16 %v2412, %v2411
      %v2442 = vpack.c.b16 %v2414, %v2413
      %v2443 = vpack.c.b16 %v2416, %v2415
      %v2444 = vpack.c.b16 %v2418, %v2417
      %v2445 = vpack.c.b16 %v2420, %v2419
      %v2446 = vpack.c.b16 %v2422, %v2421
      %v2447 = vpack.c.b16 %v2424, %v2423
      %v2448 = vpack.c.b16 %v2426, %v2425
      %v2449 = vpack.c.b16 %v2428, %v2427
      %v2450 = vpack.c.b16 %v2430, %v2429
      %v2451 = vpack.c.b16 %v2432, %v2431
      %v2452 = vpack.c.b16 %v2434, %v2433
      %v2453 = vpack.c.b16 %v2436, %v2435
      %v2454 = vpack.c.b16 %v2438, %v2437
      %2471 = vmatpush.bf16.msra.mxu0 %v2446
      %2472 = vmatpush.bf16.msra.mxu0 %v2445
      %2473 = vmatpush.bf16.msra.mxu0 %v2444
      %2474 = vmatpush.bf16.msra.mxu0 %v2443
      %2475 = vmatpush.bf16.msra.mxu0 %v2442
      %2476 = vmatpush.bf16.msra.mxu0 %v2441
      %2477 = vmatpush.bf16.msra.mxu0 %v2440
      %2478 = vmatpush.bf16.msra.mxu0 %v2439
      %2479 = vmatmul.bf16.gmra.mxu0 %v2340
      %v2480 = vpop.f32.mrf.mxu0
      %v2481 = vadd.f32 %v2374, %v2480
      %v2482 = vpop.f32.mrf.mxu0
      %2483 = vdwg.mxu0
      %2484 = vmatpush.bf16.msra.mxu0 %v2454
      %2485 = vmatpush.bf16.msra.mxu0 %v2453
      %2486 = vmatpush.bf16.msra.mxu0 %v2452
      %2487 = vmatpush.bf16.msra.mxu0 %v2451
      %2488 = vmatpush.bf16.msra.mxu0 %v2450
      %2489 = vmatpush.bf16.msra.mxu0 %v2449
      %2490 = vmatpush.bf16.msra.mxu0 %v2448
      %2491 = vmatpush.bf16.msra.mxu0 %v2447
      %2492 = vmatmul.bf16.gmra.mxu0 %v2341
      %v2493 = vpop.f32.mrf.mxu0
      %v2494 = vadd.f32 %v2481, %v2493
      %v2495 = vpop.f32.mrf.mxu0
      %2496 = vdwg.mxu0
      %v2497 = vtanh.pop %v2494
      %v2498 = vpack.c.bf16 %v2497, %v2497
      %v2499 = vld [vmem:[%s7] sm:$0xff]
      %v2500 = vld [vmem:[%s7 + $0x8] sm:$0xff]
      %v2501 = vld [vmem:[%s7 + $0x10] sm:$0xff]
      %v2502 = vld [vmem:[%s7 + $0x18] sm:$0xff]
      %v2503 = vld [vmem:[%s8] sm:$0x3]
      %v2508 = vunpack.c.l.b16 %v2499
      %v2509 = vunpack.c.h.b16 %v2499
      %v2510 = vunpack.c.l.b16 %v2500
      %v2511 = vunpack.c.h.b16 %v2500
      %v2512 = vunpack.c.l.b16 %v2501
      %v2513 = vunpack.c.h.b16 %v2501
      %v2514 = vunpack.c.l.b16 %v2502
      %v2515 = vunpack.c.h.b16 %v2502
      %v2516 = vpack.c.b16 %v2510, %v2508
      %v2517 = vpack.c.b16 %v2511, %v2509
      %v2518 = vpack.c.b16 %v2514, %v2512
      %v2519 = vpack.c.b16 %v2515, %v2513
      %v2525 = vperm.slane %v2503, 0
      %v2526 = vperm.slane %v2503, 1
      %v2530 = vsel %vm881, %v2498, 0
      %2532 = vmatpush.bf16.msra.mxu0 0
      %2533 = vmatpush.bf16.msra.mxu0 0
      %2534 = vmatpush.bf16.msra.mxu0 0
      %2535 = vmatpush.bf16.msra.mxu0 0
      %2536 = vmatpush.bf16.msra.mxu0 0
      %2537 = vmatpush.bf16.msra.mxu0 0
      %2538 = vmatpush.bf16.msra.mxu0 %v2518
      %2539 = vmatpush.bf16.msra.mxu0 %v2516
      %2540 = vmatmul.bf16.gmra.mxu0 %v2530
      %v2541 = vpop.f32.mrf.mxu0
      %v2542 = vadd.f32 %v2525, %v2541
      %v2543 = vpop.f32.mrf.mxu0
      %2544 = vdwg.mxu0
      %2545 = vmatpush.bf16.msra.mxu0 0
      %2546 = vmatpush.bf16.msra.mxu0 0
      %2547 = vmatpush.bf16.msra.mxu0 0
      %2548 = vmatpush.bf16.msra.mxu0 0
      %2549 = vmatpush.bf16.msra.mxu0 0
      %2550 = vmatpush.bf16.msra.mxu0 0
      %2551 = vmatpush.bf16.msra.mxu0 %v2519
      %2552 = vmatpush.bf16.msra.mxu0 %v2517
      %2553 = vmatmul.bf16.gmra.mxu0 %v2530
      %v2554 = vpop.f32.mrf.mxu0
      %v2555 = vadd.f32 %v2526, %v2554
      %v2556 = vpop.f32.mrf.mxu0
      %2557 = vdwg.mxu0
      %vm2558 = vcmp.ge.f32.partialorder %v2542, 0.0
      %vm2559 = vcmp.ge.f32.partialorder %v2555, 0.0
      %v2560 = vmul.f32 %v2542, 0.01
      %v2561 = vmul.f32 %v2555, 0.01
      %v2562 = vsel %vm2558, %v2542, %v2560
      %v2563 = vsel %vm2559, %v2555, %v2561
      %v2564 = vperm.slane %v2562, 0
      %v2565 = vperm.slane %v2563, 0
      %v2566 = vmul.f32 %v2318, %v2564
      %v2567 = vmul.f32 %v2319, %v2565
      %v2568 = vmul.f32 %v2320, %v2564
      %v2569 = vmul.f32 %v2321, %v2565
      %v2570 = vpack.c.bf16 %v2568, %v2566
      %v2571 = vpack.c.bf16 %v2569, %v2567
      %v2572 = vld [vmem:[%s23] sm:$0xf]
      %v2573 = vld [vmem:[%s23 + $0x4] sm:$0xf]
      %v2574 = vld [vmem:[%s23 + $0x8] sm:$0xf]
      %v2575 = vld [vmem:[%s23 + $0xc] sm:$0xf]
      %v2576 = vld [vmem:[%s23 + $0x10] sm:$0xf]
      %v2577 = vld [vmem:[%s23 + $0x14] sm:$0xf]
      %v2578 = vld [vmem:[%s23 + $0x18] sm:$0xf]
      %v2579 = vld [vmem:[%s23 + $0x1c] sm:$0xf]
      %v2580 = vld [vmem:[%s23 + $0x20] sm:$0xf]
      %v2581 = vld [vmem:[%s23 + $0x24] sm:$0xf]
      %v2582 = vld [vmem:[%s23 + $0x28] sm:$0xf]
      %v2583 = vld [vmem:[%s23 + $0x2c] sm:$0xf]
      %v2584 = vld [vmem:[%s23 + $0x30] sm:$0xf]
      %v2585 = vld [vmem:[%s23 + $0x34] sm:$0xf]
      %v2586 = vld [vmem:[%s23 + $0x38] sm:$0xf]
      %v2587 = vld [vmem:[%s23 + $0x3c] sm:$0xf]
      %v2588 = vld [vmem:[%s23 + $0x40] sm:$0xf]
      %v2589 = vld [vmem:[%s23 + $0x44] sm:$0xf]
      %v2590 = vld [vmem:[%s23 + $0x48] sm:$0xf]
      %v2591 = vld [vmem:[%s23 + $0x4c] sm:$0xf]
      %v2592 = vld [vmem:[%s23 + $0x50] sm:$0xf]
      %v2593 = vld [vmem:[%s23 + $0x54] sm:$0xf]
      %v2594 = vld [vmem:[%s23 + $0x58] sm:$0xf]
      %v2595 = vld [vmem:[%s23 + $0x5c] sm:$0xf]
      %v2596 = vld [vmem:[%s23 + $0x60] sm:$0xf]
      %v2597 = vld [vmem:[%s23 + $0x64] sm:$0xf]
      %v2598 = vld [vmem:[%s23 + $0x68] sm:$0xf]
      %v2599 = vld [vmem:[%s23 + $0x6c] sm:$0xf]
      %v2600 = vld [vmem:[%s23 + $0x70] sm:$0xf]
      %v2601 = vld [vmem:[%s23 + $0x74] sm:$0xf]
      %v2602 = vld [vmem:[%s23 + $0x78] sm:$0xf]
      %v2603 = vld [vmem:[%s23 + $0x7c] sm:$0xf]
      %v2636 = vunpack.c.l.b16 %v2572
      %v2637 = vunpack.c.l.b16 %v2573
      %v2638 = vunpack.c.l.b16 %v2574
      %v2639 = vunpack.c.l.b16 %v2575
      %v2640 = vunpack.c.l.b16 %v2576
      %v2641 = vunpack.c.l.b16 %v2577
      %v2642 = vunpack.c.l.b16 %v2578
      %v2643 = vunpack.c.l.b16 %v2579
      %v2644 = vunpack.c.l.b16 %v2580
      %v2645 = vunpack.c.l.b16 %v2581
      %v2646 = vunpack.c.l.b16 %v2582
      %v2647 = vunpack.c.l.b16 %v2583
      %v2648 = vunpack.c.l.b16 %v2584
      %v2649 = vunpack.c.l.b16 %v2585
      %v2650 = vunpack.c.l.b16 %v2586
      %v2651 = vunpack.c.l.b16 %v2587
      %v2652 = vunpack.c.l.b16 %v2588
      %v2653 = vunpack.c.l.b16 %v2589
      %v2654 = vunpack.c.l.b16 %v2590
      %v2655 = vunpack.c.l.b16 %v2591
      %v2656 = vunpack.c.l.b16 %v2592
      %v2657 = vunpack.c.l.b16 %v2593
      %v2658 = vunpack.c.l.b16 %v2594
      %v2659 = vunpack.c.l.b16 %v2595
      %v2660 = vunpack.c.l.b16 %v2596
      %v2661 = vunpack.c.l.b16 %v2597
      %v2662 = vunpack.c.l.b16 %v2598
      %v2663 = vunpack.c.l.b16 %v2599
      %v2664 = vunpack.c.l.b16 %v2600
      %v2665 = vunpack.c.l.b16 %v2601
      %v2666 = vunpack.c.l.b16 %v2602
      %v2667 = vunpack.c.l.b16 %v2603
      %v2668 = vpack.c.b16 %v2637, %v2636
      %v2669 = vpack.c.b16 %v2639, %v2638
      %v2670 = vpack.c.b16 %v2641, %v2640
      %v2671 = vpack.c.b16 %v2643, %v2642
      %v2672 = vpack.c.b16 %v2645, %v2644
      %v2673 = vpack.c.b16 %v2647, %v2646
      %v2674 = vpack.c.b16 %v2649, %v2648
      %v2675 = vpack.c.b16 %v2651, %v2650
      %v2676 = vpack.c.b16 %v2653, %v2652
      %v2677 = vpack.c.b16 %v2655, %v2654
      %v2678 = vpack.c.b16 %v2657, %v2656
      %v2679 = vpack.c.b16 %v2659, %v2658
      %v2680 = vpack.c.b16 %v2661, %v2660
      %v2681 = vpack.c.b16 %v2663, %v2662
      %v2682 = vpack.c.b16 %v2665, %v2664
      %v2683 = vpack.c.b16 %v2667, %v2666
      %2700 = vmatpush.bf16.msra.mxu0 %v2675
      %2701 = vmatpush.bf16.msra.mxu0 %v2674
      %2702 = vmatpush.bf16.msra.mxu0 %v2673
      %2703 = vmatpush.bf16.msra.mxu0 %v2672
      %2704 = vmatpush.bf16.msra.mxu0 %v2671
      %2705 = vmatpush.bf16.msra.mxu0 %v2670
      %2706 = vmatpush.bf16.msra.mxu0 %v2669
      %2707 = vmatpush.bf16.msra.mxu0 %v2668
      %2708 = vmatmul.bf16.gmra.mxu0 %v2570
      %v2709 = vpop.f32.mrf.mxu0
      %v2710 = vadd.f32 0.0, %v2709
      %v2711 = vpop.f32.mrf.mxu0
      %v2712 = vadd.f32 0.0, %v2711
      %2713 = vdwg.mxu0
      %2714 = vmatpush.bf16.msra.mxu0 %v2683
      %2715 = vmatpush.bf16.msra.mxu0 %v2682
      %2716 = vmatpush.bf16.msra.mxu0 %v2681
      %2717 = vmatpush.bf16.msra.mxu0 %v2680
      %2718 = vmatpush.bf16.msra.mxu0 %v2679
      %2719 = vmatpush.bf16.msra.mxu0 %v2678
      %2720 = vmatpush.bf16.msra.mxu0 %v2677
      %2721 = vmatpush.bf16.msra.mxu0 %v2676
      %2722 = vmatmul.bf16.gmra.mxu0 %v2571
      %v2723 = vpop.f32.mrf.mxu0
      %v2724 = vadd.f32 %v2710, %v2723
      %v2725 = vpop.f32.mrf.mxu0
      %v2726 = vadd.f32 %v2712, %v2725
      %2727 = vdwg.mxu0
      %v2728 = vpack.c.bf16 %v2726, %v2724
      %v2729 = vld [vmem:[%s20] sm:$0xf]
      %v2730 = vld [vmem:[%s20 + $0x4] sm:$0xf]
      %v2733 = vunpack.c.l.b16 %v2729
      %v2734 = vunpack.c.l.b16 %v2730
      %v2735 = vpack.c.b16 %v2734, %v2733
      %v2738 = vsel %vm1079, %v2728, 0
      %2740 = vmatpush.bf16.msra.mxu0 0
      %2741 = vmatpush.bf16.msra.mxu0 0
      %2742 = vmatpush.bf16.msra.mxu0 0
      %2743 = vmatpush.bf16.msra.mxu0 0
      %2744 = vmatpush.bf16.msra.mxu0 0
      %2745 = vmatpush.bf16.msra.mxu0 0
      %2746 = vmatpush.bf16.msra.mxu0 0
      %2747 = vmatpush.bf16.msra.mxu0 %v2735
      %2748 = vmatmul.bf16.gmra.mxu0 %v2738
      %v2749 = vpop.f32.mrf.mxu0
      %v2750 = vadd.f32 0.0, %v2749
      %v2751 = vpop.f32.mrf.mxu0
      %v2752 = vadd.f32 0.0, %v2751
      %2753 = vdwg.mxu0
      %2754 = vst [vmem:[#allocation4] sm:$0xff] 0.0
      %2755 = vst [vmem:[#allocation4 + $0x18] sm:$0xff] 0.0
      %2756 = vst.msk [vmem:[#allocation4 + $0x8] sm:$0xff] %vm1990, 0.0
      %2757 = vst.msk [vmem:[#allocation4 + $0x10] sm:$0xff] %vm1992, 0.0
      %2758 = vst.msk [vmem:[#allocation4 + $0x20] sm:$0xff] %vm1990, 0.0
      %2759 = vst.msk [vmem:[#allocation4 + $0x28] sm:$0xff] %vm1992, 0.0
      %2760 = vst.msk [vmem:[#allocation4 + $0x8] sm:$0xff] %vm1992, %v2750
      %2761 = vst.msk [vmem:[#allocation4 + $0x20] sm:$0xff] %vm1992, %v2752
      %v2762 = vld [vmem:[#allocation4] sm:$0xff]
      %v2763 = vld [vmem:[#allocation4 + $0x8] sm:$0xff]
      %v2764 = vld [vmem:[#allocation4 + $0x18] sm:$0xff]
      %v2765 = vld [vmem:[#allocation4 + $0x20] sm:$0xff]
      %v2766 = vld [vmem:[%s17] sm:$0x1]
      %v2767 = vperm.slane %v2766, 0
      %2769 = vrot.lane.b32.xlu0 %v2767, 119
      %v2770 = vpop.permute.xlu0 %2769
      %v2772 = vmul.f32 %v2762, %v2770
      %v2773 = vmul.f32 %v2763, %v2770
      %v2774 = vmul.f32 %v2764, %v2770
      %v2775 = vmul.f32 %v2765, %v2770
      %2780 = vrot.lane.b32.xlu0 %v2772, 9
      %v2781 = vpop.permute.xlu0 %2780
      %2782 = vrot.lane.b32.xlu0 %v2773, 9
      %v2783 = vpop.permute.xlu0 %2782
      %2784 = vrot.lane.b32.xlu0 %v2774, 9
      %v2785 = vpop.permute.xlu0 %2784
      %2786 = vrot.lane.b32.xlu0 %v2775, 9
      %v2787 = vpop.permute.xlu0 %2786
      %v2788 = vsel %vm2011, %v2781, %v2783
      %v2789 = vsel %vm2011, %v2785, %v2787
      %2792 = vst.msk [vmem:[#allocation11] sm:$0xff] %vm1992, %v2788
      %2793 = vst.msk [vmem:[#allocation11 + $0x8] sm:$0xff] %vm1992, %v2789
      %v2794 = vld [vmem:[#allocation4] sm:$0xff]
      %v2795 = vld [vmem:[#allocation4 + $0x8] sm:$0xff]
      %v2796 = vld [vmem:[#allocation4 + $0x18] sm:$0xff]
      %v2797 = vld [vmem:[#allocation4 + $0x20] sm:$0xff]
      %v2798 = vld [vmem:[%s17 + $0x1] sm:$0x1]
      %v2799 = vperm.slane %v2798, 0
      %2801 = vrot.lane.b32.xlu0 %v2799, 120
      %v2802 = vpop.permute.xlu0 %2801
      %v2804 = vmul.f32 %v2794, %v2802
      %v2805 = vmul.f32 %v2795, %v2802
      %v2806 = vmul.f32 %v2796, %v2802
      %v2807 = vmul.f32 %v2797, %v2802
      %2812 = vrot.lane.b32.xlu0 %v2804, 8
      %v2813 = vpop.permute.xlu0 %2812
      %2814 = vrot.lane.b32.xlu0 %v2805, 8
      %v2815 = vpop.permute.xlu0 %2814
      %2816 = vrot.lane.b32.xlu0 %v2806, 8
      %v2817 = vpop.permute.xlu0 %2816
      %2818 = vrot.lane.b32.xlu0 %v2807, 8
      %v2819 = vpop.permute.xlu0 %2818
      %v2820 = vsel %vm2031, %v2813, %v2815
      %v2821 = vsel %vm2031, %v2817, %v2819
      %2824 = vst.msk [vmem:[#allocation11 + $0x10] sm:$0xff] %vm1992, %v2820
      %2825 = vst.msk [vmem:[#allocation11 + $0x18] sm:$0xff] %vm1992, %v2821
      %v2826 = vld [vmem:[#allocation4] sm:$0xff]
      %v2827 = vld [vmem:[#allocation4 + $0x8] sm:$0xff]
      %v2828 = vld [vmem:[#allocation4 + $0x18] sm:$0xff]
      %v2829 = vld [vmem:[#allocation4 + $0x20] sm:$0xff]
      %v2830 = vld [vmem:[%s17 + $0x2] sm:$0x1]
      %v2831 = vperm.slane %v2830, 0
      %2833 = vrot.lane.b32.xlu0 %v2831, 121
      %v2834 = vpop.permute.xlu0 %2833
      %v2836 = vmul.f32 %v2826, %v2834
      %v2837 = vmul.f32 %v2827, %v2834
      %v2838 = vmul.f32 %v2828, %v2834
      %v2839 = vmul.f32 %v2829, %v2834
      %2844 = vrot.lane.b32.xlu0 %v2836, 7
      %v2845 = vpop.permute.xlu0 %2844
      %2846 = vrot.lane.b32.xlu0 %v2837, 7
      %v2847 = vpop.permute.xlu0 %2846
      %2848 = vrot.lane.b32.xlu0 %v2838, 7
      %v2849 = vpop.permute.xlu0 %2848
      %2850 = vrot.lane.b32.xlu0 %v2839, 7
      %v2851 = vpop.permute.xlu0 %2850
      %v2852 = vsel %vm2051, %v2845, %v2847
      %v2853 = vsel %vm2051, %v2849, %v2851
      %2856 = vst.msk [vmem:[#allocation11 + $0x20] sm:$0xff] %vm1992, %v2852
      %2857 = vst.msk [vmem:[#allocation11 + $0x28] sm:$0xff] %vm1992, %v2853
      %v2858 = vld [vmem:[#allocation4] sm:$0xff]
      %v2859 = vld [vmem:[#allocation4 + $0x8] sm:$0xff]
      %v2860 = vld [vmem:[#allocation4 + $0x18] sm:$0xff]
      %v2861 = vld [vmem:[#allocation4 + $0x20] sm:$0xff]
      %v2862 = vld [vmem:[%s17 + $0x3] sm:$0x1]
      %v2863 = vperm.slane %v2862, 0
      %2865 = vrot.lane.b32.xlu0 %v2863, 127
      %v2866 = vpop.permute.xlu0 %2865
      %v2868 = vmul.f32 %v2858, %v2866
      %v2869 = vmul.f32 %v2859, %v2866
      %v2870 = vmul.f32 %v2860, %v2866
      %v2871 = vmul.f32 %v2861, %v2866
      %2876 = vrot.lane.b32.xlu0 %v2868, 1
      %v2877 = vpop.permute.xlu0 %2876
      %2878 = vrot.lane.b32.xlu0 %v2869, 1
      %v2879 = vpop.permute.xlu0 %2878
      %2880 = vrot.lane.b32.xlu0 %v2870, 1
      %v2881 = vpop.permute.xlu0 %2880
      %2882 = vrot.lane.b32.xlu0 %v2871, 1
      %v2883 = vpop.permute.xlu0 %2882
      %v2884 = vsel %vm1237, %v2877, %v2879
      %v2885 = vsel %vm1237, %v2881, %v2883
      %2888 = vst.msk [vmem:[#allocation11 + $0x30] sm:$0xff] %vm1992, %v2884
      %2889 = vst.msk [vmem:[#allocation11 + $0x38] sm:$0xff] %vm1992, %v2885
      %v2890 = vld [vmem:[#allocation4 + $0x8] sm:$0xff]
      %v2891 = vld [vmem:[#allocation4 + $0x20] sm:$0xff]
      %2892 = vst.msk [vmem:[#allocation11 + $0x40] sm:$0xff] %vm1992, %v2890
      %2893 = vst.msk [vmem:[#allocation11 + $0x48] sm:$0xff] %vm1992, %v2891
      %v2894 = vld [vmem:[#allocation4 + $0x8] sm:$0xff]
      %v2895 = vld [vmem:[#allocation4 + $0x20] sm:$0xff]
      %v2896 = vld [vmem:[%s17 + $0x5] sm:$0x1]
      %v2897 = vperm.slane %v2896, 0
      %2899 = vrot.lane.b32.xlu0 %v2897, 1
      %v2900 = vpop.permute.xlu0 %2899
      %v2902 = vmul.f32 %v2894, %v2900
      %v2903 = vmul.f32 %v2895, %v2900
      %2906 = vrot.lane.b32.xlu0 %v2902, 127
      %v2907 = vpop.permute.xlu0 %2906
      %2908 = vrot.lane.b32.xlu0 %v2903, 127
      %v2909 = vpop.permute.xlu0 %2908
      %2912 = vst.msk [vmem:[#allocation11 + $0x50] sm:$0xff] %vm1992, %v2907
      %2913 = vst.msk [vmem:[#allocation11 + $0x58] sm:$0xff] %vm1992, %v2909
      %v2914 = vld [vmem:[#allocation4 + $0x8] sm:$0xff]
      %v2915 = vld [vmem:[#allocation4 + $0x20] sm:$0xff]
      %v2916 = vld [vmem:[%s17 + $0x6] sm:$0x1]
      %v2917 = vperm.slane %v2916, 0
      %2919 = vrot.lane.b32.xlu0 %v2917, 7
      %v2920 = vpop.permute.xlu0 %2919
      %v2922 = vmul.f32 %v2914, %v2920
      %v2923 = vmul.f32 %v2915, %v2920
      %2926 = vrot.lane.b32.xlu0 %v2922, 121
      %v2927 = vpop.permute.xlu0 %2926
      %2928 = vrot.lane.b32.xlu0 %v2923, 121
      %v2929 = vpop.permute.xlu0 %2928
      %2932 = vst.msk [vmem:[#allocation11 + $0x60] sm:$0xff] %vm1992, %v2927
      %2933 = vst.msk [vmem:[#allocation11 + $0x68] sm:$0xff] %vm1992, %v2929
      %v2934 = vld [vmem:[#allocation4 + $0x8] sm:$0xff]
      %v2935 = vld [vmem:[#allocation4 + $0x20] sm:$0xff]
      %v2936 = vld [vmem:[%s17 + $0x7] sm:$0x1]
      %v2937 = vperm.slane %v2936, 0
      %2939 = vrot.lane.b32.xlu0 %v2937, 8
      %v2940 = vpop.permute.xlu0 %2939
      %v2942 = vmul.f32 %v2934, %v2940
      %v2943 = vmul.f32 %v2935, %v2940
      %2946 = vrot.lane.b32.xlu0 %v2942, 120
      %v2947 = vpop.permute.xlu0 %2946
      %2948 = vrot.lane.b32.xlu0 %v2943, 120
      %v2949 = vpop.permute.xlu0 %2948
      %2952 = vst.msk [vmem:[#allocation11 + $0x70] sm:$0xff] %vm1992, %v2947
      %2953 = vst.msk [vmem:[#allocation11 + $0x78] sm:$0xff] %vm1992, %v2949
      %v2954 = vld [vmem:[#allocation4 + $0x8] sm:$0xff]
      %v2955 = vld [vmem:[#allocation4 + $0x20] sm:$0xff]
      %v2956 = vld [vmem:[%s17 + $0x8] sm:$0x1]
      %v2957 = vperm.slane %v2956, 0
      %2959 = vrot.lane.b32.xlu0 %v2957, 9
      %v2960 = vpop.permute.xlu0 %2959
      %v2962 = vmul.f32 %v2954, %v2960
      %v2963 = vmul.f32 %v2955, %v2960
      %2966 = vrot.lane.b32.xlu0 %v2962, 119
      %v2967 = vpop.permute.xlu0 %2966
      %2968 = vrot.lane.b32.xlu0 %v2963, 119
      %v2969 = vpop.permute.xlu0 %2968
      %2972 = vst.msk [vmem:[#allocation11 + $0x80] sm:$0xff] %vm1992, %v2967
      %2973 = vst.msk [vmem:[#allocation11 + $0x88] sm:$0xff] %vm1992, %v2969
      %v2974 = vld [vmem:[%s9] sm:$0xff]
      %v2975 = vld [vmem:[%s9 + $0x8] sm:$0xff]
      %v2976 = vld [vmem:[#allocation11] sm:$0xff]
      %v2977 = vld [vmem:[#allocation11 + $0x8] sm:$0xff]
      %v2978 = vld [vmem:[#allocation11 + $0x10] sm:$0xff]
      %v2979 = vld [vmem:[#allocation11 + $0x18] sm:$0xff]
      %v2980 = vld [vmem:[#allocation11 + $0x20] sm:$0xff]
      %v2981 = vld [vmem:[#allocation11 + $0x28] sm:$0xff]
      %v2982 = vld [vmem:[#allocation11 + $0x30] sm:$0xff]
      %v2983 = vld [vmem:[#allocation11 + $0x38] sm:$0xff]
      %v2984 = vld [vmem:[#allocation11 + $0x40] sm:$0xff]
      %v2985 = vld [vmem:[#allocation11 + $0x48] sm:$0xff]
      %v2986 = vld [vmem:[#allocation11 + $0x50] sm:$0xff]
      %v2987 = vld [vmem:[#allocation11 + $0x58] sm:$0xff]
      %v2988 = vld [vmem:[#allocation11 + $0x60] sm:$0xff]
      %v2989 = vld [vmem:[#allocation11 + $0x68] sm:$0xff]
      %v2990 = vld [vmem:[#allocation11 + $0x70] sm:$0xff]
      %v2991 = vld [vmem:[#allocation11 + $0x78] sm:$0xff]
      %v2992 = vld [vmem:[#allocation11 + $0x80] sm:$0xff]
      %v2993 = vld [vmem:[#allocation11 + $0x88] sm:$0xff]
      %v2994 = vpack.c.bf16 %v2977, %v2976
      %v2995 = vpack.c.bf16 %v2979, %v2978
      %v2996 = vpack.c.bf16 %v2981, %v2980
      %v2997 = vpack.c.bf16 %v2983, %v2982
      %v2998 = vpack.c.bf16 %v2985, %v2984
      %v2999 = vpack.c.bf16 %v2987, %v2986
      %v3000 = vpack.c.bf16 %v2989, %v2988
      %v3001 = vpack.c.bf16 %v2991, %v2990
      %v3002 = vpack.c.bf16 %v2993, %v2992
      %v3003 = vld [vmem:[%s10] sm:$0xff]
      %v3004 = vld [vmem:[%s10 + $0x8] sm:$0xff]
      %3006 = vset.pattern.permute.xlu0 0
      %3007 = vperm.xlu0 %3006, %v3003
      %v3008 = vpop.permute.xlu0 %3007
      %3011 = vset.pattern.permute.xlu0 0
      %3012 = vperm.xlu0 %3011, %v3004
      %v3013 = vpop.permute.xlu0 %3012
      %v3017 = vunpack.c.l.b16 %v2974
      %v3018 = vunpack.c.h.b16 %v2974
      %v3019 = vunpack.c.l.b16 %v2975
      %v3020 = vunpack.c.h.b16 %v2975
      %v3021 = vpack.c.b16 %v3019, %v3017
      %v3022 = vpack.c.b16 %v3020, %v3018
      %v3025 = vsel %vm1079, %v3022, 0
      %3027 = vmatpush.bf16.msra.mxu0 %v3001
      %3028 = vmatpush.bf16.msra.mxu0 %v3000
      %3029 = vmatpush.bf16.msra.mxu0 %v2999
      %3030 = vmatpush.bf16.msra.mxu0 %v2998
      %3031 = vmatpush.bf16.msra.mxu0 %v2997
      %3032 = vmatpush.bf16.msra.mxu0 %v2996
      %3033 = vmatpush.bf16.msra.mxu0 %v2995
      %3034 = vmatpush.bf16.msra.mxu0 %v2994
      %3035 = vmatmul.bf16.gmra.mxu0 %v3021
      %v3036 = vpop.f32.mrf.mxu0
      %v3037 = vadd.f32 %v3008, %v3036
      %v3038 = vpop.f32.mrf.mxu0
      %v3039 = vadd.f32 %v3013, %v3038
      %3040 = vdwg.mxu0
      %3041 = vmatpush.bf16.msra.mxu0 0
      %3042 = vmatpush.bf16.msra.mxu0 0
      %3043 = vmatpush.bf16.msra.mxu0 0
      %3044 = vmatpush.bf16.msra.mxu0 0
      %3045 = vmatpush.bf16.msra.mxu0 0
      %3046 = vmatpush.bf16.msra.mxu0 0
      %3047 = vmatpush.bf16.msra.mxu0 0
      %3048 = vmatpush.bf16.msra.mxu0 %v3002
      %3049 = vmatmul.bf16.gmra.mxu0 %v3025
      %v3050 = vpop.f32.mrf.mxu0
      %v3051 = vadd.f32 %v3037, %v3050
      %v3052 = vpop.f32.mrf.mxu0
      %v3053 = vadd.f32 %v3039, %v3052
      %3054 = vdwg.mxu0
      %vm3055 = vcmp.ge.f32.partialorder %v3051, 0.0
      %vm3056 = vcmp.ge.f32.partialorder %v3053, 0.0
      %v3057 = vmul.f32 %v3051, 0.01
      %v3058 = vmul.f32 %v3053, 0.01
      %v3059 = vsel %vm3055, %v3051, %v3057
      %v3060 = vsel %vm3056, %v3053, %v3058
      %v3061 = vpack.c.bf16 %v3060, %v3059
      %v3062 = vld [vmem:[%s21] sm:$0xff]
      %v3063 = vld [vmem:[%s21 + $0x8] sm:$0xff]
      %v3064 = vld [vmem:[%s21 + $0x10] sm:$0xff]
      %v3065 = vld [vmem:[%s21 + $0x18] sm:$0xff]
      %v3066 = vld [vmem:[%s21 + $0x20] sm:$0xff]
      %v3067 = vld [vmem:[%s21 + $0x28] sm:$0xff]
      %v3068 = vld [vmem:[%s21 + $0x30] sm:$0xff]
      %v3069 = vld [vmem:[%s21 + $0x38] sm:$0xff]
      %v3078 = vunpack.c.l.b16 %v3062
      %v3079 = vunpack.c.h.b16 %v3062
      %v3080 = vunpack.c.l.b16 %v3063
      %v3081 = vunpack.c.h.b16 %v3063
      %v3082 = vunpack.c.l.b16 %v3064
      %v3083 = vunpack.c.h.b16 %v3064
      %v3084 = vunpack.c.l.b16 %v3065
      %v3085 = vunpack.c.h.b16 %v3065
      %v3086 = vunpack.c.l.b16 %v3066
      %v3087 = vunpack.c.h.b16 %v3066
      %v3088 = vunpack.c.l.b16 %v3067
      %v3089 = vunpack.c.h.b16 %v3067
      %v3090 = vunpack.c.l.b16 %v3068
      %v3091 = vunpack.c.h.b16 %v3068
      %v3092 = vunpack.c.l.b16 %v3069
      %v3093 = vunpack.c.h.b16 %v3069
      %v3094 = vpack.c.b16 %v3080, %v3078
      %v3095 = vpack.c.b16 %v3081, %v3079
      %v3096 = vpack.c.b16 %v3084, %v3082
      %v3097 = vpack.c.b16 %v3085, %v3083
      %v3098 = vpack.c.b16 %v3088, %v3086
      %v3099 = vpack.c.b16 %v3089, %v3087
      %v3100 = vpack.c.b16 %v3092, %v3090
      %v3101 = vpack.c.b16 %v3093, %v3091
      %v3111 = vsel %vm1992, %v3061, 0
      %3113 = vmatpush.bf16.msra.mxu0 0
      %3114 = vmatpush.bf16.msra.mxu0 0
      %3115 = vmatpush.bf16.msra.mxu0 0
      %3116 = vmatpush.bf16.msra.mxu0 0
      %3117 = vmatpush.bf16.msra.mxu0 %v3100
      %3118 = vmatpush.bf16.msra.mxu0 %v3098
      %3119 = vmatpush.bf16.msra.mxu0 %v3096
      %3120 = vmatpush.bf16.msra.mxu0 %v3094
      %3121 = vmatmul.bf16.gmra.mxu0 %v3111
      %v3122 = vpop.f32.mrf.mxu0
      %v3123 = vadd.f32 0.0, %v3122
      %v3124 = vpop.f32.mrf.mxu0
      %v3125 = vadd.f32 0.0, %v3124
      %3126 = vdwg.mxu0
      %3127 = vmatpush.bf16.msra.mxu0 0
      %3128 = vmatpush.bf16.msra.mxu0 0
      %3129 = vmatpush.bf16.msra.mxu0 0
      %3130 = vmatpush.bf16.msra.mxu0 0
      %3131 = vmatpush.bf16.msra.mxu0 %v3101
      %3132 = vmatpush.bf16.msra.mxu0 %v3099
      %3133 = vmatpush.bf16.msra.mxu0 %v3097
      %3134 = vmatpush.bf16.msra.mxu0 %v3095
      %3135 = vmatmul.bf16.gmra.mxu0 %v3111
      %v3136 = vpop.f32.mrf.mxu0
      %v3137 = vadd.f32 0.0, %v3136
      %v3138 = vpop.f32.mrf.mxu0
      %v3139 = vadd.f32 0.0, %v3138
      %3140 = vdwg.mxu0
      %3141 = vst [vmem:[#allocation5] sm:$0xff] 0.0
      %3142 = vst [vmem:[#allocation5 + $0x20] sm:$0xff] 0.0
      %3143 = vst [vmem:[#allocation5 + $0x18] sm:$0xff] 0.0
      %3144 = vst [vmem:[#allocation5 + $0x38] sm:$0xff] 0.0
      %3145 = vst [vmem:[#allocation5 + $0x8] sm:$0xff] %v3123
      %3146 = vst [vmem:[#allocation5 + $0x10] sm:$0xff] %v3137
      %3147 = vst [vmem:[#allocation5 + $0x28] sm:$0xff] %v3125
      %3148 = vst [vmem:[#allocation5 + $0x30] sm:$0xff] %v3139
      %v3149 = vld [vmem:[#allocation5] sm:$0xff]
      %v3150 = vld [vmem:[#allocation5 + $0x8] sm:$0xff]
      %v3151 = vld [vmem:[#allocation5 + $0x10] sm:$0xff]
      %v3152 = vld [vmem:[#allocation5 + $0x20] sm:$0xff]
      %v3153 = vld [vmem:[#allocation5 + $0x28] sm:$0xff]
      %v3154 = vld [vmem:[#allocation5 + $0x30] sm:$0xff]
      %v3155 = vld [vmem:[%s16] ss:$8 sm:$0x3]
      %v3157 = vperm.slane %v3155, 0
      %v3158 = vperm.slane %v3155, 1
      %3159 = vrot.lane.b32.xlu0 %v3157, 111
      %v3160 = vpop.permute.xlu0 %3159
      %3161 = vrot.lane.b32.xlu0 %v3158, 111
      %v3162 = vpop.permute.xlu0 %3161
      %v3163 = vsel %vm1019, %v3160, %v3162
      %v3167 = vmul.f32 %v3149, %v3160
      %v3168 = vmul.f32 %v3150, %v3163
      %v3169 = vmul.f32 %v3151, %v3162
      %v3170 = vmul.f32 %v3152, %v3160
      %v3171 = vmul.f32 %v3153, %v3163
      %v3172 = vmul.f32 %v3154, %v3162
      %3179 = vrot.lane.b32.xlu0 %v3167, 17
      %v3180 = vpop.permute.xlu0 %3179
      %3181 = vrot.lane.b32.xlu0 %v3168, 17
      %v3182 = vpop.permute.xlu0 %3181
      %3183 = vrot.lane.b32.xlu0 %v3169, 17
      %v3184 = vpop.permute.xlu0 %3183
      %3185 = vrot.lane.b32.xlu0 %v3170, 17
      %v3186 = vpop.permute.xlu0 %3185
      %3187 = vrot.lane.b32.xlu0 %v3171, 17
      %v3188 = vpop.permute.xlu0 %3187
      %3189 = vrot.lane.b32.xlu0 %v3172, 17
      %v3190 = vpop.permute.xlu0 %3189
      %v3191 = vsel %vm1039, %v3180, %v3182
      %v3192 = vsel %vm1039, %v3182, %v3184
      %v3193 = vsel %vm1039, %v3186, %v3188
      %v3194 = vsel %vm1039, %v3188, %v3190
      %3199 = vst [vmem:[#allocation12] sm:$0xff] %v3191
      %3200 = vst [vmem:[#allocation12 + $0x8] sm:$0xff] %v3192
      %3201 = vst [vmem:[#allocation12 + $0x10] sm:$0xff] %v3193
      %3202 = vst [vmem:[#allocation12 + $0x18] sm:$0xff] %v3194
      %v3203 = vld [vmem:[#allocation5] sm:$0xff]
      %v3204 = vld [vmem:[#allocation5 + $0x8] sm:$0xff]
      %v3205 = vld [vmem:[#allocation5 + $0x10] sm:$0xff]
      %v3206 = vld [vmem:[#allocation5 + $0x20] sm:$0xff]
      %v3207 = vld [vmem:[#allocation5 + $0x28] sm:$0xff]
      %v3208 = vld [vmem:[#allocation5 + $0x30] sm:$0xff]
      %s3209 = scalar_lea.vmem %s16, 1
      %v3210 = vld [vmem:[%s3209] ss:$8 sm:$0x3]
      %v3212 = vperm.slane %v3210, 0
      %v3213 = vperm.slane %v3210, 1
      %3214 = vrot.lane.b32.xlu0 %v3212, 112
      %v3215 = vpop.permute.xlu0 %3214
      %3216 = vrot.lane.b32.xlu0 %v3213, 112
      %v3217 = vpop.permute.xlu0 %3216
      %v3218 = vsel %vm1058, %v3215, %v3217
      %v3222 = vmul.f32 %v3203, %v3215
      %v3223 = vmul.f32 %v3204, %v3218
      %v3224 = vmul.f32 %v3205, %v3217
      %v3225 = vmul.f32 %v3206, %v3215
      %v3226 = vmul.f32 %v3207, %v3218
      %v3227 = vmul.f32 %v3208, %v3217
      %3234 = vrot.lane.b32.xlu0 %v3222, 16
      %v3235 = vpop.permute.xlu0 %3234
      %3236 = vrot.lane.b32.xlu0 %v3223, 16
      %v3237 = vpop.permute.xlu0 %3236
      %3238 = vrot.lane.b32.xlu0 %v3224, 16
      %v3239 = vpop.permute.xlu0 %3238
      %3240 = vrot.lane.b32.xlu0 %v3225, 16
      %v3241 = vpop.permute.xlu0 %3240
      %3242 = vrot.lane.b32.xlu0 %v3226, 16
      %v3243 = vpop.permute.xlu0 %3242
      %3244 = vrot.lane.b32.xlu0 %v3227, 16
      %v3245 = vpop.permute.xlu0 %3244
      %v3246 = vsel %vm1079, %v3235, %v3237
      %v3247 = vsel %vm1079, %v3237, %v3239
      %v3248 = vsel %vm1079, %v3241, %v3243
      %v3249 = vsel %vm1079, %v3243, %v3245
      %3254 = vst [vmem:[#allocation12 + $0x20] sm:$0xff] %v3246
      %3255 = vst [vmem:[#allocation12 + $0x28] sm:$0xff] %v3247
      %3256 = vst [vmem:[#allocation12 + $0x30] sm:$0xff] %v3248
      %3257 = vst [vmem:[#allocation12 + $0x38] sm:$0xff] %v3249
      %v3258 = vld [vmem:[#allocation5] sm:$0xff]
      %v3259 = vld [vmem:[#allocation5 + $0x8] sm:$0xff]
      %v3260 = vld [vmem:[#allocation5 + $0x10] sm:$0xff]
      %v3261 = vld [vmem:[#allocation5 + $0x20] sm:$0xff]
      %v3262 = vld [vmem:[#allocation5 + $0x28] sm:$0xff]
      %v3263 = vld [vmem:[#allocation5 + $0x30] sm:$0xff]
      %s3264 = scalar_lea.vmem %s16, 2
      %v3265 = vld [vmem:[%s3264] ss:$8 sm:$0x3]
      %v3267 = vperm.slane %v3265, 0
      %v3268 = vperm.slane %v3265, 1
      %3269 = vrot.lane.b32.xlu0 %v3267, 113
      %v3270 = vpop.permute.xlu0 %3269
      %3271 = vrot.lane.b32.xlu0 %v3268, 113
      %v3272 = vpop.permute.xlu0 %3271
      %v3273 = vsel %vm1098, %v3270, %v3272
      %v3277 = vmul.f32 %v3258, %v3270
      %v3278 = vmul.f32 %v3259, %v3273
      %v3279 = vmul.f32 %v3260, %v3272
      %v3280 = vmul.f32 %v3261, %v3270
      %v3281 = vmul.f32 %v3262, %v3273
      %v3282 = vmul.f32 %v3263, %v3272
      %3289 = vrot.lane.b32.xlu0 %v3277, 15
      %v3290 = vpop.permute.xlu0 %3289
      %3291 = vrot.lane.b32.xlu0 %v3278, 15
      %v3292 = vpop.permute.xlu0 %3291
      %3293 = vrot.lane.b32.xlu0 %v3279, 15
      %v3294 = vpop.permute.xlu0 %3293
      %3295 = vrot.lane.b32.xlu0 %v3280, 15
      %v3296 = vpop.permute.xlu0 %3295
      %3297 = vrot.lane.b32.xlu0 %v3281, 15
      %v3298 = vpop.permute.xlu0 %3297
      %3299 = vrot.lane.b32.xlu0 %v3282, 15
      %v3300 = vpop.permute.xlu0 %3299
      %v3301 = vsel %vm1118, %v3290, %v3292
      %v3302 = vsel %vm1118, %v3292, %v3294
      %v3303 = vsel %vm1118, %v3296, %v3298
      %v3304 = vsel %vm1118, %v3298, %v3300
      %3309 = vst [vmem:[#allocation12 + $0x40] sm:$0xff] %v3301
      %3310 = vst [vmem:[#allocation12 + $0x48] sm:$0xff] %v3302
      %3311 = vst [vmem:[#allocation12 + $0x50] sm:$0xff] %v3303
      %3312 = vst [vmem:[#allocation12 + $0x58] sm:$0xff] %v3304
      %v3313 = vld [vmem:[#allocation5] sm:$0xff]
      %v3314 = vld [vmem:[#allocation5 + $0x8] sm:$0xff]
      %v3315 = vld [vmem:[#allocation5 + $0x10] sm:$0xff]
      %v3316 = vld [vmem:[#allocation5 + $0x20] sm:$0xff]
      %v3317 = vld [vmem:[#allocation5 + $0x28] sm:$0xff]
      %v3318 = vld [vmem:[#allocation5 + $0x30] sm:$0xff]
      %s3319 = scalar_lea.vmem %s16, 3
      %v3320 = vld [vmem:[%s3319] ss:$8 sm:$0x3]
      %v3322 = vperm.slane %v3320, 0
      %v3323 = vperm.slane %v3320, 1
      %3324 = vrot.lane.b32.xlu0 %v3322, 127
      %v3325 = vpop.permute.xlu0 %3324
      %3326 = vrot.lane.b32.xlu0 %v3323, 127
      %v3327 = vpop.permute.xlu0 %3326
      %v3328 = vsel %vm1216, %v3325, %v3327
      %v3332 = vmul.f32 %v3313, %v3325
      %v3333 = vmul.f32 %v3314, %v3328
      %v3334 = vmul.f32 %v3315, %v3327
      %v3335 = vmul.f32 %v3316, %v3325
      %v3336 = vmul.f32 %v3317, %v3328
      %v3337 = vmul.f32 %v3318, %v3327
      %3344 = vrot.lane.b32.xlu0 %v3332, 1
      %v3345 = vpop.permute.xlu0 %3344
      %3346 = vrot.lane.b32.xlu0 %v3333, 1
      %v3347 = vpop.permute.xlu0 %3346
      %3348 = vrot.lane.b32.xlu0 %v3334, 1
      %v3349 = vpop.permute.xlu0 %3348
      %3350 = vrot.lane.b32.xlu0 %v3335, 1
      %v3351 = vpop.permute.xlu0 %3350
      %3352 = vrot.lane.b32.xlu0 %v3336, 1
      %v3353 = vpop.permute.xlu0 %3352
      %3354 = vrot.lane.b32.xlu0 %v3337, 1
      %v3355 = vpop.permute.xlu0 %3354
      %v3356 = vsel %vm1237, %v3345, %v3347
      %v3357 = vsel %vm1237, %v3347, %v3349
      %v3358 = vsel %vm1237, %v3351, %v3353
      %v3359 = vsel %vm1237, %v3353, %v3355
      %3364 = vst [vmem:[#allocation12 + $0x60] sm:$0xff] %v3356
      %3365 = vst [vmem:[#allocation12 + $0x68] sm:$0xff] %v3357
      %3366 = vst [vmem:[#allocation12 + $0x70] sm:$0xff] %v3358
      %3367 = vst [vmem:[#allocation12 + $0x78] sm:$0xff] %v3359
      %v3368 = vld [vmem:[#allocation5 + $0x8] sm:$0xff]
      %v3369 = vld [vmem:[#allocation5 + $0x10] sm:$0xff]
      %v3370 = vld [vmem:[#allocation5 + $0x28] sm:$0xff]
      %v3371 = vld [vmem:[#allocation5 + $0x30] sm:$0xff]
      %3372 = vst [vmem:[#allocation12 + $0x80] sm:$0xff] %v3368
      %3373 = vst [vmem:[#allocation12 + $0x88] sm:$0xff] %v3369
      %3374 = vst [vmem:[#allocation12 + $0x90] sm:$0xff] %v3370
      %3375 = vst [vmem:[#allocation12 + $0x98] sm:$0xff] %v3371
      %v3376 = vld [vmem:[#allocation5 + $0x8] sm:$0xff]
      %v3377 = vld [vmem:[#allocation5 + $0x10] sm:$0xff]
      %v3378 = vld [vmem:[#allocation5 + $0x18] sm:$0xff]
      %v3379 = vld [vmem:[#allocation5 + $0x28] sm:$0xff]
      %v3380 = vld [vmem:[#allocation5 + $0x30] sm:$0xff]
      %v3381 = vld [vmem:[#allocation5 + $0x38] sm:$0xff]
      %s3382 = scalar_lea.vmem %s16, 5
      %v3383 = vld [vmem:[%s3382] ss:$8 sm:$0x3]
      %v3385 = vperm.slane %v3383, 0
      %v3386 = vperm.slane %v3383, 1
      %3387 = vrot.lane.b32.xlu0 %v3385, 1
      %v3388 = vpop.permute.xlu0 %3387
      %3389 = vrot.lane.b32.xlu0 %v3386, 1
      %v3390 = vpop.permute.xlu0 %3389
      %v3391 = vsel %vm1237, %v3388, %v3390
      %v3395 = vmul.f32 %v3376, %v3388
      %v3396 = vmul.f32 %v3377, %v3391
      %v3397 = vmul.f32 %v3378, %v3390
      %v3398 = vmul.f32 %v3379, %v3388
      %v3399 = vmul.f32 %v3380, %v3391
      %v3400 = vmul.f32 %v3381, %v3390
      %3407 = vrot.lane.b32.xlu0 %v3395, 127
      %v3408 = vpop.permute.xlu0 %3407
      %3409 = vrot.lane.b32.xlu0 %v3396, 127
      %v3410 = vpop.permute.xlu0 %3409
      %3411 = vrot.lane.b32.xlu0 %v3397, 127
      %v3412 = vpop.permute.xlu0 %3411
      %3413 = vrot.lane.b32.xlu0 %v3398, 127
      %v3414 = vpop.permute.xlu0 %3413
      %3415 = vrot.lane.b32.xlu0 %v3399, 127
      %v3416 = vpop.permute.xlu0 %3415
      %3417 = vrot.lane.b32.xlu0 %v3400, 127
      %v3418 = vpop.permute.xlu0 %3417
      %v3419 = vsel %vm1216, %v3408, %v3410
      %v3420 = vsel %vm1216, %v3410, %v3412
      %v3421 = vsel %vm1216, %v3414, %v3416
      %v3422 = vsel %vm1216, %v3416, %v3418
      %3427 = vst [vmem:[#allocation12 + $0xa0] sm:$0xff] %v3419
      %3428 = vst [vmem:[#allocation12 + $0xa8] sm:$0xff] %v3420
      %3429 = vst [vmem:[#allocation12 + $0xb0] sm:$0xff] %v3421
      %3430 = vst [vmem:[#allocation12 + $0xb8] sm:$0xff] %v3422
      %v3431 = vld [vmem:[#allocation5 + $0x8] sm:$0xff]
      %v3432 = vld [vmem:[#allocation5 + $0x10] sm:$0xff]
      %v3433 = vld [vmem:[#allocation5 + $0x18] sm:$0xff]
      %v3434 = vld [vmem:[#allocation5 + $0x28] sm:$0xff]
      %v3435 = vld [vmem:[#allocation5 + $0x30] sm:$0xff]
      %v3436 = vld [vmem:[#allocation5 + $0x38] sm:$0xff]
      %s3437 = scalar_lea.vmem %s16, 6
      %v3438 = vld [vmem:[%s3437] ss:$8 sm:$0x3]
      %v3440 = vperm.slane %v3438, 0
      %v3441 = vperm.slane %v3438, 1
      %3442 = vrot.lane.b32.xlu0 %v3440, 15
      %v3443 = vpop.permute.xlu0 %3442
      %3444 = vrot.lane.b32.xlu0 %v3441, 15
      %v3445 = vpop.permute.xlu0 %3444
      %v3446 = vsel %vm1118, %v3443, %v3445
      %v3450 = vmul.f32 %v3431, %v3443
      %v3451 = vmul.f32 %v3432, %v3446
      %v3452 = vmul.f32 %v3433, %v3445
      %v3453 = vmul.f32 %v3434, %v3443
      %v3454 = vmul.f32 %v3435, %v3446
      %v3455 = vmul.f32 %v3436, %v3445
      %3462 = vrot.lane.b32.xlu0 %v3450, 113
      %v3463 = vpop.permute.xlu0 %3462
      %3464 = vrot.lane.b32.xlu0 %v3451, 113
      %v3465 = vpop.permute.xlu0 %3464
      %3466 = vrot.lane.b32.xlu0 %v3452, 113
      %v3467 = vpop.permute.xlu0 %3466
      %3468 = vrot.lane.b32.xlu0 %v3453, 113
      %v3469 = vpop.permute.xlu0 %3468
      %3470 = vrot.lane.b32.xlu0 %v3454, 113
      %v3471 = vpop.permute.xlu0 %3470
      %3472 = vrot.lane.b32.xlu0 %v3455, 113
      %v3473 = vpop.permute.xlu0 %3472
      %v3474 = vsel %vm1098, %v3463, %v3465
      %v3475 = vsel %vm1098, %v3465, %v3467
      %v3476 = vsel %vm1098, %v3469, %v3471
      %v3477 = vsel %vm1098, %v3471, %v3473
      %3482 = vst [vmem:[#allocation12 + $0xc0] sm:$0xff] %v3474
      %3483 = vst [vmem:[#allocation12 + $0xc8] sm:$0xff] %v3475
      %3484 = vst [vmem:[#allocation12 + $0xd0] sm:$0xff] %v3476
      %3485 = vst [vmem:[#allocation12 + $0xd8] sm:$0xff] %v3477
      %v3486 = vld [vmem:[#allocation5 + $0x8] sm:$0xff]
      %v3487 = vld [vmem:[#allocation5 + $0x10] sm:$0xff]
      %v3488 = vld [vmem:[#allocation5 + $0x18] sm:$0xff]
      %v3489 = vld [vmem:[#allocation5 + $0x28] sm:$0xff]
      %v3490 = vld [vmem:[#allocation5 + $0x30] sm:$0xff]
      %v3491 = vld [vmem:[#allocation5 + $0x38] sm:$0xff]
      %s3492 = scalar_lea.vmem %s16, 7
      %v3493 = vld [vmem:[%s3492] ss:$8 sm:$0x3]
      %v3495 = vperm.slane %v3493, 0
      %v3496 = vperm.slane %v3493, 1
      %3497 = vrot.lane.b32.xlu0 %v3495, 16
      %v3498 = vpop.permute.xlu0 %3497
      %3499 = vrot.lane.b32.xlu0 %v3496, 16
      %v3500 = vpop.permute.xlu0 %3499
      %v3501 = vsel %vm1079, %v3498, %v3500
      %v3505 = vmul.f32 %v3486, %v3498
      %v3506 = vmul.f32 %v3487, %v3501
      %v3507 = vmul.f32 %v3488, %v3500
      %v3508 = vmul.f32 %v3489, %v3498
      %v3509 = vmul.f32 %v3490, %v3501
      %v3510 = vmul.f32 %v3491, %v3500
      %3517 = vrot.lane.b32.xlu0 %v3505, 112
      %v3518 = vpop.permute.xlu0 %3517
      %3519 = vrot.lane.b32.xlu0 %v3506, 112
      %v3520 = vpop.permute.xlu0 %3519
      %3521 = vrot.lane.b32.xlu0 %v3507, 112
      %v3522 = vpop.permute.xlu0 %3521
      %3523 = vrot.lane.b32.xlu0 %v3508, 112
      %v3524 = vpop.permute.xlu0 %3523
      %3525 = vrot.lane.b32.xlu0 %v3509, 112
      %v3526 = vpop.permute.xlu0 %3525
      %3527 = vrot.lane.b32.xlu0 %v3510, 112
      %v3528 = vpop.permute.xlu0 %3527
      %v3529 = vsel %vm1058, %v3518, %v3520
      %v3530 = vsel %vm1058, %v3520, %v3522
      %v3531 = vsel %vm1058, %v3524, %v3526
      %v3532 = vsel %vm1058, %v3526, %v3528
      %3537 = vst [vmem:[#allocation12 + $0xe0] sm:$0xff] %v3529
      %3538 = vst [vmem:[#allocation12 + $0xe8] sm:$0xff] %v3530
      %3539 = vst [vmem:[#allocation12 + $0xf0] sm:$0xff] %v3531
      %3540 = vst [vmem:[#allocation12 + $0xf8] sm:$0xff] %v3532
      %v3541 = vld [vmem:[#allocation5 + $0x8] sm:$0xff]
      %v3542 = vld [vmem:[#allocation5 + $0x10] sm:$0xff]
      %v3543 = vld [vmem:[#allocation5 + $0x18] sm:$0xff]
      %v3544 = vld [vmem:[#allocation5 + $0x28] sm:$0xff]
      %v3545 = vld [vmem:[#allocation5 + $0x30] sm:$0xff]
      %v3546 = vld [vmem:[#allocation5 + $0x38] sm:$0xff]
      %s3547 = scalar_lea.vmem %s16, 16
      %v3548 = vld [vmem:[%s3547] ss:$8 sm:$0x3]
      %v3550 = vperm.slane %v3548, 0
      %v3551 = vperm.slane %v3548, 1
      %3552 = vrot.lane.b32.xlu0 %v3550, 17
      %v3553 = vpop.permute.xlu0 %3552
      %3554 = vrot.lane.b32.xlu0 %v3551, 17
      %v3555 = vpop.permute.xlu0 %3554
      %v3556 = vsel %vm1039, %v3553, %v3555
      %v3560 = vmul.f32 %v3541, %v3553
      %v3561 = vmul.f32 %v3542, %v3556
      %v3562 = vmul.f32 %v3543, %v3555
      %v3563 = vmul.f32 %v3544, %v3553
      %v3564 = vmul.f32 %v3545, %v3556
      %v3565 = vmul.f32 %v3546, %v3555
      %3572 = vrot.lane.b32.xlu0 %v3560, 111
      %v3573 = vpop.permute.xlu0 %3572
      %3574 = vrot.lane.b32.xlu0 %v3561, 111
      %v3575 = vpop.permute.xlu0 %3574
      %3576 = vrot.lane.b32.xlu0 %v3562, 111
      %v3577 = vpop.permute.xlu0 %3576
      %3578 = vrot.lane.b32.xlu0 %v3563, 111
      %v3579 = vpop.permute.xlu0 %3578
      %3580 = vrot.lane.b32.xlu0 %v3564, 111
      %v3581 = vpop.permute.xlu0 %3580
      %3582 = vrot.lane.b32.xlu0 %v3565, 111
      %v3583 = vpop.permute.xlu0 %3582
      %v3584 = vsel %vm1019, %v3573, %v3575
      %v3585 = vsel %vm1019, %v3575, %v3577
      %v3586 = vsel %vm1019, %v3579, %v3581
      %v3587 = vsel %vm1019, %v3581, %v3583
      %3592 = vst [vmem:[#allocation12 + $0x100] sm:$0xff] %v3584
      %3593 = vst [vmem:[#allocation12 + $0x108] sm:$0xff] %v3585
      %3594 = vst [vmem:[#allocation12 + $0x110] sm:$0xff] %v3586
      %3595 = vst [vmem:[#allocation12 + $0x118] sm:$0xff] %v3587
      %v3596 = vld [vmem:[%s11] sm:$0xff]
      %v3597 = vld [vmem:[#allocation12] sm:$0xff]
      %v3598 = vld [vmem:[#allocation12 + $0x8] sm:$0xff]
      %v3599 = vld [vmem:[#allocation12 + $0x10] sm:$0xff]
      %v3600 = vld [vmem:[#allocation12 + $0x18] sm:$0xff]
      %v3601 = vld [vmem:[#allocation12 + $0x20] sm:$0xff]
      %v3602 = vld [vmem:[#allocation12 + $0x28] sm:$0xff]
      %v3603 = vld [vmem:[#allocation12 + $0x30] sm:$0xff]
      %v3604 = vld [vmem:[#allocation12 + $0x38] sm:$0xff]
      %v3605 = vld [vmem:[#allocation12 + $0x40] sm:$0xff]
      %v3606 = vld [vmem:[#allocation12 + $0x48] sm:$0xff]
      %v3607 = vld [vmem:[#allocation12 + $0x50] sm:$0xff]
      %v3608 = vld [vmem:[#allocation12 + $0x58] sm:$0xff]
      %v3609 = vld [vmem:[#allocation12 + $0x60] sm:$0xff]
      %v3610 = vld [vmem:[#allocation12 + $0x68] sm:$0xff]
      %v3611 = vld [vmem:[#allocation12 + $0x70] sm:$0xff]
      %v3612 = vld [vmem:[#allocation12 + $0x78] sm:$0xff]
      %v3613 = vld [vmem:[#allocation12 + $0x80] sm:$0xff]
      %v3614 = vld [vmem:[#allocation12 + $0x88] sm:$0xff]
      %v3615 = vld [vmem:[#allocation12 + $0x90] sm:$0xff]
      %v3616 = vld [vmem:[#allocation12 + $0x98] sm:$0xff]
      %v3617 = vld [vmem:[#allocation12 + $0xa0] sm:$0xff]
      %v3618 = vld [vmem:[#allocation12 + $0xa8] sm:$0xff]
      %v3619 = vld [vmem:[#allocation12 + $0xb0] sm:$0xff]
      %v3620 = vld [vmem:[#allocation12 + $0xb8] sm:$0xff]
      %v3621 = vld [vmem:[#allocation12 + $0xc0] sm:$0xff]
      %v3622 = vld [vmem:[#allocation12 + $0xc8] sm:$0xff]
      %v3623 = vld [vmem:[#allocation12 + $0xd0] sm:$0xff]
      %v3624 = vld [vmem:[#allocation12 + $0xd8] sm:$0xff]
      %v3625 = vld [vmem:[#allocation12 + $0xe0] sm:$0xff]
      %v3626 = vld [vmem:[#allocation12 + $0xe8] sm:$0xff]
      %v3627 = vld [vmem:[#allocation12 + $0xf0] sm:$0xff]
      %v3628 = vld [vmem:[#allocation12 + $0xf8] sm:$0xff]
      %v3629 = vld [vmem:[#allocation12 + $0x100] sm:$0xff]
      %v3630 = vld [vmem:[#allocation12 + $0x108] sm:$0xff]
      %v3631 = vld [vmem:[#allocation12 + $0x110] sm:$0xff]
      %v3632 = vld [vmem:[#allocation12 + $0x118] sm:$0xff]
      %v3633 = vpack.c.bf16 %v3599, %v3597
      %v3634 = vpack.c.bf16 %v3600, %v3598
      %v3635 = vpack.c.bf16 %v3603, %v3601
      %v3636 = vpack.c.bf16 %v3604, %v3602
      %v3637 = vpack.c.bf16 %v3607, %v3605
      %v3638 = vpack.c.bf16 %v3608, %v3606
      %v3639 = vpack.c.bf16 %v3611, %v3609
      %v3640 = vpack.c.bf16 %v3612, %v3610
      %v3641 = vpack.c.bf16 %v3615, %v3613
      %v3642 = vpack.c.bf16 %v3616, %v3614
      %v3643 = vpack.c.bf16 %v3619, %v3617
      %v3644 = vpack.c.bf16 %v3620, %v3618
      %v3645 = vpack.c.bf16 %v3623, %v3621
      %v3646 = vpack.c.bf16 %v3624, %v3622
      %v3647 = vpack.c.bf16 %v3627, %v3625
      %v3648 = vpack.c.bf16 %v3628, %v3626
      %v3649 = vpack.c.bf16 %v3631, %v3629
      %v3650 = vpack.c.bf16 %v3632, %v3630
      %v3651 = vld [vmem:[%s12] sm:$0xff]
      %3653 = vset.pattern.permute.xlu0 0
      %3654 = vperm.xlu0 %3653, %v3651
      %v3655 = vpop.permute.xlu0 %3654
      %v3658 = vunpack.c.l.b16 %v3596
      %v3659 = vunpack.c.h.b16 %v3596
      %v3660 = vpack.c.b16 %v3658, %v3658
      %v3661 = vpack.c.b16 %v3659, %v3659
      %v3664 = vsel %vm1079, %v3661, 0
      %3666 = vmatpush.bf16.msra.mxu0 %v3647
      %3667 = vmatpush.bf16.msra.mxu0 %v3645
      %3668 = vmatpush.bf16.msra.mxu0 %v3643
      %3669 = vmatpush.bf16.msra.mxu0 %v3641
      %3670 = vmatpush.bf16.msra.mxu0 %v3639
      %3671 = vmatpush.bf16.msra.mxu0 %v3637
      %3672 = vmatpush.bf16.msra.mxu0 %v3635
      %3673 = vmatpush.bf16.msra.mxu0 %v3633
      %3674 = vmatmul.bf16.gmra.mxu0 %v3660
      %v3675 = vpop.f32.mrf.mxu0
      %v3676 = vadd.f32 %v3655, %v3675
      %v3677 = vpop.f32.mrf.mxu0
      %3678 = vdwg.mxu0
      %3679 = vmatpush.bf16.msra.mxu0 0
      %3680 = vmatpush.bf16.msra.mxu0 0
      %3681 = vmatpush.bf16.msra.mxu0 0
      %3682 = vmatpush.bf16.msra.mxu0 0
      %3683 = vmatpush.bf16.msra.mxu0 0
      %3684 = vmatpush.bf16.msra.mxu0 0
      %3685 = vmatpush.bf16.msra.mxu0 0
      %3686 = vmatpush.bf16.msra.mxu0 %v3649
      %3687 = vmatmul.bf16.gmra.mxu0 %v3664
      %v3688 = vpop.f32.mrf.mxu0
      %v3689 = vadd.f32 %v3676, %v3688
      %v3690 = vpop.f32.mrf.mxu0
      %3691 = vdwg.mxu0
      %3692 = vmatpush.bf16.msra.mxu0 %v3648
      %3693 = vmatpush.bf16.msra.mxu0 %v3646
      %3694 = vmatpush.bf16.msra.mxu0 %v3644
      %3695 = vmatpush.bf16.msra.mxu0 %v3642
      %3696 = vmatpush.bf16.msra.mxu0 %v3640
      %3697 = vmatpush.bf16.msra.mxu0 %v3638
      %3698 = vmatpush.bf16.msra.mxu0 %v3636
      %3699 = vmatpush.bf16.msra.mxu0 %v3634
      %3700 = vmatmul.bf16.gmra.mxu0 %v3660
      %v3701 = vpop.f32.mrf.mxu0
      %v3702 = vadd.f32 %v3655, %v3701
      %v3703 = vpop.f32.mrf.mxu0
      %3704 = vdwg.mxu0
      %3705 = vmatpush.bf16.msra.mxu0 0
      %3706 = vmatpush.bf16.msra.mxu0 0
      %3707 = vmatpush.bf16.msra.mxu0 0
      %3708 = vmatpush.bf16.msra.mxu0 0
      %3709 = vmatpush.bf16.msra.mxu0 0
      %3710 = vmatpush.bf16.msra.mxu0 0
      %3711 = vmatpush.bf16.msra.mxu0 0
      %3712 = vmatpush.bf16.msra.mxu0 %v3650
      %3713 = vmatmul.bf16.gmra.mxu0 %v3664
      %v3714 = vpop.f32.mrf.mxu0
      %v3715 = vadd.f32 %v3702, %v3714
      %v3716 = vpop.f32.mrf.mxu0
      %3717 = vdwg.mxu0
      %vm3718 = vcmp.ge.f32.partialorder %v3689, 0.0
      %vm3719 = vcmp.ge.f32.partialorder %v3715, 0.0
      %v3720 = vmul.f32 %v3689, 0.01
      %v3721 = vmul.f32 %v3715, 0.01
      %v3722 = vsel %vm3718, %v3689, %v3720
      %v3723 = vsel %vm3719, %v3715, %v3721
      %3724 = vst [vmem:[#allocation6] sm:$0xff] 0.0
      %3725 = vst [vmem:[#allocation6 + $0x18] sm:$0xff] 0.0
      %3726 = vst [vmem:[#allocation6 + $0x8] sm:$0xff] %v3722
      %3727 = vst [vmem:[#allocation6 + $0x10] sm:$0xff] %v3723
      %v3728 = vld [vmem:[#allocation6] sm:$0xff]
      %v3729 = vld [vmem:[#allocation6 + $0x8] sm:$0xff]
      %v3730 = vld [vmem:[#allocation6 + $0x10] sm:$0xff]
      %v3731 = vld [vmem:[%s15] ss:$8 sm:$0x3]
      %v3733 = vperm.slane %v3731, 0
      %v3734 = vperm.slane %v3731, 1
      %3735 = vrot.lane.b32.xlu0 %v3733, 94
      %v3736 = vpop.permute.xlu0 %3735
      %3737 = vrot.lane.b32.xlu0 %v3734, 94
      %v3738 = vpop.permute.xlu0 %3737
      %v3739 = vsel %vm782, %v3736, %v3738
      %v3743 = vmul.f32 %v3728, %v3736
      %v3744 = vmul.f32 %v3729, %v3739
      %v3745 = vmul.f32 %v3730, %v3738
      %3749 = vrot.lane.b32.xlu0 %v3743, 34
      %v3750 = vpop.permute.xlu0 %3749
      %3751 = vrot.lane.b32.xlu0 %v3744, 34
      %v3752 = vpop.permute.xlu0 %3751
      %3753 = vrot.lane.b32.xlu0 %v3745, 34
      %v3754 = vpop.permute.xlu0 %3753
      %v3755 = vsel %vm802, %v3750, %v3752
      %v3756 = vsel %vm802, %v3752, %v3754
      %3759 = vst [vmem:[#allocation13] sm:$0xff] %v3755
      %3760 = vst [vmem:[#allocation13 + $0x8] sm:$0xff] %v3756
      %v3761 = vld [vmem:[#allocation6] sm:$0xff]
      %v3762 = vld [vmem:[#allocation6 + $0x8] sm:$0xff]
      %v3763 = vld [vmem:[#allocation6 + $0x10] sm:$0xff]
      %v3764 = vld [vmem:[%s811] ss:$8 sm:$0x3]
      %v3766 = vperm.slane %v3764, 0
      %v3767 = vperm.slane %v3764, 1
      %3768 = vrot.lane.b32.xlu0 %v3766, 95
      %v3769 = vpop.permute.xlu0 %3768
      %3770 = vrot.lane.b32.xlu0 %v3767, 95
      %v3771 = vpop.permute.xlu0 %3770
      %v3772 = vsel %vm821, %v3769, %v3771
      %v3776 = vmul.f32 %v3761, %v3769
      %v3777 = vmul.f32 %v3762, %v3772
      %v3778 = vmul.f32 %v3763, %v3771
      %3782 = vrot.lane.b32.xlu0 %v3776, 33
      %v3783 = vpop.permute.xlu0 %3782
      %3784 = vrot.lane.b32.xlu0 %v3777, 33
      %v3785 = vpop.permute.xlu0 %3784
      %3786 = vrot.lane.b32.xlu0 %v3778, 33
      %v3787 = vpop.permute.xlu0 %3786
      %v3788 = vsel %vm842, %v3783, %v3785
      %v3789 = vsel %vm842, %v3785, %v3787
      %3792 = vst [vmem:[#allocation13 + $0x10] sm:$0xff] %v3788
      %3793 = vst [vmem:[#allocation13 + $0x18] sm:$0xff] %v3789
      %v3794 = vld [vmem:[#allocation6] sm:$0xff]
      %v3795 = vld [vmem:[#allocation6 + $0x8] sm:$0xff]
      %v3796 = vld [vmem:[#allocation6 + $0x10] sm:$0xff]
      %v3797 = vld [vmem:[%s851] ss:$8 sm:$0x3]
      %v3799 = vperm.slane %v3797, 0
      %v3800 = vperm.slane %v3797, 1
      %3801 = vrot.lane.b32.xlu0 %v3799, 96
      %v3802 = vpop.permute.xlu0 %3801
      %3803 = vrot.lane.b32.xlu0 %v3800, 96
      %v3804 = vpop.permute.xlu0 %3803
      %v3805 = vsel %vm861, %v3802, %v3804
      %v3809 = vmul.f32 %v3794, %v3802
      %v3810 = vmul.f32 %v3795, %v3805
      %v3811 = vmul.f32 %v3796, %v3804
      %3815 = vrot.lane.b32.xlu0 %v3809, 32
      %v3816 = vpop.permute.xlu0 %3815
      %3817 = vrot.lane.b32.xlu0 %v3810, 32
      %v3818 = vpop.permute.xlu0 %3817
      %3819 = vrot.lane.b32.xlu0 %v3811, 32
      %v3820 = vpop.permute.xlu0 %3819
      %v3821 = vsel %vm881, %v3816, %v3818
      %v3822 = vsel %vm881, %v3818, %v3820
      %3825 = vst [vmem:[#allocation13 + $0x20] sm:$0xff] %v3821
      %3826 = vst [vmem:[#allocation13 + $0x28] sm:$0xff] %v3822
      %v3827 = vld [vmem:[#allocation6] sm:$0xff]
      %v3828 = vld [vmem:[#allocation6 + $0x8] sm:$0xff]
      %v3829 = vld [vmem:[#allocation6 + $0x10] sm:$0xff]
      %v3830 = vld [vmem:[%s890] ss:$8 sm:$0x3]
      %v3832 = vperm.slane %v3830, 0
      %v3833 = vperm.slane %v3830, 1
      %3834 = vrot.lane.b32.xlu0 %v3832, 97
      %v3835 = vpop.permute.xlu0 %3834
      %3836 = vrot.lane.b32.xlu0 %v3833, 97
      %v3837 = vpop.permute.xlu0 %3836
      %v3838 = vsel %vm900, %v3835, %v3837
      %v3842 = vmul.f32 %v3827, %v3835
      %v3843 = vmul.f32 %v3828, %v3838
      %v3844 = vmul.f32 %v3829, %v3837
      %3848 = vrot.lane.b32.xlu0 %v3842, 31
      %v3849 = vpop.permute.xlu0 %3848
      %3850 = vrot.lane.b32.xlu0 %v3843, 31
      %v3851 = vpop.permute.xlu0 %3850
      %3852 = vrot.lane.b32.xlu0 %v3844, 31
      %v3853 = vpop.permute.xlu0 %3852
      %v3854 = vsel %vm921, %v3849, %v3851
      %v3855 = vsel %vm921, %v3851, %v3853
      %3858 = vst [vmem:[#allocation13 + $0x30] sm:$0xff] %v3854
      %3859 = vst [vmem:[#allocation13 + $0x38] sm:$0xff] %v3855
      %v3860 = vld [vmem:[#allocation6] sm:$0xff]
      %v3861 = vld [vmem:[#allocation6 + $0x8] sm:$0xff]
      %v3862 = vld [vmem:[#allocation6 + $0x10] sm:$0xff]
      %v3863 = vld [vmem:[%s930] ss:$8 sm:$0x3]
      %v3865 = vperm.slane %v3863, 0
      %v3866 = vperm.slane %v3863, 1
      %3867 = vrot.lane.b32.xlu0 %v3865, 98
      %v3868 = vpop.permute.xlu0 %3867
      %3869 = vrot.lane.b32.xlu0 %v3866, 98
      %v3870 = vpop.permute.xlu0 %3869
      %v3871 = vsel %vm940, %v3868, %v3870
      %v3875 = vmul.f32 %v3860, %v3868
      %v3876 = vmul.f32 %v3861, %v3871
      %v3877 = vmul.f32 %v3862, %v3870
      %3881 = vrot.lane.b32.xlu0 %v3875, 30
      %v3882 = vpop.permute.xlu0 %3881
      %3883 = vrot.lane.b32.xlu0 %v3876, 30
      %v3884 = vpop.permute.xlu0 %3883
      %3885 = vrot.lane.b32.xlu0 %v3877, 30
      %v3886 = vpop.permute.xlu0 %3885
      %v3887 = vsel %vm960, %v3882, %v3884
      %v3888 = vsel %vm960, %v3884, %v3886
      %3891 = vst [vmem:[#allocation13 + $0x40] sm:$0xff] %v3887
      %3892 = vst [vmem:[#allocation13 + $0x48] sm:$0xff] %v3888
      %v3893 = vld [vmem:[#allocation6] sm:$0xff]
      %v3894 = vld [vmem:[#allocation6 + $0x8] sm:$0xff]
      %v3895 = vld [vmem:[#allocation6 + $0x10] sm:$0xff]
      %v3896 = vld [vmem:[%s969] ss:$8 sm:$0x3]
      %v3898 = vperm.slane %v3896, 0
      %v3899 = vperm.slane %v3896, 1
      %3900 = vrot.lane.b32.xlu0 %v3898, 110
      %v3901 = vpop.permute.xlu0 %3900
      %3902 = vrot.lane.b32.xlu0 %v3899, 110
      %v3903 = vpop.permute.xlu0 %3902
      %v3904 = vsel %vm979, %v3901, %v3903
      %v3908 = vmul.f32 %v3893, %v3901
      %v3909 = vmul.f32 %v3894, %v3904
      %v3910 = vmul.f32 %v3895, %v3903
      %3914 = vrot.lane.b32.xlu0 %v3908, 18
      %v3915 = vpop.permute.xlu0 %3914
      %3916 = vrot.lane.b32.xlu0 %v3909, 18
      %v3917 = vpop.permute.xlu0 %3916
      %3918 = vrot.lane.b32.xlu0 %v3910, 18
      %v3919 = vpop.permute.xlu0 %3918
      %v3920 = vsel %vm1000, %v3915, %v3917
      %v3921 = vsel %vm1000, %v3917, %v3919
      %3924 = vst [vmem:[#allocation13 + $0x50] sm:$0xff] %v3920
      %3925 = vst [vmem:[#allocation13 + $0x58] sm:$0xff] %v3921
      %v3926 = vld [vmem:[#allocation6] sm:$0xff]
      %v3927 = vld [vmem:[#allocation6 + $0x8] sm:$0xff]
      %v3928 = vld [vmem:[#allocation6 + $0x10] sm:$0xff]
      %v3929 = vld [vmem:[%s1009] ss:$8 sm:$0x3]
      %v3931 = vperm.slane %v3929, 0
      %v3932 = vperm.slane %v3929, 1
      %3933 = vrot.lane.b32.xlu0 %v3931, 111
      %v3934 = vpop.permute.xlu0 %3933
      %3935 = vrot.lane.b32.xlu0 %v3932, 111
      %v3936 = vpop.permute.xlu0 %3935
      %v3937 = vsel %vm1019, %v3934, %v3936
      %v3941 = vmul.f32 %v3926, %v3934
      %v3942 = vmul.f32 %v3927, %v3937
      %v3943 = vmul.f32 %v3928, %v3936
      %3947 = vrot.lane.b32.xlu0 %v3941, 17
      %v3948 = vpop.permute.xlu0 %3947
      %3949 = vrot.lane.b32.xlu0 %v3942, 17
      %v3950 = vpop.permute.xlu0 %3949
      %3951 = vrot.lane.b32.xlu0 %v3943, 17
      %v3952 = vpop.permute.xlu0 %3951
      %v3953 = vsel %vm1039, %v3948, %v3950
      %v3954 = vsel %vm1039, %v3950, %v3952
      %3957 = vst [vmem:[#allocation13 + $0x60] sm:$0xff] %v3953
      %3958 = vst [vmem:[#allocation13 + $0x68] sm:$0xff] %v3954
      %v3959 = vld [vmem:[#allocation6] sm:$0xff]
      %v3960 = vld [vmem:[#allocation6 + $0x8] sm:$0xff]
      %v3961 = vld [vmem:[#allocation6 + $0x10] sm:$0xff]
      %v3962 = vld [vmem:[%s1048] ss:$8 sm:$0x3]
      %v3964 = vperm.slane %v3962, 0
      %v3965 = vperm.slane %v3962, 1
      %3966 = vrot.lane.b32.xlu0 %v3964, 112
      %v3967 = vpop.permute.xlu0 %3966
      %3968 = vrot.lane.b32.xlu0 %v3965, 112
      %v3969 = vpop.permute.xlu0 %3968
      %v3970 = vsel %vm1058, %v3967, %v3969
      %v3974 = vmul.f32 %v3959, %v3967
      %v3975 = vmul.f32 %v3960, %v3970
      %v3976 = vmul.f32 %v3961, %v3969
      %3980 = vrot.lane.b32.xlu0 %v3974, 16
      %v3981 = vpop.permute.xlu0 %3980
      %3982 = vrot.lane.b32.xlu0 %v3975, 16
      %v3983 = vpop.permute.xlu0 %3982
      %3984 = vrot.lane.b32.xlu0 %v3976, 16
      %v3985 = vpop.permute.xlu0 %3984
      %v3986 = vsel %vm1079, %v3981, %v3983
      %v3987 = vsel %vm1079, %v3983, %v3985
      %3990 = vst [vmem:[#allocation13 + $0x70] sm:$0xff] %v3986
      %3991 = vst [vmem:[#allocation13 + $0x78] sm:$0xff] %v3987
      %v3992 = vld [vmem:[#allocation6] sm:$0xff]
      %v3993 = vld [vmem:[#allocation6 + $0x8] sm:$0xff]
      %v3994 = vld [vmem:[#allocation6 + $0x10] sm:$0xff]
      %v3995 = vld [vmem:[%s1088] ss:$8 sm:$0x3]
      %v3997 = vperm.slane %v3995, 0
      %v3998 = vperm.slane %v3995, 1
      %3999 = vrot.lane.b32.xlu0 %v3997, 113
      %v4000 = vpop.permute.xlu0 %3999
      %4001 = vrot.lane.b32.xlu0 %v3998, 113
      %v4002 = vpop.permute.xlu0 %4001
      %v4003 = vsel %vm1098, %v4000, %v4002
      %v4007 = vmul.f32 %v3992, %v4000
      %v4008 = vmul.f32 %v3993, %v4003
      %v4009 = vmul.f32 %v3994, %v4002
      %4013 = vrot.lane.b32.xlu0 %v4007, 15
      %v4014 = vpop.permute.xlu0 %4013
      %4015 = vrot.lane.b32.xlu0 %v4008, 15
      %v4016 = vpop.permute.xlu0 %4015
      %4017 = vrot.lane.b32.xlu0 %v4009, 15
      %v4018 = vpop.permute.xlu0 %4017
      %v4019 = vsel %vm1118, %v4014, %v4016
      %v4020 = vsel %vm1118, %v4016, %v4018
      %4023 = vst [vmem:[#allocation13 + $0x80] sm:$0xff] %v4019
      %4024 = vst [vmem:[#allocation13 + $0x88] sm:$0xff] %v4020
      %v4025 = vld [vmem:[#allocation6] sm:$0xff]
      %v4026 = vld [vmem:[#allocation6 + $0x8] sm:$0xff]
      %v4027 = vld [vmem:[#allocation6 + $0x10] sm:$0xff]
      %v4028 = vld [vmem:[%s1127] ss:$8 sm:$0x3]
      %v4030 = vperm.slane %v4028, 0
      %v4031 = vperm.slane %v4028, 1
      %4032 = vrot.lane.b32.xlu0 %v4030, 114
      %v4033 = vpop.permute.xlu0 %4032
      %4034 = vrot.lane.b32.xlu0 %v4031, 114
      %v4035 = vpop.permute.xlu0 %4034
      %v4036 = vsel %vm1137, %v4033, %v4035
      %v4040 = vmul.f32 %v4025, %v4033
      %v4041 = vmul.f32 %v4026, %v4036
      %v4042 = vmul.f32 %v4027, %v4035
      %4046 = vrot.lane.b32.xlu0 %v4040, 14
      %v4047 = vpop.permute.xlu0 %4046
      %4048 = vrot.lane.b32.xlu0 %v4041, 14
      %v4049 = vpop.permute.xlu0 %4048
      %4050 = vrot.lane.b32.xlu0 %v4042, 14
      %v4051 = vpop.permute.xlu0 %4050
      %v4052 = vsel %vm1158, %v4047, %v4049
      %v4053 = vsel %vm1158, %v4049, %v4051
      %4056 = vst [vmem:[#allocation13 + $0x90] sm:$0xff] %v4052
      %4057 = vst [vmem:[#allocation13 + $0x98] sm:$0xff] %v4053
      %v4058 = vld [vmem:[#allocation6] sm:$0xff]
      %v4059 = vld [vmem:[#allocation6 + $0x8] sm:$0xff]
      %v4060 = vld [vmem:[#allocation6 + $0x10] sm:$0xff]
      %v4061 = vld [vmem:[%s1167] ss:$8 sm:$0x3]
      %v4063 = vperm.slane %v4061, 0
      %v4064 = vperm.slane %v4061, 1
      %4065 = vrot.lane.b32.xlu0 %v4063, 126
      %v4066 = vpop.permute.xlu0 %4065
      %4067 = vrot.lane.b32.xlu0 %v4064, 126
      %v4068 = vpop.permute.xlu0 %4067
      %v4069 = vsel %vm1177, %v4066, %v4068
      %v4073 = vmul.f32 %v4058, %v4066
      %v4074 = vmul.f32 %v4059, %v4069
      %v4075 = vmul.f32 %v4060, %v4068
      %4079 = vrot.lane.b32.xlu0 %v4073, 2
      %v4080 = vpop.permute.xlu0 %4079
      %4081 = vrot.lane.b32.xlu0 %v4074, 2
      %v4082 = vpop.permute.xlu0 %4081
      %4083 = vrot.lane.b32.xlu0 %v4075, 2
      %v4084 = vpop.permute.xlu0 %4083
      %v4085 = vsel %vm1197, %v4080, %v4082
      %v4086 = vsel %vm1197, %v4082, %v4084
      %4089 = vst [vmem:[#allocation13 + $0xa0] sm:$0xff] %v4085
      %4090 = vst [vmem:[#allocation13 + $0xa8] sm:$0xff] %v4086
      %v4091 = vld [vmem:[#allocation6] sm:$0xff]
      %v4092 = vld [vmem:[#allocation6 + $0x8] sm:$0xff]
      %v4093 = vld [vmem:[#allocation6 + $0x10] sm:$0xff]
      %v4094 = vld [vmem:[%s1206] ss:$8 sm:$0x3]
      %v4096 = vperm.slane %v4094, 0
      %v4097 = vperm.slane %v4094, 1
      %4098 = vrot.lane.b32.xlu0 %v4096, 127
      %v4099 = vpop.permute.xlu0 %4098
      %4100 = vrot.lane.b32.xlu0 %v4097, 127
      %v4101 = vpop.permute.xlu0 %4100
      %v4102 = vsel %vm1216, %v4099, %v4101
      %v4106 = vmul.f32 %v4091, %v4099
      %v4107 = vmul.f32 %v4092, %v4102
      %v4108 = vmul.f32 %v4093, %v4101
      %4112 = vrot.lane.b32.xlu0 %v4106, 1
      %v4113 = vpop.permute.xlu0 %4112
      %4114 = vrot.lane.b32.xlu0 %v4107, 1
      %v4115 = vpop.permute.xlu0 %4114
      %4116 = vrot.lane.b32.xlu0 %v4108, 1
      %v4117 = vpop.permute.xlu0 %4116
      %v4118 = vsel %vm1237, %v4113, %v4115
      %v4119 = vsel %vm1237, %v4115, %v4117
      %4122 = vst [vmem:[#allocation13 + $0xb0] sm:$0xff] %v4118
      %4123 = vst [vmem:[#allocation13 + $0xb8] sm:$0xff] %v4119
      %v4124 = vld [vmem:[#allocation6 + $0x8] sm:$0xff]
      %v4125 = vld [vmem:[#allocation6 + $0x10] sm:$0xff]
      %4126 = vst [vmem:[#allocation13 + $0xc0] sm:$0xff] %v4124
      %4127 = vst [vmem:[#allocation13 + $0xc8] sm:$0xff] %v4125
      %v4128 = vld [vmem:[#allocation6 + $0x8] sm:$0xff]
      %v4129 = vld [vmem:[#allocation6 + $0x10] sm:$0xff]
      %v4130 = vld [vmem:[#allocation6 + $0x18] sm:$0xff]
      %v4131 = vld [vmem:[%s1255] ss:$8 sm:$0x3]
      %v4133 = vperm.slane %v4131, 0
      %v4134 = vperm.slane %v4131, 1
      %4135 = vrot.lane.b32.xlu0 %v4133, 1
      %v4136 = vpop.permute.xlu0 %4135
      %4137 = vrot.lane.b32.xlu0 %v4134, 1
      %v4138 = vpop.permute.xlu0 %4137
      %v4139 = vsel %vm1237, %v4136, %v4138
      %v4143 = vmul.f32 %v4128, %v4136
      %v4144 = vmul.f32 %v4129, %v4139
      %v4145 = vmul.f32 %v4130, %v4138
      %4149 = vrot.lane.b32.xlu0 %v4143, 127
      %v4150 = vpop.permute.xlu0 %4149
      %4151 = vrot.lane.b32.xlu0 %v4144, 127
      %v4152 = vpop.permute.xlu0 %4151
      %4153 = vrot.lane.b32.xlu0 %v4145, 127
      %v4154 = vpop.permute.xlu0 %4153
      %v4155 = vsel %vm1216, %v4150, %v4152
      %v4156 = vsel %vm1216, %v4152, %v4154
      %4159 = vst [vmem:[#allocation13 + $0xd0] sm:$0xff] %v4155
      %4160 = vst [vmem:[#allocation13 + $0xd8] sm:$0xff] %v4156
      %v4161 = vld [vmem:[#allocation6 + $0x8] sm:$0xff]
      %v4162 = vld [vmem:[#allocation6 + $0x10] sm:$0xff]
      %v4163 = vld [vmem:[#allocation6 + $0x18] sm:$0xff]
      %v4164 = vld [vmem:[%s1293] ss:$8 sm:$0x3]
      %v4166 = vperm.slane %v4164, 0
      %v4167 = vperm.slane %v4164, 1
      %4168 = vrot.lane.b32.xlu0 %v4166, 2
      %v4169 = vpop.permute.xlu0 %4168
      %4170 = vrot.lane.b32.xlu0 %v4167, 2
      %v4171 = vpop.permute.xlu0 %4170
      %v4172 = vsel %vm1197, %v4169, %v4171
      %v4176 = vmul.f32 %v4161, %v4169
      %v4177 = vmul.f32 %v4162, %v4172
      %v4178 = vmul.f32 %v4163, %v4171
      %4182 = vrot.lane.b32.xlu0 %v4176, 126
      %v4183 = vpop.permute.xlu0 %4182
      %4184 = vrot.lane.b32.xlu0 %v4177, 126
      %v4185 = vpop.permute.xlu0 %4184
      %4186 = vrot.lane.b32.xlu0 %v4178, 126
      %v4187 = vpop.permute.xlu0 %4186
      %v4188 = vsel %vm1177, %v4183, %v4185
      %v4189 = vsel %vm1177, %v4185, %v4187
      %4192 = vst [vmem:[#allocation13 + $0xe0] sm:$0xff] %v4188
      %4193 = vst [vmem:[#allocation13 + $0xe8] sm:$0xff] %v4189
      %v4194 = vld [vmem:[#allocation6 + $0x8] sm:$0xff]
      %v4195 = vld [vmem:[#allocation6 + $0x10] sm:$0xff]
      %v4196 = vld [vmem:[#allocation6 + $0x18] sm:$0xff]
      %v4197 = vld [vmem:[%s1330] ss:$8 sm:$0x3]
      %v4199 = vperm.slane %v4197, 0
      %v4200 = vperm.slane %v4197, 1
      %4201 = vrot.lane.b32.xlu0 %v4199, 14
      %v4202 = vpop.permute.xlu0 %4201
      %4203 = vrot.lane.b32.xlu0 %v4200, 14
      %v4204 = vpop.permute.xlu0 %4203
      %v4205 = vsel %vm1158, %v4202, %v4204
      %v4209 = vmul.f32 %v4194, %v4202
      %v4210 = vmul.f32 %v4195, %v4205
      %v4211 = vmul.f32 %v4196, %v4204
      %4215 = vrot.lane.b32.xlu0 %v4209, 114
      %v4216 = vpop.permute.xlu0 %4215
      %4217 = vrot.lane.b32.xlu0 %v4210, 114
      %v4218 = vpop.permute.xlu0 %4217
      %4219 = vrot.lane.b32.xlu0 %v4211, 114
      %v4220 = vpop.permute.xlu0 %4219
      %v4221 = vsel %vm1137, %v4216, %v4218
      %v4222 = vsel %vm1137, %v4218, %v4220
      %4225 = vst [vmem:[#allocation13 + $0xf0] sm:$0xff] %v4221
      %4226 = vst [vmem:[#allocation13 + $0xf8] sm:$0xff] %v4222
      %v4227 = vld [vmem:[#allocation6 + $0x8] sm:$0xff]
      %v4228 = vld [vmem:[#allocation6 + $0x10] sm:$0xff]
      %v4229 = vld [vmem:[#allocation6 + $0x18] sm:$0xff]
      %v4230 = vld [vmem:[%s1368] ss:$8 sm:$0x3]
      %v4232 = vperm.slane %v4230, 0
      %v4233 = vperm.slane %v4230, 1
      %4234 = vrot.lane.b32.xlu0 %v4232, 15
      %v4235 = vpop.permute.xlu0 %4234
      %4236 = vrot.lane.b32.xlu0 %v4233, 15
      %v4237 = vpop.permute.xlu0 %4236
      %v4238 = vsel %vm1118, %v4235, %v4237
      %v4242 = vmul.f32 %v4227, %v4235
      %v4243 = vmul.f32 %v4228, %v4238
      %v4244 = vmul.f32 %v4229, %v4237
      %4248 = vrot.lane.b32.xlu0 %v4242, 113
      %v4249 = vpop.permute.xlu0 %4248
      %4250 = vrot.lane.b32.xlu0 %v4243, 113
      %v4251 = vpop.permute.xlu0 %4250
      %4252 = vrot.lane.b32.xlu0 %v4244, 113
      %v4253 = vpop.permute.xlu0 %4252
      %v4254 = vsel %vm1098, %v4249, %v4251
      %v4255 = vsel %vm1098, %v4251, %v4253
      %4258 = vst [vmem:[#allocation13 + $0x100] sm:$0xff] %v4254
      %4259 = vst [vmem:[#allocation13 + $0x108] sm:$0xff] %v4255
      %v4260 = vld [vmem:[#allocation6 + $0x8] sm:$0xff]
      %v4261 = vld [vmem:[#allocation6 + $0x10] sm:$0xff]
      %v4262 = vld [vmem:[#allocation6 + $0x18] sm:$0xff]
      %v4263 = vld [vmem:[%s1405] ss:$8 sm:$0x3]
      %v4265 = vperm.slane %v4263, 0
      %v4266 = vperm.slane %v4263, 1
      %4267 = vrot.lane.b32.xlu0 %v4265, 16
      %v4268 = vpop.permute.xlu0 %4267
      %4269 = vrot.lane.b32.xlu0 %v4266, 16
      %v4270 = vpop.permute.xlu0 %4269
      %v4271 = vsel %vm1079, %v4268, %v4270
      %v4275 = vmul.f32 %v4260, %v4268
      %v4276 = vmul.f32 %v4261, %v4271
      %v4277 = vmul.f32 %v4262, %v4270
      %4281 = vrot.lane.b32.xlu0 %v4275, 112
      %v4282 = vpop.permute.xlu0 %4281
      %4283 = vrot.lane.b32.xlu0 %v4276, 112
      %v4284 = vpop.permute.xlu0 %4283
      %4285 = vrot.lane.b32.xlu0 %v4277, 112
      %v4286 = vpop.permute.xlu0 %4285
      %v4287 = vsel %vm1058, %v4282, %v4284
      %v4288 = vsel %vm1058, %v4284, %v4286
      %4291 = vst [vmem:[#allocation13 + $0x110] sm:$0xff] %v4287
      %4292 = vst [vmem:[#allocation13 + $0x118] sm:$0xff] %v4288
      %v4293 = vld [vmem:[#allocation6 + $0x8] sm:$0xff]
      %v4294 = vld [vmem:[#allocation6 + $0x10] sm:$0xff]
      %v4295 = vld [vmem:[#allocation6 + $0x18] sm:$0xff]
      %v4296 = vld [vmem:[%s1443] ss:$8 sm:$0x3]
      %v4298 = vperm.slane %v4296, 0
      %v4299 = vperm.slane %v4296, 1
      %4300 = vrot.lane.b32.xlu0 %v4298, 17
      %v4301 = vpop.permute.xlu0 %4300
      %4302 = vrot.lane.b32.xlu0 %v4299, 17
      %v4303 = vpop.permute.xlu0 %4302
      %v4304 = vsel %vm1039, %v4301, %v4303
      %v4308 = vmul.f32 %v4293, %v4301
      %v4309 = vmul.f32 %v4294, %v4304
      %v4310 = vmul.f32 %v4295, %v4303
      %4314 = vrot.lane.b32.xlu0 %v4308, 111
      %v4315 = vpop.permute.xlu0 %4314
      %4316 = vrot.lane.b32.xlu0 %v4309, 111
      %v4317 = vpop.permute.xlu0 %4316
      %4318 = vrot.lane.b32.xlu0 %v4310, 111
      %v4319 = vpop.permute.xlu0 %4318
      %v4320 = vsel %vm1019, %v4315, %v4317
      %v4321 = vsel %vm1019, %v4317, %v4319
      %4324 = vst [vmem:[#allocation13 + $0x120] sm:$0xff] %v4320
      %4325 = vst [vmem:[#allocation13 + $0x128] sm:$0xff] %v4321
      %v4326 = vld [vmem:[#allocation6 + $0x8] sm:$0xff]
      %v4327 = vld [vmem:[#allocation6 + $0x10] sm:$0xff]
      %v4328 = vld [vmem:[#allocation6 + $0x18] sm:$0xff]
      %v4329 = vld [vmem:[%s1480] ss:$8 sm:$0x3]
      %v4331 = vperm.slane %v4329, 0
      %v4332 = vperm.slane %v4329, 1
      %4333 = vrot.lane.b32.xlu0 %v4331, 18
      %v4334 = vpop.permute.xlu0 %4333
      %4335 = vrot.lane.b32.xlu0 %v4332, 18
      %v4336 = vpop.permute.xlu0 %4335
      %v4337 = vsel %vm1000, %v4334, %v4336
      %v4341 = vmul.f32 %v4326, %v4334
      %v4342 = vmul.f32 %v4327, %v4337
      %v4343 = vmul.f32 %v4328, %v4336
      %4347 = vrot.lane.b32.xlu0 %v4341, 110
      %v4348 = vpop.permute.xlu0 %4347
      %4349 = vrot.lane.b32.xlu0 %v4342, 110
      %v4350 = vpop.permute.xlu0 %4349
      %4351 = vrot.lane.b32.xlu0 %v4343, 110
      %v4352 = vpop.permute.xlu0 %4351
      %v4353 = vsel %vm979, %v4348, %v4350
      %v4354 = vsel %vm979, %v4350, %v4352
      %4357 = vst [vmem:[#allocation13 + $0x130] sm:$0xff] %v4353
      %4358 = vst [vmem:[#allocation13 + $0x138] sm:$0xff] %v4354
      %v4359 = vld [vmem:[#allocation6 + $0x8] sm:$0xff]
      %v4360 = vld [vmem:[#allocation6 + $0x10] sm:$0xff]
      %v4361 = vld [vmem:[#allocation6 + $0x18] sm:$0xff]
      %v4362 = vld [vmem:[%s1518] ss:$8 sm:$0x3]
      %v4364 = vperm.slane %v4362, 0
      %v4365 = vperm.slane %v4362, 1
      %4366 = vrot.lane.b32.xlu0 %v4364, 30
      %v4367 = vpop.permute.xlu0 %4366
      %4368 = vrot.lane.b32.xlu0 %v4365, 30
      %v4369 = vpop.permute.xlu0 %4368
      %v4370 = vsel %vm960, %v4367, %v4369
      %v4374 = vmul.f32 %v4359, %v4367
      %v4375 = vmul.f32 %v4360, %v4370
      %v4376 = vmul.f32 %v4361, %v4369
      %4380 = vrot.lane.b32.xlu0 %v4374, 98
      %v4381 = vpop.permute.xlu0 %4380
      %4382 = vrot.lane.b32.xlu0 %v4375, 98
      %v4383 = vpop.permute.xlu0 %4382
      %4384 = vrot.lane.b32.xlu0 %v4376, 98
      %v4385 = vpop.permute.xlu0 %4384
      %v4386 = vsel %vm940, %v4381, %v4383
      %v4387 = vsel %vm940, %v4383, %v4385
      %4390 = vst [vmem:[#allocation13 + $0x140] sm:$0xff] %v4386
      %4391 = vst [vmem:[#allocation13 + $0x148] sm:$0xff] %v4387
      %v4392 = vld [vmem:[#allocation6 + $0x8] sm:$0xff]
      %v4393 = vld [vmem:[#allocation6 + $0x10] sm:$0xff]
      %v4394 = vld [vmem:[#allocation6 + $0x18] sm:$0xff]
      %v4395 = vld [vmem:[%s1555] ss:$8 sm:$0x3]
      %v4397 = vperm.slane %v4395, 0
      %v4398 = vperm.slane %v4395, 1
      %4399 = vrot.lane.b32.xlu0 %v4397, 31
      %v4400 = vpop.permute.xlu0 %4399
      %4401 = vrot.lane.b32.xlu0 %v4398, 31
      %v4402 = vpop.permute.xlu0 %4401
      %v4403 = vsel %vm921, %v4400, %v4402
      %v4407 = vmul.f32 %v4392, %v4400
      %v4408 = vmul.f32 %v4393, %v4403
      %v4409 = vmul.f32 %v4394, %v4402
      %4413 = vrot.lane.b32.xlu0 %v4407, 97
      %v4414 = vpop.permute.xlu0 %4413
      %4415 = vrot.lane.b32.xlu0 %v4408, 97
      %v4416 = vpop.permute.xlu0 %4415
      %4417 = vrot.lane.b32.xlu0 %v4409, 97
      %v4418 = vpop.permute.xlu0 %4417
      %v4419 = vsel %vm900, %v4414, %v4416
      %v4420 = vsel %vm900, %v4416, %v4418
      %4423 = vst [vmem:[#allocation13 + $0x150] sm:$0xff] %v4419
      %4424 = vst [vmem:[#allocation13 + $0x158] sm:$0xff] %v4420
      %v4425 = vld [vmem:[#allocation6 + $0x8] sm:$0xff]
      %v4426 = vld [vmem:[#allocation6 + $0x10] sm:$0xff]
      %v4427 = vld [vmem:[#allocation6 + $0x18] sm:$0xff]
      %v4428 = vld [vmem:[%s1593] ss:$8 sm:$0x3]
      %v4430 = vperm.slane %v4428, 0
      %v4431 = vperm.slane %v4428, 1
      %4432 = vrot.lane.b32.xlu0 %v4430, 32
      %v4433 = vpop.permute.xlu0 %4432
      %4434 = vrot.lane.b32.xlu0 %v4431, 32
      %v4435 = vpop.permute.xlu0 %4434
      %v4436 = vsel %vm881, %v4433, %v4435
      %v4440 = vmul.f32 %v4425, %v4433
      %v4441 = vmul.f32 %v4426, %v4436
      %v4442 = vmul.f32 %v4427, %v4435
      %4446 = vrot.lane.b32.xlu0 %v4440, 96
      %v4447 = vpop.permute.xlu0 %4446
      %4448 = vrot.lane.b32.xlu0 %v4441, 96
      %v4449 = vpop.permute.xlu0 %4448
      %4450 = vrot.lane.b32.xlu0 %v4442, 96
      %v4451 = vpop.permute.xlu0 %4450
      %v4452 = vsel %vm861, %v4447, %v4449
      %v4453 = vsel %vm861, %v4449, %v4451
      %4456 = vst [vmem:[#allocation13 + $0x160] sm:$0xff] %v4452
      %4457 = vst [vmem:[#allocation13 + $0x168] sm:$0xff] %v4453
      %v4458 = vld [vmem:[#allocation6 + $0x8] sm:$0xff]
      %v4459 = vld [vmem:[#allocation6 + $0x10] sm:$0xff]
      %v4460 = vld [vmem:[#allocation6 + $0x18] sm:$0xff]
      %v4461 = vld [vmem:[%s1630] ss:$8 sm:$0x3]
      %v4463 = vperm.slane %v4461, 0
      %v4464 = vperm.slane %v4461, 1
      %4465 = vrot.lane.b32.xlu0 %v4463, 33
      %v4466 = vpop.permute.xlu0 %4465
      %4467 = vrot.lane.b32.xlu0 %v4464, 33
      %v4468 = vpop.permute.xlu0 %4467
      %v4469 = vsel %vm842, %v4466, %v4468
      %v4473 = vmul.f32 %v4458, %v4466
      %v4474 = vmul.f32 %v4459, %v4469
      %v4475 = vmul.f32 %v4460, %v4468
      %4479 = vrot.lane.b32.xlu0 %v4473, 95
      %v4480 = vpop.permute.xlu0 %4479
      %4481 = vrot.lane.b32.xlu0 %v4474, 95
      %v4482 = vpop.permute.xlu0 %4481
      %4483 = vrot.lane.b32.xlu0 %v4475, 95
      %v4484 = vpop.permute.xlu0 %4483
      %v4485 = vsel %vm821, %v4480, %v4482
      %v4486 = vsel %vm821, %v4482, %v4484
      %4489 = vst [vmem:[#allocation13 + $0x170] sm:$0xff] %v4485
      %4490 = vst [vmem:[#allocation13 + $0x178] sm:$0xff] %v4486
      %v4491 = vld [vmem:[#allocation6 + $0x8] sm:$0xff]
      %v4492 = vld [vmem:[#allocation6 + $0x10] sm:$0xff]
      %v4493 = vld [vmem:[#allocation6 + $0x18] sm:$0xff]
      %v4494 = vld [vmem:[%s1668] ss:$8 sm:$0x3]
      %v4496 = vperm.slane %v4494, 0
      %v4497 = vperm.slane %v4494, 1
      %4498 = vrot.lane.b32.xlu0 %v4496, 34
      %v4499 = vpop.permute.xlu0 %4498
      %4500 = vrot.lane.b32.xlu0 %v4497, 34
      %v4501 = vpop.permute.xlu0 %4500
      %v4502 = vsel %vm802, %v4499, %v4501
      %v4506 = vmul.f32 %v4491, %v4499
      %v4507 = vmul.f32 %v4492, %v4502
      %v4508 = vmul.f32 %v4493, %v4501
      %4512 = vrot.lane.b32.xlu0 %v4506, 94
      %v4513 = vpop.permute.xlu0 %4512
      %4514 = vrot.lane.b32.xlu0 %v4507, 94
      %v4515 = vpop.permute.xlu0 %4514
      %4516 = vrot.lane.b32.xlu0 %v4508, 94
      %v4517 = vpop.permute.xlu0 %4516
      %v4518 = vsel %vm782, %v4513, %v4515
      %v4519 = vsel %vm782, %v4515, %v4517
      %4522 = vst [vmem:[#allocation13 + $0x180] sm:$0xff] %v4518
      %4523 = vst [vmem:[#allocation13 + $0x188] sm:$0xff] %v4519
      %v4524 = vld [vmem:[%s13] sm:$0xf]
      %v4525 = vld [vmem:[#allocation13] sm:$0xff]
      %v4526 = vld [vmem:[#allocation13 + $0x8] sm:$0xff]
      %v4527 = vld [vmem:[#allocation13 + $0x10] sm:$0xff]
      %v4528 = vld [vmem:[#allocation13 + $0x18] sm:$0xff]
      %v4529 = vld [vmem:[#allocation13 + $0x20] sm:$0xff]
      %v4530 = vld [vmem:[#allocation13 + $0x28] sm:$0xff]
      %v4531 = vld [vmem:[#allocation13 + $0x30] sm:$0xff]
      %v4532 = vld [vmem:[#allocation13 + $0x38] sm:$0xff]
      %v4533 = vld [vmem:[#allocation13 + $0x40] sm:$0xff]
      %v4534 = vld [vmem:[#allocation13 + $0x48] sm:$0xff]
      %v4535 = vld [vmem:[#allocation13 + $0x50] sm:$0xff]
      %v4536 = vld [vmem:[#allocation13 + $0x58] sm:$0xff]
      %v4537 = vld [vmem:[#allocation13 + $0x60] sm:$0xff]
      %v4538 = vld [vmem:[#allocation13 + $0x68] sm:$0xff]
      %v4539 = vld [vmem:[#allocation13 + $0x70] sm:$0xff]
      %v4540 = vld [vmem:[#allocation13 + $0x78] sm:$0xff]
      %v4541 = vld [vmem:[#allocation13 + $0x80] sm:$0xff]
      %v4542 = vld [vmem:[#allocation13 + $0x88] sm:$0xff]
      %v4543 = vld [vmem:[#allocation13 + $0x90] sm:$0xff]
      %v4544 = vld [vmem:[#allocation13 + $0x98] sm:$0xff]
      %v4545 = vld [vmem:[#allocation13 + $0xa0] sm:$0xff]
      %v4546 = vld [vmem:[#allocation13 + $0xa8] sm:$0xff]
      %v4547 = vld [vmem:[#allocation13 + $0xb0] sm:$0xff]
      %v4548 = vld [vmem:[#allocation13 + $0xb8] sm:$0xff]
      %v4549 = vld [vmem:[#allocation13 + $0xc0] sm:$0xff]
      %v4550 = vld [vmem:[#allocation13 + $0xc8] sm:$0xff]
      %v4551 = vld [vmem:[#allocation13 + $0xd0] sm:$0xff]
      %v4552 = vld [vmem:[#allocation13 + $0xd8] sm:$0xff]
      %v4553 = vld [vmem:[#allocation13 + $0xe0] sm:$0xff]
      %v4554 = vld [vmem:[#allocation13 + $0xe8] sm:$0xff]
      %v4555 = vld [vmem:[#allocation13 + $0xf0] sm:$0xff]
      %v4556 = vld [vmem:[#allocation13 + $0xf8] sm:$0xff]
      %v4557 = vld [vmem:[#allocation13 + $0x100] sm:$0xff]
      %v4558 = vld [vmem:[#allocation13 + $0x108] sm:$0xff]
      %v4559 = vld [vmem:[#allocation13 + $0x110] sm:$0xff]
      %v4560 = vld [vmem:[#allocation13 + $0x118] sm:$0xff]
      %v4561 = vld [vmem:[#allocation13 + $0x120] sm:$0xff]
      %v4562 = vld [vmem:[#allocation13 + $0x128] sm:$0xff]
      %v4563 = vld [vmem:[#allocation13 + $0x130] sm:$0xff]
      %v4564 = vld [vmem:[#allocation13 + $0x138] sm:$0xff]
      %v4565 = vld [vmem:[#allocation13 + $0x140] sm:$0xff]
      %v4566 = vld [vmem:[#allocation13 + $0x148] sm:$0xff]
      %v4567 = vld [vmem:[#allocation13 + $0x150] sm:$0xff]
      %v4568 = vld [vmem:[#allocation13 + $0x158] sm:$0xff]
      %v4569 = vld [vmem:[#allocation13 + $0x160] sm:$0xff]
      %v4570 = vld [vmem:[#allocation13 + $0x168] sm:$0xff]
      %v4571 = vld [vmem:[#allocation13 + $0x170] sm:$0xff]
      %v4572 = vld [vmem:[#allocation13 + $0x178] sm:$0xff]
      %v4573 = vld [vmem:[#allocation13 + $0x180] sm:$0xff]
      %v4574 = vld [vmem:[#allocation13 + $0x188] sm:$0xff]
      %v4575 = vpack.c.bf16 %v4527, %v4525
      %v4576 = vpack.c.bf16 %v4528, %v4526
      %v4577 = vpack.c.bf16 %v4531, %v4529
      %v4578 = vpack.c.bf16 %v4532, %v4530
      %v4579 = vpack.c.bf16 %v4535, %v4533
      %v4580 = vpack.c.bf16 %v4536, %v4534
      %v4581 = vpack.c.bf16 %v4539, %v4537
      %v4582 = vpack.c.bf16 %v4540, %v4538
      %v4583 = vpack.c.bf16 %v4543, %v4541
      %v4584 = vpack.c.bf16 %v4544, %v4542
      %v4585 = vpack.c.bf16 %v4547, %v4545
      %v4586 = vpack.c.bf16 %v4548, %v4546
      %v4587 = vpack.c.bf16 %v4551, %v4549
      %v4588 = vpack.c.bf16 %v4552, %v4550
      %v4589 = vpack.c.bf16 %v4555, %v4553
      %v4590 = vpack.c.bf16 %v4556, %v4554
      %v4591 = vpack.c.bf16 %v4559, %v4557
      %v4592 = vpack.c.bf16 %v4560, %v4558
      %v4593 = vpack.c.bf16 %v4563, %v4561
      %v4594 = vpack.c.bf16 %v4564, %v4562
      %v4595 = vpack.c.bf16 %v4567, %v4565
      %v4596 = vpack.c.bf16 %v4568, %v4566
      %v4597 = vpack.c.bf16 %v4571, %v4569
      %v4598 = vpack.c.bf16 %v4572, %v4570
      %v4599 = vpack.c.bf16 %v4573, %v4573
      %v4600 = vpack.c.bf16 %v4574, %v4574
      %v4601 = vld [vmem:[%s14] sm:$0xf]
      %4603 = vset.pattern.permute.xlu0 0
      %4604 = vperm.xlu0 %4603, %v4601
      %v4605 = vpop.permute.xlu0 %4604
      %4608 = vst [vmem:[#allocation1] ss:$4 sm:$0xff] %v4524
      %v4609 = vld.sshfl [vmem:[#allocation1] sm:$0xff pattern:$0x73625140]
      %v4610 = vld.sshfl [vmem:[#allocation1 + $0x8] sm:$0xff pattern:$0x73625140]
      %v4612 = vsel %vm2161, %v4610, 0
      %v4615 = vsel %vm777, %v4599, 0
      %v4618 = vsel %vm777, %v4600, 0
      %4620 = vmatpush.bf16.msra.mxu0 %v4589
      %4621 = vmatpush.bf16.msra.mxu0 %v4587
      %4622 = vmatpush.bf16.msra.mxu0 %v4585
      %4623 = vmatpush.bf16.msra.mxu0 %v4583
      %4624 = vmatpush.bf16.msra.mxu0 %v4581
      %4625 = vmatpush.bf16.msra.mxu0 %v4579
      %4626 = vmatpush.bf16.msra.mxu0 %v4577
      %4627 = vmatpush.bf16.msra.mxu0 %v4575
      %4628 = vmatmul.bf16.gmra.mxu0 %v4609
      %v4629 = vpop.f32.mrf.mxu0
      %v4630 = vadd.f32 %v4605, %v4629
      %v4631 = vpop.f32.mrf.mxu0
      %4632 = vdwg.mxu0
      %4633 = vmatpush.bf16.msra.mxu0 0
      %4634 = vmatpush.bf16.msra.mxu0 0
      %4635 = vmatpush.bf16.msra.mxu0 0
      %4636 = vmatpush.bf16.msra.mxu0 %v4615
      %4637 = vmatpush.bf16.msra.mxu0 %v4597
      %4638 = vmatpush.bf16.msra.mxu0 %v4595
      %4639 = vmatpush.bf16.msra.mxu0 %v4593
      %4640 = vmatpush.bf16.msra.mxu0 %v4591
      %4641 = vmatmul.bf16.gmra.mxu0 %v4612
      %v4642 = vpop.f32.mrf.mxu0
      %v4643 = vadd.f32 %v4630, %v4642
      %v4644 = vpop.f32.mrf.mxu0
      %4645 = vdwg.mxu0
      %4646 = vmatpush.bf16.msra.mxu0 %v4590
      %4647 = vmatpush.bf16.msra.mxu0 %v4588
      %4648 = vmatpush.bf16.msra.mxu0 %v4586
      %4649 = vmatpush.bf16.msra.mxu0 %v4584
      %4650 = vmatpush.bf16.msra.mxu0 %v4582
      %4651 = vmatpush.bf16.msra.mxu0 %v4580
      %4652 = vmatpush.bf16.msra.mxu0 %v4578
      %4653 = vmatpush.bf16.msra.mxu0 %v4576
      %4654 = vmatmul.bf16.gmra.mxu0 %v4609
      %v4655 = vpop.f32.mrf.mxu0
      %v4656 = vadd.f32 %v4605, %v4655
      %v4657 = vpop.f32.mrf.mxu0
      %4658 = vdwg.mxu0
      %4659 = vmatpush.bf16.msra.mxu0 0
      %4660 = vmatpush.bf16.msra.mxu0 0
      %4661 = vmatpush.bf16.msra.mxu0 0
      %4662 = vmatpush.bf16.msra.mxu0 %v4618
      %4663 = vmatpush.bf16.msra.mxu0 %v4598
      %4664 = vmatpush.bf16.msra.mxu0 %v4596
      %4665 = vmatpush.bf16.msra.mxu0 %v4594
      %4666 = vmatpush.bf16.msra.mxu0 %v4592
      %4667 = vmatmul.bf16.gmra.mxu0 %v4612
      %v4668 = vpop.f32.mrf.mxu0
      %v4669 = vadd.f32 %v4656, %v4668
      %v4670 = vpop.f32.mrf.mxu0
      %4671 = vdwg.mxu0
      %v4672 = vxor.u32 %v4643, 2147483648
      %v4673 = vxor.u32 %v4669, 2147483648
      %v4674 = vmul.f32 %v4672, 1.442695
      %v4675 = vpow.pop %v4674
      %v4676 = vmul.f32 %v4673, 1.442695
      %v4677 = vpow.pop %v4676
      %v4678 = vadd.f32 %v4675, 1.0
      %v4679 = vadd.f32 %v4677, 1.0
      %v4680 = vrcp.pop %v4678
      %v4681 = vmul.f32 %v4678, %v4680
      %v4682 = vsub.f32 1.0, %v4681
      %v4683 = vmul.f32 %v4680, %v4682
      %v4684 = vadd.f32 %v4680, %v4683
      %vm4685 = vweird.f32 %v4678
      %vm4686 = vweird.f32 %v4680
      %vm4687 = vmor %vm4685, %vm4686
      %v4688 = vsel %vm4687, %v4680, %v4684
      %v4689 = vand.u32 2147483647, %v4678
      %vm4690 = vcmp.eq.f32.partialorder %v4689, 8.507059e+37
      %v4691 = vand.u32 %v4678, 2147483648
      %v4692 = vor.u32 1.1754944e-38, %v4691
      %v4693 = vsel %vm4690, %v4692, %v4688
      %v4694 = vmul.f32 1.0, %v4693
      %v4695 = vrcp.pop %v4679
      %v4696 = vmul.f32 %v4679, %v4695
      %v4697 = vsub.f32 1.0, %v4696
      %v4698 = vmul.f32 %v4695, %v4697
      %v4699 = vadd.f32 %v4695, %v4698
      %vm4700 = vweird.f32 %v4679
      %vm4701 = vweird.f32 %v4695
      %vm4702 = vmor %vm4700, %vm4701
      %v4703 = vsel %vm4702, %v4695, %v4699
      %v4704 = vand.u32 2147483647, %v4679
      %vm4705 = vcmp.eq.f32.partialorder %v4704, 8.507059e+37
      %v4706 = vand.u32 %v4679, 2147483648
      %v4707 = vor.u32 1.1754944e-38, %v4706
      %v4708 = vsel %vm4705, %v4707, %v4703
      %v4709 = vmul.f32 1.0, %v4708
      %v4712 = vrot.slane %v4709, 4
      %v4713 = vsel %vm777, %v4694, %v4712
      %4715 = vst [vmem:[%s764] sm:$0xff] %v4713
      %p4716 = scmp.lt.s32.totalorder %s36, 1
      %s4717 = scalar_select %p4716, %s36, 1
      %s4718 = smul.addr %s4717, 2
      %s4719 = smul.addr %s4718, 4
      %s4720 = scalar_lea.vmem %s25, %s4719
      // Predicated region
      $region121: #{autoencoder_forward.1} parent=119 // pred_check
        %p4721 = pneg %p584
      $region122: #{autoencoder_forward.1} parent=119 // pred_check_branch
        %4723 = sbr.rel (%p4721) target = $region124
      $region123: #{autoencoder_forward.1} parent=119 // pred_region
        _
      $region124: #{autoencoder_forward.1} parent=119 // pred_fallthru
        _
    $region120: #{autoencoder_forward.1} parent=5 // pred_fallthru
      _
    %p4724 = scmp.le.s32.totalorder 2, %s31
    // Predicated region
    $region125: #{autoencoder_forward.1} parent=5 // pred_check
      %p4725 = pneg %p4724
    $region126: #{autoencoder_forward.1} parent=5 // pred_check_branch
      %4727 = sbr.rel (%p4725) target = $region128
    $region127: #{autoencoder_forward.1} parent=5 // pred_region
      %s4728 = ssub.s32 %s31, 2
      // Predicated region
      $region129: #{autoencoder_forward.1} parent=127 // pred_check
        %p4729 = pneg %p590
      $region130: #{autoencoder_forward.1} parent=127 // pred_check_branch
        %4731 = sbr.rel (%p4729) target = $region132
      $region131: #{autoencoder_forward.1} parent=127 // pred_region
        %p4732 = scmp.lt.s32.totalorder %s37, 1
        %s4733 = scalar_select %p4732, %s37, 1
        %s4734 = smul.addr %s4733, 2
        %s4735 = smul.addr %s4734, 4
        %s4736 = scalar_lea.vmem %s25, %s4735
      $region132: #{autoencoder_forward.1} parent=127 // pred_fallthru
        _
    $region128: #{autoencoder_forward.1} parent=5 // pred_fallthru
      _
  $region6: #{autoencoder_forward.1} parent=0 // loop_footer
    %s35 = sadd.s32 1, %s31
  $region7: #{autoencoder_forward.1} parent=0 // loop_footer_branch
    %30 = sbr.rel target = $region3
  $region8: #{autoencoder_forward.1} parent=0 // loop_exit
    _

</llo_original>
